<compile_context>
chip_gen: v7x
topology: tpu7x:2x2x1
jax: 0.10.0
libtpu: 0.0.40
codegen_flags: <defaults>
</compile_context>

<pallas_src>
import functools

import jax
import jax.numpy as jnp
from jax.experimental import pallas as pl
from jax.experimental.pallas import tpu as pltpu


def _round_up(x, m):
    return ((x + m - 1) // m) * m


def _pick_proj_tile(lp, tb, batch, max_rows=512):
    """Largest multiple of tb that divides lp with batch*tile <= max_rows."""
    tl = tb
    while lp % (tl * 2) == 0 and batch * tl * 2 <= max_rows:
        tl *= 2
    return tl


# ----------------------------------------------------------------------------
# Stage 1a: BatchNorm mean (tiled reduction over time blocks)
# ----------------------------------------------------------------------------
def _bn_mean_kernel(x_ref, mean_ref, *, valid_len, n_valid):
    s = pl.program_id(0)

    @pl.when(s == 0)
    def _():
        mean_ref[...] = jnp.zeros_like(mean_ref)

    b, tl, d = x_ref.shape
    t_idx = s * tl + jax.lax.broadcasted_iota(jnp.int32, (1, tl, 1), 1)
    x = x_ref[...].astype(jnp.float32)
    xm = jnp.where(t_idx < valid_len, x, 0.0)           # mask padded timesteps
    mean_ref[...] += jnp.sum(xm.reshape(b * tl, d), axis=0, keepdims=True)

    @pl.when(s == pl.num_programs(0) - 1)
    def _():
        mean_ref[...] = mean_ref[...] * (1.0 / n_valid)


def _bn_mean(x3, valid_len, n_valid, tl):
    b, lp, d = x3.shape
    kernel = functools.partial(_bn_mean_kernel, valid_len=valid_len,
                               n_valid=n_valid)
    return pl.pallas_call(
        kernel,
        out_shape=jax.ShapeDtypeStruct((1, d), jnp.float32),
        grid_spec=pltpu.PrefetchScalarGridSpec(
            num_scalar_prefetch=0,
            grid=(lp // tl,),
            in_specs=[pl.BlockSpec((b, tl, d), lambda s: (0, s, 0))],
            out_specs=pl.BlockSpec((1, d), lambda s: (0, 0)),
        ),
        compiler_params=pltpu.CompilerParams(
            dimension_semantics=("arbitrary",)),
    )(x3)


# ----------------------------------------------------------------------------
# Stage 1b: BatchNorm rstd from sum((x - mean)^2)  (second pass: no E[x^2]
# cancellation)
# ----------------------------------------------------------------------------
def _bn_rstd_kernel(x_ref, mean_ref, rstd_ref, *, valid_len, n_valid, eps):
    s = pl.program_id(0)

    @pl.when(s == 0)
    def _():
        rstd_ref[...] = jnp.zeros_like(rstd_ref)

    b, tl, d = x_ref.shape
    t_idx = s * tl + jax.lax.broadcasted_iota(jnp.int32, (1, tl, 1), 1)
    xc = x_ref[...].astype(jnp.float32) - mean_ref[...]
    xc = jnp.where(t_idx < valid_len, xc, 0.0)
    rstd_ref[...] += jnp.sum((xc * xc).reshape(b * tl, d),
                             axis=0, keepdims=True)

    @pl.when(s == pl.num_programs(0) - 1)
    def _():
        var = rstd_ref[...] * (1.0 / n_valid)            # biased, as in PyTorch
        rstd_ref[...] = jax.lax.rsqrt(var + eps)


def _bn_rstd(x3, mean, valid_len, n_valid, tl, eps=1e-5):
    b, lp, d = x3.shape
    kernel = functools.partial(_bn_rstd_kernel, valid_len=valid_len,
                               n_valid=n_valid, eps=eps)
    return pl.pallas_call(
        kernel,
        out_shape=jax.ShapeDtypeStruct((1, d), jnp.float32),
        grid_spec=pltpu.PrefetchScalarGridSpec(
            num_scalar_prefetch=0,
            grid=(lp // tl,),
            in_specs=[pl.BlockSpec((b, tl, d), lambda s: (0, s, 0)),
                      pl.BlockSpec((1, d), lambda s: (0, 0))],
            out_specs=pl.BlockSpec((1, d), lambda s: (0, 0)),
        ),
        compiler_params=pltpu.CompilerParams(
            dimension_semantics=("arbitrary",)),
    )(x3, mean)


# ----------------------------------------------------------------------------
# Stage 2: BatchNorm normalize fused with the hoisted input projection for
# both directions / all three gates, written directly into the time-padded
# (B, Lp, 3*Hp) layout (padded timesteps are zeroed AFTER normalization so
# their gate inputs are exactly zero).
# ----------------------------------------------------------------------------
def _bn_project_kernel(x_ref, mean_ref, rstd_ref, gamma_ref, beta_ref, w_ref,
                       gif_ref, gib_ref, *, valid_len):
    s = pl.program_id(0)
    b, tl, d = x_ref.shape
    g = gif_ref.shape[-1]

    t_idx = s * tl + jax.lax.broadcasted_iota(jnp.int32, (1, tl, 1), 1)
    x = x_ref[...].astype(jnp.float32)
    xn = (x - mean_ref[...]) * rstd_ref[...] * gamma_ref[...] + beta_ref[...]
    xn = jnp.where(t_idx < valid_len, xn, 0.0)           # zero padded timesteps
    xn2 = xn.reshape(b * tl, d).astype(w_ref.dtype)

    # one lane-dense GEMM for both directions: (rows, D) @ (D, 6*Hp)
    res = jnp.dot(xn2, w_ref[...], preferred_element_type=jnp.float32)
    gif_ref[...] = res[:, :g].reshape(b, tl, g).astype(gif_ref.dtype)
    gib_ref[...] = res[:, g:].reshape(b, tl, g).astype(gib_ref.dtype)


def _bn_project(x3, mean, rstd, gamma, beta, w_ih, valid_len, tl, out_dtype):
    b, lp, d = x3.shape
    g6 = w_ih.shape[1]
    g = g6 // 2
    kernel = functools.partial(_bn_project_kernel, valid_len=valid_len)
    return pl.pallas_call(
        kernel,
        out_shape=(jax.ShapeDtypeStruct((b, lp, g), out_dtype),
                   jax.ShapeDtypeStruct((b, lp, g), out_dtype)),
        grid_spec=pltpu.PrefetchScalarGridSpec(
            num_scalar_prefetch=0,
            grid=(lp // tl,),
            in_specs=[
                pl.BlockSpec((b, tl, d), lambda s: (0, s, 0)),
                pl.BlockSpec((1, d), lambda s: (0, 0)),
                pl.BlockSpec((1, d), lambda s: (0, 0)),
                pl.BlockSpec((1, d), lambda s: (0, 0)),
                pl.BlockSpec((1, d), lambda s: (0, 0)),
                pl.BlockSpec((d, g6), lambda s: (0, 0)),
            ],
            out_specs=[pl.BlockSpec((b, tl, g), lambda s: (0, s, 0)),
                       pl.BlockSpec((b, tl, g), lambda s: (0, s, 0))],
        ),
        compiler_params=pltpu.CompilerParams(
            dimension_semantics=("parallel",),
            vmem_limit_bytes=64 * 1024 * 1024),
    )(x3, mean, rstd, gamma, beta, w_ih)


# ----------------------------------------------------------------------------
# Stage 3: bidirectional recurrence.
#   grid = (batch tiles [parallel], time blocks [arbitrary]).
#   Hidden states (bt, Hp) per direction persist in VMEM scratch; W_hh is
#   DMA'd once into a single-buffered VMEM scratch; two separate dots per
#   timestep; per-timestep ref loads/stores.
# ----------------------------------------------------------------------------
def _bigru_kernel(gif_ref, gib_ref, whh_hbm_ref, of_ref, ob_ref,
                  whh_vmem, hf_ref, hb_ref, dma_sem):
    t = pl.program_id(1)
    bt, tb, _ = gif_ref.shape
    hp = of_ref.shape[-1]

    @pl.when(t == 0)
    def _():
        # loop-invariant recurrent weights: single-buffered manual DMA
        cp = pltpu.make_async_copy(whh_hbm_ref, whh_vmem, dma_sem)
        cp.start()
        cp.wait()
        hf_ref[...] = jnp.zeros_like(hf_ref)
        hb_ref[...] = jnp.zeros_like(hb_ref)

    cdt = whh_vmem.dtype
    whh_f = whh_vmem[0]                       # (Hp, 3*Hp)
    whh_b = whh_vmem[1]

    h_f = hf_ref[...]                         # (bt, Hp) float32
    h_b = hb_ref[...]
    for j in range(tb):                       # unrolled over the time block
        gi_f = gif_ref[:, j, :].astype(jnp.float32)            # (bt, 3*Hp)
        gi_b = gib_ref[:, tb - 1 - j, :].astype(jnp.float32)
        gh_f = jnp.dot(h_f.astype(cdt), whh_f,
                       preferred_element_type=jnp.float32)
        gh_b = jnp.dot(h_b.astype(cdt), whh_b,
                       preferred_element_type=jnp.float32)

        r_f = jax.nn.sigmoid(gi_f[:, :hp] + gh_f[:, :hp])
        z_f = jax.nn.sigmoid(gi_f[:, hp:2 * hp] + gh_f[:, hp:2 * hp])
        n_f = jnp.tanh(gi_f[:, 2 * hp:] + r_f * gh_f[:, 2 * hp:])
        h_f = (1.0 - z_f) * n_f + z_f * h_f

        r_b = jax.nn.sigmoid(gi_b[:, :hp] + gh_b[:, :hp])
        z_b = jax.nn.sigmoid(gi_b[:, hp:2 * hp] + gh_b[:, hp:2 * hp])
        n_b = jnp.tanh(gi_b[:, 2 * hp:] + r_b * gh_b[:, 2 * hp:])
        h_b = (1.0 - z_b) * n_b + z_b * h_b

        of_ref[:, j, :] = h_f.astype(of_ref.dtype)
        ob_ref[:, tb - 1 - j, :] = h_b.astype(ob_ref.dtype)

    hf_ref[...] = h_f
    hb_ref[...] = h_b


def _bigru_recurrent(gi_f, gi_b, w_hh, time_block, batch_block, out_dtype):
    b, lp, g = gi_f.shape
    hp = g // 3
    nt = lp // time_block
    nb = b // batch_block
    bt = batch_block
    return pl.pallas_call(
        _bigru_kernel,
        out_shape=(jax.ShapeDtypeStruct((b, lp, hp), out_dtype),
                   jax.ShapeDtypeStruct((b, lp, hp), out_dtype)),
        grid_spec=pltpu.PrefetchScalarGridSpec(
            num_scalar_prefetch=0,
            grid=(nb, nt),
            in_specs=[
                pl.BlockSpec((bt, time_block, g), lambda bi, s: (bi, s, 0)),
                pl.BlockSpec((bt, time_block, g),
                             lambda bi, s: (bi, nt - 1 - s, 0)),
                pl.BlockSpec(memory_space=pl.ANY),        # W_hh stays in HBM
            ],
            out_specs=[
                pl.BlockSpec((bt, time_block, hp), lambda bi, s: (bi, s, 0)),
                pl.BlockSpec((bt, time_block, hp),
                             lambda bi, s: (bi, nt - 1 - s, 0)),
            ],
            scratch_shapes=[
                pltpu.VMEM((2, hp, g), w_hh.dtype),       # single-buffered W_hh
                pltpu.VMEM((bt, hp), jnp.float32),        # h forward
                pltpu.VMEM((bt, hp), jnp.float32),        # h backward
                pltpu.SemaphoreType.DMA(()),
            ],
        ),
        compiler_params=pltpu.CompilerParams(
            dimension_semantics=("parallel", "arbitrary"),
            vmem_limit_bytes=64 * 1024 * 1024),
    )(gi_f, gi_b, w_hh)


# ----------------------------------------------------------------------------
# Parameter packing: PyTorch-layout gate-major weights -> fused, lane-padded
# kernel layout (gate order [r, z, n]).  Weights stored in compute_dtype
# (bfloat16 by default: ~2x MXU throughput, half the weight DMA/VMEM).
# ----------------------------------------------------------------------------
def pack_params(params, compute_dtype=jnp.bfloat16):
    d = params["w_ih_f"].shape[1]
    h = params["w_ih_f"].shape[2]
    hp = _round_up(h, 128)

    def pack_ih(w):      # (3, D, H) -> (D, 3*Hp), zero-padded gate blocks
        out = jnp.zeros((d, 3 * hp), jnp.float32)
        for k in range(3):
            out = out.at[:, k * hp:k * hp + h].set(w[k])
        return out

    def pack_hh(w):      # (3, H, H) -> (Hp, 3*Hp), zero-padded rows/cols
        out = jnp.zeros((hp, 3 * hp), jnp.float32)
        for k in range(3):
            out = out.at[:h, k * hp:k * hp + h].set(w[k])
        return out

    w_ih = jnp.concatenate([pack_ih(params["w_ih_f"]),
                            pack_ih(params["w_ih_b"])], axis=1)   # (D, 6*Hp)
    w_hh = jnp.stack([pack_hh(params["w_hh_f"]),
                      pack_hh(params["w_hh_b"])], axis=0)         # (2, Hp, 3*Hp)
    return {
        "gamma": params["gamma"].astype(jnp.float32),
        "beta": params["beta"].astype(jnp.float32),
        "w_ih": w_ih.astype(compute_dtype),
        "w_hh": w_hh.astype(compute_dtype),
    }


# ----------------------------------------------------------------------------
# Full NormBiGRU forward
# ----------------------------------------------------------------------------
@functools.partial(jax.jit,
                   static_argnames=("hidden_size", "is_batch_norm",
                                    "time_block"))
def norm_bigru_forward(x, packed, hidden_size, is_batch_norm=True,
                       time_block=16):
    # time_block multiple of 16 keeps bf16 gi / output blocks sublane-packed.
    assert time_block % 16 == 0 and time_block > 0
    b, l, d = x.shape
    w_ih = packed["w_ih"]                    # (D, 6*Hp)
    w_hh = packed["w_hh"]                    # (2, Hp, 3*Hp)
    g = w_ih.shape[1] // 2                   # 3*Hp
    act_dtype = w_ih.dtype                   # bf16 (fast) or f32 (exact)

    # Pad time once to a multiple of time_block (D-wide, cheap).  Padded
    # timesteps get exactly-zero gate inputs (masked post-BN in stage 2); with
    # zero gate inputs r=z=0.5, n=0, so h_new = 0.5*0 + 0.5*0 = 0: the hidden
    # state stays zero through the padded tail and the backward direction
    # enters the valid region with h=0, exactly as in the unpadded GRU.
    lp = _round_up(l, time_block)
    x3 = x if lp == l else jnp.pad(x, ((0, 0), (0, lp - l), (0, 0)))

    tl = _pick_proj_tile(lp, time_block, b)
    n_valid = b * l

    if is_batch_norm:
        mean = _bn_mean(x3, l, n_valid, tl)
        rstd = _bn_rstd(x3, mean, l, n_valid, tl)
        gamma, beta = packed["gamma"], packed["beta"]
    else:
        mean = jnp.zeros((1, d), jnp.float32)
        rstd = jnp.ones((1, d), jnp.float32)
        gamma = jnp.ones((1, d), jnp.float32)
        beta = jnp.zeros((1, d), jnp.float32)

    gi_f, gi_b = _bn_project(x3, mean, rstd, gamma, beta, w_ih, l, tl,
                             act_dtype)

    # batch tiles: split in two when possible so the "parallel" grid axis can
    # shard the recurrence across both v7x TensorCores.
    bt = b // 2 if (b % 2 == 0 and b >= 2) else b
    of, ob = _bigru_recurrent(gi_f, gi_b, w_hh, time_block, bt, act_dtype)

    hs = hidden_size
    return (of[:, :l, :hs].astype(jnp.float32)
            + ob[:, :l, :hs].astype(jnp.float32))


# ----------------------------------------------------------------------------
# Pure-JAX reference (for correctness checking only)
# ----------------------------------------------------------------------------
def _gru_dir_ref(x_bld, w_ih, w_hh, reverse):
    b, l, d = x_bld.shape
    h_dim = w_ih.shape[2]
    xs = jnp.transpose(x_bld, (1, 0, 2))
    if reverse:
        xs = xs[::-1]

    def step(h, x_t):
        gi = jnp.einsum("bd,gdh->gbh", x_t, w_ih)
        gh = jnp.einsum("bh,ghk->gbk", h, w_hh)
        r = jax.nn.sigmoid(gi[0] + gh[0])
        z = jax.nn.sigmoid(gi[1] + gh[1])
        n = jnp.tanh(gi[2] + r * gh[2])
        h_new = (1.0 - z) * n + z * h
        return h_new, h_new

    _, ys = jax.lax.scan(step, jnp.zeros((b, h_dim), jnp.float32), xs)
    if reverse:
        ys = ys[::-1]
    return jnp.transpose(ys, (1, 0, 2))


def norm_bigru_ref(x_bld, params, is_batch_norm=True):
    b, l, d = x_bld.shape
    if is_batch_norm:
        xf = x_bld.reshape(b * l, d)
        mean = jnp.mean(xf, axis=0, keepdims=True)
        var = jnp.mean((xf - mean) ** 2, axis=0, keepdims=True)
        xf = (xf - mean) * jax.lax.rsqrt(var + 1e-5)
        xf = xf * params["gamma"] + params["beta"]
        x_bld = xf.reshape(b, l, d)
    of = _gru_dir_ref(x_bld, params["w_ih_f"], params["w_hh_f"], False)
    ob = _gru_dir_ref(x_bld, params["w_ih_b"], params["w_hh_b"], True)
    return of + ob


# ----------------------------------------------------------------------------
def init_params(key, input_size, hidden_size):
    """Deterministic synthetic init matching PyTorch shapes.

    PyTorch nn.GRU stores weight_ih_l0 as (3H, D) in gate order [r, z, n];
    here each direction stores the transposed gate-major form (3, D, H).
    """
    k = 1.0 / jnp.sqrt(hidden_size)
    keys = jax.random.split(key, 4)
    u = lambda kk, shape: jax.random.uniform(kk, shape, jnp.float32, -k, k)
    return {
        "gamma": jnp.ones((1, input_size), jnp.float32),
        "beta": jnp.zeros((1, input_size), jnp.float32),
        "w_ih_f": u(keys[0], (3, input_size, hidden_size)),
        "w_hh_f": u(keys[1], (3, hidden_size, hidden_size)),
        "w_ih_b": u(keys[2], (3, input_size, hidden_size)),
        "w_hh_b": u(keys[3], (3, hidden_size, hidden_size)),
    }


if __name__ == "__main__":
    # batch, seq length (deliberately not a multiple of 16), input, hidden
    B, L, D, H = 2, 12, 16, 32

    root = jax.random.PRNGKey(0)
    k_x, k_p = jax.random.split(root)
    x = jax.random.normal(k_x, (B, L, D), jnp.float32)
    params = init_params(k_p, D, H)

    ref = jax.block_until_ready(norm_bigru_ref(x, params, is_batch_norm=True))

    # exact path (f32 weights/activations) -- tight check
    packed_f32 = pack_params(params, compute_dtype=jnp.float32)
    out_f32 = jax.block_until_ready(
        norm_bigru_forward(x, packed_f32, hidden_size=H, is_batch_norm=True))
    assert out_f32.shape == (B, L, H), out_f32.shape
    err_f32 = float(jnp.max(jnp.abs(out_f32 - ref)))
    assert err_f32 < 1e-3, err_f32

    # optimized path (bf16 weights + bf16 gate-input / output activations)
    packed_bf16 = pack_params(params, compute_dtype=jnp.bfloat16)
    out_bf16 = jax.block_until_ready(
        norm_bigru_forward(x, packed_bf16, hidden_size=H, is_batch_norm=True))
    assert out_bf16.shape == (B, L, H), out_bf16.shape
    err_bf16 = float(jnp.max(jnp.abs(out_bf16 - ref)))
    assert err_bf16 < 5e-2, err_bf16

    print("KERNEL_OK")
</pallas_src>

<mosaic_0001>
module attributes {stable_mosaic.version = 11 : i64} {
  func.func @_bn_rstd_kernel(%arg0: i32, %arg1: memref<2x16x16xf32, #tpu.memory_space<vmem>>, %arg2: memref<1x16xf32, #tpu.memory_space<vmem>>, %arg3: memref<1x16xf32, #tpu.memory_space<vmem>>) attributes {dimension_semantics = [#tpu.dimension_semantics<arbitrary>], iteration_bounds = array<i64: 1>, scalar_prefetch = 0 : i64, scratch_operands = 0 : i64, tpu.core_type = #tpu.core_type<tc>, window_params = [{transform_indices = @transform_0, window_bounds = array<i64: 2, 16, 16>}, {pipeline_mode = #tpu.pipeline_mode<synchronous>, transform_indices = @transform_1, window_bounds = array<i64: 1, 16>}, {pipeline_mode = #tpu.pipeline_mode<synchronous>, transform_indices = @transform_2, window_bounds = array<i64: 1, 16>}]} {
    %c0_i32 = arith.constant 0 : i32
    %0 = arith.cmpi eq, %arg0, %c0_i32 : i32
    %1 = arith.extui %0 : i1 to i32
    %c0_i32_0 = arith.constant 0 : i32
    %2 = arith.cmpi ne, %1, %c0_i32_0 : i32
    scf.if %2 {
      %cst_12 = arith.constant 0.000000e+00 : f32
      %28 = vector.broadcast %cst_12 : f32 to vector<1x16xf32>
      %c0_13 = arith.constant 0 : index
      %c0_14 = arith.constant 0 : index
      %29 = vector.load %arg3[%c0_13, %c0_14] : memref<1x16xf32, #tpu.memory_space<vmem>>, vector<1x16xf32>
      tpu.vector_store %arg3[%c0_13, %c0_14], %28 {strides = array<i32>} : memref<1x16xf32, #tpu.memory_space<vmem>>, vector<1x16xf32>,
    } else {
    }
    %c16_i32 = arith.constant 16 : i32
    %3 = arith.muli %arg0, %c16_i32 : i32
    %4 = tpu.iota {dimensions = array<i32: 1>} : vector<1x16x1xi32>
    %5 = vector.broadcast %3 : i32 to vector<1x16x1xi32>
    %6 = arith.addi %5, %4 : vector<1x16x1xi32>
    %c0 = arith.constant 0 : index
    %c0_1 = arith.constant 0 : index
    %c0_2 = arith.constant 0 : index
    %7 = vector.load %arg1[%c0, %c0_1, %c0_2] : memref<2x16x16xf32, #tpu.memory_space<vmem>>, vector<2x16x16xf32>
    %c0_3 = arith.constant 0 : index
    %c0_4 = arith.constant 0 : index
    %8 = vector.load %arg2[%c0_3, %c0_4] : memref<1x16xf32, #tpu.memory_space<vmem>>, vector<1x16xf32>
    %9 = vector.shape_cast %8 : vector<1x16xf32> to vector<1x1x16xf32>
    %10 = vector.broadcast %9 : vector<1x1x16xf32> to vector<2x16x16xf32>
    %11 = arith.subf %7, %10 : vector<2x16x16xf32>
    %c12_i32 = arith.constant 12 : i32
    %12 = vector.broadcast %c12_i32 : i32 to vector<1x16x1xi32>
    %13 = arith.cmpi slt, %6, %12 : vector<1x16x1xi32>
    %cst = arith.constant 0.000000e+00 : f32
    %14 = vector.shape_cast %13 : vector<1x16x1xi1> to vector<1x16x1xi1>
    %15 = vector.broadcast %14 : vector<1x16x1xi1> to vector<2x16x16xi1>
    %16 = vector.broadcast %cst : f32 to vector<2x16x16xf32>
    %17 = arith.select %15, %11, %16 : vector<2x16x16xi1>, vector<2x16x16xf32>
    %c0_5 = arith.constant 0 : index
    %c0_6 = arith.constant 0 : index
    %18 = vector.load %arg3[%c0_5, %c0_6] : memref<1x16xf32, #tpu.memory_space<vmem>>, vector<1x16xf32>
    %19 = arith.mulf %17, %17 : vector<2x16x16xf32>
    %20 = vector.shape_cast %19 : vector<2x16x16xf32> to vector<32x16xf32>
    %cst_7 = arith.constant dense<0.000000e+00> : vector<16xf32>
    %21 = vector.multi_reduction <add>, %20, %cst_7 [0] : vector<32x16xf32> to vector<16xf32>
    %22 = vector.shape_cast %21 : vector<16xf32> to vector<1x16xf32>
    %23 = arith.addf %18, %22 : vector<1x16xf32>
    %c0_8 = arith.constant 0 : index
    %c0_9 = arith.constant 0 : index
    %24 = vector.load %arg3[%c0_8, %c0_9] : memref<1x16xf32, #tpu.memory_space<vmem>>, vector<1x16xf32>
    tpu.vector_store %arg3[%c0_8, %c0_9], %23 {strides = array<i32>} : memref<1x16xf32, #tpu.memory_space<vmem>>, vector<1x16xf32>,
    %c0_i32_10 = arith.constant 0 : i32
    %25 = arith.cmpi eq, %arg0, %c0_i32_10 : i32
    %26 = arith.extui %25 : i1 to i32
    %c0_i32_11 = arith.constant 0 : i32
    %27 = arith.cmpi ne, %26, %c0_i32_11 : i32
    scf.if %27 {
      %c0_12 = arith.constant 0 : index
      %c0_13 = arith.constant 0 : index
      %28 = vector.load %arg3[%c0_12, %c0_13] : memref<1x16xf32, #tpu.memory_space<vmem>>, vector<1x16xf32>
      %cst_14 = arith.constant 0.0416666679 : f32
      %29 = vector.broadcast %cst_14 : f32 to vector<1x16xf32>
      %30 = arith.mulf %28, %29 : vector<1x16xf32>
      %cst_15 = arith.constant 9.99999974E-6 : f32
      %31 = vector.broadcast %cst_15 : f32 to vector<1x16xf32>
      %32 = arith.addf %30, %31 : vector<1x16xf32>
      %33 = math.rsqrt %32 : vector<1x16xf32>
      %c0_16 = arith.constant 0 : index
      %c0_17 = arith.constant 0 : index
      %34 = vector.load %arg3[%c0_16, %c0_17] : memref<1x16xf32, #tpu.memory_space<vmem>>, vector<1x16xf32>
      tpu.vector_store %arg3[%c0_16, %c0_17], %33 {strides = array<i32>} : memref<1x16xf32, #tpu.memory_space<vmem>>, vector<1x16xf32>,
    } else {
    }
    return
  }
  func.func @transform_0(%arg0: i32) -> (i32, i32, i32) {
    %c0_i32 = arith.constant 0 : i32
    %c0_i32_0 = arith.constant 0 : i32
    %c0_i32_1 = arith.constant 0 : i32
    return %c0_i32, %arg0, %c0_i32_0 : i32, i32, i32
  }
  func.func @transform_1(%arg0: i32) -> (i32, i32) {
    %c0_i32 = arith.constant 0 : i32
    %c0_i32_0 = arith.constant 0 : i32
    %c0_i32_1 = arith.constant 0 : i32
    return %c0_i32, %c0_i32_0 : i32, i32
  }
  func.func @transform_2(%arg0: i32) -> (i32, i32) {
    %c0_i32 = arith.constant 0 : i32
    %c0_i32_0 = arith.constant 0 : i32
    %c0_i32_1 = arith.constant 0 : i32
    return %c0_i32, %c0_i32_0 : i32, i32
  }
}

module attributes {stable_mosaic.version = 11 : i64} {
  func.func @_bn_mean_kernel(%arg0: i32, %arg1: memref<2x16x16xf32, #tpu.memory_space<vmem>>, %arg2: memref<1x16xf32, #tpu.memory_space<vmem>>) attributes {dimension_semantics = [#tpu.dimension_semantics<arbitrary>], iteration_bounds = array<i64: 1>, scalar_prefetch = 0 : i64, scratch_operands = 0 : i64, tpu.core_type = #tpu.core_type<tc>, window_params = [{transform_indices = @transform_0, window_bounds = array<i64: 2, 16, 16>}, {pipeline_mode = #tpu.pipeline_mode<synchronous>, transform_indices = @transform_1, window_bounds = array<i64: 1, 16>}]} {
    %c0_i32 = arith.constant 0 : i32
    %0 = arith.cmpi eq, %arg0, %c0_i32 : i32
    %1 = arith.extui %0 : i1 to i32
    %c0_i32_0 = arith.constant 0 : i32
    %2 = arith.cmpi ne, %1, %c0_i32_0 : i32
    scf.if %2 {
      %cst_10 = arith.constant 0.000000e+00 : f32
      %23 = vector.broadcast %cst_10 : f32 to vector<1x16xf32>
      %c0_11 = arith.constant 0 : index
      %c0_12 = arith.constant 0 : index
      %24 = vector.load %arg2[%c0_11, %c0_12] : memref<1x16xf32, #tpu.memory_space<vmem>>, vector<1x16xf32>
      tpu.vector_store %arg2[%c0_11, %c0_12], %23 {strides = array<i32>} : memref<1x16xf32, #tpu.memory_space<vmem>>, vector<1x16xf32>,
    } else {
    }
    %c16_i32 = arith.constant 16 : i32
    %3 = arith.muli %arg0, %c16_i32 : i32
    %4 = tpu.iota {dimensions = array<i32: 1>} : vector<1x16x1xi32>
    %5 = vector.broadcast %3 : i32 to vector<1x16x1xi32>
    %6 = arith.addi %5, %4 : vector<1x16x1xi32>
    %c0 = arith.constant 0 : index
    %c0_1 = arith.constant 0 : index
    %c0_2 = arith.constant 0 : index
    %7 = vector.load %arg1[%c0, %c0_1, %c0_2] : memref<2x16x16xf32, #tpu.memory_space<vmem>>, vector<2x16x16xf32>
    %c12_i32 = arith.constant 12 : i32
    %8 = vector.broadcast %c12_i32 : i32 to vector<1x16x1xi32>
    %9 = arith.cmpi slt, %6, %8 : vector<1x16x1xi32>
    %cst = arith.constant 0.000000e+00 : f32
    %10 = vector.shape_cast %9 : vector<1x16x1xi1> to vector<1x16x1xi1>
    %11 = vector.broadcast %10 : vector<1x16x1xi1> to vector<2x16x16xi1>
    %12 = vector.broadcast %cst : f32 to vector<2x16x16xf32>
    %13 = arith.select %11, %7, %12 : vector<2x16x16xi1>, vector<2x16x16xf32>
    %c0_3 = arith.constant 0 : index
    %c0_4 = arith.constant 0 : index
    %14 = vector.load %arg2[%c0_3, %c0_4] : memref<1x16xf32, #tpu.memory_space<vmem>>, vector<1x16xf32>
    %15 = vector.shape_cast %13 : vector<2x16x16xf32> to vector<32x16xf32>
    %cst_5 = arith.constant dense<0.000000e+00> : vector<16xf32>
    %16 = vector.multi_reduction <add>, %15, %cst_5 [0] : vector<32x16xf32> to vector<16xf32>
    %17 = vector.shape_cast %16 : vector<16xf32> to vector<1x16xf32>
    %18 = arith.addf %14, %17 : vector<1x16xf32>
    %c0_6 = arith.constant 0 : index
    %c0_7 = arith.constant 0 : index
    %19 = vector.load %arg2[%c0_6, %c0_7] : memref<1x16xf32, #tpu.memory_space<vmem>>, vector<1x16xf32>
    tpu.vector_store %arg2[%c0_6, %c0_7], %18 {strides = array<i32>} : memref<1x16xf32, #tpu.memory_space<vmem>>, vector<1x16xf32>,
    %c0_i32_8 = arith.constant 0 : i32
    %20 = arith.cmpi eq, %arg0, %c0_i32_8 : i32
    %21 = arith.extui %20 : i1 to i32
    %c0_i32_9 = arith.constant 0 : i32
    %22 = arith.cmpi ne, %21, %c0_i32_9 : i32
    scf.if %22 {
      %c0_10 = arith.constant 0 : index
      %c0_11 = arith.constant 0 : index
      %23 = vector.load %arg2[%c0_10, %c0_11] : memref<1x16xf32, #tpu.memory_space<vmem>>, vector<1x16xf32>
      %cst_12 = arith.constant 0.0416666679 : f32
      %24 = vector.broadcast %cst_12 : f32 to vector<1x16xf32>
      %25 = arith.mulf %23, %24 : vector<1x16xf32>
      %c0_13 = arith.constant 0 : index
      %c0_14 = arith.constant 0 : index
      %26 = vector.load %arg2[%c0_13, %c0_14] : memref<1x16xf32, #tpu.memory_space<vmem>>, vector<1x16xf32>
      tpu.vector_store %arg2[%c0_13, %c0_14], %25 {strides = array<i32>} : memref<1x16xf32, #tpu.memory_space<vmem>>, vector<1x16xf32>,
    } else {
    }
    return
  }
  func.func @transform_0(%arg0: i32) -> (i32, i32, i32) {
    %c0_i32 = arith.constant 0 : i32
    %c0_i32_0 = arith.constant 0 : i32
    %c0_i32_1 = arith.constant 0 : i32
    return %c0_i32, %arg0, %c0_i32_0 : i32, i32, i32
  }
  func.func @transform_1(%arg0: i32) -> (i32, i32) {
    %c0_i32 = arith.constant 0 : i32
    %c0_i32_0 = arith.constant 0 : i32
    %c0_i32_1 = arith.constant 0 : i32
    return %c0_i32, %c0_i32_0 : i32, i32
  }
}

module attributes {stable_mosaic.version = 11 : i64} {
  func.func @_bn_project_kernel(%arg0: i32, %arg1: memref<2x16x16xf32, #tpu.memory_space<vmem>>, %arg2: memref<1x16xf32, #tpu.memory_space<vmem>>, %arg3: memref<1x16xf32, #tpu.memory_space<vmem>>, %arg4: memref<1x16xf32, #tpu.memory_space<vmem>>, %arg5: memref<1x16xf32, #tpu.memory_space<vmem>>, %arg6: memref<16x768xf32, #tpu.memory_space<vmem>>, %arg7: memref<2x16x384xf32, #tpu.memory_space<vmem>>, %arg8: memref<2x16x384xf32, #tpu.memory_space<vmem>>) attributes {dimension_semantics = [#tpu.dimension_semantics<parallel>], iteration_bounds = array<i64: 1>, scalar_prefetch = 0 : i64, scratch_operands = 0 : i64, tpu.core_type = #tpu.core_type<tc>, window_params = [{transform_indices = @transform_0, window_bounds = array<i64: 2, 16, 16>}, {pipeline_mode = #tpu.pipeline_mode<synchronous>, transform_indices = @transform_1, window_bounds = array<i64: 1, 16>}, {pipeline_mode = #tpu.pipeline_mode<synchronous>, transform_indices = @transform_2, window_bounds = array<i64: 1, 16>}, {pipeline_mode = #tpu.pipeline_mode<synchronous>, transform_indices = @transform_3, window_bounds = array<i64: 1, 16>}, {pipeline_mode = #tpu.pipeline_mode<synchronous>, transform_indices = @transform_4, window_bounds = array<i64: 1, 16>}, {pipeline_mode = #tpu.pipeline_mode<synchronous>, transform_indices = @transform_5, window_bounds = array<i64: 16, 768>}, {transform_indices = @transform_6, window_bounds = array<i64: 2, 16, 384>}, {transform_indices = @transform_7, window_bounds = array<i64: 2, 16, 384>}]} {
    %c16_i32 = arith.constant 16 : i32
    %0 = arith.muli %arg0, %c16_i32 : i32
    %1 = tpu.iota {dimensions = array<i32: 1>} : vector<1x16x1xi32>
    %2 = vector.broadcast %0 : i32 to vector<1x16x1xi32>
    %3 = arith.addi %2, %1 : vector<1x16x1xi32>
    %c0 = arith.constant 0 : index
    %c0_0 = arith.constant 0 : index
    %c0_1 = arith.constant 0 : index
    %4 = vector.load %arg1[%c0, %c0_0, %c0_1] : memref<2x16x16xf32, #tpu.memory_space<vmem>>, vector<2x16x16xf32>
    %c0_2 = arith.constant 0 : index
    %c0_3 = arith.constant 0 : index
    %5 = vector.load %arg2[%c0_2, %c0_3] : memref<1x16xf32, #tpu.memory_space<vmem>>, vector<1x16xf32>
    %6 = vector.shape_cast %5 : vector<1x16xf32> to vector<1x1x16xf32>
    %7 = vector.broadcast %6 : vector<1x1x16xf32> to vector<2x16x16xf32>
    %8 = arith.subf %4, %7 : vector<2x16x16xf32>
    %c0_4 = arith.constant 0 : index
    %c0_5 = arith.constant 0 : index
    %9 = vector.load %arg3[%c0_4, %c0_5] : memref<1x16xf32, #tpu.memory_space<vmem>>, vector<1x16xf32>
    %10 = vector.shape_cast %9 : vector<1x16xf32> to vector<1x1x16xf32>
    %11 = vector.broadcast %10 : vector<1x1x16xf32> to vector<2x16x16xf32>
    %12 = arith.mulf %8, %11 : vector<2x16x16xf32>
    %c0_6 = arith.constant 0 : index
    %c0_7 = arith.constant 0 : index
    %13 = vector.load %arg4[%c0_6, %c0_7] : memref<1x16xf32, #tpu.memory_space<vmem>>, vector<1x16xf32>
    %14 = vector.shape_cast %13 : vector<1x16xf32> to vector<1x1x16xf32>
    %15 = vector.broadcast %14 : vector<1x1x16xf32> to vector<2x16x16xf32>
    %16 = arith.mulf %12, %15 : vector<2x16x16xf32>
    %c0_8 = arith.constant 0 : index
    %c0_9 = arith.constant 0 : index
    %17 = vector.load %arg5[%c0_8, %c0_9] : memref<1x16xf32, #tpu.memory_space<vmem>>, vector<1x16xf32>
    %18 = vector.shape_cast %17 : vector<1x16xf32> to vector<1x1x16xf32>
    %19 = vector.broadcast %18 : vector<1x1x16xf32> to vector<2x16x16xf32>
    %20 = arith.addf %16, %19 : vector<2x16x16xf32>
    %c12_i32 = arith.constant 12 : i32
    %21 = vector.broadcast %c12_i32 : i32 to vector<1x16x1xi32>
    %22 = arith.cmpi slt, %3, %21 : vector<1x16x1xi32>
    %cst = arith.constant 0.000000e+00 : f32
    %23 = vector.shape_cast %22 : vector<1x16x1xi1> to vector<1x16x1xi1>
    %24 = vector.broadcast %23 : vector<1x16x1xi1> to vector<2x16x16xi1>
    %25 = vector.broadcast %cst : f32 to vector<2x16x16xf32>
    %26 = arith.select %24, %20, %25 : vector<2x16x16xi1>, vector<2x16x16xf32>
    %27 = vector.shape_cast %26 : vector<2x16x16xf32> to vector<32x16xf32>
    %c0_10 = arith.constant 0 : index
    %c0_11 = arith.constant 0 : index
    %28 = vector.load %arg6[%c0_10, %c0_11] : memref<16x768xf32, #tpu.memory_space<vmem>>, vector<16x768xf32>
    %cst_12 = arith.constant dense<0.000000e+00> : vector<32x768xf32>
    %29 = tpu.matmul %27, %28, %cst_12 {dimension_numbers = #tpu.dot_dimension_numbers<[1], [0], [0], [1], [0, 0, 1, 1], [], []>} : vector<32x16xf32>, vector<16x768xf32>, vector<32x768xf32> -> vector<32x768xf32>
    %30 = vector.extract_strided_slice %29 {offsets = [0, 0], sizes = [32, 384], strides = [1, 1]} : vector<32x768xf32> to vector<32x384xf32>
    %31 = vector.shape_cast %30 : vector<32x384xf32> to vector<2x16x384xf32>
    %c0_13 = arith.constant 0 : index
    %c0_14 = arith.constant 0 : index
    %c0_15 = arith.constant 0 : index
    %32 = vector.load %arg7[%c0_13, %c0_14, %c0_15] : memref<2x16x384xf32, #tpu.memory_space<vmem>>, vector<2x16x384xf32>
    tpu.vector_store %arg7[%c0_13, %c0_14, %c0_15], %31 {strides = array<i32>} : memref<2x16x384xf32, #tpu.memory_space<vmem>>, vector<2x16x384xf32>,
    %33 = vector.extract_strided_slice %29 {offsets = [0, 384], sizes = [32, 384], strides = [1, 1]} : vector<32x768xf32> to vector<32x384xf32>
    %34 = vector.shape_cast %33 : vector<32x384xf32> to vector<2x16x384xf32>
    %c0_16 = arith.constant 0 : index
    %c0_17 = arith.constant 0 : index
    %c0_18 = arith.constant 0 : index
    %35 = vector.load %arg8[%c0_16, %c0_17, %c0_18] : memref<2x16x384xf32, #tpu.memory_space<vmem>>, vector<2x16x384xf32>
    tpu.vector_store %arg8[%c0_16, %c0_17, %c0_18], %34 {strides = array<i32>} : memref<2x16x384xf32, #tpu.memory_space<vmem>>, vector<2x16x384xf32>,
    return
  }
  func.func @transform_0(%arg0: i32) -> (i32, i32, i32) {
    %c0_i32 = arith.constant 0 : i32
    %c0_i32_0 = arith.constant 0 : i32
    %c0_i32_1 = arith.constant 0 : i32
    return %c0_i32, %arg0, %c0_i32_0 : i32, i32, i32
  }
  func.func @transform_1(%arg0: i32) -> (i32, i32) {
    %c0_i32 = arith.constant 0 : i32
    %c0_i32_0 = arith.constant 0 : i32
    %c0_i32_1 = arith.constant 0 : i32
    return %c0_i32, %c0_i32_0 : i32, i32
  }
  func.func @transform_2(%arg0: i32) -> (i32, i32) {
    %c0_i32 = arith.constant 0 : i32
    %c0_i32_0 = arith.constant 0 : i32
    %c0_i32_1 = arith.constant 0 : i32
    return %c0_i32, %c0_i32_0 : i32, i32
  }
  func.func @transform_3(%arg0: i32) -> (i32, i32) {
    %c0_i32 = arith.constant 0 : i32
    %c0_i32_0 = arith.constant 0 : i32
    %c0_i32_1 = arith.constant 0 : i32
    return %c0_i32, %c0_i32_0 : i32, i32
  }
  func.func @transform_4(%arg0: i32) -> (i32, i32) {
    %c0_i32 = arith.constant 0 : i32
    %c0_i32_0 = arith.constant 0 : i32
    %c0_i32_1 = arith.constant 0 : i32
    return %c0_i32, %c0_i32_0 : i32, i32
  }
  func.func @transform_5(%arg0: i32) -> (i32, i32) {
    %c0_i32 = arith.constant 0 : i32
    %c0_i32_0 = arith.constant 0 : i32
    %c0_i32_1 = arith.constant 0 : i32
    return %c0_i32, %c0_i32_0 : i32, i32
  }
  func.func @transform_6(%arg0: i32) -> (i32, i32, i32) {
    %c0_i32 = arith.constant 0 : i32
    %c0_i32_0 = arith.constant 0 : i32
    %c0_i32_1 = arith.constant 0 : i32
    return %c0_i32, %arg0, %c0_i32_0 : i32, i32, i32
  }
  func.func @transform_7(%arg0: i32) -> (i32, i32, i32) {
    %c0_i32 = arith.constant 0 : i32
    %c0_i32_0 = arith.constant 0 : i32
    %c0_i32_1 = arith.constant 0 : i32
    return %c0_i32, %arg0, %c0_i32_0 : i32, i32, i32
  }
}

module attributes {stable_mosaic.version = 11 : i64} {
  func.func @_bigru_kernel(%arg0: i32, %arg1: i32, %arg2: memref<1x16x384xf32, #tpu.memory_space<vmem>>, %arg3: memref<1x16x384xf32, #tpu.memory_space<vmem>>, %arg4: memref<2x128x384xf32, #tpu.memory_space<any>>, %arg5: memref<1x16x128xf32, #tpu.memory_space<vmem>>, %arg6: memref<1x16x128xf32, #tpu.memory_space<vmem>>, %arg7: memref<2x128x384xf32, #tpu.memory_space<vmem>>, %arg8: memref<1x128xf32, #tpu.memory_space<vmem>>, %arg9: memref<1x128xf32, #tpu.memory_space<vmem>>, %arg10: memref<!tpu.dma_semaphore, #tpu.memory_space<semaphore_mem>>) attributes {dimension_semantics = [#tpu.dimension_semantics<parallel>, #tpu.dimension_semantics<arbitrary>], iteration_bounds = array<i64: 2, 1>, scalar_prefetch = 0 : i64, scratch_operands = 4 : i64, tpu.core_type = #tpu.core_type<tc>, window_params = [{transform_indices = @transform_0, window_bounds = array<i64: 1, 16, 384>}, {transform_indices = @transform_1, window_bounds = array<i64: 1, 16, 384>}, {}, {transform_indices = @transform_3, window_bounds = array<i64: 1, 16, 128>}, {transform_indices = @transform_4, window_bounds = array<i64: 1, 16, 128>}]} {
    %c0_i32 = arith.constant 0 : i32
    %0 = arith.cmpi eq, %arg1, %c0_i32 : i32
    %1 = arith.extui %0 : i1 to i32
    %c0_i32_0 = arith.constant 0 : i32
    %2 = arith.cmpi ne, %1, %c0_i32_0 : i32
    scf.if %2 {
      tpu.enqueue_dma source(%arg4 : memref<2x128x384xf32, #tpu.memory_space<any>>) target(%arg7 : memref<2x128x384xf32, #tpu.memory_space<vmem>>) target_semaphore(%arg10 : memref<!tpu.dma_semaphore, #tpu.memory_space<semaphore_mem>>)
      tpu.wait_dma2 semaphore(%arg10 : memref<!tpu.dma_semaphore, #tpu.memory_space<semaphore_mem>>) src(%arg4 : memref<2x128x384xf32, #tpu.memory_space<any>>) dst(%arg7 : memref<2x128x384xf32, #tpu.memory_space<vmem>>)
      %cst_318 = arith.constant 0.000000e+00 : f32
      %1035 = vector.broadcast %cst_318 : f32 to vector<1x128xf32>
      %c0_319 = arith.constant 0 : index
      %c0_320 = arith.constant 0 : index
      %1036 = vector.load %arg8[%c0_319, %c0_320] : memref<1x128xf32, #tpu.memory_space<vmem>>, vector<1x128xf32>
      tpu.vector_store %arg8[%c0_319, %c0_320], %1035 {strides = array<i32>} : memref<1x128xf32, #tpu.memory_space<vmem>>, vector<1x128xf32>,
      %cst_321 = arith.constant 0.000000e+00 : f32
      %1037 = vector.broadcast %cst_321 : f32 to vector<1x128xf32>
      %c0_322 = arith.constant 0 : index
      %c0_323 = arith.constant 0 : index
      %1038 = vector.load %arg9[%c0_322, %c0_323] : memref<1x128xf32, #tpu.memory_space<vmem>>, vector<1x128xf32>
      tpu.vector_store %arg9[%c0_322, %c0_323], %1037 {strides = array<i32>} : memref<1x128xf32, #tpu.memory_space<vmem>>, vector<1x128xf32>,
    } else {
    }
    %c0 = arith.constant 0 : index
    %c0_1 = arith.constant 0 : index
    %c0_2 = arith.constant 0 : index
    %3 = vector.load %arg7[%c0, %c0_1, %c0_2] : memref<2x128x384xf32, #tpu.memory_space<vmem>>, vector<1x128x384xf32>
    %4 = vector.shape_cast %3 : vector<1x128x384xf32> to vector<128x384xf32>
    %c1 = arith.constant 1 : index
    %c0_3 = arith.constant 0 : index
    %c0_4 = arith.constant 0 : index
    %5 = vector.load %arg7[%c1, %c0_3, %c0_4] : memref<2x128x384xf32, #tpu.memory_space<vmem>>, vector<1x128x384xf32>
    %6 = vector.shape_cast %5 : vector<1x128x384xf32> to vector<128x384xf32>
    %c0_5 = arith.constant 0 : index
    %c0_6 = arith.constant 0 : index
    %7 = vector.load %arg8[%c0_5, %c0_6] : memref<1x128xf32, #tpu.memory_space<vmem>>, vector<1x128xf32>
    %c0_7 = arith.constant 0 : index
    %c0_8 = arith.constant 0 : index
    %8 = vector.load %arg9[%c0_7, %c0_8] : memref<1x128xf32, #tpu.memory_space<vmem>>, vector<1x128xf32>
    %c0_9 = arith.constant 0 : index
    %c0_10 = arith.constant 0 : index
    %c0_11 = arith.constant 0 : index
    %9 = vector.load %arg2[%c0_9, %c0_10, %c0_11] : memref<1x16x384xf32, #tpu.memory_space<vmem>>, vector<1x1x384xf32>
    %10 = vector.shape_cast %9 : vector<1x1x384xf32> to vector<1x384xf32>
    %c0_12 = arith.constant 0 : index
    %c15 = arith.constant 15 : index
    %c0_13 = arith.constant 0 : index
    %11 = vector.load %arg3[%c0_12, %c15, %c0_13] : memref<1x16x384xf32, #tpu.memory_space<vmem>>, vector<1x1x384xf32>
    %12 = vector.shape_cast %11 : vector<1x1x384xf32> to vector<1x384xf32>
    %cst = arith.constant dense<0.000000e+00> : vector<1x384xf32>
    %13 = tpu.matmul %7, %4, %cst {dimension_numbers = #tpu.dot_dimension_numbers<[1], [0], [0], [1], [0, 0, 1, 1], [], []>} : vector<1x128xf32>, vector<128x384xf32>, vector<1x384xf32> -> vector<1x384xf32>
    %cst_14 = arith.constant dense<0.000000e+00> : vector<1x384xf32>
    %14 = tpu.matmul %8, %6, %cst_14 {dimension_numbers = #tpu.dot_dimension_numbers<[1], [0], [0], [1], [0, 0, 1, 1], [], []>} : vector<1x128xf32>, vector<128x384xf32>, vector<1x384xf32> -> vector<1x384xf32>
    %15 = vector.extract_strided_slice %10 {offsets = [0, 0], sizes = [1, 128], strides = [1, 1]} : vector<1x384xf32> to vector<1x128xf32>
    %16 = vector.extract_strided_slice %13 {offsets = [0, 0], sizes = [1, 128], strides = [1, 1]} : vector<1x384xf32> to vector<1x128xf32>
    %17 = arith.addf %15, %16 : vector<1x128xf32>
    %18 = arith.negf %17 : vector<1x128xf32>
    %19 = math.exp %18 : vector<1x128xf32>
    %cst_15 = arith.constant 1.000000e+00 : f32
    %20 = vector.broadcast %cst_15 : f32 to vector<1x128xf32>
    %21 = arith.addf %20, %19 : vector<1x128xf32>
    %22 = arith.divf %20, %21 : vector<1x128xf32>
    %23 = vector.extract_strided_slice %10 {offsets = [0, 128], sizes = [1, 128], strides = [1, 1]} : vector<1x384xf32> to vector<1x128xf32>
    %24 = vector.extract_strided_slice %13 {offsets = [0, 128], sizes = [1, 128], strides = [1, 1]} : vector<1x384xf32> to vector<1x128xf32>
    %25 = arith.addf %23, %24 : vector<1x128xf32>
    %26 = arith.negf %25 : vector<1x128xf32>
    %27 = math.exp %26 : vector<1x128xf32>
    %cst_16 = arith.constant 1.000000e+00 : f32
    %28 = vector.broadcast %cst_16 : f32 to vector<1x128xf32>
    %29 = arith.addf %28, %27 : vector<1x128xf32>
    %30 = arith.divf %28, %29 : vector<1x128xf32>
    %31 = vector.extract_strided_slice %10 {offsets = [0, 256], sizes = [1, 128], strides = [1, 1]} : vector<1x384xf32> to vector<1x128xf32>
    %32 = vector.extract_strided_slice %13 {offsets = [0, 256], sizes = [1, 128], strides = [1, 1]} : vector<1x384xf32> to vector<1x128xf32>
    %33 = arith.mulf %22, %32 : vector<1x128xf32>
    %34 = arith.addf %31, %33 : vector<1x128xf32>
    %35 = math.tanh %34 : vector<1x128xf32>
    %cst_17 = arith.constant 1.000000e+00 : f32
    %36 = vector.broadcast %cst_17 : f32 to vector<1x128xf32>
    %37 = arith.subf %36, %30 : vector<1x128xf32>
    %38 = arith.mulf %37, %35 : vector<1x128xf32>
    %39 = arith.mulf %30, %7 : vector<1x128xf32>
    %40 = arith.addf %38, %39 : vector<1x128xf32>
    %41 = vector.extract_strided_slice %12 {offsets = [0, 0], sizes = [1, 128], strides = [1, 1]} : vector<1x384xf32> to vector<1x128xf32>
    %42 = vector.extract_strided_slice %14 {offsets = [0, 0], sizes = [1, 128], strides = [1, 1]} : vector<1x384xf32> to vector<1x128xf32>
    %43 = arith.addf %41, %42 : vector<1x128xf32>
    %44 = arith.negf %43 : vector<1x128xf32>
    %45 = math.exp %44 : vector<1x128xf32>
    %cst_18 = arith.constant 1.000000e+00 : f32
    %46 = vector.broadcast %cst_18 : f32 to vector<1x128xf32>
    %47 = arith.addf %46, %45 : vector<1x128xf32>
    %48 = arith.divf %46, %47 : vector<1x128xf32>
    %49 = vector.extract_strided_slice %12 {offsets = [0, 128], sizes = [1, 128], strides = [1, 1]} : vector<1x384xf32> to vector<1x128xf32>
    %50 = vector.extract_strided_slice %14 {offsets = [0, 128], sizes = [1, 128], strides = [1, 1]} : vector<1x384xf32> to vector<1x128xf32>
    %51 = arith.addf %49, %50 : vector<1x128xf32>
    %52 = arith.negf %51 : vector<1x128xf32>
    %53 = math.exp %52 : vector<1x128xf32>
    %cst_19 = arith.constant 1.000000e+00 : f32
    %54 = vector.broadcast %cst_19 : f32 to vector<1x128xf32>
    %55 = arith.addf %54, %53 : vector<1x128xf32>
    %56 = arith.divf %54, %55 : vector<1x128xf32>
    %57 = vector.extract_strided_slice %12 {offsets = [0, 256], sizes = [1, 128], strides = [1, 1]} : vector<1x384xf32> to vector<1x128xf32>
    %58 = vector.extract_strided_slice %14 {offsets = [0, 256], sizes = [1, 128], strides = [1, 1]} : vector<1x384xf32> to vector<1x128xf32>
    %59 = arith.mulf %48, %58 : vector<1x128xf32>
    %60 = arith.addf %57, %59 : vector<1x128xf32>
    %61 = math.tanh %60 : vector<1x128xf32>
    %cst_20 = arith.constant 1.000000e+00 : f32
    %62 = vector.broadcast %cst_20 : f32 to vector<1x128xf32>
    %63 = arith.subf %62, %56 : vector<1x128xf32>
    %64 = arith.mulf %63, %61 : vector<1x128xf32>
    %65 = arith.mulf %56, %8 : vector<1x128xf32>
    %66 = arith.addf %64, %65 : vector<1x128xf32>
    %c0_21 = arith.constant 0 : index
    %c0_22 = arith.constant 0 : index
    %c0_23 = arith.constant 0 : index
    %67 = vector.load %arg5[%c0_21, %c0_22, %c0_23] : memref<1x16x128xf32, #tpu.memory_space<vmem>>, vector<1x1x128xf32>
    %68 = vector.shape_cast %67 : vector<1x1x128xf32> to vector<1x128xf32>
    %69 = vector.shape_cast %40 : vector<1x128xf32> to vector<1x1x128xf32>
    tpu.vector_store %arg5[%c0_21, %c0_22, %c0_23], %69 {strides = array<i32>} : memref<1x16x128xf32, #tpu.memory_space<vmem>>, vector<1x1x128xf32>,
    %c0_24 = arith.constant 0 : index
    %c15_25 = arith.constant 15 : index
    %c0_26 = arith.constant 0 : index
    %70 = vector.load %arg6[%c0_24, %c15_25, %c0_26] : memref<1x16x128xf32, #tpu.memory_space<vmem>>, vector<1x1x128xf32>
    %71 = vector.shape_cast %70 : vector<1x1x128xf32> to vector<1x128xf32>
    %72 = vector.shape_cast %66 : vector<1x128xf32> to vector<1x1x128xf32>
    tpu.vector_store %arg6[%c0_24, %c15_25, %c0_26], %72 {strides = array<i32>} : memref<1x16x128xf32, #tpu.memory_space<vmem>>, vector<1x1x128xf32>,
    %c0_27 = arith.constant 0 : index
    %c1_28 = arith.constant 1 : index
    %c0_29 = arith.constant 0 : index
    %73 = vector.load %arg2[%c0_27, %c1_28, %c0_29] : memref<1x16x384xf32, #tpu.memory_space<vmem>>, vector<1x1x384xf32>
    %74 = vector.shape_cast %73 : vector<1x1x384xf32> to vector<1x384xf32>
    %c0_30 = arith.constant 0 : index
    %c14 = arith.constant 14 : index
    %c0_31 = arith.constant 0 : index
    %75 = vector.load %arg3[%c0_30, %c14, %c0_31] : memref<1x16x384xf32, #tpu.memory_space<vmem>>, vector<1x1x384xf32>
    %76 = vector.shape_cast %75 : vector<1x1x384xf32> to vector<1x384xf32>
    %cst_32 = arith.constant dense<0.000000e+00> : vector<1x384xf32>
    %77 = tpu.matmul %40, %4, %cst_32 {dimension_numbers = #tpu.dot_dimension_numbers<[1], [0], [0], [1], [0, 0, 1, 1], [], []>} : vector<1x128xf32>, vector<128x384xf32>, vector<1x384xf32> -> vector<1x384xf32>
    %cst_33 = arith.constant dense<0.000000e+00> : vector<1x384xf32>
    %78 = tpu.matmul %66, %6, %cst_33 {dimension_numbers = #tpu.dot_dimension_numbers<[1], [0], [0], [1], [0, 0, 1, 1], [], []>} : vector<1x128xf32>, vector<128x384xf32>, vector<1x384xf32> -> vector<1x384xf32>
    %79 = vector.extract_strided_slice %74 {offsets = [0, 0], sizes = [1, 128], strides = [1, 1]} : vector<1x384xf32> to vector<1x128xf32>
    %80 = vector.extract_strided_slice %77 {offsets = [0, 0], sizes = [1, 128], strides = [1, 1]} : vector<1x384xf32> to vector<1x128xf32>
    %81 = arith.addf %79, %80 : vector<1x128xf32>
    %82 = arith.negf %81 : vector<1x128xf32>
    %83 = math.exp %82 : vector<1x128xf32>
    %cst_34 = arith.constant 1.000000e+00 : f32
    %84 = vector.broadcast %cst_34 : f32 to vector<1x128xf32>
    %85 = arith.addf %84, %83 : vector<1x128xf32>
    %86 = arith.divf %84, %85 : vector<1x128xf32>
    %87 = vector.extract_strided_slice %74 {offsets = [0, 128], sizes = [1, 128], strides = [1, 1]} : vector<1x384xf32> to vector<1x128xf32>
    %88 = vector.extract_strided_slice %77 {offsets = [0, 128], sizes = [1, 128], strides = [1, 1]} : vector<1x384xf32> to vector<1x128xf32>
    %89 = arith.addf %87, %88 : vector<1x128xf32>
    %90 = arith.negf %89 : vector<1x128xf32>
    %91 = math.exp %90 : vector<1x128xf32>
    %cst_35 = arith.constant 1.000000e+00 : f32
    %92 = vector.broadcast %cst_35 : f32 to vector<1x128xf32>
    %93 = arith.addf %92, %91 : vector<1x128xf32>
    %94 = arith.divf %92, %93 : vector<1x128xf32>
    %95 = vector.extract_strided_slice %74 {offsets = [0, 256], sizes = [1, 128], strides = [1, 1]} : vector<1x384xf32> to vector<1x128xf32>
    %96 = vector.extract_strided_slice %77 {offsets = [0, 256], sizes = [1, 128], strides = [1, 1]} : vector<1x384xf32> to vector<1x128xf32>
    %97 = arith.mulf %86, %96 : vector<1x128xf32>
    %98 = arith.addf %95, %97 : vector<1x128xf32>
    %99 = math.tanh %98 : vector<1x128xf32>
    %cst_36 = arith.constant 1.000000e+00 : f32
    %100 = vector.broadcast %cst_36 : f32 to vector<1x128xf32>
    %101 = arith.subf %100, %94 : vector<1x128xf32>
    %102 = arith.mulf %101, %99 : vector<1x128xf32>
    %103 = arith.mulf %94, %40 : vector<1x128xf32>
    %104 = arith.addf %102, %103 : vector<1x128xf32>
    %105 = vector.extract_strided_slice %76 {offsets = [0, 0], sizes = [1, 128], strides = [1, 1]} : vector<1x384xf32> to vector<1x128xf32>
    %106 = vector.extract_strided_slice %78 {offsets = [0, 0], sizes = [1, 128], strides = [1, 1]} : vector<1x384xf32> to vector<1x128xf32>
    %107 = arith.addf %105, %106 : vector<1x128xf32>
    %108 = arith.negf %107 : vector<1x128xf32>
    %109 = math.exp %108 : vector<1x128xf32>
    %cst_37 = arith.constant 1.000000e+00 : f32
    %110 = vector.broadcast %cst_37 : f32 to vector<1x128xf32>
    %111 = arith.addf %110, %109 : vector<1x128xf32>
    %112 = arith.divf %110, %111 : vector<1x128xf32>
    %113 = vector.extract_strided_slice %76 {offsets = [0, 128], sizes = [1, 128], strides = [1, 1]} : vector<1x384xf32> to vector<1x128xf32>
    %114 = vector.extract_strided_slice %78 {offsets = [0, 128], sizes = [1, 128], strides = [1, 1]} : vector<1x384xf32> to vector<1x128xf32>
    %115 = arith.addf %113, %114 : vector<1x128xf32>
    %116 = arith.negf %115 : vector<1x128xf32>
    %117 = math.exp %116 : vector<1x128xf32>
    %cst_38 = arith.constant 1.000000e+00 : f32
    %118 = vector.broadcast %cst_38 : f32 to vector<1x128xf32>
    %119 = arith.addf %118, %117 : vector<1x128xf32>
    %120 = arith.divf %118, %119 : vector<1x128xf32>
    %121 = vector.extract_strided_slice %76 {offsets = [0, 256], sizes = [1, 128], strides = [1, 1]} : vector<1x384xf32> to vector<1x128xf32>
    %122 = vector.extract_strided_slice %78 {offsets = [0, 256], sizes = [1, 128], strides = [1, 1]} : vector<1x384xf32> to vector<1x128xf32>
    %123 = arith.mulf %112, %122 : vector<1x128xf32>
    %124 = arith.addf %121, %123 : vector<1x128xf32>
    %125 = math.tanh %124 : vector<1x128xf32>
    %cst_39 = arith.constant 1.000000e+00 : f32
    %126 = vector.broadcast %cst_39 : f32 to vector<1x128xf32>
    %127 = arith.subf %126, %120 : vector<1x128xf32>
    %128 = arith.mulf %127, %125 : vector<1x128xf32>
    %129 = arith.mulf %120, %66 : vector<1x128xf32>
    %130 = arith.addf %128, %129 : vector<1x128xf32>
    %c0_40 = arith.constant 0 : index
    %c1_41 = arith.constant 1 : index
    %c0_42 = arith.constant 0 : index
    %131 = vector.load %arg5[%c0_40, %c1_41, %c0_42] : memref<1x16x128xf32, #tpu.memory_space<vmem>>, vector<1x1x128xf32>
    %132 = vector.shape_cast %131 : vector<1x1x128xf32> to vector<1x128xf32>
    %133 = vector.shape_cast %104 : vector<1x128xf32> to vector<1x1x128xf32>
    tpu.vector_store %arg5[%c0_40, %c1_41, %c0_42], %133 {strides = array<i32>} : memref<1x16x128xf32, #tpu.memory_space<vmem>>, vector<1x1x128xf32>,
    %c0_43 = arith.constant 0 : index
    %c14_44 = arith.constant 14 : index
    %c0_45 = arith.constant 0 : index
    %134 = vector.load %arg6[%c0_43, %c14_44, %c0_45] : memref<1x16x128xf32, #tpu.memory_space<vmem>>, vector<1x1x128xf32>
    %135 = vector.shape_cast %134 : vector<1x1x128xf32> to vector<1x128xf32>
    %136 = vector.shape_cast %130 : vector<1x128xf32> to vector<1x1x128xf32>
    tpu.vector_store %arg6[%c0_43, %c14_44, %c0_45], %136 {strides = array<i32>} : memref<1x16x128xf32, #tpu.memory_space<vmem>>, vector<1x1x128xf32>,
    %c0_46 = arith.constant 0 : index
    %c2 = arith.constant 2 : index
    %c0_47 = arith.constant 0 : index
    %137 = vector.load %arg2[%c0_46, %c2, %c0_47] : memref<1x16x384xf32, #tpu.memory_space<vmem>>, vector<1x1x384xf32>
    %138 = vector.shape_cast %137 : vector<1x1x384xf32> to vector<1x384xf32>
    %c0_48 = arith.constant 0 : index
    %c13 = arith.constant 13 : index
    %c0_49 = arith.constant 0 : index
    %139 = vector.load %arg3[%c0_48, %c13, %c0_49] : memref<1x16x384xf32, #tpu.memory_space<vmem>>, vector<1x1x384xf32>
    %140 = vector.shape_cast %139 : vector<1x1x384xf32> to vector<1x384xf32>
    %cst_50 = arith.constant dense<0.000000e+00> : vector<1x384xf32>
    %141 = tpu.matmul %104, %4, %cst_50 {dimension_numbers = #tpu.dot_dimension_numbers<[1], [0], [0], [1], [0, 0, 1, 1], [], []>} : vector<1x128xf32>, vector<128x384xf32>, vector<1x384xf32> -> vector<1x384xf32>
    %cst_51 = arith.constant dense<0.000000e+00> : vector<1x384xf32>
    %142 = tpu.matmul %130, %6, %cst_51 {dimension_numbers = #tpu.dot_dimension_numbers<[1], [0], [0], [1], [0, 0, 1, 1], [], []>} : vector<1x128xf32>, vector<128x384xf32>, vector<1x384xf32> -> vector<1x384xf32>
    %143 = vector.extract_strided_slice %138 {offsets = [0, 0], sizes = [1, 128], strides = [1, 1]} : vector<1x384xf32> to vector<1x128xf32>
    %144 = vector.extract_strided_slice %141 {offsets = [0, 0], sizes = [1, 128], strides = [1, 1]} : vector<1x384xf32> to vector<1x128xf32>
    %145 = arith.addf %143, %144 : vector<1x128xf32>
    %146 = arith.negf %145 : vector<1x128xf32>
    %147 = math.exp %146 : vector<1x128xf32>
    %cst_52 = arith.constant 1.000000e+00 : f32
    %148 = vector.broadcast %cst_52 : f32 to vector<1x128xf32>
    %149 = arith.addf %148, %147 : vector<1x128xf32>
    %150 = arith.divf %148, %149 : vector<1x128xf32>
    %151 = vector.extract_strided_slice %138 {offsets = [0, 128], sizes = [1, 128], strides = [1, 1]} : vector<1x384xf32> to vector<1x128xf32>
    %152 = vector.extract_strided_slice %141 {offsets = [0, 128], sizes = [1, 128], strides = [1, 1]} : vector<1x384xf32> to vector<1x128xf32>
    %153 = arith.addf %151, %152 : vector<1x128xf32>
    %154 = arith.negf %153 : vector<1x128xf32>
    %155 = math.exp %154 : vector<1x128xf32>
    %cst_53 = arith.constant 1.000000e+00 : f32
    %156 = vector.broadcast %cst_53 : f32 to vector<1x128xf32>
    %157 = arith.addf %156, %155 : vector<1x128xf32>
    %158 = arith.divf %156, %157 : vector<1x128xf32>
    %159 = vector.extract_strided_slice %138 {offsets = [0, 256], sizes = [1, 128], strides = [1, 1]} : vector<1x384xf32> to vector<1x128xf32>
    %160 = vector.extract_strided_slice %141 {offsets = [0, 256], sizes = [1, 128], strides = [1, 1]} : vector<1x384xf32> to vector<1x128xf32>
    %161 = arith.mulf %150, %160 : vector<1x128xf32>
    %162 = arith.addf %159, %161 : vector<1x128xf32>
    %163 = math.tanh %162 : vector<1x128xf32>
    %cst_54 = arith.constant 1.000000e+00 : f32
    %164 = vector.broadcast %cst_54 : f32 to vector<1x128xf32>
    %165 = arith.subf %164, %158 : vector<1x128xf32>
    %166 = arith.mulf %165, %163 : vector<1x128xf32>
    %167 = arith.mulf %158, %104 : vector<1x128xf32>
    %168 = arith.addf %166, %167 : vector<1x128xf32>
    %169 = vector.extract_strided_slice %140 {offsets = [0, 0], sizes = [1, 128], strides = [1, 1]} : vector<1x384xf32> to vector<1x128xf32>
    %170 = vector.extract_strided_slice %142 {offsets = [0, 0], sizes = [1, 128], strides = [1, 1]} : vector<1x384xf32> to vector<1x128xf32>
    %171 = arith.addf %169, %170 : vector<1x128xf32>
    %172 = arith.negf %171 : vector<1x128xf32>
    %173 = math.exp %172 : vector<1x128xf32>
    %cst_55 = arith.constant 1.000000e+00 : f32
    %174 = vector.broadcast %cst_55 : f32 to vector<1x128xf32>
    %175 = arith.addf %174, %173 : vector<1x128xf32>
    %176 = arith.divf %174, %175 : vector<1x128xf32>
    %177 = vector.extract_strided_slice %140 {offsets = [0, 128], sizes = [1, 128], strides = [1, 1]} : vector<1x384xf32> to vector<1x128xf32>
    %178 = vector.extract_strided_slice %142 {offsets = [0, 128], sizes = [1, 128], strides = [1, 1]} : vector<1x384xf32> to vector<1x128xf32>
    %179 = arith.addf %177, %178 : vector<1x128xf32>
    %180 = arith.negf %179 : vector<1x128xf32>
    %181 = math.exp %180 : vector<1x128xf32>
    %cst_56 = arith.constant 1.000000e+00 : f32
    %182 = vector.broadcast %cst_56 : f32 to vector<1x128xf32>
    %183 = arith.addf %182, %181 : vector<1x128xf32>
    %184 = arith.divf %182, %183 : vector<1x128xf32>
    %185 = vector.extract_strided_slice %140 {offsets = [0, 256], sizes = [1, 128], strides = [1, 1]} : vector<1x384xf32> to vector<1x128xf32>
    %186 = vector.extract_strided_slice %142 {offsets = [0, 256], sizes = [1, 128], strides = [1, 1]} : vector<1x384xf32> to vector<1x128xf32>
    %187 = arith.mulf %176, %186 : vector<1x128xf32>
    %188 = arith.addf %185, %187 : vector<1x128xf32>
    %189 = math.tanh %188 : vector<1x128xf32>
    %cst_57 = arith.constant 1.000000e+00 : f32
    %190 = vector.broadcast %cst_57 : f32 to vector<1x128xf32>
    %191 = arith.subf %190, %184 : vector<1x128xf32>
    %192 = arith.mulf %191, %189 : vector<1x128xf32>
    %193 = arith.mulf %184, %130 : vector<1x128xf32>
    %194 = arith.addf %192, %193 : vector<1x128xf32>
    %c0_58 = arith.constant 0 : index
    %c2_59 = arith.constant 2 : index
    %c0_60 = arith.constant 0 : index
    %195 = vector.load %arg5[%c0_58, %c2_59, %c0_60] : memref<1x16x128xf32, #tpu.memory_space<vmem>>, vector<1x1x128xf32>
    %196 = vector.shape_cast %195 : vector<1x1x128xf32> to vector<1x128xf32>
    %197 = vector.shape_cast %168 : vector<1x128xf32> to vector<1x1x128xf32>
    tpu.vector_store %arg5[%c0_58, %c2_59, %c0_60], %197 {strides = array<i32>} : memref<1x16x128xf32, #tpu.memory_space<vmem>>, vector<1x1x128xf32>,
    %c0_61 = arith.constant 0 : index
    %c13_62 = arith.constant 13 : index
    %c0_63 = arith.constant 0 : index
    %198 = vector.load %arg6[%c0_61, %c13_62, %c0_63] : memref<1x16x128xf32, #tpu.memory_space<vmem>>, vector<1x1x128xf32>
    %199 = vector.shape_cast %198 : vector<1x1x128xf32> to vector<1x128xf32>
    %200 = vector.shape_cast %194 : vector<1x128xf32> to vector<1x1x128xf32>
    tpu.vector_store %arg6[%c0_61, %c13_62, %c0_63], %200 {strides = array<i32>} : memref<1x16x128xf32, #tpu.memory_space<vmem>>, vector<1x1x128xf32>,
    %c0_64 = arith.constant 0 : index
    %c3 = arith.constant 3 : index
    %c0_65 = arith.constant 0 : index
    %201 = vector.load %arg2[%c0_64, %c3, %c0_65] : memref<1x16x384xf32, #tpu.memory_space<vmem>>, vector<1x1x384xf32>
    %202 = vector.shape_cast %201 : vector<1x1x384xf32> to vector<1x384xf32>
    %c0_66 = arith.constant 0 : index
    %c12 = arith.constant 12 : index
    %c0_67 = arith.constant 0 : index
    %203 = vector.load %arg3[%c0_66, %c12, %c0_67] : memref<1x16x384xf32, #tpu.memory_space<vmem>>, vector<1x1x384xf32>
    %204 = vector.shape_cast %203 : vector<1x1x384xf32> to vector<1x384xf32>
    %cst_68 = arith.constant dense<0.000000e+00> : vector<1x384xf32>
    %205 = tpu.matmul %168, %4, %cst_68 {dimension_numbers = #tpu.dot_dimension_numbers<[1], [0], [0], [1], [0, 0, 1, 1], [], []>} : vector<1x128xf32>, vector<128x384xf32>, vector<1x384xf32> -> vector<1x384xf32>
    %cst_69 = arith.constant dense<0.000000e+00> : vector<1x384xf32>
    %206 = tpu.matmul %194, %6, %cst_69 {dimension_numbers = #tpu.dot_dimension_numbers<[1], [0], [0], [1], [0, 0, 1, 1], [], []>} : vector<1x128xf32>, vector<128x384xf32>, vector<1x384xf32> -> vector<1x384xf32>
    %207 = vector.extract_strided_slice %202 {offsets = [0, 0], sizes = [1, 128], strides = [1, 1]} : vector<1x384xf32> to vector<1x128xf32>
    %208 = vector.extract_strided_slice %205 {offsets = [0, 0], sizes = [1, 128], strides = [1, 1]} : vector<1x384xf32> to vector<1x128xf32>
    %209 = arith.addf %207, %208 : vector<1x128xf32>
    %210 = arith.negf %209 : vector<1x128xf32>
    %211 = math.exp %210 : vector<1x128xf32>
    %cst_70 = arith.constant 1.000000e+00 : f32
    %212 = vector.broadcast %cst_70 : f32 to vector<1x128xf32>
    %213 = arith.addf %212, %211 : vector<1x128xf32>
    %214 = arith.divf %212, %213 : vector<1x128xf32>
    %215 = vector.extract_strided_slice %202 {offsets = [0, 128], sizes = [1, 128], strides = [1, 1]} : vector<1x384xf32> to vector<1x128xf32>
    %216 = vector.extract_strided_slice %205 {offsets = [0, 128], sizes = [1, 128], strides = [1, 1]} : vector<1x384xf32> to vector<1x128xf32>
    %217 = arith.addf %215, %216 : vector<1x128xf32>
    %218 = arith.negf %217 : vector<1x128xf32>
    %219 = math.exp %218 : vector<1x128xf32>
    %cst_71 = arith.constant 1.000000e+00 : f32
    %220 = vector.broadcast %cst_71 : f32 to vector<1x128xf32>
    %221 = arith.addf %220, %219 : vector<1x128xf32>
    %222 = arith.divf %220, %221 : vector<1x128xf32>
    %223 = vector.extract_strided_slice %202 {offsets = [0, 256], sizes = [1, 128], strides = [1, 1]} : vector<1x384xf32> to vector<1x128xf32>
    %224 = vector.extract_strided_slice %205 {offsets = [0, 256], sizes = [1, 128], strides = [1, 1]} : vector<1x384xf32> to vector<1x128xf32>
    %225 = arith.mulf %214, %224 : vector<1x128xf32>
    %226 = arith.addf %223, %225 : vector<1x128xf32>
    %227 = math.tanh %226 : vector<1x128xf32>
    %cst_72 = arith.constant 1.000000e+00 : f32
    %228 = vector.broadcast %cst_72 : f32 to vector<1x128xf32>
    %229 = arith.subf %228, %222 : vector<1x128xf32>
    %230 = arith.mulf %229, %227 : vector<1x128xf32>
    %231 = arith.mulf %222, %168 : vector<1x128xf32>
    %232 = arith.addf %230, %231 : vector<1x128xf32>
    %233 = vector.extract_strided_slice %204 {offsets = [0, 0], sizes = [1, 128], strides = [1, 1]} : vector<1x384xf32> to vector<1x128xf32>
    %234 = vector.extract_strided_slice %206 {offsets = [0, 0], sizes = [1, 128], strides = [1, 1]} : vector<1x384xf32> to vector<1x128xf32>
    %235 = arith.addf %233, %234 : vector<1x128xf32>
    %236 = arith.negf %235 : vector<1x128xf32>
    %237 = math.exp %236 : vector<1x128xf32>
    %cst_73 = arith.constant 1.000000e+00 : f32
    %238 = vector.broadcast %cst_73 : f32 to vector<1x128xf32>
    %239 = arith.addf %238, %237 : vector<1x128xf32>
    %240 = arith.divf %238, %239 : vector<1x128xf32>
    %241 = vector.extract_strided_slice %204 {offsets = [0, 128], sizes = [1, 128], strides = [1, 1]} : vector<1x384xf32> to vector<1x128xf32>
    %242 = vector.extract_strided_slice %206 {offsets = [0, 128], sizes = [1, 128], strides = [1, 1]} : vector<1x384xf32> to vector<1x128xf32>
    %243 = arith.addf %241, %242 : vector<1x128xf32>
    %244 = arith.negf %243 : vector<1x128xf32>
    %245 = math.exp %244 : vector<1x128xf32>
    %cst_74 = arith.constant 1.000000e+00 : f32
    %246 = vector.broadcast %cst_74 : f32 to vector<1x128xf32>
    %247 = arith.addf %246, %245 : vector<1x128xf32>
    %248 = arith.divf %246, %247 : vector<1x128xf32>
    %249 = vector.extract_strided_slice %204 {offsets = [0, 256], sizes = [1, 128], strides = [1, 1]} : vector<1x384xf32> to vector<1x128xf32>
    %250 = vector.extract_strided_slice %206 {offsets = [0, 256], sizes = [1, 128], strides = [1, 1]} : vector<1x384xf32> to vector<1x128xf32>
    %251 = arith.mulf %240, %250 : vector<1x128xf32>
    %252 = arith.addf %249, %251 : vector<1x128xf32>
    %253 = math.tanh %252 : vector<1x128xf32>
    %cst_75 = arith.constant 1.000000e+00 : f32
    %254 = vector.broadcast %cst_75 : f32 to vector<1x128xf32>
    %255 = arith.subf %254, %248 : vector<1x128xf32>
    %256 = arith.mulf %255, %253 : vector<1x128xf32>
    %257 = arith.mulf %248, %194 : vector<1x128xf32>
    %258 = arith.addf %256, %257 : vector<1x128xf32>
    %c0_76 = arith.constant 0 : index
    %c3_77 = arith.constant 3 : index
    %c0_78 = arith.constant 0 : index
    %259 = vector.load %arg5[%c0_76, %c3_77, %c0_78] : memref<1x16x128xf32, #tpu.memory_space<vmem>>, vector<1x1x128xf32>
    %260 = vector.shape_cast %259 : vector<1x1x128xf32> to vector<1x128xf32>
    %261 = vector.shape_cast %232 : vector<1x128xf32> to vector<1x1x128xf32>
    tpu.vector_store %arg5[%c0_76, %c3_77, %c0_78], %261 {strides = array<i32>} : memref<1x16x128xf32, #tpu.memory_space<vmem>>, vector<1x1x128xf32>,
    %c0_79 = arith.constant 0 : index
    %c12_80 = arith.constant 12 : index
    %c0_81 = arith.constant 0 : index
    %262 = vector.load %arg6[%c0_79, %c12_80, %c0_81] : memref<1x16x128xf32, #tpu.memory_space<vmem>>, vector<1x1x128xf32>
    %263 = vector.shape_cast %262 : vector<1x1x128xf32> to vector<1x128xf32>
    %264 = vector.shape_cast %258 : vector<1x128xf32> to vector<1x1x128xf32>
    tpu.vector_store %arg6[%c0_79, %c12_80, %c0_81], %264 {strides = array<i32>} : memref<1x16x128xf32, #tpu.memory_space<vmem>>, vector<1x1x128xf32>,
    %c0_82 = arith.constant 0 : index
    %c4 = arith.constant 4 : index
    %c0_83 = arith.constant 0 : index
    %265 = vector.load %arg2[%c0_82, %c4, %c0_83] : memref<1x16x384xf32, #tpu.memory_space<vmem>>, vector<1x1x384xf32>
    %266 = vector.shape_cast %265 : vector<1x1x384xf32> to vector<1x384xf32>
    %c0_84 = arith.constant 0 : index
    %c11 = arith.constant 11 : index
    %c0_85 = arith.constant 0 : index
    %267 = vector.load %arg3[%c0_84, %c11, %c0_85] : memref<1x16x384xf32, #tpu.memory_space<vmem>>, vector<1x1x384xf32>
    %268 = vector.shape_cast %267 : vector<1x1x384xf32> to vector<1x384xf32>
    %cst_86 = arith.constant dense<0.000000e+00> : vector<1x384xf32>
    %269 = tpu.matmul %232, %4, %cst_86 {dimension_numbers = #tpu.dot_dimension_numbers<[1], [0], [0], [1], [0, 0, 1, 1], [], []>} : vector<1x128xf32>, vector<128x384xf32>, vector<1x384xf32> -> vector<1x384xf32>
    %cst_87 = arith.constant dense<0.000000e+00> : vector<1x384xf32>
    %270 = tpu.matmul %258, %6, %cst_87 {dimension_numbers = #tpu.dot_dimension_numbers<[1], [0], [0], [1], [0, 0, 1, 1], [], []>} : vector<1x128xf32>, vector<128x384xf32>, vector<1x384xf32> -> vector<1x384xf32>
    %271 = vector.extract_strided_slice %266 {offsets = [0, 0], sizes = [1, 128], strides = [1, 1]} : vector<1x384xf32> to vector<1x128xf32>
    %272 = vector.extract_strided_slice %269 {offsets = [0, 0], sizes = [1, 128], strides = [1, 1]} : vector<1x384xf32> to vector<1x128xf32>
    %273 = arith.addf %271, %272 : vector<1x128xf32>
    %274 = arith.negf %273 : vector<1x128xf32>
    %275 = math.exp %274 : vector<1x128xf32>
    %cst_88 = arith.constant 1.000000e+00 : f32
    %276 = vector.broadcast %cst_88 : f32 to vector<1x128xf32>
    %277 = arith.addf %276, %275 : vector<1x128xf32>
    %278 = arith.divf %276, %277 : vector<1x128xf32>
    %279 = vector.extract_strided_slice %266 {offsets = [0, 128], sizes = [1, 128], strides = [1, 1]} : vector<1x384xf32> to vector<1x128xf32>
    %280 = vector.extract_strided_slice %269 {offsets = [0, 128], sizes = [1, 128], strides = [1, 1]} : vector<1x384xf32> to vector<1x128xf32>
    %281 = arith.addf %279, %280 : vector<1x128xf32>
    %282 = arith.negf %281 : vector<1x128xf32>
    %283 = math.exp %282 : vector<1x128xf32>
    %cst_89 = arith.constant 1.000000e+00 : f32
    %284 = vector.broadcast %cst_89 : f32 to vector<1x128xf32>
    %285 = arith.addf %284, %283 : vector<1x128xf32>
    %286 = arith.divf %284, %285 : vector<1x128xf32>
    %287 = vector.extract_strided_slice %266 {offsets = [0, 256], sizes = [1, 128], strides = [1, 1]} : vector<1x384xf32> to vector<1x128xf32>
    %288 = vector.extract_strided_slice %269 {offsets = [0, 256], sizes = [1, 128], strides = [1, 1]} : vector<1x384xf32> to vector<1x128xf32>
    %289 = arith.mulf %278, %288 : vector<1x128xf32>
    %290 = arith.addf %287, %289 : vector<1x128xf32>
    %291 = math.tanh %290 : vector<1x128xf32>
    %cst_90 = arith.constant 1.000000e+00 : f32
    %292 = vector.broadcast %cst_90 : f32 to vector<1x128xf32>
    %293 = arith.subf %292, %286 : vector<1x128xf32>
    %294 = arith.mulf %293, %291 : vector<1x128xf32>
    %295 = arith.mulf %286, %232 : vector<1x128xf32>
    %296 = arith.addf %294, %295 : vector<1x128xf32>
    %297 = vector.extract_strided_slice %268 {offsets = [0, 0], sizes = [1, 128], strides = [1, 1]} : vector<1x384xf32> to vector<1x128xf32>
    %298 = vector.extract_strided_slice %270 {offsets = [0, 0], sizes = [1, 128], strides = [1, 1]} : vector<1x384xf32> to vector<1x128xf32>
    %299 = arith.addf %297, %298 : vector<1x128xf32>
    %300 = arith.negf %299 : vector<1x128xf32>
    %301 = math.exp %300 : vector<1x128xf32>
    %cst_91 = arith.constant 1.000000e+00 : f32
    %302 = vector.broadcast %cst_91 : f32 to vector<1x128xf32>
    %303 = arith.addf %302, %301 : vector<1x128xf32>
    %304 = arith.divf %302, %303 : vector<1x128xf32>
    %305 = vector.extract_strided_slice %268 {offsets = [0, 128], sizes = [1, 128], strides = [1, 1]} : vector<1x384xf32> to vector<1x128xf32>
    %306 = vector.extract_strided_slice %270 {offsets = [0, 128], sizes = [1, 128], strides = [1, 1]} : vector<1x384xf32> to vector<1x128xf32>
    %307 = arith.addf %305, %306 : vector<1x128xf32>
    %308 = arith.negf %307 : vector<1x128xf32>
    %309 = math.exp %308 : vector<1x128xf32>
    %cst_92 = arith.constant 1.000000e+00 : f32
    %310 = vector.broadcast %cst_92 : f32 to vector<1x128xf32>
    %311 = arith.addf %310, %309 : vector<1x128xf32>
    %312 = arith.divf %310, %311 : vector<1x128xf32>
    %313 = vector.extract_strided_slice %268 {offsets = [0, 256], sizes = [1, 128], strides = [1, 1]} : vector<1x384xf32> to vector<1x128xf32>
    %314 = vector.extract_strided_slice %270 {offsets = [0, 256], sizes = [1, 128], strides = [1, 1]} : vector<1x384xf32> to vector<1x128xf32>
    %315 = arith.mulf %304, %314 : vector<1x128xf32>
    %316 = arith.addf %313, %315 : vector<1x128xf32>
    %317 = math.tanh %316 : vector<1x128xf32>
    %cst_93 = arith.constant 1.000000e+00 : f32
    %318 = vector.broadcast %cst_93 : f32 to vector<1x128xf32>
    %319 = arith.subf %318, %312 : vector<1x128xf32>
    %320 = arith.mulf %319, %317 : vector<1x128xf32>
    %321 = arith.mulf %312, %258 : vector<1x128xf32>
    %322 = arith.addf %320, %321 : vector<1x128xf32>
    %c0_94 = arith.constant 0 : index
    %c4_95 = arith.constant 4 : index
    %c0_96 = arith.constant 0 : index
    %323 = vector.load %arg5[%c0_94, %c4_95, %c0_96] : memref<1x16x128xf32, #tpu.memory_space<vmem>>, vector<1x1x128xf32>
    %324 = vector.shape_cast %323 : vector<1x1x128xf32> to vector<1x128xf32>
    %325 = vector.shape_cast %296 : vector<1x128xf32> to vector<1x1x128xf32>
    tpu.vector_store %arg5[%c0_94, %c4_95, %c0_96], %325 {strides = array<i32>} : memref<1x16x128xf32, #tpu.memory_space<vmem>>, vector<1x1x128xf32>,
    %c0_97 = arith.constant 0 : index
    %c11_98 = arith.constant 11 : index
    %c0_99 = arith.constant 0 : index
    %326 = vector.load %arg6[%c0_97, %c11_98, %c0_99] : memref<1x16x128xf32, #tpu.memory_space<vmem>>, vector<1x1x128xf32>
    %327 = vector.shape_cast %326 : vector<1x1x128xf32> to vector<1x128xf32>
    %328 = vector.shape_cast %322 : vector<1x128xf32> to vector<1x1x128xf32>
    tpu.vector_store %arg6[%c0_97, %c11_98, %c0_99], %328 {strides = array<i32>} : memref<1x16x128xf32, #tpu.memory_space<vmem>>, vector<1x1x128xf32>,
    %c0_100 = arith.constant 0 : index
    %c5 = arith.constant 5 : index
    %c0_101 = arith.constant 0 : index
    %329 = vector.load %arg2[%c0_100, %c5, %c0_101] : memref<1x16x384xf32, #tpu.memory_space<vmem>>, vector<1x1x384xf32>
    %330 = vector.shape_cast %329 : vector<1x1x384xf32> to vector<1x384xf32>
    %c0_102 = arith.constant 0 : index
    %c10 = arith.constant 10 : index
    %c0_103 = arith.constant 0 : index
    %331 = vector.load %arg3[%c0_102, %c10, %c0_103] : memref<1x16x384xf32, #tpu.memory_space<vmem>>, vector<1x1x384xf32>
    %332 = vector.shape_cast %331 : vector<1x1x384xf32> to vector<1x384xf32>
    %cst_104 = arith.constant dense<0.000000e+00> : vector<1x384xf32>
    %333 = tpu.matmul %296, %4, %cst_104 {dimension_numbers = #tpu.dot_dimension_numbers<[1], [0], [0], [1], [0, 0, 1, 1], [], []>} : vector<1x128xf32>, vector<128x384xf32>, vector<1x384xf32> -> vector<1x384xf32>
    %cst_105 = arith.constant dense<0.000000e+00> : vector<1x384xf32>
    %334 = tpu.matmul %322, %6, %cst_105 {dimension_numbers = #tpu.dot_dimension_numbers<[1], [0], [0], [1], [0, 0, 1, 1], [], []>} : vector<1x128xf32>, vector<128x384xf32>, vector<1x384xf32> -> vector<1x384xf32>
    %335 = vector.extract_strided_slice %330 {offsets = [0, 0], sizes = [1, 128], strides = [1, 1]} : vector<1x384xf32> to vector<1x128xf32>
    %336 = vector.extract_strided_slice %333 {offsets = [0, 0], sizes = [1, 128], strides = [1, 1]} : vector<1x384xf32> to vector<1x128xf32>
    %337 = arith.addf %335, %336 : vector<1x128xf32>
    %338 = arith.negf %337 : vector<1x128xf32>
    %339 = math.exp %338 : vector<1x128xf32>
    %cst_106 = arith.constant 1.000000e+00 : f32
    %340 = vector.broadcast %cst_106 : f32 to vector<1x128xf32>
    %341 = arith.addf %340, %339 : vector<1x128xf32>
    %342 = arith.divf %340, %341 : vector<1x128xf32>
    %343 = vector.extract_strided_slice %330 {offsets = [0, 128], sizes = [1, 128], strides = [1, 1]} : vector<1x384xf32> to vector<1x128xf32>
    %344 = vector.extract_strided_slice %333 {offsets = [0, 128], sizes = [1, 128], strides = [1, 1]} : vector<1x384xf32> to vector<1x128xf32>
    %345 = arith.addf %343, %344 : vector<1x128xf32>
    %346 = arith.negf %345 : vector<1x128xf32>
    %347 = math.exp %346 : vector<1x128xf32>
    %cst_107 = arith.constant 1.000000e+00 : f32
    %348 = vector.broadcast %cst_107 : f32 to vector<1x128xf32>
    %349 = arith.addf %348, %347 : vector<1x128xf32>
    %350 = arith.divf %348, %349 : vector<1x128xf32>
    %351 = vector.extract_strided_slice %330 {offsets = [0, 256], sizes = [1, 128], strides = [1, 1]} : vector<1x384xf32> to vector<1x128xf32>
    %352 = vector.extract_strided_slice %333 {offsets = [0, 256], sizes = [1, 128], strides = [1, 1]} : vector<1x384xf32> to vector<1x128xf32>
    %353 = arith.mulf %342, %352 : vector<1x128xf32>
    %354 = arith.addf %351, %353 : vector<1x128xf32>
    %355 = math.tanh %354 : vector<1x128xf32>
    %cst_108 = arith.constant 1.000000e+00 : f32
    %356 = vector.broadcast %cst_108 : f32 to vector<1x128xf32>
    %357 = arith.subf %356, %350 : vector<1x128xf32>
    %358 = arith.mulf %357, %355 : vector<1x128xf32>
    %359 = arith.mulf %350, %296 : vector<1x128xf32>
    %360 = arith.addf %358, %359 : vector<1x128xf32>
    %361 = vector.extract_strided_slice %332 {offsets = [0, 0], sizes = [1, 128], strides = [1, 1]} : vector<1x384xf32> to vector<1x128xf32>
    %362 = vector.extract_strided_slice %334 {offsets = [0, 0], sizes = [1, 128], strides = [1, 1]} : vector<1x384xf32> to vector<1x128xf32>
    %363 = arith.addf %361, %362 : vector<1x128xf32>
    %364 = arith.negf %363 : vector<1x128xf32>
    %365 = math.exp %364 : vector<1x128xf32>
    %cst_109 = arith.constant 1.000000e+00 : f32
    %366 = vector.broadcast %cst_109 : f32 to vector<1x128xf32>
    %367 = arith.addf %366, %365 : vector<1x128xf32>
    %368 = arith.divf %366, %367 : vector<1x128xf32>
    %369 = vector.extract_strided_slice %332 {offsets = [0, 128], sizes = [1, 128], strides = [1, 1]} : vector<1x384xf32> to vector<1x128xf32>
    %370 = vector.extract_strided_slice %334 {offsets = [0, 128], sizes = [1, 128], strides = [1, 1]} : vector<1x384xf32> to vector<1x128xf32>
    %371 = arith.addf %369, %370 : vector<1x128xf32>
    %372 = arith.negf %371 : vector<1x128xf32>
    %373 = math.exp %372 : vector<1x128xf32>
    %cst_110 = arith.constant 1.000000e+00 : f32
    %374 = vector.broadcast %cst_110 : f32 to vector<1x128xf32>
    %375 = arith.addf %374, %373 : vector<1x128xf32>
    %376 = arith.divf %374, %375 : vector<1x128xf32>
    %377 = vector.extract_strided_slice %332 {offsets = [0, 256], sizes = [1, 128], strides = [1, 1]} : vector<1x384xf32> to vector<1x128xf32>
    %378 = vector.extract_strided_slice %334 {offsets = [0, 256], sizes = [1, 128], strides = [1, 1]} : vector<1x384xf32> to vector<1x128xf32>
    %379 = arith.mulf %368, %378 : vector<1x128xf32>
    %380 = arith.addf %377, %379 : vector<1x128xf32>
    %381 = math.tanh %380 : vector<1x128xf32>
    %cst_111 = arith.constant 1.000000e+00 : f32
    %382 = vector.broadcast %cst_111 : f32 to vector<1x128xf32>
    %383 = arith.subf %382, %376 : vector<1x128xf32>
    %384 = arith.mulf %383, %381 : vector<1x128xf32>
    %385 = arith.mulf %376, %322 : vector<1x128xf32>
    %386 = arith.addf %384, %385 : vector<1x128xf32>
    %c0_112 = arith.constant 0 : index
    %c5_113 = arith.constant 5 : index
    %c0_114 = arith.constant 0 : index
    %387 = vector.load %arg5[%c0_112, %c5_113, %c0_114] : memref<1x16x128xf32, #tpu.memory_space<vmem>>, vector<1x1x128xf32>
    %388 = vector.shape_cast %387 : vector<1x1x128xf32> to vector<1x128xf32>
    %389 = vector.shape_cast %360 : vector<1x128xf32> to vector<1x1x128xf32>
    tpu.vector_store %arg5[%c0_112, %c5_113, %c0_114], %389 {strides = array<i32>} : memref<1x16x128xf32, #tpu.memory_space<vmem>>, vector<1x1x128xf32>,
    %c0_115 = arith.constant 0 : index
    %c10_116 = arith.constant 10 : index
    %c0_117 = arith.constant 0 : index
    %390 = vector.load %arg6[%c0_115, %c10_116, %c0_117] : memref<1x16x128xf32, #tpu.memory_space<vmem>>, vector<1x1x128xf32>
    %391 = vector.shape_cast %390 : vector<1x1x128xf32> to vector<1x128xf32>
    %392 = vector.shape_cast %386 : vector<1x128xf32> to vector<1x1x128xf32>
    tpu.vector_store %arg6[%c0_115, %c10_116, %c0_117], %392 {strides = array<i32>} : memref<1x16x128xf32, #tpu.memory_space<vmem>>, vector<1x1x128xf32>,
    %c0_118 = arith.constant 0 : index
    %c6 = arith.constant 6 : index
    %c0_119 = arith.constant 0 : index
    %393 = vector.load %arg2[%c0_118, %c6, %c0_119] : memref<1x16x384xf32, #tpu.memory_space<vmem>>, vector<1x1x384xf32>
    %394 = vector.shape_cast %393 : vector<1x1x384xf32> to vector<1x384xf32>
    %c0_120 = arith.constant 0 : index
    %c9 = arith.constant 9 : index
    %c0_121 = arith.constant 0 : index
    %395 = vector.load %arg3[%c0_120, %c9, %c0_121] : memref<1x16x384xf32, #tpu.memory_space<vmem>>, vector<1x1x384xf32>
    %396 = vector.shape_cast %395 : vector<1x1x384xf32> to vector<1x384xf32>
    %cst_122 = arith.constant dense<0.000000e+00> : vector<1x384xf32>
    %397 = tpu.matmul %360, %4, %cst_122 {dimension_numbers = #tpu.dot_dimension_numbers<[1], [0], [0], [1], [0, 0, 1, 1], [], []>} : vector<1x128xf32>, vector<128x384xf32>, vector<1x384xf32> -> vector<1x384xf32>
    %cst_123 = arith.constant dense<0.000000e+00> : vector<1x384xf32>
    %398 = tpu.matmul %386, %6, %cst_123 {dimension_numbers = #tpu.dot_dimension_numbers<[1], [0], [0], [1], [0, 0, 1, 1], [], []>} : vector<1x128xf32>, vector<128x384xf32>, vector<1x384xf32> -> vector<1x384xf32>
    %399 = vector.extract_strided_slice %394 {offsets = [0, 0], sizes = [1, 128], strides = [1, 1]} : vector<1x384xf32> to vector<1x128xf32>
    %400 = vector.extract_strided_slice %397 {offsets = [0, 0], sizes = [1, 128], strides = [1, 1]} : vector<1x384xf32> to vector<1x128xf32>
    %401 = arith.addf %399, %400 : vector<1x128xf32>
    %402 = arith.negf %401 : vector<1x128xf32>
    %403 = math.exp %402 : vector<1x128xf32>
    %cst_124 = arith.constant 1.000000e+00 : f32
    %404 = vector.broadcast %cst_124 : f32 to vector<1x128xf32>
    %405 = arith.addf %404, %403 : vector<1x128xf32>
    %406 = arith.divf %404, %405 : vector<1x128xf32>
    %407 = vector.extract_strided_slice %394 {offsets = [0, 128], sizes = [1, 128], strides = [1, 1]} : vector<1x384xf32> to vector<1x128xf32>
    %408 = vector.extract_strided_slice %397 {offsets = [0, 128], sizes = [1, 128], strides = [1, 1]} : vector<1x384xf32> to vector<1x128xf32>
    %409 = arith.addf %407, %408 : vector<1x128xf32>
    %410 = arith.negf %409 : vector<1x128xf32>
    %411 = math.exp %410 : vector<1x128xf32>
    %cst_125 = arith.constant 1.000000e+00 : f32
    %412 = vector.broadcast %cst_125 : f32 to vector<1x128xf32>
    %413 = arith.addf %412, %411 : vector<1x128xf32>
    %414 = arith.divf %412, %413 : vector<1x128xf32>
    %415 = vector.extract_strided_slice %394 {offsets = [0, 256], sizes = [1, 128], strides = [1, 1]} : vector<1x384xf32> to vector<1x128xf32>
    %416 = vector.extract_strided_slice %397 {offsets = [0, 256], sizes = [1, 128], strides = [1, 1]} : vector<1x384xf32> to vector<1x128xf32>
    %417 = arith.mulf %406, %416 : vector<1x128xf32>
    %418 = arith.addf %415, %417 : vector<1x128xf32>
    %419 = math.tanh %418 : vector<1x128xf32>
    %cst_126 = arith.constant 1.000000e+00 : f32
    %420 = vector.broadcast %cst_126 : f32 to vector<1x128xf32>
    %421 = arith.subf %420, %414 : vector<1x128xf32>
    %422 = arith.mulf %421, %419 : vector<1x128xf32>
    %423 = arith.mulf %414, %360 : vector<1x128xf32>
    %424 = arith.addf %422, %423 : vector<1x128xf32>
    %425 = vector.extract_strided_slice %396 {offsets = [0, 0], sizes = [1, 128], strides = [1, 1]} : vector<1x384xf32> to vector<1x128xf32>
    %426 = vector.extract_strided_slice %398 {offsets = [0, 0], sizes = [1, 128], strides = [1, 1]} : vector<1x384xf32> to vector<1x128xf32>
    %427 = arith.addf %425, %426 : vector<1x128xf32>
    %428 = arith.negf %427 : vector<1x128xf32>
    %429 = math.exp %428 : vector<1x128xf32>
    %cst_127 = arith.constant 1.000000e+00 : f32
    %430 = vector.broadcast %cst_127 : f32 to vector<1x128xf32>
    %431 = arith.addf %430, %429 : vector<1x128xf32>
    %432 = arith.divf %430, %431 : vector<1x128xf32>
    %433 = vector.extract_strided_slice %396 {offsets = [0, 128], sizes = [1, 128], strides = [1, 1]} : vector<1x384xf32> to vector<1x128xf32>
    %434 = vector.extract_strided_slice %398 {offsets = [0, 128], sizes = [1, 128], strides = [1, 1]} : vector<1x384xf32> to vector<1x128xf32>
    %435 = arith.addf %433, %434 : vector<1x128xf32>
    %436 = arith.negf %435 : vector<1x128xf32>
    %437 = math.exp %436 : vector<1x128xf32>
    %cst_128 = arith.constant 1.000000e+00 : f32
    %438 = vector.broadcast %cst_128 : f32 to vector<1x128xf32>
    %439 = arith.addf %438, %437 : vector<1x128xf32>
    %440 = arith.divf %438, %439 : vector<1x128xf32>
    %441 = vector.extract_strided_slice %396 {offsets = [0, 256], sizes = [1, 128], strides = [1, 1]} : vector<1x384xf32> to vector<1x128xf32>
    %442 = vector.extract_strided_slice %398 {offsets = [0, 256], sizes = [1, 128], strides = [1, 1]} : vector<1x384xf32> to vector<1x128xf32>
    %443 = arith.mulf %432, %442 : vector<1x128xf32>
    %444 = arith.addf %441, %443 : vector<1x128xf32>
    %445 = math.tanh %444 : vector<1x128xf32>
    %cst_129 = arith.constant 1.000000e+00 : f32
    %446 = vector.broadcast %cst_129 : f32 to vector<1x128xf32>
    %447 = arith.subf %446, %440 : vector<1x128xf32>
    %448 = arith.mulf %447, %445 : vector<1x128xf32>
    %449 = arith.mulf %440, %386 : vector<1x128xf32>
    %450 = arith.addf %448, %449 : vector<1x128xf32>
    %c0_130 = arith.constant 0 : index
    %c6_131 = arith.constant 6 : index
    %c0_132 = arith.constant 0 : index
    %451 = vector.load %arg5[%c0_130, %c6_131, %c0_132] : memref<1x16x128xf32, #tpu.memory_space<vmem>>, vector<1x1x128xf32>
    %452 = vector.shape_cast %451 : vector<1x1x128xf32> to vector<1x128xf32>
    %453 = vector.shape_cast %424 : vector<1x128xf32> to vector<1x1x128xf32>
    tpu.vector_store %arg5[%c0_130, %c6_131, %c0_132], %453 {strides = array<i32>} : memref<1x16x128xf32, #tpu.memory_space<vmem>>, vector<1x1x128xf32>,
    %c0_133 = arith.constant 0 : index
    %c9_134 = arith.constant 9 : index
    %c0_135 = arith.constant 0 : index
    %454 = vector.load %arg6[%c0_133, %c9_134, %c0_135] : memref<1x16x128xf32, #tpu.memory_space<vmem>>, vector<1x1x128xf32>
    %455 = vector.shape_cast %454 : vector<1x1x128xf32> to vector<1x128xf32>
    %456 = vector.shape_cast %450 : vector<1x128xf32> to vector<1x1x128xf32>
    tpu.vector_store %arg6[%c0_133, %c9_134, %c0_135], %456 {strides = array<i32>} : memref<1x16x128xf32, #tpu.memory_space<vmem>>, vector<1x1x128xf32>,
    %c0_136 = arith.constant 0 : index
    %c7 = arith.constant 7 : index
    %c0_137 = arith.constant 0 : index
    %457 = vector.load %arg2[%c0_136, %c7, %c0_137] : memref<1x16x384xf32, #tpu.memory_space<vmem>>, vector<1x1x384xf32>
    %458 = vector.shape_cast %457 : vector<1x1x384xf32> to vector<1x384xf32>
    %c0_138 = arith.constant 0 : index
    %c8 = arith.constant 8 : index
    %c0_139 = arith.constant 0 : index
    %459 = vector.load %arg3[%c0_138, %c8, %c0_139] : memref<1x16x384xf32, #tpu.memory_space<vmem>>, vector<1x1x384xf32>
    %460 = vector.shape_cast %459 : vector<1x1x384xf32> to vector<1x384xf32>
    %cst_140 = arith.constant dense<0.000000e+00> : vector<1x384xf32>
    %461 = tpu.matmul %424, %4, %cst_140 {dimension_numbers = #tpu.dot_dimension_numbers<[1], [0], [0], [1], [0, 0, 1, 1], [], []>} : vector<1x128xf32>, vector<128x384xf32>, vector<1x384xf32> -> vector<1x384xf32>
    %cst_141 = arith.constant dense<0.000000e+00> : vector<1x384xf32>
    %462 = tpu.matmul %450, %6, %cst_141 {dimension_numbers = #tpu.dot_dimension_numbers<[1], [0], [0], [1], [0, 0, 1, 1], [], []>} : vector<1x128xf32>, vector<128x384xf32>, vector<1x384xf32> -> vector<1x384xf32>
    %463 = vector.extract_strided_slice %458 {offsets = [0, 0], sizes = [1, 128], strides = [1, 1]} : vector<1x384xf32> to vector<1x128xf32>
    %464 = vector.extract_strided_slice %461 {offsets = [0, 0], sizes = [1, 128], strides = [1, 1]} : vector<1x384xf32> to vector<1x128xf32>
    %465 = arith.addf %463, %464 : vector<1x128xf32>
    %466 = arith.negf %465 : vector<1x128xf32>
    %467 = math.exp %466 : vector<1x128xf32>
    %cst_142 = arith.constant 1.000000e+00 : f32
    %468 = vector.broadcast %cst_142 : f32 to vector<1x128xf32>
    %469 = arith.addf %468, %467 : vector<1x128xf32>
    %470 = arith.divf %468, %469 : vector<1x128xf32>
    %471 = vector.extract_strided_slice %458 {offsets = [0, 128], sizes = [1, 128], strides = [1, 1]} : vector<1x384xf32> to vector<1x128xf32>
    %472 = vector.extract_strided_slice %461 {offsets = [0, 128], sizes = [1, 128], strides = [1, 1]} : vector<1x384xf32> to vector<1x128xf32>
    %473 = arith.addf %471, %472 : vector<1x128xf32>
    %474 = arith.negf %473 : vector<1x128xf32>
    %475 = math.exp %474 : vector<1x128xf32>
    %cst_143 = arith.constant 1.000000e+00 : f32
    %476 = vector.broadcast %cst_143 : f32 to vector<1x128xf32>
    %477 = arith.addf %476, %475 : vector<1x128xf32>
    %478 = arith.divf %476, %477 : vector<1x128xf32>
    %479 = vector.extract_strided_slice %458 {offsets = [0, 256], sizes = [1, 128], strides = [1, 1]} : vector<1x384xf32> to vector<1x128xf32>
    %480 = vector.extract_strided_slice %461 {offsets = [0, 256], sizes = [1, 128], strides = [1, 1]} : vector<1x384xf32> to vector<1x128xf32>
    %481 = arith.mulf %470, %480 : vector<1x128xf32>
    %482 = arith.addf %479, %481 : vector<1x128xf32>
    %483 = math.tanh %482 : vector<1x128xf32>
    %cst_144 = arith.constant 1.000000e+00 : f32
    %484 = vector.broadcast %cst_144 : f32 to vector<1x128xf32>
    %485 = arith.subf %484, %478 : vector<1x128xf32>
    %486 = arith.mulf %485, %483 : vector<1x128xf32>
    %487 = arith.mulf %478, %424 : vector<1x128xf32>
    %488 = arith.addf %486, %487 : vector<1x128xf32>
    %489 = vector.extract_strided_slice %460 {offsets = [0, 0], sizes = [1, 128], strides = [1, 1]} : vector<1x384xf32> to vector<1x128xf32>
    %490 = vector.extract_strided_slice %462 {offsets = [0, 0], sizes = [1, 128], strides = [1, 1]} : vector<1x384xf32> to vector<1x128xf32>
    %491 = arith.addf %489, %490 : vector<1x128xf32>
    %492 = arith.negf %491 : vector<1x128xf32>
    %493 = math.exp %492 : vector<1x128xf32>
    %cst_145 = arith.constant 1.000000e+00 : f32
    %494 = vector.broadcast %cst_145 : f32 to vector<1x128xf32>
    %495 = arith.addf %494, %493 : vector<1x128xf32>
    %496 = arith.divf %494, %495 : vector<1x128xf32>
    %497 = vector.extract_strided_slice %460 {offsets = [0, 128], sizes = [1, 128], strides = [1, 1]} : vector<1x384xf32> to vector<1x128xf32>
    %498 = vector.extract_strided_slice %462 {offsets = [0, 128], sizes = [1, 128], strides = [1, 1]} : vector<1x384xf32> to vector<1x128xf32>
    %499 = arith.addf %497, %498 : vector<1x128xf32>
    %500 = arith.negf %499 : vector<1x128xf32>
    %501 = math.exp %500 : vector<1x128xf32>
    %cst_146 = arith.constant 1.000000e+00 : f32
    %502 = vector.broadcast %cst_146 : f32 to vector<1x128xf32>
    %503 = arith.addf %502, %501 : vector<1x128xf32>
    %504 = arith.divf %502, %503 : vector<1x128xf32>
    %505 = vector.extract_strided_slice %460 {offsets = [0, 256], sizes = [1, 128], strides = [1, 1]} : vector<1x384xf32> to vector<1x128xf32>
    %506 = vector.extract_strided_slice %462 {offsets = [0, 256], sizes = [1, 128], strides = [1, 1]} : vector<1x384xf32> to vector<1x128xf32>
    %507 = arith.mulf %496, %506 : vector<1x128xf32>
    %508 = arith.addf %505, %507 : vector<1x128xf32>
    %509 = math.tanh %508 : vector<1x128xf32>
    %cst_147 = arith.constant 1.000000e+00 : f32
    %510 = vector.broadcast %cst_147 : f32 to vector<1x128xf32>
    %511 = arith.subf %510, %504 : vector<1x128xf32>
    %512 = arith.mulf %511, %509 : vector<1x128xf32>
    %513 = arith.mulf %504, %450 : vector<1x128xf32>
    %514 = arith.addf %512, %513 : vector<1x128xf32>
    %c0_148 = arith.constant 0 : index
    %c7_149 = arith.constant 7 : index
    %c0_150 = arith.constant 0 : index
    %515 = vector.load %arg5[%c0_148, %c7_149, %c0_150] : memref<1x16x128xf32, #tpu.memory_space<vmem>>, vector<1x1x128xf32>
    %516 = vector.shape_cast %515 : vector<1x1x128xf32> to vector<1x128xf32>
    %517 = vector.shape_cast %488 : vector<1x128xf32> to vector<1x1x128xf32>
    tpu.vector_store %arg5[%c0_148, %c7_149, %c0_150], %517 {strides = array<i32>} : memref<1x16x128xf32, #tpu.memory_space<vmem>>, vector<1x1x128xf32>,
    %c0_151 = arith.constant 0 : index
    %c8_152 = arith.constant 8 : index
    %c0_153 = arith.constant 0 : index
    %518 = vector.load %arg6[%c0_151, %c8_152, %c0_153] : memref<1x16x128xf32, #tpu.memory_space<vmem>>, vector<1x1x128xf32>
    %519 = vector.shape_cast %518 : vector<1x1x128xf32> to vector<1x128xf32>
    %520 = vector.shape_cast %514 : vector<1x128xf32> to vector<1x1x128xf32>
    tpu.vector_store %arg6[%c0_151, %c8_152, %c0_153], %520 {strides = array<i32>} : memref<1x16x128xf32, #tpu.memory_space<vmem>>, vector<1x1x128xf32>,
    %c0_154 = arith.constant 0 : index
    %c8_155 = arith.constant 8 : index
    %c0_156 = arith.constant 0 : index
    %521 = vector.load %arg2[%c0_154, %c8_155, %c0_156] : memref<1x16x384xf32, #tpu.memory_space<vmem>>, vector<1x1x384xf32>
    %522 = vector.shape_cast %521 : vector<1x1x384xf32> to vector<1x384xf32>
    %c0_157 = arith.constant 0 : index
    %c7_158 = arith.constant 7 : index
    %c0_159 = arith.constant 0 : index
    %523 = vector.load %arg3[%c0_157, %c7_158, %c0_159] : memref<1x16x384xf32, #tpu.memory_space<vmem>>, vector<1x1x384xf32>
    %524 = vector.shape_cast %523 : vector<1x1x384xf32> to vector<1x384xf32>
    %cst_160 = arith.constant dense<0.000000e+00> : vector<1x384xf32>
    %525 = tpu.matmul %488, %4, %cst_160 {dimension_numbers = #tpu.dot_dimension_numbers<[1], [0], [0], [1], [0, 0, 1, 1], [], []>} : vector<1x128xf32>, vector<128x384xf32>, vector<1x384xf32> -> vector<1x384xf32>
    %cst_161 = arith.constant dense<0.000000e+00> : vector<1x384xf32>
    %526 = tpu.matmul %514, %6, %cst_161 {dimension_numbers = #tpu.dot_dimension_numbers<[1], [0], [0], [1], [0, 0, 1, 1], [], []>} : vector<1x128xf32>, vector<128x384xf32>, vector<1x384xf32> -> vector<1x384xf32>
    %527 = vector.extract_strided_slice %522 {offsets = [0, 0], sizes = [1, 128], strides = [1, 1]} : vector<1x384xf32> to vector<1x128xf32>
    %528 = vector.extract_strided_slice %525 {offsets = [0, 0], sizes = [1, 128], strides = [1, 1]} : vector<1x384xf32> to vector<1x128xf32>
    %529 = arith.addf %527, %528 : vector<1x128xf32>
    %530 = arith.negf %529 : vector<1x128xf32>
    %531 = math.exp %530 : vector<1x128xf32>
    %cst_162 = arith.constant 1.000000e+00 : f32
    %532 = vector.broadcast %cst_162 : f32 to vector<1x128xf32>
    %533 = arith.addf %532, %531 : vector<1x128xf32>
    %534 = arith.divf %532, %533 : vector<1x128xf32>
    %535 = vector.extract_strided_slice %522 {offsets = [0, 128], sizes = [1, 128], strides = [1, 1]} : vector<1x384xf32> to vector<1x128xf32>
    %536 = vector.extract_strided_slice %525 {offsets = [0, 128], sizes = [1, 128], strides = [1, 1]} : vector<1x384xf32> to vector<1x128xf32>
    %537 = arith.addf %535, %536 : vector<1x128xf32>
    %538 = arith.negf %537 : vector<1x128xf32>
    %539 = math.exp %538 : vector<1x128xf32>
    %cst_163 = arith.constant 1.000000e+00 : f32
    %540 = vector.broadcast %cst_163 : f32 to vector<1x128xf32>
    %541 = arith.addf %540, %539 : vector<1x128xf32>
    %542 = arith.divf %540, %541 : vector<1x128xf32>
    %543 = vector.extract_strided_slice %522 {offsets = [0, 256], sizes = [1, 128], strides = [1, 1]} : vector<1x384xf32> to vector<1x128xf32>
    %544 = vector.extract_strided_slice %525 {offsets = [0, 256], sizes = [1, 128], strides = [1, 1]} : vector<1x384xf32> to vector<1x128xf32>
    %545 = arith.mulf %534, %544 : vector<1x128xf32>
    %546 = arith.addf %543, %545 : vector<1x128xf32>
    %547 = math.tanh %546 : vector<1x128xf32>
    %cst_164 = arith.constant 1.000000e+00 : f32
    %548 = vector.broadcast %cst_164 : f32 to vector<1x128xf32>
    %549 = arith.subf %548, %542 : vector<1x128xf32>
    %550 = arith.mulf %549, %547 : vector<1x128xf32>
    %551 = arith.mulf %542, %488 : vector<1x128xf32>
    %552 = arith.addf %550, %551 : vector<1x128xf32>
    %553 = vector.extract_strided_slice %524 {offsets = [0, 0], sizes = [1, 128], strides = [1, 1]} : vector<1x384xf32> to vector<1x128xf32>
    %554 = vector.extract_strided_slice %526 {offsets = [0, 0], sizes = [1, 128], strides = [1, 1]} : vector<1x384xf32> to vector<1x128xf32>
    %555 = arith.addf %553, %554 : vector<1x128xf32>
    %556 = arith.negf %555 : vector<1x128xf32>
    %557 = math.exp %556 : vector<1x128xf32>
    %cst_165 = arith.constant 1.000000e+00 : f32
    %558 = vector.broadcast %cst_165 : f32 to vector<1x128xf32>
    %559 = arith.addf %558, %557 : vector<1x128xf32>
    %560 = arith.divf %558, %559 : vector<1x128xf32>
    %561 = vector.extract_strided_slice %524 {offsets = [0, 128], sizes = [1, 128], strides = [1, 1]} : vector<1x384xf32> to vector<1x128xf32>
    %562 = vector.extract_strided_slice %526 {offsets = [0, 128], sizes = [1, 128], strides = [1, 1]} : vector<1x384xf32> to vector<1x128xf32>
    %563 = arith.addf %561, %562 : vector<1x128xf32>
    %564 = arith.negf %563 : vector<1x128xf32>
    %565 = math.exp %564 : vector<1x128xf32>
    %cst_166 = arith.constant 1.000000e+00 : f32
    %566 = vector.broadcast %cst_166 : f32 to vector<1x128xf32>
    %567 = arith.addf %566, %565 : vector<1x128xf32>
    %568 = arith.divf %566, %567 : vector<1x128xf32>
    %569 = vector.extract_strided_slice %524 {offsets = [0, 256], sizes = [1, 128], strides = [1, 1]} : vector<1x384xf32> to vector<1x128xf32>
    %570 = vector.extract_strided_slice %526 {offsets = [0, 256], sizes = [1, 128], strides = [1, 1]} : vector<1x384xf32> to vector<1x128xf32>
    %571 = arith.mulf %560, %570 : vector<1x128xf32>
    %572 = arith.addf %569, %571 : vector<1x128xf32>
    %573 = math.tanh %572 : vector<1x128xf32>
    %cst_167 = arith.constant 1.000000e+00 : f32
    %574 = vector.broadcast %cst_167 : f32 to vector<1x128xf32>
    %575 = arith.subf %574, %568 : vector<1x128xf32>
    %576 = arith.mulf %575, %573 : vector<1x128xf32>
    %577 = arith.mulf %568, %514 : vector<1x128xf32>
    %578 = arith.addf %576, %577 : vector<1x128xf32>
    %c0_168 = arith.constant 0 : index
    %c8_169 = arith.constant 8 : index
    %c0_170 = arith.constant 0 : index
    %579 = vector.load %arg5[%c0_168, %c8_169, %c0_170] : memref<1x16x128xf32, #tpu.memory_space<vmem>>, vector<1x1x128xf32>
    %580 = vector.shape_cast %579 : vector<1x1x128xf32> to vector<1x128xf32>
    %581 = vector.shape_cast %552 : vector<1x128xf32> to vector<1x1x128xf32>
    tpu.vector_store %arg5[%c0_168, %c8_169, %c0_170], %581 {strides = array<i32>} : memref<1x16x128xf32, #tpu.memory_space<vmem>>, vector<1x1x128xf32>,
    %c0_171 = arith.constant 0 : index
    %c7_172 = arith.constant 7 : index
    %c0_173 = arith.constant 0 : index
    %582 = vector.load %arg6[%c0_171, %c7_172, %c0_173] : memref<1x16x128xf32, #tpu.memory_space<vmem>>, vector<1x1x128xf32>
    %583 = vector.shape_cast %582 : vector<1x1x128xf32> to vector<1x128xf32>
    %584 = vector.shape_cast %578 : vector<1x128xf32> to vector<1x1x128xf32>
    tpu.vector_store %arg6[%c0_171, %c7_172, %c0_173], %584 {strides = array<i32>} : memref<1x16x128xf32, #tpu.memory_space<vmem>>, vector<1x1x128xf32>,
    %c0_174 = arith.constant 0 : index
    %c9_175 = arith.constant 9 : index
    %c0_176 = arith.constant 0 : index
    %585 = vector.load %arg2[%c0_174, %c9_175, %c0_176] : memref<1x16x384xf32, #tpu.memory_space<vmem>>, vector<1x1x384xf32>
    %586 = vector.shape_cast %585 : vector<1x1x384xf32> to vector<1x384xf32>
    %c0_177 = arith.constant 0 : index
    %c6_178 = arith.constant 6 : index
    %c0_179 = arith.constant 0 : index
    %587 = vector.load %arg3[%c0_177, %c6_178, %c0_179] : memref<1x16x384xf32, #tpu.memory_space<vmem>>, vector<1x1x384xf32>
    %588 = vector.shape_cast %587 : vector<1x1x384xf32> to vector<1x384xf32>
    %cst_180 = arith.constant dense<0.000000e+00> : vector<1x384xf32>
    %589 = tpu.matmul %552, %4, %cst_180 {dimension_numbers = #tpu.dot_dimension_numbers<[1], [0], [0], [1], [0, 0, 1, 1], [], []>} : vector<1x128xf32>, vector<128x384xf32>, vector<1x384xf32> -> vector<1x384xf32>
    %cst_181 = arith.constant dense<0.000000e+00> : vector<1x384xf32>
    %590 = tpu.matmul %578, %6, %cst_181 {dimension_numbers = #tpu.dot_dimension_numbers<[1], [0], [0], [1], [0, 0, 1, 1], [], []>} : vector<1x128xf32>, vector<128x384xf32>, vector<1x384xf32> -> vector<1x384xf32>
    %591 = vector.extract_strided_slice %586 {offsets = [0, 0], sizes = [1, 128], strides = [1, 1]} : vector<1x384xf32> to vector<1x128xf32>
    %592 = vector.extract_strided_slice %589 {offsets = [0, 0], sizes = [1, 128], strides = [1, 1]} : vector<1x384xf32> to vector<1x128xf32>
    %593 = arith.addf %591, %592 : vector<1x128xf32>
    %594 = arith.negf %593 : vector<1x128xf32>
    %595 = math.exp %594 : vector<1x128xf32>
    %cst_182 = arith.constant 1.000000e+00 : f32
    %596 = vector.broadcast %cst_182 : f32 to vector<1x128xf32>
    %597 = arith.addf %596, %595 : vector<1x128xf32>
    %598 = arith.divf %596, %597 : vector<1x128xf32>
    %599 = vector.extract_strided_slice %586 {offsets = [0, 128], sizes = [1, 128], strides = [1, 1]} : vector<1x384xf32> to vector<1x128xf32>
    %600 = vector.extract_strided_slice %589 {offsets = [0, 128], sizes = [1, 128], strides = [1, 1]} : vector<1x384xf32> to vector<1x128xf32>
    %601 = arith.addf %599, %600 : vector<1x128xf32>
    %602 = arith.negf %601 : vector<1x128xf32>
    %603 = math.exp %602 : vector<1x128xf32>
    %cst_183 = arith.constant 1.000000e+00 : f32
    %604 = vector.broadcast %cst_183 : f32 to vector<1x128xf32>
    %605 = arith.addf %604, %603 : vector<1x128xf32>
    %606 = arith.divf %604, %605 : vector<1x128xf32>
    %607 = vector.extract_strided_slice %586 {offsets = [0, 256], sizes = [1, 128], strides = [1, 1]} : vector<1x384xf32> to vector<1x128xf32>
    %608 = vector.extract_strided_slice %589 {offsets = [0, 256], sizes = [1, 128], strides = [1, 1]} : vector<1x384xf32> to vector<1x128xf32>
    %609 = arith.mulf %598, %608 : vector<1x128xf32>
    %610 = arith.addf %607, %609 : vector<1x128xf32>
    %611 = math.tanh %610 : vector<1x128xf32>
    %cst_184 = arith.constant 1.000000e+00 : f32
    %612 = vector.broadcast %cst_184 : f32 to vector<1x128xf32>
    %613 = arith.subf %612, %606 : vector<1x128xf32>
    %614 = arith.mulf %613, %611 : vector<1x128xf32>
    %615 = arith.mulf %606, %552 : vector<1x128xf32>
    %616 = arith.addf %614, %615 : vector<1x128xf32>
    %617 = vector.extract_strided_slice %588 {offsets = [0, 0], sizes = [1, 128], strides = [1, 1]} : vector<1x384xf32> to vector<1x128xf32>
    %618 = vector.extract_strided_slice %590 {offsets = [0, 0], sizes = [1, 128], strides = [1, 1]} : vector<1x384xf32> to vector<1x128xf32>
    %619 = arith.addf %617, %618 : vector<1x128xf32>
    %620 = arith.negf %619 : vector<1x128xf32>
    %621 = math.exp %620 : vector<1x128xf32>
    %cst_185 = arith.constant 1.000000e+00 : f32
    %622 = vector.broadcast %cst_185 : f32 to vector<1x128xf32>
    %623 = arith.addf %622, %621 : vector<1x128xf32>
    %624 = arith.divf %622, %623 : vector<1x128xf32>
    %625 = vector.extract_strided_slice %588 {offsets = [0, 128], sizes = [1, 128], strides = [1, 1]} : vector<1x384xf32> to vector<1x128xf32>
    %626 = vector.extract_strided_slice %590 {offsets = [0, 128], sizes = [1, 128], strides = [1, 1]} : vector<1x384xf32> to vector<1x128xf32>
    %627 = arith.addf %625, %626 : vector<1x128xf32>
    %628 = arith.negf %627 : vector<1x128xf32>
    %629 = math.exp %628 : vector<1x128xf32>
    %cst_186 = arith.constant 1.000000e+00 : f32
    %630 = vector.broadcast %cst_186 : f32 to vector<1x128xf32>
    %631 = arith.addf %630, %629 : vector<1x128xf32>
    %632 = arith.divf %630, %631 : vector<1x128xf32>
    %633 = vector.extract_strided_slice %588 {offsets = [0, 256], sizes = [1, 128], strides = [1, 1]} : vector<1x384xf32> to vector<1x128xf32>
    %634 = vector.extract_strided_slice %590 {offsets = [0, 256], sizes = [1, 128], strides = [1, 1]} : vector<1x384xf32> to vector<1x128xf32>
    %635 = arith.mulf %624, %634 : vector<1x128xf32>
    %636 = arith.addf %633, %635 : vector<1x128xf32>
    %637 = math.tanh %636 : vector<1x128xf32>
    %cst_187 = arith.constant 1.000000e+00 : f32
    %638 = vector.broadcast %cst_187 : f32 to vector<1x128xf32>
    %639 = arith.subf %638, %632 : vector<1x128xf32>
    %640 = arith.mulf %639, %637 : vector<1x128xf32>
    %641 = arith.mulf %632, %578 : vector<1x128xf32>
    %642 = arith.addf %640, %641 : vector<1x128xf32>
    %c0_188 = arith.constant 0 : index
    %c9_189 = arith.constant 9 : index
    %c0_190 = arith.constant 0 : index
    %643 = vector.load %arg5[%c0_188, %c9_189, %c0_190] : memref<1x16x128xf32, #tpu.memory_space<vmem>>, vector<1x1x128xf32>
    %644 = vector.shape_cast %643 : vector<1x1x128xf32> to vector<1x128xf32>
    %645 = vector.shape_cast %616 : vector<1x128xf32> to vector<1x1x128xf32>
    tpu.vector_store %arg5[%c0_188, %c9_189, %c0_190], %645 {strides = array<i32>} : memref<1x16x128xf32, #tpu.memory_space<vmem>>, vector<1x1x128xf32>,
    %c0_191 = arith.constant 0 : index
    %c6_192 = arith.constant 6 : index
    %c0_193 = arith.constant 0 : index
    %646 = vector.load %arg6[%c0_191, %c6_192, %c0_193] : memref<1x16x128xf32, #tpu.memory_space<vmem>>, vector<1x1x128xf32>
    %647 = vector.shape_cast %646 : vector<1x1x128xf32> to vector<1x128xf32>
    %648 = vector.shape_cast %642 : vector<1x128xf32> to vector<1x1x128xf32>
    tpu.vector_store %arg6[%c0_191, %c6_192, %c0_193], %648 {strides = array<i32>} : memref<1x16x128xf32, #tpu.memory_space<vmem>>, vector<1x1x128xf32>,
    %c0_194 = arith.constant 0 : index
    %c10_195 = arith.constant 10 : index
    %c0_196 = arith.constant 0 : index
    %649 = vector.load %arg2[%c0_194, %c10_195, %c0_196] : memref<1x16x384xf32, #tpu.memory_space<vmem>>, vector<1x1x384xf32>
    %650 = vector.shape_cast %649 : vector<1x1x384xf32> to vector<1x384xf32>
    %c0_197 = arith.constant 0 : index
    %c5_198 = arith.constant 5 : index
    %c0_199 = arith.constant 0 : index
    %651 = vector.load %arg3[%c0_197, %c5_198, %c0_199] : memref<1x16x384xf32, #tpu.memory_space<vmem>>, vector<1x1x384xf32>
    %652 = vector.shape_cast %651 : vector<1x1x384xf32> to vector<1x384xf32>
    %cst_200 = arith.constant dense<0.000000e+00> : vector<1x384xf32>
    %653 = tpu.matmul %616, %4, %cst_200 {dimension_numbers = #tpu.dot_dimension_numbers<[1], [0], [0], [1], [0, 0, 1, 1], [], []>} : vector<1x128xf32>, vector<128x384xf32>, vector<1x384xf32> -> vector<1x384xf32>
    %cst_201 = arith.constant dense<0.000000e+00> : vector<1x384xf32>
    %654 = tpu.matmul %642, %6, %cst_201 {dimension_numbers = #tpu.dot_dimension_numbers<[1], [0], [0], [1], [0, 0, 1, 1], [], []>} : vector<1x128xf32>, vector<128x384xf32>, vector<1x384xf32> -> vector<1x384xf32>
    %655 = vector.extract_strided_slice %650 {offsets = [0, 0], sizes = [1, 128], strides = [1, 1]} : vector<1x384xf32> to vector<1x128xf32>
    %656 = vector.extract_strided_slice %653 {offsets = [0, 0], sizes = [1, 128], strides = [1, 1]} : vector<1x384xf32> to vector<1x128xf32>
    %657 = arith.addf %655, %656 : vector<1x128xf32>
    %658 = arith.negf %657 : vector<1x128xf32>
    %659 = math.exp %658 : vector<1x128xf32>
    %cst_202 = arith.constant 1.000000e+00 : f32
    %660 = vector.broadcast %cst_202 : f32 to vector<1x128xf32>
    %661 = arith.addf %660, %659 : vector<1x128xf32>
    %662 = arith.divf %660, %661 : vector<1x128xf32>
    %663 = vector.extract_strided_slice %650 {offsets = [0, 128], sizes = [1, 128], strides = [1, 1]} : vector<1x384xf32> to vector<1x128xf32>
    %664 = vector.extract_strided_slice %653 {offsets = [0, 128], sizes = [1, 128], strides = [1, 1]} : vector<1x384xf32> to vector<1x128xf32>
    %665 = arith.addf %663, %664 : vector<1x128xf32>
    %666 = arith.negf %665 : vector<1x128xf32>
    %667 = math.exp %666 : vector<1x128xf32>
    %cst_203 = arith.constant 1.000000e+00 : f32
    %668 = vector.broadcast %cst_203 : f32 to vector<1x128xf32>
    %669 = arith.addf %668, %667 : vector<1x128xf32>
    %670 = arith.divf %668, %669 : vector<1x128xf32>
    %671 = vector.extract_strided_slice %650 {offsets = [0, 256], sizes = [1, 128], strides = [1, 1]} : vector<1x384xf32> to vector<1x128xf32>
    %672 = vector.extract_strided_slice %653 {offsets = [0, 256], sizes = [1, 128], strides = [1, 1]} : vector<1x384xf32> to vector<1x128xf32>
    %673 = arith.mulf %662, %672 : vector<1x128xf32>
    %674 = arith.addf %671, %673 : vector<1x128xf32>
    %675 = math.tanh %674 : vector<1x128xf32>
    %cst_204 = arith.constant 1.000000e+00 : f32
    %676 = vector.broadcast %cst_204 : f32 to vector<1x128xf32>
    %677 = arith.subf %676, %670 : vector<1x128xf32>
    %678 = arith.mulf %677, %675 : vector<1x128xf32>
    %679 = arith.mulf %670, %616 : vector<1x128xf32>
    %680 = arith.addf %678, %679 : vector<1x128xf32>
    %681 = vector.extract_strided_slice %652 {offsets = [0, 0], sizes = [1, 128], strides = [1, 1]} : vector<1x384xf32> to vector<1x128xf32>
    %682 = vector.extract_strided_slice %654 {offsets = [0, 0], sizes = [1, 128], strides = [1, 1]} : vector<1x384xf32> to vector<1x128xf32>
    %683 = arith.addf %681, %682 : vector<1x128xf32>
    %684 = arith.negf %683 : vector<1x128xf32>
    %685 = math.exp %684 : vector<1x128xf32>
    %cst_205 = arith.constant 1.000000e+00 : f32
    %686 = vector.broadcast %cst_205 : f32 to vector<1x128xf32>
    %687 = arith.addf %686, %685 : vector<1x128xf32>
    %688 = arith.divf %686, %687 : vector<1x128xf32>
    %689 = vector.extract_strided_slice %652 {offsets = [0, 128], sizes = [1, 128], strides = [1, 1]} : vector<1x384xf32> to vector<1x128xf32>
    %690 = vector.extract_strided_slice %654 {offsets = [0, 128], sizes = [1, 128], strides = [1, 1]} : vector<1x384xf32> to vector<1x128xf32>
    %691 = arith.addf %689, %690 : vector<1x128xf32>
    %692 = arith.negf %691 : vector<1x128xf32>
    %693 = math.exp %692 : vector<1x128xf32>
    %cst_206 = arith.constant 1.000000e+00 : f32
    %694 = vector.broadcast %cst_206 : f32 to vector<1x128xf32>
    %695 = arith.addf %694, %693 : vector<1x128xf32>
    %696 = arith.divf %694, %695 : vector<1x128xf32>
    %697 = vector.extract_strided_slice %652 {offsets = [0, 256], sizes = [1, 128], strides = [1, 1]} : vector<1x384xf32> to vector<1x128xf32>
    %698 = vector.extract_strided_slice %654 {offsets = [0, 256], sizes = [1, 128], strides = [1, 1]} : vector<1x384xf32> to vector<1x128xf32>
    %699 = arith.mulf %688, %698 : vector<1x128xf32>
    %700 = arith.addf %697, %699 : vector<1x128xf32>
    %701 = math.tanh %700 : vector<1x128xf32>
    %cst_207 = arith.constant 1.000000e+00 : f32
    %702 = vector.broadcast %cst_207 : f32 to vector<1x128xf32>
    %703 = arith.subf %702, %696 : vector<1x128xf32>
    %704 = arith.mulf %703, %701 : vector<1x128xf32>
    %705 = arith.mulf %696, %642 : vector<1x128xf32>
    %706 = arith.addf %704, %705 : vector<1x128xf32>
    %c0_208 = arith.constant 0 : index
    %c10_209 = arith.constant 10 : index
    %c0_210 = arith.constant 0 : index
    %707 = vector.load %arg5[%c0_208, %c10_209, %c0_210] : memref<1x16x128xf32, #tpu.memory_space<vmem>>, vector<1x1x128xf32>
    %708 = vector.shape_cast %707 : vector<1x1x128xf32> to vector<1x128xf32>
    %709 = vector.shape_cast %680 : vector<1x128xf32> to vector<1x1x128xf32>
    tpu.vector_store %arg5[%c0_208, %c10_209, %c0_210], %709 {strides = array<i32>} : memref<1x16x128xf32, #tpu.memory_space<vmem>>, vector<1x1x128xf32>,
    %c0_211 = arith.constant 0 : index
    %c5_212 = arith.constant 5 : index
    %c0_213 = arith.constant 0 : index
    %710 = vector.load %arg6[%c0_211, %c5_212, %c0_213] : memref<1x16x128xf32, #tpu.memory_space<vmem>>, vector<1x1x128xf32>
    %711 = vector.shape_cast %710 : vector<1x1x128xf32> to vector<1x128xf32>
    %712 = vector.shape_cast %706 : vector<1x128xf32> to vector<1x1x128xf32>
    tpu.vector_store %arg6[%c0_211, %c5_212, %c0_213], %712 {strides = array<i32>} : memref<1x16x128xf32, #tpu.memory_space<vmem>>, vector<1x1x128xf32>,
    %c0_214 = arith.constant 0 : index
    %c11_215 = arith.constant 11 : index
    %c0_216 = arith.constant 0 : index
    %713 = vector.load %arg2[%c0_214, %c11_215, %c0_216] : memref<1x16x384xf32, #tpu.memory_space<vmem>>, vector<1x1x384xf32>
    %714 = vector.shape_cast %713 : vector<1x1x384xf32> to vector<1x384xf32>
    %c0_217 = arith.constant 0 : index
    %c4_218 = arith.constant 4 : index
    %c0_219 = arith.constant 0 : index
    %715 = vector.load %arg3[%c0_217, %c4_218, %c0_219] : memref<1x16x384xf32, #tpu.memory_space<vmem>>, vector<1x1x384xf32>
    %716 = vector.shape_cast %715 : vector<1x1x384xf32> to vector<1x384xf32>
    %cst_220 = arith.constant dense<0.000000e+00> : vector<1x384xf32>
    %717 = tpu.matmul %680, %4, %cst_220 {dimension_numbers = #tpu.dot_dimension_numbers<[1], [0], [0], [1], [0, 0, 1, 1], [], []>} : vector<1x128xf32>, vector<128x384xf32>, vector<1x384xf32> -> vector<1x384xf32>
    %cst_221 = arith.constant dense<0.000000e+00> : vector<1x384xf32>
    %718 = tpu.matmul %706, %6, %cst_221 {dimension_numbers = #tpu.dot_dimension_numbers<[1], [0], [0], [1], [0, 0, 1, 1], [], []>} : vector<1x128xf32>, vector<128x384xf32>, vector<1x384xf32> -> vector<1x384xf32>
    %719 = vector.extract_strided_slice %714 {offsets = [0, 0], sizes = [1, 128], strides = [1, 1]} : vector<1x384xf32> to vector<1x128xf32>
    %720 = vector.extract_strided_slice %717 {offsets = [0, 0], sizes = [1, 128], strides = [1, 1]} : vector<1x384xf32> to vector<1x128xf32>
    %721 = arith.addf %719, %720 : vector<1x128xf32>
    %722 = arith.negf %721 : vector<1x128xf32>
    %723 = math.exp %722 : vector<1x128xf32>
    %cst_222 = arith.constant 1.000000e+00 : f32
    %724 = vector.broadcast %cst_222 : f32 to vector<1x128xf32>
    %725 = arith.addf %724, %723 : vector<1x128xf32>
    %726 = arith.divf %724, %725 : vector<1x128xf32>
    %727 = vector.extract_strided_slice %714 {offsets = [0, 128], sizes = [1, 128], strides = [1, 1]} : vector<1x384xf32> to vector<1x128xf32>
    %728 = vector.extract_strided_slice %717 {offsets = [0, 128], sizes = [1, 128], strides = [1, 1]} : vector<1x384xf32> to vector<1x128xf32>
    %729 = arith.addf %727, %728 : vector<1x128xf32>
    %730 = arith.negf %729 : vector<1x128xf32>
    %731 = math.exp %730 : vector<1x128xf32>
    %cst_223 = arith.constant 1.000000e+00 : f32
    %732 = vector.broadcast %cst_223 : f32 to vector<1x128xf32>
    %733 = arith.addf %732, %731 : vector<1x128xf32>
    %734 = arith.divf %732, %733 : vector<1x128xf32>
    %735 = vector.extract_strided_slice %714 {offsets = [0, 256], sizes = [1, 128], strides = [1, 1]} : vector<1x384xf32> to vector<1x128xf32>
    %736 = vector.extract_strided_slice %717 {offsets = [0, 256], sizes = [1, 128], strides = [1, 1]} : vector<1x384xf32> to vector<1x128xf32>
    %737 = arith.mulf %726, %736 : vector<1x128xf32>
    %738 = arith.addf %735, %737 : vector<1x128xf32>
    %739 = math.tanh %738 : vector<1x128xf32>
    %cst_224 = arith.constant 1.000000e+00 : f32
    %740 = vector.broadcast %cst_224 : f32 to vector<1x128xf32>
    %741 = arith.subf %740, %734 : vector<1x128xf32>
    %742 = arith.mulf %741, %739 : vector<1x128xf32>
    %743 = arith.mulf %734, %680 : vector<1x128xf32>
    %744 = arith.addf %742, %743 : vector<1x128xf32>
    %745 = vector.extract_strided_slice %716 {offsets = [0, 0], sizes = [1, 128], strides = [1, 1]} : vector<1x384xf32> to vector<1x128xf32>
    %746 = vector.extract_strided_slice %718 {offsets = [0, 0], sizes = [1, 128], strides = [1, 1]} : vector<1x384xf32> to vector<1x128xf32>
    %747 = arith.addf %745, %746 : vector<1x128xf32>
    %748 = arith.negf %747 : vector<1x128xf32>
    %749 = math.exp %748 : vector<1x128xf32>
    %cst_225 = arith.constant 1.000000e+00 : f32
    %750 = vector.broadcast %cst_225 : f32 to vector<1x128xf32>
    %751 = arith.addf %750, %749 : vector<1x128xf32>
    %752 = arith.divf %750, %751 : vector<1x128xf32>
    %753 = vector.extract_strided_slice %716 {offsets = [0, 128], sizes = [1, 128], strides = [1, 1]} : vector<1x384xf32> to vector<1x128xf32>
    %754 = vector.extract_strided_slice %718 {offsets = [0, 128], sizes = [1, 128], strides = [1, 1]} : vector<1x384xf32> to vector<1x128xf32>
    %755 = arith.addf %753, %754 : vector<1x128xf32>
    %756 = arith.negf %755 : vector<1x128xf32>
    %757 = math.exp %756 : vector<1x128xf32>
    %cst_226 = arith.constant 1.000000e+00 : f32
    %758 = vector.broadcast %cst_226 : f32 to vector<1x128xf32>
    %759 = arith.addf %758, %757 : vector<1x128xf32>
    %760 = arith.divf %758, %759 : vector<1x128xf32>
    %761 = vector.extract_strided_slice %716 {offsets = [0, 256], sizes = [1, 128], strides = [1, 1]} : vector<1x384xf32> to vector<1x128xf32>
    %762 = vector.extract_strided_slice %718 {offsets = [0, 256], sizes = [1, 128], strides = [1, 1]} : vector<1x384xf32> to vector<1x128xf32>
    %763 = arith.mulf %752, %762 : vector<1x128xf32>
    %764 = arith.addf %761, %763 : vector<1x128xf32>
    %765 = math.tanh %764 : vector<1x128xf32>
    %cst_227 = arith.constant 1.000000e+00 : f32
    %766 = vector.broadcast %cst_227 : f32 to vector<1x128xf32>
    %767 = arith.subf %766, %760 : vector<1x128xf32>
    %768 = arith.mulf %767, %765 : vector<1x128xf32>
    %769 = arith.mulf %760, %706 : vector<1x128xf32>
    %770 = arith.addf %768, %769 : vector<1x128xf32>
    %c0_228 = arith.constant 0 : index
    %c11_229 = arith.constant 11 : index
    %c0_230 = arith.constant 0 : index
    %771 = vector.load %arg5[%c0_228, %c11_229, %c0_230] : memref<1x16x128xf32, #tpu.memory_space<vmem>>, vector<1x1x128xf32>
    %772 = vector.shape_cast %771 : vector<1x1x128xf32> to vector<1x128xf32>
    %773 = vector.shape_cast %744 : vector<1x128xf32> to vector<1x1x128xf32>
    tpu.vector_store %arg5[%c0_228, %c11_229, %c0_230], %773 {strides = array<i32>} : memref<1x16x128xf32, #tpu.memory_space<vmem>>, vector<1x1x128xf32>,
    %c0_231 = arith.constant 0 : index
    %c4_232 = arith.constant 4 : index
    %c0_233 = arith.constant 0 : index
    %774 = vector.load %arg6[%c0_231, %c4_232, %c0_233] : memref<1x16x128xf32, #tpu.memory_space<vmem>>, vector<1x1x128xf32>
    %775 = vector.shape_cast %774 : vector<1x1x128xf32> to vector<1x128xf32>
    %776 = vector.shape_cast %770 : vector<1x128xf32> to vector<1x1x128xf32>
    tpu.vector_store %arg6[%c0_231, %c4_232, %c0_233], %776 {strides = array<i32>} : memref<1x16x128xf32, #tpu.memory_space<vmem>>, vector<1x1x128xf32>,
    %c0_234 = arith.constant 0 : index
    %c12_235 = arith.constant 12 : index
    %c0_236 = arith.constant 0 : index
    %777 = vector.load %arg2[%c0_234, %c12_235, %c0_236] : memref<1x16x384xf32, #tpu.memory_space<vmem>>, vector<1x1x384xf32>
    %778 = vector.shape_cast %777 : vector<1x1x384xf32> to vector<1x384xf32>
    %c0_237 = arith.constant 0 : index
    %c3_238 = arith.constant 3 : index
    %c0_239 = arith.constant 0 : index
    %779 = vector.load %arg3[%c0_237, %c3_238, %c0_239] : memref<1x16x384xf32, #tpu.memory_space<vmem>>, vector<1x1x384xf32>
    %780 = vector.shape_cast %779 : vector<1x1x384xf32> to vector<1x384xf32>
    %cst_240 = arith.constant dense<0.000000e+00> : vector<1x384xf32>
    %781 = tpu.matmul %744, %4, %cst_240 {dimension_numbers = #tpu.dot_dimension_numbers<[1], [0], [0], [1], [0, 0, 1, 1], [], []>} : vector<1x128xf32>, vector<128x384xf32>, vector<1x384xf32> -> vector<1x384xf32>
    %cst_241 = arith.constant dense<0.000000e+00> : vector<1x384xf32>
    %782 = tpu.matmul %770, %6, %cst_241 {dimension_numbers = #tpu.dot_dimension_numbers<[1], [0], [0], [1], [0, 0, 1, 1], [], []>} : vector<1x128xf32>, vector<128x384xf32>, vector<1x384xf32> -> vector<1x384xf32>
    %783 = vector.extract_strided_slice %778 {offsets = [0, 0], sizes = [1, 128], strides = [1, 1]} : vector<1x384xf32> to vector<1x128xf32>
    %784 = vector.extract_strided_slice %781 {offsets = [0, 0], sizes = [1, 128], strides = [1, 1]} : vector<1x384xf32> to vector<1x128xf32>
    %785 = arith.addf %783, %784 : vector<1x128xf32>
    %786 = arith.negf %785 : vector<1x128xf32>
    %787 = math.exp %786 : vector<1x128xf32>
    %cst_242 = arith.constant 1.000000e+00 : f32
    %788 = vector.broadcast %cst_242 : f32 to vector<1x128xf32>
    %789 = arith.addf %788, %787 : vector<1x128xf32>
    %790 = arith.divf %788, %789 : vector<1x128xf32>
    %791 = vector.extract_strided_slice %778 {offsets = [0, 128], sizes = [1, 128], strides = [1, 1]} : vector<1x384xf32> to vector<1x128xf32>
    %792 = vector.extract_strided_slice %781 {offsets = [0, 128], sizes = [1, 128], strides = [1, 1]} : vector<1x384xf32> to vector<1x128xf32>
    %793 = arith.addf %791, %792 : vector<1x128xf32>
    %794 = arith.negf %793 : vector<1x128xf32>
    %795 = math.exp %794 : vector<1x128xf32>
    %cst_243 = arith.constant 1.000000e+00 : f32
    %796 = vector.broadcast %cst_243 : f32 to vector<1x128xf32>
    %797 = arith.addf %796, %795 : vector<1x128xf32>
    %798 = arith.divf %796, %797 : vector<1x128xf32>
    %799 = vector.extract_strided_slice %778 {offsets = [0, 256], sizes = [1, 128], strides = [1, 1]} : vector<1x384xf32> to vector<1x128xf32>
    %800 = vector.extract_strided_slice %781 {offsets = [0, 256], sizes = [1, 128], strides = [1, 1]} : vector<1x384xf32> to vector<1x128xf32>
    %801 = arith.mulf %790, %800 : vector<1x128xf32>
    %802 = arith.addf %799, %801 : vector<1x128xf32>
    %803 = math.tanh %802 : vector<1x128xf32>
    %cst_244 = arith.constant 1.000000e+00 : f32
    %804 = vector.broadcast %cst_244 : f32 to vector<1x128xf32>
    %805 = arith.subf %804, %798 : vector<1x128xf32>
    %806 = arith.mulf %805, %803 : vector<1x128xf32>
    %807 = arith.mulf %798, %744 : vector<1x128xf32>
    %808 = arith.addf %806, %807 : vector<1x128xf32>
    %809 = vector.extract_strided_slice %780 {offsets = [0, 0], sizes = [1, 128], strides = [1, 1]} : vector<1x384xf32> to vector<1x128xf32>
    %810 = vector.extract_strided_slice %782 {offsets = [0, 0], sizes = [1, 128], strides = [1, 1]} : vector<1x384xf32> to vector<1x128xf32>
    %811 = arith.addf %809, %810 : vector<1x128xf32>
    %812 = arith.negf %811 : vector<1x128xf32>
    %813 = math.exp %812 : vector<1x128xf32>
    %cst_245 = arith.constant 1.000000e+00 : f32
    %814 = vector.broadcast %cst_245 : f32 to vector<1x128xf32>
    %815 = arith.addf %814, %813 : vector<1x128xf32>
    %816 = arith.divf %814, %815 : vector<1x128xf32>
    %817 = vector.extract_strided_slice %780 {offsets = [0, 128], sizes = [1, 128], strides = [1, 1]} : vector<1x384xf32> to vector<1x128xf32>
    %818 = vector.extract_strided_slice %782 {offsets = [0, 128], sizes = [1, 128], strides = [1, 1]} : vector<1x384xf32> to vector<1x128xf32>
    %819 = arith.addf %817, %818 : vector<1x128xf32>
    %820 = arith.negf %819 : vector<1x128xf32>
    %821 = math.exp %820 : vector<1x128xf32>
    %cst_246 = arith.constant 1.000000e+00 : f32
    %822 = vector.broadcast %cst_246 : f32 to vector<1x128xf32>
    %823 = arith.addf %822, %821 : vector<1x128xf32>
    %824 = arith.divf %822, %823 : vector<1x128xf32>
    %825 = vector.extract_strided_slice %780 {offsets = [0, 256], sizes = [1, 128], strides = [1, 1]} : vector<1x384xf32> to vector<1x128xf32>
    %826 = vector.extract_strided_slice %782 {offsets = [0, 256], sizes = [1, 128], strides = [1, 1]} : vector<1x384xf32> to vector<1x128xf32>
    %827 = arith.mulf %816, %826 : vector<1x128xf32>
    %828 = arith.addf %825, %827 : vector<1x128xf32>
    %829 = math.tanh %828 : vector<1x128xf32>
    %cst_247 = arith.constant 1.000000e+00 : f32
    %830 = vector.broadcast %cst_247 : f32 to vector<1x128xf32>
    %831 = arith.subf %830, %824 : vector<1x128xf32>
    %832 = arith.mulf %831, %829 : vector<1x128xf32>
    %833 = arith.mulf %824, %770 : vector<1x128xf32>
    %834 = arith.addf %832, %833 : vector<1x128xf32>
    %c0_248 = arith.constant 0 : index
    %c12_249 = arith.constant 12 : index
    %c0_250 = arith.constant 0 : index
    %835 = vector.load %arg5[%c0_248, %c12_249, %c0_250] : memref<1x16x128xf32, #tpu.memory_space<vmem>>, vector<1x1x128xf32>
    %836 = vector.shape_cast %835 : vector<1x1x128xf32> to vector<1x128xf32>
    %837 = vector.shape_cast %808 : vector<1x128xf32> to vector<1x1x128xf32>
    tpu.vector_store %arg5[%c0_248, %c12_249, %c0_250], %837 {strides = array<i32>} : memref<1x16x128xf32, #tpu.memory_space<vmem>>, vector<1x1x128xf32>,
    %c0_251 = arith.constant 0 : index
    %c3_252 = arith.constant 3 : index
    %c0_253 = arith.constant 0 : index
    %838 = vector.load %arg6[%c0_251, %c3_252, %c0_253] : memref<1x16x128xf32, #tpu.memory_space<vmem>>, vector<1x1x128xf32>
    %839 = vector.shape_cast %838 : vector<1x1x128xf32> to vector<1x128xf32>
    %840 = vector.shape_cast %834 : vector<1x128xf32> to vector<1x1x128xf32>
    tpu.vector_store %arg6[%c0_251, %c3_252, %c0_253], %840 {strides = array<i32>} : memref<1x16x128xf32, #tpu.memory_space<vmem>>, vector<1x1x128xf32>,
    %c0_254 = arith.constant 0 : index
    %c13_255 = arith.constant 13 : index
    %c0_256 = arith.constant 0 : index
    %841 = vector.load %arg2[%c0_254, %c13_255, %c0_256] : memref<1x16x384xf32, #tpu.memory_space<vmem>>, vector<1x1x384xf32>
    %842 = vector.shape_cast %841 : vector<1x1x384xf32> to vector<1x384xf32>
    %c0_257 = arith.constant 0 : index
    %c2_258 = arith.constant 2 : index
    %c0_259 = arith.constant 0 : index
    %843 = vector.load %arg3[%c0_257, %c2_258, %c0_259] : memref<1x16x384xf32, #tpu.memory_space<vmem>>, vector<1x1x384xf32>
    %844 = vector.shape_cast %843 : vector<1x1x384xf32> to vector<1x384xf32>
    %cst_260 = arith.constant dense<0.000000e+00> : vector<1x384xf32>
    %845 = tpu.matmul %808, %4, %cst_260 {dimension_numbers = #tpu.dot_dimension_numbers<[1], [0], [0], [1], [0, 0, 1, 1], [], []>} : vector<1x128xf32>, vector<128x384xf32>, vector<1x384xf32> -> vector<1x384xf32>
    %cst_261 = arith.constant dense<0.000000e+00> : vector<1x384xf32>
    %846 = tpu.matmul %834, %6, %cst_261 {dimension_numbers = #tpu.dot_dimension_numbers<[1], [0], [0], [1], [0, 0, 1, 1], [], []>} : vector<1x128xf32>, vector<128x384xf32>, vector<1x384xf32> -> vector<1x384xf32>
    %847 = vector.extract_strided_slice %842 {offsets = [0, 0], sizes = [1, 128], strides = [1, 1]} : vector<1x384xf32> to vector<1x128xf32>
    %848 = vector.extract_strided_slice %845 {offsets = [0, 0], sizes = [1, 128], strides = [1, 1]} : vector<1x384xf32> to vector<1x128xf32>
    %849 = arith.addf %847, %848 : vector<1x128xf32>
    %850 = arith.negf %849 : vector<1x128xf32>
    %851 = math.exp %850 : vector<1x128xf32>
    %cst_262 = arith.constant 1.000000e+00 : f32
    %852 = vector.broadcast %cst_262 : f32 to vector<1x128xf32>
    %853 = arith.addf %852, %851 : vector<1x128xf32>
    %854 = arith.divf %852, %853 : vector<1x128xf32>
    %855 = vector.extract_strided_slice %842 {offsets = [0, 128], sizes = [1, 128], strides = [1, 1]} : vector<1x384xf32> to vector<1x128xf32>
    %856 = vector.extract_strided_slice %845 {offsets = [0, 128], sizes = [1, 128], strides = [1, 1]} : vector<1x384xf32> to vector<1x128xf32>
    %857 = arith.addf %855, %856 : vector<1x128xf32>
    %858 = arith.negf %857 : vector<1x128xf32>
    %859 = math.exp %858 : vector<1x128xf32>
    %cst_263 = arith.constant 1.000000e+00 : f32
    %860 = vector.broadcast %cst_263 : f32 to vector<1x128xf32>
    %861 = arith.addf %860, %859 : vector<1x128xf32>
    %862 = arith.divf %860, %861 : vector<1x128xf32>
    %863 = vector.extract_strided_slice %842 {offsets = [0, 256], sizes = [1, 128], strides = [1, 1]} : vector<1x384xf32> to vector<1x128xf32>
    %864 = vector.extract_strided_slice %845 {offsets = [0, 256], sizes = [1, 128], strides = [1, 1]} : vector<1x384xf32> to vector<1x128xf32>
    %865 = arith.mulf %854, %864 : vector<1x128xf32>
    %866 = arith.addf %863, %865 : vector<1x128xf32>
    %867 = math.tanh %866 : vector<1x128xf32>
    %cst_264 = arith.constant 1.000000e+00 : f32
    %868 = vector.broadcast %cst_264 : f32 to vector<1x128xf32>
    %869 = arith.subf %868, %862 : vector<1x128xf32>
    %870 = arith.mulf %869, %867 : vector<1x128xf32>
    %871 = arith.mulf %862, %808 : vector<1x128xf32>
    %872 = arith.addf %870, %871 : vector<1x128xf32>
    %873 = vector.extract_strided_slice %844 {offsets = [0, 0], sizes = [1, 128], strides = [1, 1]} : vector<1x384xf32> to vector<1x128xf32>
    %874 = vector.extract_strided_slice %846 {offsets = [0, 0], sizes = [1, 128], strides = [1, 1]} : vector<1x384xf32> to vector<1x128xf32>
    %875 = arith.addf %873, %874 : vector<1x128xf32>
    %876 = arith.negf %875 : vector<1x128xf32>
    %877 = math.exp %876 : vector<1x128xf32>
    %cst_265 = arith.constant 1.000000e+00 : f32
    %878 = vector.broadcast %cst_265 : f32 to vector<1x128xf32>
    %879 = arith.addf %878, %877 : vector<1x128xf32>
    %880 = arith.divf %878, %879 : vector<1x128xf32>
    %881 = vector.extract_strided_slice %844 {offsets = [0, 128], sizes = [1, 128], strides = [1, 1]} : vector<1x384xf32> to vector<1x128xf32>
    %882 = vector.extract_strided_slice %846 {offsets = [0, 128], sizes = [1, 128], strides = [1, 1]} : vector<1x384xf32> to vector<1x128xf32>
    %883 = arith.addf %881, %882 : vector<1x128xf32>
    %884 = arith.negf %883 : vector<1x128xf32>
    %885 = math.exp %884 : vector<1x128xf32>
    %cst_266 = arith.constant 1.000000e+00 : f32
    %886 = vector.broadcast %cst_266 : f32 to vector<1x128xf32>
    %887 = arith.addf %886, %885 : vector<1x128xf32>
    %888 = arith.divf %886, %887 : vector<1x128xf32>
    %889 = vector.extract_strided_slice %844 {offsets = [0, 256], sizes = [1, 128], strides = [1, 1]} : vector<1x384xf32> to vector<1x128xf32>
    %890 = vector.extract_strided_slice %846 {offsets = [0, 256], sizes = [1, 128], strides = [1, 1]} : vector<1x384xf32> to vector<1x128xf32>
    %891 = arith.mulf %880, %890 : vector<1x128xf32>
    %892 = arith.addf %889, %891 : vector<1x128xf32>
    %893 = math.tanh %892 : vector<1x128xf32>
    %cst_267 = arith.constant 1.000000e+00 : f32
    %894 = vector.broadcast %cst_267 : f32 to vector<1x128xf32>
    %895 = arith.subf %894, %888 : vector<1x128xf32>
    %896 = arith.mulf %895, %893 : vector<1x128xf32>
    %897 = arith.mulf %888, %834 : vector<1x128xf32>
    %898 = arith.addf %896, %897 : vector<1x128xf32>
    %c0_268 = arith.constant 0 : index
    %c13_269 = arith.constant 13 : index
    %c0_270 = arith.constant 0 : index
    %899 = vector.load %arg5[%c0_268, %c13_269, %c0_270] : memref<1x16x128xf32, #tpu.memory_space<vmem>>, vector<1x1x128xf32>
    %900 = vector.shape_cast %899 : vector<1x1x128xf32> to vector<1x128xf32>
    %901 = vector.shape_cast %872 : vector<1x128xf32> to vector<1x1x128xf32>
    tpu.vector_store %arg5[%c0_268, %c13_269, %c0_270], %901 {strides = array<i32>} : memref<1x16x128xf32, #tpu.memory_space<vmem>>, vector<1x1x128xf32>,
    %c0_271 = arith.constant 0 : index
    %c2_272 = arith.constant 2 : index
    %c0_273 = arith.constant 0 : index
    %902 = vector.load %arg6[%c0_271, %c2_272, %c0_273] : memref<1x16x128xf32, #tpu.memory_space<vmem>>, vector<1x1x128xf32>
    %903 = vector.shape_cast %902 : vector<1x1x128xf32> to vector<1x128xf32>
    %904 = vector.shape_cast %898 : vector<1x128xf32> to vector<1x1x128xf32>
    tpu.vector_store %arg6[%c0_271, %c2_272, %c0_273], %904 {strides = array<i32>} : memref<1x16x128xf32, #tpu.memory_space<vmem>>, vector<1x1x128xf32>,
    %c0_274 = arith.constant 0 : index
    %c14_275 = arith.constant 14 : index
    %c0_276 = arith.constant 0 : index
    %905 = vector.load %arg2[%c0_274, %c14_275, %c0_276] : memref<1x16x384xf32, #tpu.memory_space<vmem>>, vector<1x1x384xf32>
    %906 = vector.shape_cast %905 : vector<1x1x384xf32> to vector<1x384xf32>
    %c0_277 = arith.constant 0 : index
    %c1_278 = arith.constant 1 : index
    %c0_279 = arith.constant 0 : index
    %907 = vector.load %arg3[%c0_277, %c1_278, %c0_279] : memref<1x16x384xf32, #tpu.memory_space<vmem>>, vector<1x1x384xf32>
    %908 = vector.shape_cast %907 : vector<1x1x384xf32> to vector<1x384xf32>
    %cst_280 = arith.constant dense<0.000000e+00> : vector<1x384xf32>
    %909 = tpu.matmul %872, %4, %cst_280 {dimension_numbers = #tpu.dot_dimension_numbers<[1], [0], [0], [1], [0, 0, 1, 1], [], []>} : vector<1x128xf32>, vector<128x384xf32>, vector<1x384xf32> -> vector<1x384xf32>
    %cst_281 = arith.constant dense<0.000000e+00> : vector<1x384xf32>
    %910 = tpu.matmul %898, %6, %cst_281 {dimension_numbers = #tpu.dot_dimension_numbers<[1], [0], [0], [1], [0, 0, 1, 1], [], []>} : vector<1x128xf32>, vector<128x384xf32>, vector<1x384xf32> -> vector<1x384xf32>
    %911 = vector.extract_strided_slice %906 {offsets = [0, 0], sizes = [1, 128], strides = [1, 1]} : vector<1x384xf32> to vector<1x128xf32>
    %912 = vector.extract_strided_slice %909 {offsets = [0, 0], sizes = [1, 128], strides = [1, 1]} : vector<1x384xf32> to vector<1x128xf32>
    %913 = arith.addf %911, %912 : vector<1x128xf32>
    %914 = arith.negf %913 : vector<1x128xf32>
    %915 = math.exp %914 : vector<1x128xf32>
    %cst_282 = arith.constant 1.000000e+00 : f32
    %916 = vector.broadcast %cst_282 : f32 to vector<1x128xf32>
    %917 = arith.addf %916, %915 : vector<1x128xf32>
    %918 = arith.divf %916, %917 : vector<1x128xf32>
    %919 = vector.extract_strided_slice %906 {offsets = [0, 128], sizes = [1, 128], strides = [1, 1]} : vector<1x384xf32> to vector<1x128xf32>
    %920 = vector.extract_strided_slice %909 {offsets = [0, 128], sizes = [1, 128], strides = [1, 1]} : vector<1x384xf32> to vector<1x128xf32>
    %921 = arith.addf %919, %920 : vector<1x128xf32>
    %922 = arith.negf %921 : vector<1x128xf32>
    %923 = math.exp %922 : vector<1x128xf32>
    %cst_283 = arith.constant 1.000000e+00 : f32
    %924 = vector.broadcast %cst_283 : f32 to vector<1x128xf32>
    %925 = arith.addf %924, %923 : vector<1x128xf32>
    %926 = arith.divf %924, %925 : vector<1x128xf32>
    %927 = vector.extract_strided_slice %906 {offsets = [0, 256], sizes = [1, 128], strides = [1, 1]} : vector<1x384xf32> to vector<1x128xf32>
    %928 = vector.extract_strided_slice %909 {offsets = [0, 256], sizes = [1, 128], strides = [1, 1]} : vector<1x384xf32> to vector<1x128xf32>
    %929 = arith.mulf %918, %928 : vector<1x128xf32>
    %930 = arith.addf %927, %929 : vector<1x128xf32>
    %931 = math.tanh %930 : vector<1x128xf32>
    %cst_284 = arith.constant 1.000000e+00 : f32
    %932 = vector.broadcast %cst_284 : f32 to vector<1x128xf32>
    %933 = arith.subf %932, %926 : vector<1x128xf32>
    %934 = arith.mulf %933, %931 : vector<1x128xf32>
    %935 = arith.mulf %926, %872 : vector<1x128xf32>
    %936 = arith.addf %934, %935 : vector<1x128xf32>
    %937 = vector.extract_strided_slice %908 {offsets = [0, 0], sizes = [1, 128], strides = [1, 1]} : vector<1x384xf32> to vector<1x128xf32>
    %938 = vector.extract_strided_slice %910 {offsets = [0, 0], sizes = [1, 128], strides = [1, 1]} : vector<1x384xf32> to vector<1x128xf32>
    %939 = arith.addf %937, %938 : vector<1x128xf32>
    %940 = arith.negf %939 : vector<1x128xf32>
    %941 = math.exp %940 : vector<1x128xf32>
    %cst_285 = arith.constant 1.000000e+00 : f32
    %942 = vector.broadcast %cst_285 : f32 to vector<1x128xf32>
    %943 = arith.addf %942, %941 : vector<1x128xf32>
    %944 = arith.divf %942, %943 : vector<1x128xf32>
    %945 = vector.extract_strided_slice %908 {offsets = [0, 128], sizes = [1, 128], strides = [1, 1]} : vector<1x384xf32> to vector<1x128xf32>
    %946 = vector.extract_strided_slice %910 {offsets = [0, 128], sizes = [1, 128], strides = [1, 1]} : vector<1x384xf32> to vector<1x128xf32>
    %947 = arith.addf %945, %946 : vector<1x128xf32>
    %948 = arith.negf %947 : vector<1x128xf32>
    %949 = math.exp %948 : vector<1x128xf32>
    %cst_286 = arith.constant 1.000000e+00 : f32
    %950 = vector.broadcast %cst_286 : f32 to vector<1x128xf32>
    %951 = arith.addf %950, %949 : vector<1x128xf32>
    %952 = arith.divf %950, %951 : vector<1x128xf32>
    %953 = vector.extract_strided_slice %908 {offsets = [0, 256], sizes = [1, 128], strides = [1, 1]} : vector<1x384xf32> to vector<1x128xf32>
    %954 = vector.extract_strided_slice %910 {offsets = [0, 256], sizes = [1, 128], strides = [1, 1]} : vector<1x384xf32> to vector<1x128xf32>
    %955 = arith.mulf %944, %954 : vector<1x128xf32>
    %956 = arith.addf %953, %955 : vector<1x128xf32>
    %957 = math.tanh %956 : vector<1x128xf32>
    %cst_287 = arith.constant 1.000000e+00 : f32
    %958 = vector.broadcast %cst_287 : f32 to vector<1x128xf32>
    %959 = arith.subf %958, %952 : vector<1x128xf32>
    %960 = arith.mulf %959, %957 : vector<1x128xf32>
    %961 = arith.mulf %952, %898 : vector<1x128xf32>
    %962 = arith.addf %960, %961 : vector<1x128xf32>
    %c0_288 = arith.constant 0 : index
    %c14_289 = arith.constant 14 : index
    %c0_290 = arith.constant 0 : index
    %963 = vector.load %arg5[%c0_288, %c14_289, %c0_290] : memref<1x16x128xf32, #tpu.memory_space<vmem>>, vector<1x1x128xf32>
    %964 = vector.shape_cast %963 : vector<1x1x128xf32> to vector<1x128xf32>
    %965 = vector.shape_cast %936 : vector<1x128xf32> to vector<1x1x128xf32>
    tpu.vector_store %arg5[%c0_288, %c14_289, %c0_290], %965 {strides = array<i32>} : memref<1x16x128xf32, #tpu.memory_space<vmem>>, vector<1x1x128xf32>,
    %c0_291 = arith.constant 0 : index
    %c1_292 = arith.constant 1 : index
    %c0_293 = arith.constant 0 : index
    %966 = vector.load %arg6[%c0_291, %c1_292, %c0_293] : memref<1x16x128xf32, #tpu.memory_space<vmem>>, vector<1x1x128xf32>
    %967 = vector.shape_cast %966 : vector<1x1x128xf32> to vector<1x128xf32>
    %968 = vector.shape_cast %962 : vector<1x128xf32> to vector<1x1x128xf32>
    tpu.vector_store %arg6[%c0_291, %c1_292, %c0_293], %968 {strides = array<i32>} : memref<1x16x128xf32, #tpu.memory_space<vmem>>, vector<1x1x128xf32>,
    %c0_294 = arith.constant 0 : index
    %c15_295 = arith.constant 15 : index
    %c0_296 = arith.constant 0 : index
    %969 = vector.load %arg2[%c0_294, %c15_295, %c0_296] : memref<1x16x384xf32, #tpu.memory_space<vmem>>, vector<1x1x384xf32>
    %970 = vector.shape_cast %969 : vector<1x1x384xf32> to vector<1x384xf32>
    %c0_297 = arith.constant 0 : index
    %c0_298 = arith.constant 0 : index
    %c0_299 = arith.constant 0 : index
    %971 = vector.load %arg3[%c0_297, %c0_298, %c0_299] : memref<1x16x384xf32, #tpu.memory_space<vmem>>, vector<1x1x384xf32>
    %972 = vector.shape_cast %971 : vector<1x1x384xf32> to vector<1x384xf32>
    %cst_300 = arith.constant dense<0.000000e+00> : vector<1x384xf32>
    %973 = tpu.matmul %936, %4, %cst_300 {dimension_numbers = #tpu.dot_dimension_numbers<[1], [0], [0], [1], [0, 0, 1, 1], [], []>} : vector<1x128xf32>, vector<128x384xf32>, vector<1x384xf32> -> vector<1x384xf32>
    %cst_301 = arith.constant dense<0.000000e+00> : vector<1x384xf32>
    %974 = tpu.matmul %962, %6, %cst_301 {dimension_numbers = #tpu.dot_dimension_numbers<[1], [0], [0], [1], [0, 0, 1, 1], [], []>} : vector<1x128xf32>, vector<128x384xf32>, vector<1x384xf32> -> vector<1x384xf32>
    %975 = vector.extract_strided_slice %970 {offsets = [0, 0], sizes = [1, 128], strides = [1, 1]} : vector<1x384xf32> to vector<1x128xf32>
    %976 = vector.extract_strided_slice %973 {offsets = [0, 0], sizes = [1, 128], strides = [1, 1]} : vector<1x384xf32> to vector<1x128xf32>
    %977 = arith.addf %975, %976 : vector<1x128xf32>
    %978 = arith.negf %977 : vector<1x128xf32>
    %979 = math.exp %978 : vector<1x128xf32>
    %cst_302 = arith.constant 1.000000e+00 : f32
    %980 = vector.broadcast %cst_302 : f32 to vector<1x128xf32>
    %981 = arith.addf %980, %979 : vector<1x128xf32>
    %982 = arith.divf %980, %981 : vector<1x128xf32>
    %983 = vector.extract_strided_slice %970 {offsets = [0, 128], sizes = [1, 128], strides = [1, 1]} : vector<1x384xf32> to vector<1x128xf32>
    %984 = vector.extract_strided_slice %973 {offsets = [0, 128], sizes = [1, 128], strides = [1, 1]} : vector<1x384xf32> to vector<1x128xf32>
    %985 = arith.addf %983, %984 : vector<1x128xf32>
    %986 = arith.negf %985 : vector<1x128xf32>
    %987 = math.exp %986 : vector<1x128xf32>
    %cst_303 = arith.constant 1.000000e+00 : f32
    %988 = vector.broadcast %cst_303 : f32 to vector<1x128xf32>
    %989 = arith.addf %988, %987 : vector<1x128xf32>
    %990 = arith.divf %988, %989 : vector<1x128xf32>
    %991 = vector.extract_strided_slice %970 {offsets = [0, 256], sizes = [1, 128], strides = [1, 1]} : vector<1x384xf32> to vector<1x128xf32>
    %992 = vector.extract_strided_slice %973 {offsets = [0, 256], sizes = [1, 128], strides = [1, 1]} : vector<1x384xf32> to vector<1x128xf32>
    %993 = arith.mulf %982, %992 : vector<1x128xf32>
    %994 = arith.addf %991, %993 : vector<1x128xf32>
    %995 = math.tanh %994 : vector<1x128xf32>
    %cst_304 = arith.constant 1.000000e+00 : f32
    %996 = vector.broadcast %cst_304 : f32 to vector<1x128xf32>
    %997 = arith.subf %996, %990 : vector<1x128xf32>
    %998 = arith.mulf %997, %995 : vector<1x128xf32>
    %999 = arith.mulf %990, %936 : vector<1x128xf32>
    %1000 = arith.addf %998, %999 : vector<1x128xf32>
    %1001 = vector.extract_strided_slice %972 {offsets = [0, 0], sizes = [1, 128], strides = [1, 1]} : vector<1x384xf32> to vector<1x128xf32>
    %1002 = vector.extract_strided_slice %974 {offsets = [0, 0], sizes = [1, 128], strides = [1, 1]} : vector<1x384xf32> to vector<1x128xf32>
    %1003 = arith.addf %1001, %1002 : vector<1x128xf32>
    %1004 = arith.negf %1003 : vector<1x128xf32>
    %1005 = math.exp %1004 : vector<1x128xf32>
    %cst_305 = arith.constant 1.000000e+00 : f32
    %1006 = vector.broadcast %cst_305 : f32 to vector<1x128xf32>
    %1007 = arith.addf %1006, %1005 : vector<1x128xf32>
    %1008 = arith.divf %1006, %1007 : vector<1x128xf32>
    %1009 = vector.extract_strided_slice %972 {offsets = [0, 128], sizes = [1, 128], strides = [1, 1]} : vector<1x384xf32> to vector<1x128xf32>
    %1010 = vector.extract_strided_slice %974 {offsets = [0, 128], sizes = [1, 128], strides = [1, 1]} : vector<1x384xf32> to vector<1x128xf32>
    %1011 = arith.addf %1009, %1010 : vector<1x128xf32>
    %1012 = arith.negf %1011 : vector<1x128xf32>
    %1013 = math.exp %1012 : vector<1x128xf32>
    %cst_306 = arith.constant 1.000000e+00 : f32
    %1014 = vector.broadcast %cst_306 : f32 to vector<1x128xf32>
    %1015 = arith.addf %1014, %1013 : vector<1x128xf32>
    %1016 = arith.divf %1014, %1015 : vector<1x128xf32>
    %1017 = vector.extract_strided_slice %972 {offsets = [0, 256], sizes = [1, 128], strides = [1, 1]} : vector<1x384xf32> to vector<1x128xf32>
    %1018 = vector.extract_strided_slice %974 {offsets = [0, 256], sizes = [1, 128], strides = [1, 1]} : vector<1x384xf32> to vector<1x128xf32>
    %1019 = arith.mulf %1008, %1018 : vector<1x128xf32>
    %1020 = arith.addf %1017, %1019 : vector<1x128xf32>
    %1021 = math.tanh %1020 : vector<1x128xf32>
    %cst_307 = arith.constant 1.000000e+00 : f32
    %1022 = vector.broadcast %cst_307 : f32 to vector<1x128xf32>
    %1023 = arith.subf %1022, %1016 : vector<1x128xf32>
    %1024 = arith.mulf %1023, %1021 : vector<1x128xf32>
    %1025 = arith.mulf %1016, %962 : vector<1x128xf32>
    %1026 = arith.addf %1024, %1025 : vector<1x128xf32>
    %c0_308 = arith.constant 0 : index
    %c15_309 = arith.constant 15 : index
    %c0_310 = arith.constant 0 : index
    %1027 = vector.load %arg5[%c0_308, %c15_309, %c0_310] : memref<1x16x128xf32, #tpu.memory_space<vmem>>, vector<1x1x128xf32>
    %1028 = vector.shape_cast %1027 : vector<1x1x128xf32> to vector<1x128xf32>
    %1029 = vector.shape_cast %1000 : vector<1x128xf32> to vector<1x1x128xf32>
    tpu.vector_store %arg5[%c0_308, %c15_309, %c0_310], %1029 {strides = array<i32>} : memref<1x16x128xf32, #tpu.memory_space<vmem>>, vector<1x1x128xf32>,
    %c0_311 = arith.constant 0 : index
    %c0_312 = arith.constant 0 : index
    %c0_313 = arith.constant 0 : index
    %1030 = vector.load %arg6[%c0_311, %c0_312, %c0_313] : memref<1x16x128xf32, #tpu.memory_space<vmem>>, vector<1x1x128xf32>
    %1031 = vector.shape_cast %1030 : vector<1x1x128xf32> to vector<1x128xf32>
    %1032 = vector.shape_cast %1026 : vector<1x128xf32> to vector<1x1x128xf32>
    tpu.vector_store %arg6[%c0_311, %c0_312, %c0_313], %1032 {strides = array<i32>} : memref<1x16x128xf32, #tpu.memory_space<vmem>>, vector<1x1x128xf32>,
    %c0_314 = arith.constant 0 : index
    %c0_315 = arith.constant 0 : index
    %1033 = vector.load %arg8[%c0_314, %c0_315] : memref<1x128xf32, #tpu.memory_space<vmem>>, vector<1x128xf32>
    tpu.vector_store %arg8[%c0_314, %c0_315], %1000 {strides = array<i32>} : memref<1x128xf32, #tpu.memory_space<vmem>>, vector<1x128xf32>,
    %c0_316 = arith.constant 0 : index
    %c0_317 = arith.constant 0 : index
    %1034 = vector.load %arg9[%c0_316, %c0_317] : memref<1x128xf32, #tpu.memory_space<vmem>>, vector<1x128xf32>
    tpu.vector_store %arg9[%c0_316, %c0_317], %1026 {strides = array<i32>} : memref<1x128xf32, #tpu.memory_space<vmem>>, vector<1x128xf32>,
    return
  }
  func.func @transform_0(%arg0: i32, %arg1: i32) -> (i32, i32, i32) {
    %c0_i32 = arith.constant 0 : i32
    %c0_i32_0 = arith.constant 0 : i32
    return %arg0, %arg1, %c0_i32 : i32, i32, i32
  }
  func.func @transform_1(%arg0: i32, %arg1: i32) -> (i32, i32, i32) {
    %c0_i32 = arith.constant 0 : i32
    %0 = arith.subi %c0_i32, %arg1 : i32
    %c0_i32_0 = arith.constant 0 : i32
    %c0_i32_1 = arith.constant 0 : i32
    return %arg0, %0, %c0_i32_0 : i32, i32, i32
  }
  func.func @transform_3(%arg0: i32, %arg1: i32) -> (i32, i32, i32) {
    %c0_i32 = arith.constant 0 : i32
    %c0_i32_0 = arith.constant 0 : i32
    return %arg0, %arg1, %c0_i32 : i32, i32, i32
  }
  func.func @transform_4(%arg0: i32, %arg1: i32) -> (i32, i32, i32) {
    %c0_i32 = arith.constant 0 : i32
    %0 = arith.subi %c0_i32, %arg1 : i32
    %c0_i32_0 = arith.constant 0 : i32
    %c0_i32_1 = arith.constant 0 : i32
    return %arg0, %0, %c0_i32_0 : i32, i32, i32
  }
}

</mosaic_0001>

<llo_original>
// kernel: norm_bigru_forward.4
$region0: #{norm_bigru_forward.4}
  #allocation0 [shape = 'u32[]', space=smem, size = 0x4, offset = 0x4, fixed_abs, tag = 'smem constant byte address 0x4 - core index']
  #allocation1 [shape = 'u32[144,128]{1,0:T(1,128)}', space=vmem, size = 0x12000, scoped, tag = 'internal scratch']
  %s0 = inlined_call_operand.vmem [shape: f32[2,16,16], index: 0, kind: input, shape index: {}]
  %s1 = inlined_call_operand.vmem [shape: f32[1,16], index: 1, kind: output, shape index: {}]
  %s2 = sld [smem:[#allocation0]]
  $region22: #{norm_bigru_forward.4} parent=0
    _
  %s4 = ssub.s32 1, %s2
  %s5 = scalar_select 0, %s4, %s2
  // Predicated region
  $region2: #{norm_bigru_forward.4} parent=0 // pred_check
    _
  $region3: #{norm_bigru_forward.4} parent=0 // pred_check_branch
    %7 = sbr.rel (0) target = $region5
  $region4: #{norm_bigru_forward.4} parent=0 // pred_region
    _
  $region5: #{norm_bigru_forward.4} parent=0 // pred_fallthru
    _
  %p8 = scmp.eq.s32.totalorder 0, 0
  // Predicated region
  $region6: #{norm_bigru_forward.4} parent=0 // pred_check
    %p9 = pneg %p8
  $region7: #{norm_bigru_forward.4} parent=0 // pred_check_branch
    %11 = sbr.rel (%p9) target = $region9
  $region8: #{norm_bigru_forward.4} parent=0 // pred_region
    %vm12 = vcmask 122880
    %13 = vst.msk [vmem:[%s1] sm:$0x1] %vm12, 0.0
  $region9: #{norm_bigru_forward.4} parent=0 // pred_fallthru
    _
  %s14 = smul.u32 0, 16
  %v15 = vlaneseq
  %v16 = vshrl.u32 %v15, 7
  %v17 = vadd.s32 %v16, 8
  %v18 = vstv %s14
  %v19 = vadd.s32 %v18, %v16
  %v20 = vadd.s32 %v18, %v17
  %v21 = vld [vmem:[%s0] sm:$0xff]
  %v22 = vld [vmem:[%s0 + $0x8] sm:$0xff]
  %v23 = vld [vmem:[%s0 + $0x10] sm:$0xff]
  %v24 = vld [vmem:[%s0 + $0x18] sm:$0xff]
  %vm25 = vcmp.lt.s32.totalorder %v19, 12
  %vm26 = vcmp.lt.s32.totalorder %v20, 12
  %v27 = vsel %vm25, 1, 0
  %v28 = vsel %vm26, 1, 0
  %vm29 = vcmp.eq.s32.totalorder %v27, 1
  %vm30 = vcmp.eq.s32.totalorder %v28, 1
  %v31 = vsel %vm29, %v21, 0.0
  %v32 = vsel %vm30, %v22, 0.0
  %v33 = vsel %vm29, %v23, 0.0
  %v34 = vsel %vm30, %v24, 0.0
  %v35 = vld [vmem:[%s1] sm:$0x1]
  %vm36 = vcmask 130048
  %v37 = vsel %vm36, %v31, 0.0
  %v38 = vsel %vm36, %v32, 0.0
  %v39 = vadd.f32 %v37, %v38
  %v40 = vsel %vm36, %v33, 0.0
  %v41 = vadd.f32 %v39, %v40
  %v42 = vsel %vm36, %v34, 0.0
  %v43 = vadd.f32 %v41, %v42
  %v44 = vrot.slane %v43, 4
  %v45 = vadd.f32 %v43, %v44
  %v46 = vrot.slane %v45, 2
  %v47 = vadd.f32 %v45, %v46
  %v48 = vrot.slane %v47, 1
  %v49 = vadd.f32 %v47, %v48
  %v50 = vadd.f32 %v35, %v49
  %vm51 = vcmask 122880
  %52 = vst.msk [vmem:[%s1] sm:$0x1] %vm51, %v50
  // Predicated region
  $region10: #{norm_bigru_forward.4} parent=0 // pred_check
    %p53 = pneg %p8
  $region11: #{norm_bigru_forward.4} parent=0 // pred_check_branch
    %55 = sbr.rel (%p53) target = $region13
  $region12: #{norm_bigru_forward.4} parent=0 // pred_region
    %v56 = vld [vmem:[%s1] sm:$0x1]
    %v57 = vmul.f32 %v56, 0.041666668
    %58 = vst.msk [vmem:[%s1] sm:$0x1] %vm51, %v57
  $region13: #{norm_bigru_forward.4} parent=0 // pred_fallthru
    _
  // Predicated region
  $region14: #{norm_bigru_forward.4} parent=0 // pred_check
    _
  $region15: #{norm_bigru_forward.4} parent=0 // pred_check_branch
    %60 = sbr.rel (0) target = $region17
  $region16: #{norm_bigru_forward.4} parent=0 // pred_region
    _
  $region17: #{norm_bigru_forward.4} parent=0 // pred_fallthru
    _
  // Predicated region
  $region18: #{norm_bigru_forward.4} parent=0 // pred_check
    _
  $region19: #{norm_bigru_forward.4} parent=0 // pred_check_branch
    %62 = sbr.rel (0) target = $region21
  $region20: #{norm_bigru_forward.4} parent=0 // pred_region
    _
  $region21: #{norm_bigru_forward.4} parent=0 // pred_fallthru
    _

// kernel: norm_bigru_forward.5
$region0: #{norm_bigru_forward.5}
  #allocation0 [shape = 'u32[]', space=smem, size = 0x4, offset = 0x4, fixed_abs, tag = 'smem constant byte address 0x4 - core index']
  #allocation1 [shape = 'u32[144,128]{1,0:T(1,128)}', space=vmem, size = 0x12000, scoped, tag = 'internal scratch']
  %s0 = inlined_call_operand.vmem [shape: f32[2,16,16], index: 0, kind: input, shape index: {}]
  %s1 = inlined_call_operand.vmem [shape: f32[1,16], index: 1, kind: input, shape index: {}]
  %s2 = inlined_call_operand.hbm [shape: f32[1,16], index: 2, kind: output, shape index: {}]
  %s3 = sld [smem:[#allocation0]]
  $region26: #{norm_bigru_forward.5} parent=0
    _
  %s5 = ssub.s32 1, %s3
  %s6 = scalar_select 0, %s5, %s3
  $region1: #{norm_bigru_forward.5} parent=0
    #allocation2 [shape = 'u8[512]{0}', space=vmem, size = 0x400, scoped, tag = 'output window, operand 0, single buffered']
    #allocation3 [shape = 's32[1]{0}', space=sflag, size = 0x4, scoped, tag = 'scoped memory for norm_bigru_forward.5']
    %7 = vsyncpa [#allocation3], 0
    // Predicated region
    $region2: #{norm_bigru_forward.5} parent=1 // pred_check
      _
    $region3: #{norm_bigru_forward.5} parent=1 // pred_check_branch
      %9 = sbr.rel (0) target = $region5
    $region4: #{norm_bigru_forward.5} parent=1 // pred_region
      _
    $region5: #{norm_bigru_forward.5} parent=1 // pred_fallthru
      _
    // Predicated region
    $region6: #{norm_bigru_forward.5} parent=1 // pred_check
      _
    $region7: #{norm_bigru_forward.5} parent=1 // pred_check_branch
      %11 = sbr.rel (0) target = $region9
    $region8: #{norm_bigru_forward.5} parent=1 // pred_region
      _
    $region9: #{norm_bigru_forward.5} parent=1 // pred_fallthru
      _
    %p12 = scmp.eq.s32.totalorder 0, 0
    // Predicated region
    $region10: #{norm_bigru_forward.5} parent=1 // pred_check
      %p13 = pneg %p12
    $region11: #{norm_bigru_forward.5} parent=1 // pred_check_branch
      %15 = sbr.rel (%p13) target = $region13
    $region12: #{norm_bigru_forward.5} parent=1 // pred_region
      %vm16 = vcmask 122880
      %17 = vst.msk [vmem:[#allocation2] sm:$0x1] %vm16, 0.0
    $region13: #{norm_bigru_forward.5} parent=1 // pred_fallthru
      _
    %s18 = smul.u32 0, 16
    %v19 = vlaneseq
    %v20 = vshrl.u32 %v19, 7
    %v21 = vadd.s32 %v20, 8
    %v22 = vstv %s18
    %v23 = vadd.s32 %v22, %v20
    %v24 = vadd.s32 %v22, %v21
    %v25 = vld [vmem:[%s0] sm:$0xff]
    %v26 = vld [vmem:[%s0 + $0x8] sm:$0xff]
    %v27 = vld [vmem:[%s0 + $0x10] sm:$0xff]
    %v28 = vld [vmem:[%s0 + $0x18] sm:$0xff]
    %v29 = vld [vmem:[%s1] sm:$0x1]
    %v31 = vlaneseq
    %v32 = vshrl.u32 %v31, 7
    %v33 = vsub.s32 0, %v32
    %v34 = vrot.slane %v29, %v33
    %v36 = vsub.f32 %v25, %v34
    %v37 = vsub.f32 %v26, %v34
    %v38 = vsub.f32 %v27, %v34
    %v39 = vsub.f32 %v28, %v34
    %vm40 = vcmp.lt.s32.totalorder %v23, 12
    %vm41 = vcmp.lt.s32.totalorder %v24, 12
    %v42 = vsel %vm40, 1, 0
    %v43 = vsel %vm41, 1, 0
    %vm44 = vcmp.eq.s32.totalorder %v42, 1
    %vm45 = vcmp.eq.s32.totalorder %v43, 1
    %v46 = vsel %vm44, %v36, 0.0
    %v47 = vsel %vm45, %v37, 0.0
    %v48 = vsel %vm44, %v38, 0.0
    %v49 = vsel %vm45, %v39, 0.0
    %v50 = vld [vmem:[#allocation2] sm:$0x1]
    %v51 = vmul.f32 %v46, %v46
    %v52 = vmul.f32 %v47, %v47
    %v53 = vmul.f32 %v48, %v48
    %v54 = vmul.f32 %v49, %v49
    %vm55 = vcmask 130048
    %v56 = vsel %vm55, %v51, 0.0
    %v57 = vsel %vm55, %v52, 0.0
    %v58 = vadd.f32 %v56, %v57
    %v59 = vsel %vm55, %v53, 0.0
    %v60 = vadd.f32 %v58, %v59
    %v61 = vsel %vm55, %v54, 0.0
    %v62 = vadd.f32 %v60, %v61
    %v63 = vrot.slane %v62, 4
    %v64 = vadd.f32 %v62, %v63
    %v65 = vrot.slane %v64, 2
    %v66 = vadd.f32 %v64, %v65
    %v67 = vrot.slane %v66, 1
    %v68 = vadd.f32 %v66, %v67
    %v69 = vadd.f32 %v50, %v68
    %vm70 = vcmask 122880
    %71 = vst.msk [vmem:[#allocation2] sm:$0x1] %vm70, %v69
    // Predicated region
    $region14: #{norm_bigru_forward.5} parent=1 // pred_check
      %p72 = pneg %p12
    $region15: #{norm_bigru_forward.5} parent=1 // pred_check_branch
      %74 = sbr.rel (%p72) target = $region17
    $region16: #{norm_bigru_forward.5} parent=1 // pred_region
      %v75 = vld [vmem:[#allocation2] sm:$0x1]
      %v76 = vmul.f32 %v75, 0.041666668
      %v77 = vadd.f32 %v76, 1e-05
      %v78 = vrsqrt.pop %v77
      %79 = vst.msk [vmem:[#allocation2] sm:$0x1] %vm70, %v78
    $region17: #{norm_bigru_forward.5} parent=1 // pred_fallthru
      _
    // Predicated region
    $region18: #{norm_bigru_forward.5} parent=1 // pred_check
      _
    $region19: #{norm_bigru_forward.5} parent=1 // pred_check_branch
      %81 = sbr.rel (0) target = $region21
    $region20: #{norm_bigru_forward.5} parent=1 // pred_region
      %s83 = ssub.s32 16, 16
      %84 = vsyncadd [#allocation3], %s83
      %s86 = sshll.u32 [#allocation2], 4
      %s87 = int_to_ptr.vmem [resolvable:$true] %s86
      %89 = dma.vmem_to_hbm [thread:$0]  %s87, 16, %s2, [#allocation3]
    $region21: #{norm_bigru_forward.5} parent=1 // pred_fallthru
      _
    // Predicated region
    $region22: #{norm_bigru_forward.5} parent=1 // pred_check
      _
    $region23: #{norm_bigru_forward.5} parent=1 // pred_check_branch
      %91 = sbr.rel (0) target = $region25
    $region24: #{norm_bigru_forward.5} parent=1 // pred_region
      %92 = dma.done [#allocation3], 16
    $region25: #{norm_bigru_forward.5} parent=1 // pred_fallthru
      _
    %93 = vsyncpa [#allocation3], 1

// kernel: norm_bigru_forward.6
$region0: #{norm_bigru_forward.6}
  #allocation0 [shape = 'u32[]', space=smem, size = 0x4, offset = 0x4, fixed_abs, tag = 'smem constant byte address 0x4 - core index']
  #allocation1 [shape = 'u32[144,128]{1,0:T(1,128)}', space=vmem, size = 0x12000, scoped, tag = 'internal scratch']
  %s0 = inlined_call_operand.hbm [shape: f32[2,16,16], index: 0, kind: input, shape index: {}]
  %s1 = inlined_call_operand.hbm [shape: f32[1,16], index: 1, kind: input, shape index: {}]
  %s2 = inlined_call_operand.hbm [shape: f32[1,16], index: 2, kind: input, shape index: {}]
  %s3 = inlined_call_operand.hbm [shape: f32[1,16], index: 3, kind: input, shape index: {}]
  %s4 = inlined_call_operand.hbm [shape: f32[1,16], index: 4, kind: input, shape index: {}]
  %s5 = inlined_call_operand.hbm [shape: f32[16,768], index: 5, kind: input, shape index: {}]
  %s6 = inlined_call_operand.hbm [shape: f32[2,16,384], index: 6, kind: output, shape index: {0}]
  %s7 = inlined_call_operand.hbm [shape: f32[2,16,384], index: 7, kind: output, shape index: {1}]
  %8 = xla_tuple %s6, %s7
  %s9 = sld [smem:[#allocation0]]
  $region66: #{norm_bigru_forward.6} parent=0
    _
  %s11 = ssub.s32 1, %s9
  %s12 = scalar_select 0, %s11, %s9
  $region1: #{norm_bigru_forward.6} parent=0
    #allocation2 [shape = 'u8[16384]{0}', space=vmem, size = 0x4000, scoped, tag = 'input window, operand 0, single buffered']
    #allocation3 [shape = 's32[1]{0}', space=sflag, size = 0x4, scoped, tag = 'scoped memory for norm_bigru_forward.6']
    #allocation4 [shape = 's32[1]{0}', space=sflag, size = 0x4, scoped, tag = 'scoped memory for norm_bigru_forward.6']
    #allocation5 [shape = 'u8[512]{0}', space=vmem, size = 0x400, scoped, tag = 'input window, operand 1, single buffered']
    #allocation6 [shape = 's32[1]{0}', space=sflag, size = 0x4, scoped, tag = 'scoped memory for norm_bigru_forward.6']
    #allocation7 [shape = 'u8[512]{0}', space=vmem, size = 0x400, scoped, tag = 'input window, operand 2, single buffered']
    #allocation8 [shape = 'u8[512]{0}', space=vmem, size = 0x400, scoped, tag = 'input window, operand 3, single buffered']
    #allocation9 [shape = 's32[1]{0}', space=sflag, size = 0x4, scoped, tag = 'scoped memory for norm_bigru_forward.6']
    #allocation10 [shape = 'u8[512]{0}', space=vmem, size = 0x400, scoped, tag = 'input window, operand 4, single buffered']
    #allocation11 [shape = 'u8[49152]{0}', space=vmem, size = 0xc000, scoped, tag = 'input window, operand 5, single buffered']
    #allocation12 [shape = 's32[1]{0}', space=sflag, size = 0x4, scoped, tag = 'scoped memory for norm_bigru_forward.6']
    #allocation13 [shape = 'u8[49152]{0}', space=vmem, size = 0xc000, scoped, tag = 'output window, operand 0, single buffered']
    #allocation14 [shape = 'u8[49152]{0}', space=vmem, size = 0xc000, scoped, tag = 'output window, operand 1, single buffered']
    #allocation15 [shape = 's32[1]{0}', space=sflag, size = 0x4, scoped, tag = 'scoped memory for norm_bigru_forward.6']
    %13 = vsyncpa [#allocation3], 0
    %14 = vsyncpa [#allocation6], 0
    %15 = vsyncpa [#allocation9], 0
    %16 = vsyncpa [#allocation12], 0
    %17 = vsyncpa [#allocation4], 0
    %18 = vsyncpa [#allocation15], 0
    // Predicated region
    $region2: #{norm_bigru_forward.6} parent=1 // pred_check
      _
    $region3: #{norm_bigru_forward.6} parent=1 // pred_check_branch
      %20 = sbr.rel (0) target = $region5
    $region4: #{norm_bigru_forward.6} parent=1 // pred_region
      %s22 = ssub.s32 512, 512
      %23 = vsyncadd [#allocation3], %s22
      %s24 = sshll.u32 [#allocation2], 4
      %s25 = int_to_ptr.vmem [resolvable:$true] %s24
      %30 = dma.hbm_to_vmem [thread:$0]  %s0, 512, %s25, [#allocation3], 128, 128, 8
    $region5: #{norm_bigru_forward.6} parent=1 // pred_fallthru
      _
    // Predicated region
    $region6: #{norm_bigru_forward.6} parent=1 // pred_check
      _
    $region7: #{norm_bigru_forward.6} parent=1 // pred_check_branch
      %32 = sbr.rel (0) target = $region9
    $region8: #{norm_bigru_forward.6} parent=1 // pred_region
      %s34 = ssub.s32 16, 16
      %35 = vsyncadd [#allocation6], %s34
      %s37 = sshll.u32 [#allocation5], 4
      %s38 = int_to_ptr.vmem [resolvable:$true] %s37
      %40 = dma.hbm_to_vmem [thread:$0]  %s1, 16, %s38, [#allocation6]
    $region9: #{norm_bigru_forward.6} parent=1 // pred_fallthru
      _
    // Predicated region
    $region10: #{norm_bigru_forward.6} parent=1 // pred_check
      _
    $region11: #{norm_bigru_forward.6} parent=1 // pred_check_branch
      %42 = sbr.rel (0) target = $region13
    $region12: #{norm_bigru_forward.6} parent=1 // pred_region
      %s44 = ssub.s32 16, 16
      %45 = vsyncadd [#allocation6], %s44
      %s47 = sshll.u32 [#allocation7], 4
      %s48 = int_to_ptr.vmem [resolvable:$true] %s47
      %50 = dma.hbm_to_vmem [thread:$0]  %s2, 16, %s48, [#allocation6]
    $region13: #{norm_bigru_forward.6} parent=1 // pred_fallthru
      _
    // Predicated region
    $region14: #{norm_bigru_forward.6} parent=1 // pred_check
      _
    $region15: #{norm_bigru_forward.6} parent=1 // pred_check_branch
      %52 = sbr.rel (0) target = $region17
    $region16: #{norm_bigru_forward.6} parent=1 // pred_region
      %s54 = ssub.s32 16, 16
      %55 = vsyncadd [#allocation9], %s54
      %s57 = sshll.u32 [#allocation8], 4
      %s58 = int_to_ptr.vmem [resolvable:$true] %s57
      %60 = dma.hbm_to_vmem [thread:$0]  %s3, 16, %s58, [#allocation9]
    $region17: #{norm_bigru_forward.6} parent=1 // pred_fallthru
      _
    // Predicated region
    $region18: #{norm_bigru_forward.6} parent=1 // pred_check
      _
    $region19: #{norm_bigru_forward.6} parent=1 // pred_check_branch
      %62 = sbr.rel (0) target = $region21
    $region20: #{norm_bigru_forward.6} parent=1 // pred_region
      %s64 = ssub.s32 16, 16
      %65 = vsyncadd [#allocation9], %s64
      %s67 = sshll.u32 [#allocation10], 4
      %s68 = int_to_ptr.vmem [resolvable:$true] %s67
      %70 = dma.hbm_to_vmem [thread:$0]  %s4, 16, %s68, [#allocation9]
    $region21: #{norm_bigru_forward.6} parent=1 // pred_fallthru
      _
    // Predicated region
    $region22: #{norm_bigru_forward.6} parent=1 // pred_check
      _
    $region23: #{norm_bigru_forward.6} parent=1 // pred_check_branch
      %72 = sbr.rel (0) target = $region25
    $region24: #{norm_bigru_forward.6} parent=1 // pred_region
      %s74 = ssub.s32 1536, 1536
      %75 = vsyncadd [#allocation12], %s74
      %s76 = sshll.u32 [#allocation11], 4
      %s77 = int_to_ptr.vmem [resolvable:$true] %s76
      %82 = dma.hbm_to_vmem [thread:$0]  %s5, 1536, %s77, [#allocation12], 768, 768, 48
    $region25: #{norm_bigru_forward.6} parent=1 // pred_fallthru
      _
    // Predicated region
    $region26: #{norm_bigru_forward.6} parent=1 // pred_check
      _
    $region27: #{norm_bigru_forward.6} parent=1 // pred_check_branch
      %84 = sbr.rel (0) target = $region29
    $region28: #{norm_bigru_forward.6} parent=1 // pred_region
      %85 = dma.done [#allocation3], 512
    $region29: #{norm_bigru_forward.6} parent=1 // pred_fallthru
      _
    // Predicated region
    $region30: #{norm_bigru_forward.6} parent=1 // pred_check
      _
    $region31: #{norm_bigru_forward.6} parent=1 // pred_check_branch
      %87 = sbr.rel (0) target = $region33
    $region32: #{norm_bigru_forward.6} parent=1 // pred_region
      %88 = dma.done [#allocation6], 16
    $region33: #{norm_bigru_forward.6} parent=1 // pred_fallthru
      _
    // Predicated region
    $region34: #{norm_bigru_forward.6} parent=1 // pred_check
      _
    $region35: #{norm_bigru_forward.6} parent=1 // pred_check_branch
      %90 = sbr.rel (0) target = $region37
    $region36: #{norm_bigru_forward.6} parent=1 // pred_region
      %91 = dma.done [#allocation6], 16
    $region37: #{norm_bigru_forward.6} parent=1 // pred_fallthru
      _
    // Predicated region
    $region38: #{norm_bigru_forward.6} parent=1 // pred_check
      _
    $region39: #{norm_bigru_forward.6} parent=1 // pred_check_branch
      %93 = sbr.rel (0) target = $region41
    $region40: #{norm_bigru_forward.6} parent=1 // pred_region
      %94 = dma.done [#allocation9], 16
    $region41: #{norm_bigru_forward.6} parent=1 // pred_fallthru
      _
    // Predicated region
    $region42: #{norm_bigru_forward.6} parent=1 // pred_check
      _
    $region43: #{norm_bigru_forward.6} parent=1 // pred_check_branch
      %96 = sbr.rel (0) target = $region45
    $region44: #{norm_bigru_forward.6} parent=1 // pred_region
      %97 = dma.done [#allocation9], 16
    $region45: #{norm_bigru_forward.6} parent=1 // pred_fallthru
      _
    // Predicated region
    $region46: #{norm_bigru_forward.6} parent=1 // pred_check
      _
    $region47: #{norm_bigru_forward.6} parent=1 // pred_check_branch
      %99 = sbr.rel (0) target = $region49
    $region48: #{norm_bigru_forward.6} parent=1 // pred_region
      %100 = dma.done [#allocation12], 1536
    $region49: #{norm_bigru_forward.6} parent=1 // pred_fallthru
      _
    %s101 = smul.u32 0, 16
    %v102 = vlaneseq
    %v103 = vshrl.u32 %v102, 7
    %v104 = vadd.s32 %v103, 8
    %v105 = vstv %s101
    %v106 = vadd.s32 %v105, %v103
    %v107 = vadd.s32 %v105, %v104
    %v108 = vld [vmem:[#allocation2] sm:$0xff]
    %v109 = vld [vmem:[#allocation2 + $0x8] sm:$0xff]
    %v110 = vld [vmem:[#allocation2 + $0x10] sm:$0xff]
    %v111 = vld [vmem:[#allocation2 + $0x18] sm:$0xff]
    %v112 = vld [vmem:[#allocation5] sm:$0x1]
    %v114 = vlaneseq
    %v115 = vshrl.u32 %v114, 7
    %v116 = vsub.s32 0, %v115
    %v117 = vrot.slane %v112, %v116
    %v119 = vsub.f32 %v108, %v117
    %v120 = vsub.f32 %v109, %v117
    %v121 = vsub.f32 %v110, %v117
    %v122 = vsub.f32 %v111, %v117
    %v123 = vld [vmem:[#allocation7] sm:$0x1]
    %v125 = vlaneseq
    %v126 = vshrl.u32 %v125, 7
    %v127 = vsub.s32 0, %v126
    %v128 = vrot.slane %v123, %v127
    %v130 = vmul.f32 %v119, %v128
    %v131 = vmul.f32 %v120, %v128
    %v132 = vmul.f32 %v121, %v128
    %v133 = vmul.f32 %v122, %v128
    %v134 = vld [vmem:[#allocation8] sm:$0x1]
    %v136 = vlaneseq
    %v137 = vshrl.u32 %v136, 7
    %v138 = vsub.s32 0, %v137
    %v139 = vrot.slane %v134, %v138
    %v141 = vmul.f32 %v130, %v139
    %v142 = vmul.f32 %v131, %v139
    %v143 = vmul.f32 %v132, %v139
    %v144 = vmul.f32 %v133, %v139
    %v145 = vld [vmem:[#allocation10] sm:$0x1]
    %v147 = vlaneseq
    %v148 = vshrl.u32 %v147, 7
    %v149 = vsub.s32 0, %v148
    %v150 = vrot.slane %v145, %v149
    %v152 = vadd.f32 %v141, %v150
    %v153 = vadd.f32 %v142, %v150
    %v154 = vadd.f32 %v143, %v150
    %v155 = vadd.f32 %v144, %v150
    %vm156 = vcmp.lt.s32.totalorder %v106, 12
    %vm157 = vcmp.lt.s32.totalorder %v107, 12
    %v158 = vsel %vm156, 1, 0
    %v159 = vsel %vm157, 1, 0
    %vm160 = vcmp.eq.s32.totalorder %v158, 1
    %vm161 = vcmp.eq.s32.totalorder %v159, 1
    %v162 = vsel %vm160, %v152, 0.0
    %v163 = vsel %vm161, %v153, 0.0
    %v164 = vsel %vm160, %v154, 0.0
    %v165 = vsel %vm161, %v155, 0.0
    %v166 = vld [vmem:[#allocation11] sm:$0xff]
    %v167 = vld [vmem:[#allocation11 + $0x8] sm:$0xff]
    %v168 = vld [vmem:[#allocation11 + $0x10] sm:$0xff]
    %v169 = vld [vmem:[#allocation11 + $0x18] sm:$0xff]
    %v170 = vld [vmem:[#allocation11 + $0x20] sm:$0xff]
    %v171 = vld [vmem:[#allocation11 + $0x28] sm:$0xff]
    %v172 = vld [vmem:[#allocation11 + $0x30] sm:$0xff]
    %v173 = vld [vmem:[#allocation11 + $0x38] sm:$0xff]
    %v174 = vld [vmem:[#allocation11 + $0x40] sm:$0xff]
    %v175 = vld [vmem:[#allocation11 + $0x48] sm:$0xff]
    %v176 = vld [vmem:[#allocation11 + $0x50] sm:$0xff]
    %v177 = vld [vmem:[#allocation11 + $0x58] sm:$0xff]
    %vm178 = vcmask 130048
    %v180 = vsel %vm178, %v162, 0
    %v183 = vsel %vm178, %v163, 0
    %v186 = vsel %vm178, %v164, 0
    %v189 = vsel %vm178, %v165, 0
    %191 = vmatprep.subr.mxu0 %v167
    %192 = vmatpush1.msra.mxu0 %v166
    %193 = vmatprep.subr.mxu0 %v173
    %194 = vmatpush1.msra.mxu0 %v172
    %195 = vmatprep.subr.mxu0 0.0
    %196 = vmatpush1.msra.mxu0 0.0
    %197 = vmatprep.subr.mxu0 0.0
    %198 = vmatpush1.msra.mxu0 0.0
    %199 = vmatprep.subr.mxu0 0.0
    %200 = vmatpush1.msra.mxu0 0.0
    %201 = vmatprep.subr.mxu0 0.0
    %202 = vmatpush1.msra.mxu0 0.0
    %203 = vmatprep.subr.mxu0 0.0
    %204 = vmatpush1.msra.mxu0 0.0
    %205 = vmatprep.subr.mxu0 0.0
    %206 = vmatpush1.msra.mxu0 0.0
    %207 = vmatprep.subr.mxu0 0.0
    %208 = vmatpush1.msra.mxu0 0.0
    %209 = vmatprep.subr.mxu0 0.0
    %210 = vmatpush1.msra.mxu0 0.0
    %211 = vmatprep.subr.mxu0 0.0
    %212 = vmatpush1.msra.mxu0 0.0
    %213 = vmatprep.subr.mxu0 0.0
    %214 = vmatpush1.msra.mxu0 0.0
    %215 = vmatprep.subr.mxu0 0.0
    %216 = vmatpush1.msra.mxu0 0.0
    %217 = vmatprep.subr.mxu0 0.0
    %218 = vmatpush1.msra.mxu0 0.0
    %219 = vmatprep.subr.mxu0 0.0
    %220 = vmatpush1.msra.mxu0 0.0
    %221 = vmatprep.subr.mxu0 0.0
    %222 = vmatpush1.msra.mxu0 0.0
    %223 = vmatprep.subr.mxu0 0.0
    %224 = vmatpush1.msra.mxu0 0.0
    %225 = vmatprep.subr.mxu0 0.0
    %226 = vmatpush1.msra.mxu0 0.0
    %227 = vmatprep.subr.mxu0 0.0
    %228 = vmatpush1.msra.mxu0 0.0
    %229 = vmatprep.subr.mxu0 0.0
    %230 = vmatpush1.msra.mxu0 0.0
    %231 = vmatprep.subr.mxu0 0.0
    %232 = vmatpush1.msra.mxu0 0.0
    %233 = vmatprep.subr.mxu0 0.0
    %234 = vmatpush1.msra.mxu0 0.0
    %235 = vmatprep.subr.mxu0 0.0
    %236 = vmatpush1.msra.mxu0 0.0
    %237 = vmatprep.subr.mxu0 0.0
    %238 = vmatpush1.msra.mxu0 0.0
    %239 = vmatprep.subr.mxu0 0.0
    %240 = vmatpush1.msra.mxu0 0.0
    %241 = vmatprep.subr.mxu0 0.0
    %242 = vmatpush1.msra.mxu0 0.0
    %243 = vmatprep.subr.mxu0 0.0
    %244 = vmatpush1.msra.mxu0 0.0
    %245 = vmatprep.subr.mxu0 0.0
    %246 = vmatpush1.msra.mxu0 0.0
    %247 = vmatprep.subr.mxu0 0.0
    %248 = vmatpush1.msra.mxu0 0.0
    %249 = vmatprep.subr.mxu0 0.0
    %250 = vmatpush1.msra.mxu0 0.0
    %251 = vmatprep.subr.mxu0 0.0
    %252 = vmatpush1.msra.mxu0 0.0
    %253 = vmatprep.subr.mxu0 0.0
    %254 = vmatpush1.msra.mxu0 0.0
    %255 = vmatprep.mubr.f32.mxu0 0.0
    %256 = vmatmul.mubr.f32.gmra.mrb[0].mxu0 %v180
    %v257 = vpop.f32.mrb[0].mxu0
    %v258 = vadd.f32 0.0, %v257
    %v259 = vpop.f32.mrb[0].mxu0
    %v260 = vadd.f32 0.0, %v259
    %261 = vmatprep.mubr.f32.mxu0 0.0
    %262 = vmatmul.mubr.f32.gmra.mrb[0].mxu0 %v183
    %v263 = vpop.f32.mrb[0].mxu0
    %v264 = vadd.f32 0.0, %v263
    %v265 = vpop.f32.mrb[0].mxu0
    %v266 = vadd.f32 0.0, %v265
    %267 = vmatprep.mubr.f32.mxu0 0.0
    %268 = vmatmul.mubr.f32.gmra.mrb[0].mxu0 %v186
    %v269 = vpop.f32.mrb[0].mxu0
    %v270 = vadd.f32 0.0, %v269
    %v271 = vpop.f32.mrb[0].mxu0
    %v272 = vadd.f32 0.0, %v271
    %273 = vmatprep.mubr.f32.mxu0 0.0
    %274 = vmatmul.mubr.f32.gmra.mrb[0].mxu0 %v189
    %v275 = vpop.f32.mrb[0].mxu0
    %v276 = vadd.f32 0.0, %v275
    %v277 = vpop.f32.mrb[0].mxu0
    %v278 = vadd.f32 0.0, %v277
    %279 = vdwg.mxu0
    %280 = vmatprep.subr.mxu0 %v169
    %281 = vmatpush1.msra.mxu0 %v168
    %282 = vmatprep.subr.mxu0 %v175
    %283 = vmatpush1.msra.mxu0 %v174
    %284 = vmatprep.subr.mxu0 0.0
    %285 = vmatpush1.msra.mxu0 0.0
    %286 = vmatprep.subr.mxu0 0.0
    %287 = vmatpush1.msra.mxu0 0.0
    %288 = vmatprep.subr.mxu0 0.0
    %289 = vmatpush1.msra.mxu0 0.0
    %290 = vmatprep.subr.mxu0 0.0
    %291 = vmatpush1.msra.mxu0 0.0
    %292 = vmatprep.subr.mxu0 0.0
    %293 = vmatpush1.msra.mxu0 0.0
    %294 = vmatprep.subr.mxu0 0.0
    %295 = vmatpush1.msra.mxu0 0.0
    %296 = vmatprep.subr.mxu0 0.0
    %297 = vmatpush1.msra.mxu0 0.0
    %298 = vmatprep.subr.mxu0 0.0
    %299 = vmatpush1.msra.mxu0 0.0
    %300 = vmatprep.subr.mxu0 0.0
    %301 = vmatpush1.msra.mxu0 0.0
    %302 = vmatprep.subr.mxu0 0.0
    %303 = vmatpush1.msra.mxu0 0.0
    %304 = vmatprep.subr.mxu0 0.0
    %305 = vmatpush1.msra.mxu0 0.0
    %306 = vmatprep.subr.mxu0 0.0
    %307 = vmatpush1.msra.mxu0 0.0
    %308 = vmatprep.subr.mxu0 0.0
    %309 = vmatpush1.msra.mxu0 0.0
    %310 = vmatprep.subr.mxu0 0.0
    %311 = vmatpush1.msra.mxu0 0.0
    %312 = vmatprep.subr.mxu0 0.0
    %313 = vmatpush1.msra.mxu0 0.0
    %314 = vmatprep.subr.mxu0 0.0
    %315 = vmatpush1.msra.mxu0 0.0
    %316 = vmatprep.subr.mxu0 0.0
    %317 = vmatpush1.msra.mxu0 0.0
    %318 = vmatprep.subr.mxu0 0.0
    %319 = vmatpush1.msra.mxu0 0.0
    %320 = vmatprep.subr.mxu0 0.0
    %321 = vmatpush1.msra.mxu0 0.0
    %322 = vmatprep.subr.mxu0 0.0
    %323 = vmatpush1.msra.mxu0 0.0
    %324 = vmatprep.subr.mxu0 0.0
    %325 = vmatpush1.msra.mxu0 0.0
    %326 = vmatprep.subr.mxu0 0.0
    %327 = vmatpush1.msra.mxu0 0.0
    %328 = vmatprep.subr.mxu0 0.0
    %329 = vmatpush1.msra.mxu0 0.0
    %330 = vmatprep.subr.mxu0 0.0
    %331 = vmatpush1.msra.mxu0 0.0
    %332 = vmatprep.subr.mxu0 0.0
    %333 = vmatpush1.msra.mxu0 0.0
    %334 = vmatprep.subr.mxu0 0.0
    %335 = vmatpush1.msra.mxu0 0.0
    %336 = vmatprep.subr.mxu0 0.0
    %337 = vmatpush1.msra.mxu0 0.0
    %338 = vmatprep.subr.mxu0 0.0
    %339 = vmatpush1.msra.mxu0 0.0
    %340 = vmatprep.subr.mxu0 0.0
    %341 = vmatpush1.msra.mxu0 0.0
    %342 = vmatprep.subr.mxu0 0.0
    %343 = vmatpush1.msra.mxu0 0.0
    %344 = vmatprep.mubr.f32.mxu0 0.0
    %345 = vmatmul.mubr.f32.gmra.mrb[0].mxu0 %v180
    %v346 = vpop.f32.mrb[0].mxu0
    %v347 = vadd.f32 0.0, %v346
    %v348 = vpop.f32.mrb[0].mxu0
    %v349 = vadd.f32 0.0, %v348
    %350 = vmatprep.mubr.f32.mxu0 0.0
    %351 = vmatmul.mubr.f32.gmra.mrb[0].mxu0 %v183
    %v352 = vpop.f32.mrb[0].mxu0
    %v353 = vadd.f32 0.0, %v352
    %v354 = vpop.f32.mrb[0].mxu0
    %v355 = vadd.f32 0.0, %v354
    %356 = vmatprep.mubr.f32.mxu0 0.0
    %357 = vmatmul.mubr.f32.gmra.mrb[0].mxu0 %v186
    %v358 = vpop.f32.mrb[0].mxu0
    %v359 = vadd.f32 0.0, %v358
    %v360 = vpop.f32.mrb[0].mxu0
    %v361 = vadd.f32 0.0, %v360
    %362 = vmatprep.mubr.f32.mxu0 0.0
    %363 = vmatmul.mubr.f32.gmra.mrb[0].mxu0 %v189
    %v364 = vpop.f32.mrb[0].mxu0
    %v365 = vadd.f32 0.0, %v364
    %v366 = vpop.f32.mrb[0].mxu0
    %v367 = vadd.f32 0.0, %v366
    %368 = vdwg.mxu0
    %369 = vmatprep.subr.mxu0 %v171
    %370 = vmatpush1.msra.mxu0 %v170
    %371 = vmatprep.subr.mxu0 %v177
    %372 = vmatpush1.msra.mxu0 %v176
    %373 = vmatprep.subr.mxu0 0.0
    %374 = vmatpush1.msra.mxu0 0.0
    %375 = vmatprep.subr.mxu0 0.0
    %376 = vmatpush1.msra.mxu0 0.0
    %377 = vmatprep.subr.mxu0 0.0
    %378 = vmatpush1.msra.mxu0 0.0
    %379 = vmatprep.subr.mxu0 0.0
    %380 = vmatpush1.msra.mxu0 0.0
    %381 = vmatprep.subr.mxu0 0.0
    %382 = vmatpush1.msra.mxu0 0.0
    %383 = vmatprep.subr.mxu0 0.0
    %384 = vmatpush1.msra.mxu0 0.0
    %385 = vmatprep.subr.mxu0 0.0
    %386 = vmatpush1.msra.mxu0 0.0
    %387 = vmatprep.subr.mxu0 0.0
    %388 = vmatpush1.msra.mxu0 0.0
    %389 = vmatprep.subr.mxu0 0.0
    %390 = vmatpush1.msra.mxu0 0.0
    %391 = vmatprep.subr.mxu0 0.0
    %392 = vmatpush1.msra.mxu0 0.0
    %393 = vmatprep.subr.mxu0 0.0
    %394 = vmatpush1.msra.mxu0 0.0
    %395 = vmatprep.subr.mxu0 0.0
    %396 = vmatpush1.msra.mxu0 0.0
    %397 = vmatprep.subr.mxu0 0.0
    %398 = vmatpush1.msra.mxu0 0.0
    %399 = vmatprep.subr.mxu0 0.0
    %400 = vmatpush1.msra.mxu0 0.0
    %401 = vmatprep.subr.mxu0 0.0
    %402 = vmatpush1.msra.mxu0 0.0
    %403 = vmatprep.subr.mxu0 0.0
    %404 = vmatpush1.msra.mxu0 0.0
    %405 = vmatprep.subr.mxu0 0.0
    %406 = vmatpush1.msra.mxu0 0.0
    %407 = vmatprep.subr.mxu0 0.0
    %408 = vmatpush1.msra.mxu0 0.0
    %409 = vmatprep.subr.mxu0 0.0
    %410 = vmatpush1.msra.mxu0 0.0
    %411 = vmatprep.subr.mxu0 0.0
    %412 = vmatpush1.msra.mxu0 0.0
    %413 = vmatprep.subr.mxu0 0.0
    %414 = vmatpush1.msra.mxu0 0.0
    %415 = vmatprep.subr.mxu0 0.0
    %416 = vmatpush1.msra.mxu0 0.0
    %417 = vmatprep.subr.mxu0 0.0
    %418 = vmatpush1.msra.mxu0 0.0
    %419 = vmatprep.subr.mxu0 0.0
    %420 = vmatpush1.msra.mxu0 0.0
    %421 = vmatprep.subr.mxu0 0.0
    %422 = vmatpush1.msra.mxu0 0.0
    %423 = vmatprep.subr.mxu0 0.0
    %424 = vmatpush1.msra.mxu0 0.0
    %425 = vmatprep.subr.mxu0 0.0
    %426 = vmatpush1.msra.mxu0 0.0
    %427 = vmatprep.subr.mxu0 0.0
    %428 = vmatpush1.msra.mxu0 0.0
    %429 = vmatprep.subr.mxu0 0.0
    %430 = vmatpush1.msra.mxu0 0.0
    %431 = vmatprep.subr.mxu0 0.0
    %432 = vmatpush1.msra.mxu0 0.0
    %433 = vmatprep.mubr.f32.mxu0 0.0
    %434 = vmatmul.mubr.f32.gmra.mrb[0].mxu0 %v180
    %v435 = vpop.f32.mrb[0].mxu0
    %v436 = vadd.f32 0.0, %v435
    %v437 = vpop.f32.mrb[0].mxu0
    %v438 = vadd.f32 0.0, %v437
    %439 = vmatprep.mubr.f32.mxu0 0.0
    %440 = vmatmul.mubr.f32.gmra.mrb[0].mxu0 %v183
    %v441 = vpop.f32.mrb[0].mxu0
    %v442 = vadd.f32 0.0, %v441
    %v443 = vpop.f32.mrb[0].mxu0
    %v444 = vadd.f32 0.0, %v443
    %445 = vmatprep.mubr.f32.mxu0 0.0
    %446 = vmatmul.mubr.f32.gmra.mrb[0].mxu0 %v186
    %v447 = vpop.f32.mrb[0].mxu0
    %v448 = vadd.f32 0.0, %v447
    %v449 = vpop.f32.mrb[0].mxu0
    %v450 = vadd.f32 0.0, %v449
    %451 = vmatprep.mubr.f32.mxu0 0.0
    %452 = vmatmul.mubr.f32.gmra.mrb[0].mxu0 %v189
    %v453 = vpop.f32.mrb[0].mxu0
    %v454 = vadd.f32 0.0, %v453
    %v455 = vpop.f32.mrb[0].mxu0
    %v456 = vadd.f32 0.0, %v455
    %457 = vdwg.mxu0
    %458 = vst [vmem:[#allocation13] sm:$0xff] %v258
    %459 = vst [vmem:[#allocation13 + $0x8] sm:$0xff] %v260
    %460 = vst [vmem:[#allocation13 + $0x10] sm:$0xff] %v347
    %461 = vst [vmem:[#allocation13 + $0x18] sm:$0xff] %v264
    %462 = vst [vmem:[#allocation13 + $0x20] sm:$0xff] %v266
    %463 = vst [vmem:[#allocation13 + $0x28] sm:$0xff] %v353
    %464 = vst [vmem:[#allocation13 + $0x30] sm:$0xff] %v270
    %465 = vst [vmem:[#allocation13 + $0x38] sm:$0xff] %v272
    %466 = vst [vmem:[#allocation13 + $0x40] sm:$0xff] %v359
    %467 = vst [vmem:[#allocation13 + $0x48] sm:$0xff] %v276
    %468 = vst [vmem:[#allocation13 + $0x50] sm:$0xff] %v278
    %469 = vst [vmem:[#allocation13 + $0x58] sm:$0xff] %v365
    %470 = vst [vmem:[#allocation14] sm:$0xff] %v349
    %471 = vst [vmem:[#allocation14 + $0x8] sm:$0xff] %v436
    %472 = vst [vmem:[#allocation14 + $0x10] sm:$0xff] %v438
    %473 = vst [vmem:[#allocation14 + $0x18] sm:$0xff] %v355
    %474 = vst [vmem:[#allocation14 + $0x20] sm:$0xff] %v442
    %475 = vst [vmem:[#allocation14 + $0x28] sm:$0xff] %v444
    %476 = vst [vmem:[#allocation14 + $0x30] sm:$0xff] %v361
    %477 = vst [vmem:[#allocation14 + $0x38] sm:$0xff] %v448
    %478 = vst [vmem:[#allocation14 + $0x40] sm:$0xff] %v450
    %479 = vst [vmem:[#allocation14 + $0x48] sm:$0xff] %v367
    %480 = vst [vmem:[#allocation14 + $0x50] sm:$0xff] %v454
    %481 = vst [vmem:[#allocation14 + $0x58] sm:$0xff] %v456
    // Predicated region
    $region50: #{norm_bigru_forward.6} parent=1 // pred_check
      _
    $region51: #{norm_bigru_forward.6} parent=1 // pred_check_branch
      %483 = sbr.rel (0) target = $region53
    $region52: #{norm_bigru_forward.6} parent=1 // pred_region
      %s485 = ssub.s32 1536, 1536
      %486 = vsyncadd [#allocation4], %s485
      %s487 = sshll.u32 [#allocation13], 4
      %s488 = int_to_ptr.vmem [resolvable:$true] %s487
      %493 = dma.vmem_to_hbm [thread:$0]  %s488, 1536, %s6, [#allocation4], 384, 384, 24
    $region53: #{norm_bigru_forward.6} parent=1 // pred_fallthru
      _
    // Predicated region
    $region54: #{norm_bigru_forward.6} parent=1 // pred_check
      _
    $region55: #{norm_bigru_forward.6} parent=1 // pred_check_branch
      %495 = sbr.rel (0) target = $region57
    $region56: #{norm_bigru_forward.6} parent=1 // pred_region
      %s497 = ssub.s32 1536, 1536
      %498 = vsyncadd [#allocation15], %s497
      %s499 = sshll.u32 [#allocation14], 4
      %s500 = int_to_ptr.vmem [resolvable:$true] %s499
      %505 = dma.vmem_to_hbm [thread:$0]  %s500, 1536, %s7, [#allocation15], 384, 384, 24
    $region57: #{norm_bigru_forward.6} parent=1 // pred_fallthru
      _
    // Predicated region
    $region58: #{norm_bigru_forward.6} parent=1 // pred_check
      _
    $region59: #{norm_bigru_forward.6} parent=1 // pred_check_branch
      %507 = sbr.rel (0) target = $region61
    $region60: #{norm_bigru_forward.6} parent=1 // pred_region
      %508 = dma.done [#allocation4], 1536
    $region61: #{norm_bigru_forward.6} parent=1 // pred_fallthru
      _
    // Predicated region
    $region62: #{norm_bigru_forward.6} parent=1 // pred_check
      _
    $region63: #{norm_bigru_forward.6} parent=1 // pred_check_branch
      %510 = sbr.rel (0) target = $region65
    $region64: #{norm_bigru_forward.6} parent=1 // pred_region
      %511 = dma.done [#allocation15], 1536
    $region65: #{norm_bigru_forward.6} parent=1 // pred_fallthru
      _
    %512 = vsyncpa [#allocation3], 1
    %513 = vsyncpa [#allocation6], 1
    %514 = vsyncpa [#allocation9], 1
    %515 = vsyncpa [#allocation12], 1
    %516 = vsyncpa [#allocation4], 1
    %517 = vsyncpa [#allocation15], 1

// kernel: norm_bigru_forward.7
$region0: #{norm_bigru_forward.7}
  #allocation0 [shape = 'u32[]', space=smem, size = 0x4, offset = 0x4, fixed_abs, tag = 'smem constant byte address 0x4 - core index']
  #allocation1 [shape = 'u32[144,128]{1,0:T(1,128)}', space=vmem, size = 0x12000, scoped, tag = 'internal scratch']
  #allocation2 [shape = 'f32[2,128,384]{2,1,0:T(8,128)}', space=vmem, size = 0x60000, scoped, tag = 'scratch operand']
  #allocation3 [shape = 'f32[1,128]{1,0:T(1,128)}', space=vmem, size = 0x200, scoped, tag = 'scratch operand']
  #allocation4 [shape = 'f32[1,128]{1,0:T(1,128)}', space=vmem, size = 0x200, scoped, tag = 'scratch operand']
  #allocation5 [shape = 's32[1]{0}', space=sflag, size = 0x4, scoped, tag = 'scratch operand']
  #allocation14 [shape = 's32[]', space=sflag, size = 0x4, offset = 0, fixed_abs, tag = 'sflag constant byte address 0x0 - dummy sync flag']
  #allocation15 [shape = 's32[]', space=sflag, size = 0x4, offset = 0, fixed_abs, tag = 'sflag constant byte address 0x0 - dummy sync flag']
  #allocation16 [shape = 'u32[]', space=smem, size = 0x4, offset = 0x44, fixed_abs, tag = 'smem constant byte address 0x44 - assertion arg 0']
  #allocation17 [shape = 'u32[]', space=smem, size = 0x4, offset = 0x48, fixed_abs, tag = 'smem constant byte address 0x48 - assertion arg 1']
  %s0 = inlined_call_operand.hbm [shape: f32[2,16,384], index: 0, kind: input, shape index: {}]
  %s1 = inlined_call_operand.hbm [shape: f32[2,16,384], index: 1, kind: input, shape index: {}]
  %s2 = inlined_call_operand.hbm [shape: f32[2,128,384], index: 2, kind: input, shape index: {}]
  %s3 = inlined_call_operand.hbm [shape: f32[2,16,128], index: 3, kind: output, shape index: {0}]
  %s4 = inlined_call_operand.hbm [shape: f32[2,16,128], index: 4, kind: output, shape index: {1}]
  %5 = xla_tuple %s3, %s4
  %s6 = sld [smem:[#allocation0]]
  $region65: #{norm_bigru_forward.7} parent=0
    _
  %s8 = ssub.s32 1, %s6
  %s9 = scalar_select 0, %s8, %s6
  $region1: #{norm_bigru_forward.7} parent=0
    #allocation6 [shape = 'u8[49152]{0}', space=vmem, size = 0xc000, scoped, tag = 'input window, operand 0']
    #allocation7 [shape = 's32[2]{0}', space=sflag, size = 0x8, scoped, tag = 'scoped memory for norm_bigru_forward.7']
    #allocation8 [shape = 's32[2]{0}', space=sflag, size = 0x8, scoped, tag = 'scoped memory for norm_bigru_forward.7']
    #allocation9 [shape = 'u8[49152]{0}', space=vmem, size = 0xc000, scoped, tag = 'input window, operand 1']
    #allocation10 [shape = 's32[2]{0}', space=sflag, size = 0x8, scoped, tag = 'scoped memory for norm_bigru_forward.7']
    #allocation11 [shape = 'u8[16384]{0}', space=vmem, size = 0x4000, scoped, tag = 'output window, operand 0']
    #allocation12 [shape = 'u8[16384]{0}', space=vmem, size = 0x4000, scoped, tag = 'output window, operand 1']
    #allocation13 [shape = 's32[2]{0}', space=sflag, size = 0x8, scoped, tag = 'scoped memory for norm_bigru_forward.7']
    %10 = vsyncpa [#allocation7], 0
    %s11 = scalar_lea.sflag [#allocation7], 1
    %12 = vsyncpa %s11, 0
    %13 = vsyncpa [#allocation10], 0
    %s14 = scalar_lea.sflag [#allocation10], 1
    %15 = vsyncpa %s14, 0
    %16 = vsyncpa [#allocation8], 0
    %s17 = scalar_lea.sflag [#allocation8], 1
    %18 = vsyncpa %s17, 0
    %19 = vsyncpa [#allocation13], 0
    %s20 = scalar_lea.sflag [#allocation13], 1
    %21 = vsyncpa %s20, 0
    loop: start=0, step=1, limit=4
    $region2: #{norm_bigru_forward.7} parent=1 // loop_pre_header
      _
    $region3: #{norm_bigru_forward.7} parent=1 // loop_header
      %s23 = sphi 0, %s27
      %p24 = scmp.ge.s32.totalorder %s23, 4
      %s30 = sphi 0, %s42
      %s31 = sphi 0, %s38
      %s32 = sphi 0, %s30
      %s33 = sphi 0, %s31
      %s34 = sphi 0, %s32
      %s35 = sphi 0, %s33
      %s47 = sphi 0, %s49
      %s50 = sphi 0, %s47
      %s51 = sphi 0, %s50
      %s67 = sphi 0, %s51
      %s77 = sphi 0, %s79
      %s80 = sphi 0, %s77
      %s81 = sphi 0, %s80
      %s97 = sphi 0, %s81
      %s105 = sphi 0, %s107
      %s108 = sphi 0, %s105
      %s109 = sphi 0, %s108
      %s125 = sphi 0, %s109
      %s135 = sphi 0, %s137
      %s138 = sphi 0, %s135
      %s139 = sphi 0, %s138
      %s155 = sphi 0, %s139
    $region4: #{norm_bigru_forward.7} parent=1 // loop_header_branch
      %26 = sbr.rel (%p24) target = $region8
    $region5: #{norm_bigru_forward.7} parent=1 // loop_body
      %s28 = ssub.s32 %s23, 1
      %s29 = ssub.s32 %s23, 2
      %s36 = sadd.s32 1, %s31
      %p37 = scmp.ge.s32.totalorder %s36, 1
      %s38 = scalar_select %p37, 0, %s36
      %s39 = sadd.s32 1, %s30
      %s40 = scalar_select %p37, %s39, %s30
      %p41 = scmp.ge.s32.totalorder %s40, 2
      %s42 = scalar_select %p41, 0, %s40
      %s43 = ssub.s32 %s30, %s42
      %s44 = ssub.s32 %s31, %s38
      %s45 = sor.u32 %s43, %s44
      %p46 = scmp.eq.s32.totalorder %s45, 0
      %s48 = sadd.s32 %s47, 1
      %s49 = scalar_select %p46, %s47, %s48
      %p52 = pneg %p46
      %p53 = scmp.eq.s32.totalorder %s23, 1
      %p54 = por %p52, %p53
      %p55 = scmp.ne.s32.totalorder %s47, %s50
      %p56 = scmp.eq.s32.totalorder %s23, 0
      %p57 = por %p55, %p56
      %p58 = scmp.ne.s32.totalorder %s47, %s50
      %p59 = scmp.eq.s32.totalorder %s28, 1
      %p60 = por %p58, %p59
      %p61 = scmp.ne.s32.totalorder %s50, %s51
      %p62 = scmp.eq.s32.totalorder %s28, 0
      %p63 = por %p61, %p62
      %p64 = scmp.ne.s32.totalorder %s50, %s51
      %p65 = scmp.eq.s32.totalorder %s29, 1
      %p66 = por %p64, %p65
      %p68 = scmp.ne.s32.totalorder %s51, %s67
      %p69 = scmp.eq.s32.totalorder %s29, 0
      %p70 = por %p68, %p69
      %s71 = ssub.s32 0, %s31
      %s72 = ssub.s32 0, %s38
      %s73 = ssub.s32 %s30, %s42
      %s74 = ssub.s32 %s71, %s72
      %s75 = sor.u32 %s73, %s74
      %p76 = scmp.eq.s32.totalorder %s75, 0
      %s78 = sadd.s32 %s77, 1
      %s79 = scalar_select %p76, %s77, %s78
      %p82 = pneg %p76
      %p83 = scmp.eq.s32.totalorder %s23, 1
      %p84 = por %p82, %p83
      %p85 = scmp.ne.s32.totalorder %s77, %s80
      %p86 = scmp.eq.s32.totalorder %s23, 0
      %p87 = por %p85, %p86
      %p88 = scmp.ne.s32.totalorder %s77, %s80
      %p89 = scmp.eq.s32.totalorder %s28, 1
      %p90 = por %p88, %p89
      %p91 = scmp.ne.s32.totalorder %s80, %s81
      %p92 = scmp.eq.s32.totalorder %s28, 0
      %p93 = por %p91, %p92
      %p94 = scmp.ne.s32.totalorder %s80, %s81
      %p95 = scmp.eq.s32.totalorder %s29, 1
      %p96 = por %p94, %p95
      %p98 = scmp.ne.s32.totalorder %s81, %s97
      %p99 = scmp.eq.s32.totalorder %s29, 0
      %p100 = por %p98, %p99
      %s101 = ssub.s32 %s30, %s42
      %s102 = ssub.s32 %s31, %s38
      %s103 = sor.u32 %s101, %s102
      %p104 = scmp.eq.s32.totalorder %s103, 0
      %s106 = sadd.s32 %s105, 1
      %s107 = scalar_select %p104, %s105, %s106
      %p110 = pneg %p104
      %p111 = scmp.eq.s32.totalorder %s23, 1
      %p112 = por %p110, %p111
      %p113 = scmp.ne.s32.totalorder %s105, %s108
      %p114 = scmp.eq.s32.totalorder %s23, 0
      %p115 = por %p113, %p114
      %p116 = scmp.ne.s32.totalorder %s105, %s108
      %p117 = scmp.eq.s32.totalorder %s28, 1
      %p118 = por %p116, %p117
      %p119 = scmp.ne.s32.totalorder %s108, %s109
      %p120 = scmp.eq.s32.totalorder %s28, 0
      %p121 = por %p119, %p120
      %p122 = scmp.ne.s32.totalorder %s108, %s109
      %p123 = scmp.eq.s32.totalorder %s29, 1
      %p124 = por %p122, %p123
      %p126 = scmp.ne.s32.totalorder %s109, %s125
      %p127 = scmp.eq.s32.totalorder %s29, 0
      %p128 = por %p126, %p127
      %s129 = ssub.s32 0, %s31
      %s130 = ssub.s32 0, %s38
      %s131 = ssub.s32 %s30, %s42
      %s132 = ssub.s32 %s129, %s130
      %s133 = sor.u32 %s131, %s132
      %p134 = scmp.eq.s32.totalorder %s133, 0
      %s136 = sadd.s32 %s135, 1
      %s137 = scalar_select %p134, %s135, %s136
      %p140 = pneg %p134
      %p141 = scmp.eq.s32.totalorder %s23, 1
      %p142 = por %p140, %p141
      %p143 = scmp.ne.s32.totalorder %s135, %s138
      %p144 = scmp.eq.s32.totalorder %s23, 0
      %p145 = por %p143, %p144
      %p146 = scmp.ne.s32.totalorder %s135, %s138
      %p147 = scmp.eq.s32.totalorder %s28, 1
      %p148 = por %p146, %p147
      %p149 = scmp.ne.s32.totalorder %s138, %s139
      %p150 = scmp.eq.s32.totalorder %s28, 0
      %p151 = por %p149, %p150
      %p152 = scmp.ne.s32.totalorder %s138, %s139
      %p153 = scmp.eq.s32.totalorder %s29, 1
      %p154 = por %p152, %p153
      %p156 = scmp.ne.s32.totalorder %s139, %s155
      %p157 = scmp.eq.s32.totalorder %s29, 0
      %p158 = por %p156, %p157
      %p159 = scmp.le.s32.totalorder 1, %s23
      %p160 = scmp.lt.s32.totalorder %s23, 3
      %p161 = pnand %p159, %p160
      %p162 = pneg %p161
      // Predicated region
      $region9: #{norm_bigru_forward.7} parent=5 // pred_check
        _
      $region10: #{norm_bigru_forward.7} parent=5 // pred_check_branch
        %164 = sbr.rel (%p161) target = $region12
      $region11: #{norm_bigru_forward.7} parent=5 // pred_region
        %s165 = ssub.s32 %s23, 1
      $region12: #{norm_bigru_forward.7} parent=5 // pred_fallthru
        _
      %p166 = scmp.lt.s32.totalorder %s23, 2
      // Predicated region
      $region13: #{norm_bigru_forward.7} parent=5 // pred_check
        %p167 = pneg %p166
      $region14: #{norm_bigru_forward.7} parent=5 // pred_check_branch
        %169 = sbr.rel (%p167) target = $region16
      $region15: #{norm_bigru_forward.7} parent=5 // pred_region
        // Predicated region
        $region17: #{norm_bigru_forward.7} parent=15 // pred_check
          %p170 = pneg %p57
        $region18: #{norm_bigru_forward.7} parent=15 // pred_check_branch
          %172 = sbr.rel (%p170) target = $region20
        $region19: #{norm_bigru_forward.7} parent=15 // pred_region
          %s173 = sand.u32 %s47, 1
          %s174 = scalar_lea.sflag [#allocation7], %s173
          %s175 = sand.u32 %s47, 1
          %s176 = smul.addr %s175, 48
          %s177 = scalar_lea.vmem [#allocation6], %s176
          %s178 = smul.u32 2, %s31
          %s180 = ssub.s32 768, 768
          %181 = vsyncadd %s174, %s180
          %s182 = smul.addr %s178, 3
          %s183 = smul.addr %s30, 6
          %s184 = sadd.s32 %s182, %s183
          %s185 = smul.addr %s184, 128
          %s186 = scalar_lea.hbm %s0, %s185
          %s187 = sshll.u32 %s177, 4
          %s188 = int_to_ptr.vmem [resolvable:$true] %s187
          %193 = dma.hbm_to_vmem [thread:$0]  %s186, 768, %s188, %s174, 384, 384, 24
        $region20: #{norm_bigru_forward.7} parent=15 // pred_fallthru
          _
        // Predicated region
        $region21: #{norm_bigru_forward.7} parent=15 // pred_check
          %p194 = pneg %p87
        $region22: #{norm_bigru_forward.7} parent=15 // pred_check_branch
          %196 = sbr.rel (%p194) target = $region24
        $region23: #{norm_bigru_forward.7} parent=15 // pred_region
          %s197 = sand.u32 %s77, 1
          %s198 = scalar_lea.sflag [#allocation10], %s197
          %s199 = sand.u32 %s77, 1
          %s200 = smul.addr %s199, 48
          %s201 = scalar_lea.vmem [#allocation9], %s200
          %s202 = ssub.s32 0, %s31
          %s203 = smul.u32 2, %s202
          %s205 = ssub.s32 768, 768
          %206 = vsyncadd %s198, %s205
          %s207 = smul.addr %s203, 3
          %s208 = smul.addr %s30, 6
          %s209 = sadd.s32 %s207, %s208
          %s210 = smul.addr %s209, 128
          %s211 = scalar_lea.hbm %s1, %s210
          %s212 = sshll.u32 %s201, 4
          %s213 = int_to_ptr.vmem [resolvable:$true] %s212
          %218 = dma.hbm_to_vmem [thread:$0]  %s211, 768, %s213, %s198, 384, 384, 24
        $region24: #{norm_bigru_forward.7} parent=15 // pred_fallthru
          _
      $region16: #{norm_bigru_forward.7} parent=5 // pred_fallthru
        _
      %p219 = scmp.le.s32.totalorder 1, %s23
      %p220 = scmp.lt.s32.totalorder %s23, 3
      %p221 = pnand %p219, %p220
      %p222 = pneg %p221
      // Predicated region
      $region25: #{norm_bigru_forward.7} parent=5 // pred_check
        _
      $region26: #{norm_bigru_forward.7} parent=5 // pred_check_branch
        %224 = sbr.rel (%p221) target = $region28
      $region27: #{norm_bigru_forward.7} parent=5 // pred_region
        %s225 = ssub.s32 %s23, 1
        %s226 = sand.u32 %s50, 1
        %s227 = scalar_lea.sflag [#allocation7], %s226
        %s228 = sand.u32 %s50, 1
        %s229 = smul.addr %s228, 48
        %s230 = scalar_lea.vmem [#allocation6], %s229
        // Predicated region
        $region29: #{norm_bigru_forward.7} parent=27 // pred_check
          %p231 = pneg %p63
        $region30: #{norm_bigru_forward.7} parent=27 // pred_check_branch
          %233 = sbr.rel (%p231) target = $region32
        $region31: #{norm_bigru_forward.7} parent=27 // pred_region
          %234 = dma.done %s227, 768
        $region32: #{norm_bigru_forward.7} parent=27 // pred_fallthru
          _
        %s235 = sand.u32 %s80, 1
        %s236 = scalar_lea.sflag [#allocation10], %s235
        %s237 = sand.u32 %s80, 1
        %s238 = smul.addr %s237, 48
        %s239 = scalar_lea.vmem [#allocation9], %s238
        // Predicated region
        $region33: #{norm_bigru_forward.7} parent=27 // pred_check
          %p240 = pneg %p93
        $region34: #{norm_bigru_forward.7} parent=27 // pred_check_branch
          %242 = sbr.rel (%p240) target = $region36
        $region35: #{norm_bigru_forward.7} parent=27 // pred_region
          %243 = dma.done %s236, 768
        $region36: #{norm_bigru_forward.7} parent=27 // pred_fallthru
          _
        %s244 = sand.u32 %s50, 1
        %s245 = scalar_lea.sflag [#allocation7], %s244
        %s246 = sand.u32 %s50, 1
        %s247 = smul.addr %s246, 48
        %s248 = scalar_lea.vmem [#allocation6], %s247
        %p249 = pneg %p63
        %p250 = pneg %p60
        %s251 = sand.u32 %s80, 1
        %s252 = scalar_lea.sflag [#allocation10], %s251
        %s253 = sand.u32 %s80, 1
        %s254 = smul.addr %s253, 48
        %s255 = scalar_lea.vmem [#allocation9], %s254
        %p256 = pneg %p93
        %p257 = pneg %p90
        %p258 = pneg %p121
        %p259 = pneg %p118
        %s260 = sand.u32 %s108, 1
        %s261 = scalar_lea.sflag [#allocation8], %s260
        %s262 = sand.u32 %s108, 1
        %s263 = smul.addr %s262, 16
        %s264 = scalar_lea.vmem [#allocation11], %s263
        %p265 = pneg %p151
        %p266 = pneg %p148
        %s267 = sand.u32 %s138, 1
        %s268 = scalar_lea.sflag [#allocation13], %s267
        %s269 = sand.u32 %s138, 1
        %s270 = smul.addr %s269, 16
        %s271 = scalar_lea.vmem [#allocation12], %s270
        %s272 = smul.u32 2, %s33
        %s273 = ssub.s32 0, %s33
        %s274 = smul.u32 2, %s273
        %s275 = smul.u32 2, %s33
        %s276 = ssub.s32 0, %s33
        %s277 = smul.u32 2, %s276
        %p278 = scmp.eq.s32.totalorder %s33, 0
        // Predicated region
        $region37: #{norm_bigru_forward.7} parent=27 // pred_check
          %p279 = pneg %p278
        $region38: #{norm_bigru_forward.7} parent=27 // pred_check_branch
          %281 = sbr.rel (%p279) target = $region40
        $region39: #{norm_bigru_forward.7} parent=27 // pred_region
          // Predicated region
          $region41: #{norm_bigru_forward.7} parent=39 // pred_check
            _
          $region42: #{norm_bigru_forward.7} parent=39 // pred_check_branch
            %283 = sbr.rel target = $region44
          $region43: #{norm_bigru_forward.7} parent=39 // pred_region
            %284 = sst [smem:[#allocation16]] [#allocation15]
            %285 = sst [smem:[#allocation17]] [#allocation14]
          $region44: #{norm_bigru_forward.7} parent=39 // pred_fallthru
            _
          %287 = shalt.err (0)
          %s289 = sshll.u32 [#allocation2], 4
          %s290 = int_to_ptr.vmem [resolvable:$true] %s289
          %292 = dma.hbm_to_vmem [thread:$0]  %s2, 12288, %s290, [#allocation5]
          %s293 = smul.u32 8, 2
          %s294 = smul.u32 %s293, 16
          %s295 = smul.u32 %s294, 3
          %s296 = sshll.u32 %s295, 4
          %297 = dma.done [#allocation5], %s296
          %298 = vst [vmem:[#allocation3] sm:$0x1] 0.0
          %299 = vst [vmem:[#allocation4] sm:$0x1] 0.0
        $region40: #{norm_bigru_forward.7} parent=27 // pred_fallthru
          _
        %v300 = vld [vmem:[#allocation2] sm:$0xff]
        %v301 = vld [vmem:[#allocation2 + $0x8] sm:$0xff]
        %v302 = vld [vmem:[#allocation2 + $0x10] sm:$0xff]
        %v303 = vld [vmem:[#allocation2 + $0x18] sm:$0xff]
        %v304 = vld [vmem:[#allocation2 + $0x20] sm:$0xff]
        %v305 = vld [vmem:[#allocation2 + $0x28] sm:$0xff]
        %v306 = vld [vmem:[#allocation2 + $0x30] sm:$0xff]
        %v307 = vld [vmem:[#allocation2 + $0x38] sm:$0xff]
        %v308 = vld [vmem:[#allocation2 + $0x40] sm:$0xff]
        %v309 = vld [vmem:[#allocation2 + $0x48] sm:$0xff]
        %v310 = vld [vmem:[#allocation2 + $0x50] sm:$0xff]
        %v311 = vld [vmem:[#allocation2 + $0x58] sm:$0xff]
        %v312 = vld [vmem:[#allocation2 + $0x60] sm:$0xff]
        %v313 = vld [vmem:[#allocation2 + $0x68] sm:$0xff]
        %v314 = vld [vmem:[#allocation2 + $0x70] sm:$0xff]
        %v315 = vld [vmem:[#allocation2 + $0x78] sm:$0xff]
        %v316 = vld [vmem:[#allocation2 + $0x80] sm:$0xff]
        %v317 = vld [vmem:[#allocation2 + $0x88] sm:$0xff]
        %v318 = vld [vmem:[#allocation2 + $0x90] sm:$0xff]
        %v319 = vld [vmem:[#allocation2 + $0x98] sm:$0xff]
        %v320 = vld [vmem:[#allocation2 + $0xa0] sm:$0xff]
        %v321 = vld [vmem:[#allocation2 + $0xa8] sm:$0xff]
        %v322 = vld [vmem:[#allocation2 + $0xb0] sm:$0xff]
        %v323 = vld [vmem:[#allocation2 + $0xb8] sm:$0xff]
        %v324 = vld [vmem:[#allocation2 + $0xc0] sm:$0xff]
        %v325 = vld [vmem:[#allocation2 + $0xc8] sm:$0xff]
        %v326 = vld [vmem:[#allocation2 + $0xd0] sm:$0xff]
        %v327 = vld [vmem:[#allocation2 + $0xd8] sm:$0xff]
        %v328 = vld [vmem:[#allocation2 + $0xe0] sm:$0xff]
        %v329 = vld [vmem:[#allocation2 + $0xe8] sm:$0xff]
        %v330 = vld [vmem:[#allocation2 + $0xf0] sm:$0xff]
        %v331 = vld [vmem:[#allocation2 + $0xf8] sm:$0xff]
        %v332 = vld [vmem:[#allocation2 + $0x100] sm:$0xff]
        %v333 = vld [vmem:[#allocation2 + $0x108] sm:$0xff]
        %v334 = vld [vmem:[#allocation2 + $0x110] sm:$0xff]
        %v335 = vld [vmem:[#allocation2 + $0x118] sm:$0xff]
        %v336 = vld [vmem:[#allocation2 + $0x120] sm:$0xff]
        %v337 = vld [vmem:[#allocation2 + $0x128] sm:$0xff]
        %v338 = vld [vmem:[#allocation2 + $0x130] sm:$0xff]
        %v339 = vld [vmem:[#allocation2 + $0x138] sm:$0xff]
        %v340 = vld [vmem:[#allocation2 + $0x140] sm:$0xff]
        %v341 = vld [vmem:[#allocation2 + $0x148] sm:$0xff]
        %v342 = vld [vmem:[#allocation2 + $0x150] sm:$0xff]
        %v343 = vld [vmem:[#allocation2 + $0x158] sm:$0xff]
        %v344 = vld [vmem:[#allocation2 + $0x160] sm:$0xff]
        %v345 = vld [vmem:[#allocation2 + $0x168] sm:$0xff]
        %v346 = vld [vmem:[#allocation2 + $0x170] sm:$0xff]
        %v347 = vld [vmem:[#allocation2 + $0x178] sm:$0xff]
        %s348 = scalar_lea.vmem [#allocation2], 384
        %v349 = vld [vmem:[%s348] sm:$0xff]
        %v350 = vld [vmem:[%s348 + $0x8] sm:$0xff]
        %v351 = vld [vmem:[%s348 + $0x10] sm:$0xff]
        %v352 = vld [vmem:[%s348 + $0x18] sm:$0xff]
        %v353 = vld [vmem:[%s348 + $0x20] sm:$0xff]
        %v354 = vld [vmem:[%s348 + $0x28] sm:$0xff]
        %v355 = vld [vmem:[%s348 + $0x30] sm:$0xff]
        %v356 = vld [vmem:[%s348 + $0x38] sm:$0xff]
        %v357 = vld [vmem:[%s348 + $0x40] sm:$0xff]
        %v358 = vld [vmem:[%s348 + $0x48] sm:$0xff]
        %v359 = vld [vmem:[%s348 + $0x50] sm:$0xff]
        %v360 = vld [vmem:[%s348 + $0x58] sm:$0xff]
        %v361 = vld [vmem:[%s348 + $0x60] sm:$0xff]
        %v362 = vld [vmem:[%s348 + $0x68] sm:$0xff]
        %v363 = vld [vmem:[%s348 + $0x70] sm:$0xff]
        %v364 = vld [vmem:[%s348 + $0x78] sm:$0xff]
        %v365 = vld [vmem:[%s348 + $0x80] sm:$0xff]
        %v366 = vld [vmem:[%s348 + $0x88] sm:$0xff]
        %v367 = vld [vmem:[%s348 + $0x90] sm:$0xff]
        %v368 = vld [vmem:[%s348 + $0x98] sm:$0xff]
        %v369 = vld [vmem:[%s348 + $0xa0] sm:$0xff]
        %v370 = vld [vmem:[%s348 + $0xa8] sm:$0xff]
        %v371 = vld [vmem:[%s348 + $0xb0] sm:$0xff]
        %v372 = vld [vmem:[%s348 + $0xb8] sm:$0xff]
        %v373 = vld [vmem:[%s348 + $0xc0] sm:$0xff]
        %v374 = vld [vmem:[%s348 + $0xc8] sm:$0xff]
        %v375 = vld [vmem:[%s348 + $0xd0] sm:$0xff]
        %v376 = vld [vmem:[%s348 + $0xd8] sm:$0xff]
        %v377 = vld [vmem:[%s348 + $0xe0] sm:$0xff]
        %v378 = vld [vmem:[%s348 + $0xe8] sm:$0xff]
        %v379 = vld [vmem:[%s348 + $0xf0] sm:$0xff]
        %v380 = vld [vmem:[%s348 + $0xf8] sm:$0xff]
        %v381 = vld [vmem:[%s348 + $0x100] sm:$0xff]
        %v382 = vld [vmem:[%s348 + $0x108] sm:$0xff]
        %v383 = vld [vmem:[%s348 + $0x110] sm:$0xff]
        %v384 = vld [vmem:[%s348 + $0x118] sm:$0xff]
        %v385 = vld [vmem:[%s348 + $0x120] sm:$0xff]
        %v386 = vld [vmem:[%s348 + $0x128] sm:$0xff]
        %v387 = vld [vmem:[%s348 + $0x130] sm:$0xff]
        %v388 = vld [vmem:[%s348 + $0x138] sm:$0xff]
        %v389 = vld [vmem:[%s348 + $0x140] sm:$0xff]
        %v390 = vld [vmem:[%s348 + $0x148] sm:$0xff]
        %v391 = vld [vmem:[%s348 + $0x150] sm:$0xff]
        %v392 = vld [vmem:[%s348 + $0x158] sm:$0xff]
        %v393 = vld [vmem:[%s348 + $0x160] sm:$0xff]
        %v394 = vld [vmem:[%s348 + $0x168] sm:$0xff]
        %v395 = vld [vmem:[%s348 + $0x170] sm:$0xff]
        %v396 = vld [vmem:[%s348 + $0x178] sm:$0xff]
        %v397 = vld [vmem:[#allocation3] sm:$0x1]
        %v398 = vld [vmem:[#allocation4] sm:$0x1]
        %v399 = vld [vmem:[%s230] ss:$8 sm:$0x7]
        %s400 = scalar_lea.vmem %s239, 31 [#allocation9]
        %v401 = vld [vmem:[%s400] ss:$8 sm:$0x7]
        %402 = vmatprep.subr.mxu0 %v301
        %403 = vmatpush1.msra.mxu0 %v300
        %404 = vmatprep.subr.mxu0 %v304
        %405 = vmatpush1.msra.mxu0 %v303
        %406 = vmatprep.subr.mxu0 %v307
        %407 = vmatpush1.msra.mxu0 %v306
        %408 = vmatprep.subr.mxu0 %v310
        %409 = vmatpush1.msra.mxu0 %v309
        %410 = vmatprep.subr.mxu0 %v313
        %411 = vmatpush1.msra.mxu0 %v312
        %412 = vmatprep.subr.mxu0 %v316
        %413 = vmatpush1.msra.mxu0 %v315
        %414 = vmatprep.subr.mxu0 %v319
        %415 = vmatpush1.msra.mxu0 %v318
        %416 = vmatprep.subr.mxu0 %v322
        %417 = vmatpush1.msra.mxu0 %v321
        %418 = vmatprep.subr.mxu0 %v325
        %419 = vmatpush1.msra.mxu0 %v324
        %420 = vmatprep.subr.mxu0 %v328
        %421 = vmatpush1.msra.mxu0 %v327
        %422 = vmatprep.subr.mxu0 %v331
        %423 = vmatpush1.msra.mxu0 %v330
        %424 = vmatprep.subr.mxu0 %v334
        %425 = vmatpush1.msra.mxu0 %v333
        %426 = vmatprep.subr.mxu0 %v337
        %427 = vmatpush1.msra.mxu0 %v336
        %428 = vmatprep.subr.mxu0 %v340
        %429 = vmatpush1.msra.mxu0 %v339
        %430 = vmatprep.subr.mxu0 %v343
        %431 = vmatpush1.msra.mxu0 %v342
        %432 = vmatprep.subr.mxu0 %v346
        %433 = vmatpush1.msra.mxu0 %v345
        %434 = vmatprep.subr.mxu0 0.0
        %435 = vmatpush1.msra.mxu0 0.0
        %436 = vmatprep.subr.mxu0 0.0
        %437 = vmatpush1.msra.mxu0 0.0
        %438 = vmatprep.subr.mxu0 0.0
        %439 = vmatpush1.msra.mxu0 0.0
        %440 = vmatprep.subr.mxu0 0.0
        %441 = vmatpush1.msra.mxu0 0.0
        %442 = vmatprep.subr.mxu0 0.0
        %443 = vmatpush1.msra.mxu0 0.0
        %444 = vmatprep.subr.mxu0 0.0
        %445 = vmatpush1.msra.mxu0 0.0
        %446 = vmatprep.subr.mxu0 0.0
        %447 = vmatpush1.msra.mxu0 0.0
        %448 = vmatprep.subr.mxu0 0.0
        %449 = vmatpush1.msra.mxu0 0.0
        %450 = vmatprep.subr.mxu0 0.0
        %451 = vmatpush1.msra.mxu0 0.0
        %452 = vmatprep.subr.mxu0 0.0
        %453 = vmatpush1.msra.mxu0 0.0
        %454 = vmatprep.subr.mxu0 0.0
        %455 = vmatpush1.msra.mxu0 0.0
        %456 = vmatprep.subr.mxu0 0.0
        %457 = vmatpush1.msra.mxu0 0.0
        %458 = vmatprep.subr.mxu0 0.0
        %459 = vmatpush1.msra.mxu0 0.0
        %460 = vmatprep.subr.mxu0 0.0
        %461 = vmatpush1.msra.mxu0 0.0
        %462 = vmatprep.subr.mxu0 0.0
        %463 = vmatpush1.msra.mxu0 0.0
        %464 = vmatprep.subr.mxu0 0.0
        %465 = vmatpush1.msra.mxu0 0.0
        %466 = vmatprep.mubr.f32.mxu0 0.0
        %467 = vmatmul.mubr.f32.gmra.mrb[0].mxu0 %v397
        %v468 = vpop.f32.mrb[0].mxu0
        %v469 = vadd.f32 0.0, %v468
        %v470 = vpop.f32.mrb[0].mxu0
        %v471 = vadd.f32 0.0, %v470
        %472 = vdwg.mxu0
        %473 = vmatprep.subr.mxu0 0.0
        %474 = vmatpush1.msra.mxu0 %v302
        %475 = vmatprep.subr.mxu0 0.0
        %476 = vmatpush1.msra.mxu0 %v305
        %477 = vmatprep.subr.mxu0 0.0
        %478 = vmatpush1.msra.mxu0 %v308
        %479 = vmatprep.subr.mxu0 0.0
        %480 = vmatpush1.msra.mxu0 %v311
        %481 = vmatprep.subr.mxu0 0.0
        %482 = vmatpush1.msra.mxu0 %v314
        %483 = vmatprep.subr.mxu0 0.0
        %484 = vmatpush1.msra.mxu0 %v317
        %485 = vmatprep.subr.mxu0 0.0
        %486 = vmatpush1.msra.mxu0 %v320
        %487 = vmatprep.subr.mxu0 0.0
        %488 = vmatpush1.msra.mxu0 %v323
        %489 = vmatprep.subr.mxu0 0.0
        %490 = vmatpush1.msra.mxu0 %v326
        %491 = vmatprep.subr.mxu0 0.0
        %492 = vmatpush1.msra.mxu0 %v329
        %493 = vmatprep.subr.mxu0 0.0
        %494 = vmatpush1.msra.mxu0 %v332
        %495 = vmatprep.subr.mxu0 0.0
        %496 = vmatpush1.msra.mxu0 %v335
        %497 = vmatprep.subr.mxu0 0.0
        %498 = vmatpush1.msra.mxu0 %v338
        %499 = vmatprep.subr.mxu0 0.0
        %500 = vmatpush1.msra.mxu0 %v341
        %501 = vmatprep.subr.mxu0 0.0
        %502 = vmatpush1.msra.mxu0 %v344
        %503 = vmatprep.subr.mxu0 0.0
        %504 = vmatpush1.msra.mxu0 %v347
        %505 = vmatprep.subr.mxu0 0.0
        %506 = vmatpush1.msra.mxu0 0.0
        %507 = vmatprep.subr.mxu0 0.0
        %508 = vmatpush1.msra.mxu0 0.0
        %509 = vmatprep.subr.mxu0 0.0
        %510 = vmatpush1.msra.mxu0 0.0
        %511 = vmatprep.subr.mxu0 0.0
        %512 = vmatpush1.msra.mxu0 0.0
        %513 = vmatprep.subr.mxu0 0.0
        %514 = vmatpush1.msra.mxu0 0.0
        %515 = vmatprep.subr.mxu0 0.0
        %516 = vmatpush1.msra.mxu0 0.0
        %517 = vmatprep.subr.mxu0 0.0
        %518 = vmatpush1.msra.mxu0 0.0
        %519 = vmatprep.subr.mxu0 0.0
        %520 = vmatpush1.msra.mxu0 0.0
        %521 = vmatprep.subr.mxu0 0.0
        %522 = vmatpush1.msra.mxu0 0.0
        %523 = vmatprep.subr.mxu0 0.0
        %524 = vmatpush1.msra.mxu0 0.0
        %525 = vmatprep.subr.mxu0 0.0
        %526 = vmatpush1.msra.mxu0 0.0
        %527 = vmatprep.subr.mxu0 0.0
        %528 = vmatpush1.msra.mxu0 0.0
        %529 = vmatprep.subr.mxu0 0.0
        %530 = vmatpush1.msra.mxu0 0.0
        %531 = vmatprep.subr.mxu0 0.0
        %532 = vmatpush1.msra.mxu0 0.0
        %533 = vmatprep.subr.mxu0 0.0
        %534 = vmatpush1.msra.mxu0 0.0
        %535 = vmatprep.subr.mxu0 0.0
        %536 = vmatpush1.msra.mxu0 0.0
        %537 = vmatprep.mubr.f32.mxu0 0.0
        %538 = vmatmul.mubr.f32.gmra.mrb[0].mxu0 %v397
        %v539 = vpop.f32.mrb[0].mxu0
        %v540 = vadd.f32 0.0, %v539
        %v541 = vpop.f32.mrb[0].mxu0
        %542 = vdwg.mxu0
        %543 = vmatprep.subr.mxu0 %v350
        %544 = vmatpush1.msra.mxu0 %v349
        %545 = vmatprep.subr.mxu0 %v353
        %546 = vmatpush1.msra.mxu0 %v352
        %547 = vmatprep.subr.mxu0 %v356
        %548 = vmatpush1.msra.mxu0 %v355
        %549 = vmatprep.subr.mxu0 %v359
        %550 = vmatpush1.msra.mxu0 %v358
        %551 = vmatprep.subr.mxu0 %v362
        %552 = vmatpush1.msra.mxu0 %v361
        %553 = vmatprep.subr.mxu0 %v365
        %554 = vmatpush1.msra.mxu0 %v364
        %555 = vmatprep.subr.mxu0 %v368
        %556 = vmatpush1.msra.mxu0 %v367
        %557 = vmatprep.subr.mxu0 %v371
        %558 = vmatpush1.msra.mxu0 %v370
        %559 = vmatprep.subr.mxu0 %v374
        %560 = vmatpush1.msra.mxu0 %v373
        %561 = vmatprep.subr.mxu0 %v377
        %562 = vmatpush1.msra.mxu0 %v376
        %563 = vmatprep.subr.mxu0 %v380
        %564 = vmatpush1.msra.mxu0 %v379
        %565 = vmatprep.subr.mxu0 %v383
        %566 = vmatpush1.msra.mxu0 %v382
        %567 = vmatprep.subr.mxu0 %v386
        %568 = vmatpush1.msra.mxu0 %v385
        %569 = vmatprep.subr.mxu0 %v389
        %570 = vmatpush1.msra.mxu0 %v388
        %571 = vmatprep.subr.mxu0 %v392
        %572 = vmatpush1.msra.mxu0 %v391
        %573 = vmatprep.subr.mxu0 %v395
        %574 = vmatpush1.msra.mxu0 %v394
        %575 = vmatprep.subr.mxu0 0.0
        %576 = vmatpush1.msra.mxu0 0.0
        %577 = vmatprep.subr.mxu0 0.0
        %578 = vmatpush1.msra.mxu0 0.0
        %579 = vmatprep.subr.mxu0 0.0
        %580 = vmatpush1.msra.mxu0 0.0
        %581 = vmatprep.subr.mxu0 0.0
        %582 = vmatpush1.msra.mxu0 0.0
        %583 = vmatprep.subr.mxu0 0.0
        %584 = vmatpush1.msra.mxu0 0.0
        %585 = vmatprep.subr.mxu0 0.0
        %586 = vmatpush1.msra.mxu0 0.0
        %587 = vmatprep.subr.mxu0 0.0
        %588 = vmatpush1.msra.mxu0 0.0
        %589 = vmatprep.subr.mxu0 0.0
        %590 = vmatpush1.msra.mxu0 0.0
        %591 = vmatprep.subr.mxu0 0.0
        %592 = vmatpush1.msra.mxu0 0.0
        %593 = vmatprep.subr.mxu0 0.0
        %594 = vmatpush1.msra.mxu0 0.0
        %595 = vmatprep.subr.mxu0 0.0
        %596 = vmatpush1.msra.mxu0 0.0
        %597 = vmatprep.subr.mxu0 0.0
        %598 = vmatpush1.msra.mxu0 0.0
        %599 = vmatprep.subr.mxu0 0.0
        %600 = vmatpush1.msra.mxu0 0.0
        %601 = vmatprep.subr.mxu0 0.0
        %602 = vmatpush1.msra.mxu0 0.0
        %603 = vmatprep.subr.mxu0 0.0
        %604 = vmatpush1.msra.mxu0 0.0
        %605 = vmatprep.subr.mxu0 0.0
        %606 = vmatpush1.msra.mxu0 0.0
        %607 = vmatprep.mubr.f32.mxu0 0.0
        %608 = vmatmul.mubr.f32.gmra.mrb[0].mxu0 %v398
        %v609 = vpop.f32.mrb[0].mxu0
        %v610 = vadd.f32 0.0, %v609
        %v611 = vpop.f32.mrb[0].mxu0
        %v612 = vadd.f32 0.0, %v611
        %613 = vdwg.mxu0
        %614 = vmatprep.subr.mxu0 0.0
        %615 = vmatpush1.msra.mxu0 %v351
        %616 = vmatprep.subr.mxu0 0.0
        %617 = vmatpush1.msra.mxu0 %v354
        %618 = vmatprep.subr.mxu0 0.0
        %619 = vmatpush1.msra.mxu0 %v357
        %620 = vmatprep.subr.mxu0 0.0
        %621 = vmatpush1.msra.mxu0 %v360
        %622 = vmatprep.subr.mxu0 0.0
        %623 = vmatpush1.msra.mxu0 %v363
        %624 = vmatprep.subr.mxu0 0.0
        %625 = vmatpush1.msra.mxu0 %v366
        %626 = vmatprep.subr.mxu0 0.0
        %627 = vmatpush1.msra.mxu0 %v369
        %628 = vmatprep.subr.mxu0 0.0
        %629 = vmatpush1.msra.mxu0 %v372
        %630 = vmatprep.subr.mxu0 0.0
        %631 = vmatpush1.msra.mxu0 %v375
        %632 = vmatprep.subr.mxu0 0.0
        %633 = vmatpush1.msra.mxu0 %v378
        %634 = vmatprep.subr.mxu0 0.0
        %635 = vmatpush1.msra.mxu0 %v381
        %636 = vmatprep.subr.mxu0 0.0
        %637 = vmatpush1.msra.mxu0 %v384
        %638 = vmatprep.subr.mxu0 0.0
        %639 = vmatpush1.msra.mxu0 %v387
        %640 = vmatprep.subr.mxu0 0.0
        %641 = vmatpush1.msra.mxu0 %v390
        %642 = vmatprep.subr.mxu0 0.0
        %643 = vmatpush1.msra.mxu0 %v393
        %644 = vmatprep.subr.mxu0 0.0
        %645 = vmatpush1.msra.mxu0 %v396
        %646 = vmatprep.subr.mxu0 0.0
        %647 = vmatpush1.msra.mxu0 0.0
        %648 = vmatprep.subr.mxu0 0.0
        %649 = vmatpush1.msra.mxu0 0.0
        %650 = vmatprep.subr.mxu0 0.0
        %651 = vmatpush1.msra.mxu0 0.0
        %652 = vmatprep.subr.mxu0 0.0
        %653 = vmatpush1.msra.mxu0 0.0
        %654 = vmatprep.subr.mxu0 0.0
        %655 = vmatpush1.msra.mxu0 0.0
        %656 = vmatprep.subr.mxu0 0.0
        %657 = vmatpush1.msra.mxu0 0.0
        %658 = vmatprep.subr.mxu0 0.0
        %659 = vmatpush1.msra.mxu0 0.0
        %660 = vmatprep.subr.mxu0 0.0
        %661 = vmatpush1.msra.mxu0 0.0
        %662 = vmatprep.subr.mxu0 0.0
        %663 = vmatpush1.msra.mxu0 0.0
        %664 = vmatprep.subr.mxu0 0.0
        %665 = vmatpush1.msra.mxu0 0.0
        %666 = vmatprep.subr.mxu0 0.0
        %667 = vmatpush1.msra.mxu0 0.0
        %668 = vmatprep.subr.mxu0 0.0
        %669 = vmatpush1.msra.mxu0 0.0
        %670 = vmatprep.subr.mxu0 0.0
        %671 = vmatpush1.msra.mxu0 0.0
        %672 = vmatprep.subr.mxu0 0.0
        %673 = vmatpush1.msra.mxu0 0.0
        %674 = vmatprep.subr.mxu0 0.0
        %675 = vmatpush1.msra.mxu0 0.0
        %676 = vmatprep.subr.mxu0 0.0
        %677 = vmatpush1.msra.mxu0 0.0
        %678 = vmatprep.mubr.f32.mxu0 0.0
        %679 = vmatmul.mubr.f32.gmra.mrb[0].mxu0 %v398
        %v680 = vpop.f32.mrb[0].mxu0
        %v681 = vadd.f32 0.0, %v680
        %v682 = vpop.f32.mrb[0].mxu0
        %683 = vdwg.mxu0
        %v684 = vadd.f32 %v399, %v469
        %v685 = vxor.u32 %v684, 2147483648
        %v686 = vmul.f32 %v685, 1.442695
        %v687 = vpow.pop %v686
        %v688 = vadd.f32 %v687, 1.0
        %v689 = vrcp.pop %v688
        %v690 = vmul.f32 1.0, %v689
        %v692 = vrot.slane %v399, 1
        %v694 = vadd.f32 %v692, %v471
        %v695 = vxor.u32 %v694, 2147483648
        %v696 = vmul.f32 %v695, 1.442695
        %v697 = vpow.pop %v696
        %v698 = vadd.f32 %v697, 1.0
        %v699 = vrcp.pop %v698
        %v700 = vmul.f32 1.0, %v699
        %v701 = vmul.f32 %v690, %v540
        %v702 = vrot.slane %v399, 2
        %v704 = vadd.f32 %v702, %v701
        %v705 = vtanh.pop %v704
        %v706 = vsub.f32 1.0, %v700
        %v707 = vmul.f32 %v706, %v705
        %v708 = vmul.f32 %v700, %v397
        %v709 = vadd.f32 %v707, %v708
        %v710 = vadd.f32 %v401, %v610
        %v711 = vxor.u32 %v710, 2147483648
        %v712 = vmul.f32 %v711, 1.442695
        %v713 = vpow.pop %v712
        %v714 = vadd.f32 %v713, 1.0
        %v715 = vrcp.pop %v714
        %v716 = vmul.f32 1.0, %v715
        %v718 = vrot.slane %v401, 1
        %v720 = vadd.f32 %v718, %v612
        %v721 = vxor.u32 %v720, 2147483648
        %v722 = vmul.f32 %v721, 1.442695
        %v723 = vpow.pop %v722
        %v724 = vadd.f32 %v723, 1.0
        %v725 = vrcp.pop %v724
        %v726 = vmul.f32 1.0, %v725
        %v727 = vmul.f32 %v716, %v681
        %v728 = vrot.slane %v401, 2
        %v730 = vadd.f32 %v728, %v727
        %v731 = vtanh.pop %v730
        %v732 = vsub.f32 1.0, %v726
        %v733 = vmul.f32 %v732, %v731
        %v734 = vmul.f32 %v726, %v398
        %v735 = vadd.f32 %v733, %v734
        %736 = vst [vmem:[%s264] sm:$0x1] %v709
        %737 = vst [vmem:[%s271 + $0xf] sm:$0x1] %v735
        %s738 = scalar_lea.vmem %s230, 1 [#allocation6]
        %v739 = vld [vmem:[%s738] ss:$8 sm:$0x7]
        %s740 = scalar_lea.vmem %s239, 30 [#allocation9]
        %v741 = vld [vmem:[%s740] ss:$8 sm:$0x7]
        %742 = vmatprep.subr.mxu0 %v301
        %743 = vmatpush1.msra.mxu0 %v300
        %744 = vmatprep.subr.mxu0 %v304
        %745 = vmatpush1.msra.mxu0 %v303
        %746 = vmatprep.subr.mxu0 %v307
        %747 = vmatpush1.msra.mxu0 %v306
        %748 = vmatprep.subr.mxu0 %v310
        %749 = vmatpush1.msra.mxu0 %v309
        %750 = vmatprep.subr.mxu0 %v313
        %751 = vmatpush1.msra.mxu0 %v312
        %752 = vmatprep.subr.mxu0 %v316
        %753 = vmatpush1.msra.mxu0 %v315
        %754 = vmatprep.subr.mxu0 %v319
        %755 = vmatpush1.msra.mxu0 %v318
        %756 = vmatprep.subr.mxu0 %v322
        %757 = vmatpush1.msra.mxu0 %v321
        %758 = vmatprep.subr.mxu0 %v325
        %759 = vmatpush1.msra.mxu0 %v324
        %760 = vmatprep.subr.mxu0 %v328
        %761 = vmatpush1.msra.mxu0 %v327
        %762 = vmatprep.subr.mxu0 %v331
        %763 = vmatpush1.msra.mxu0 %v330
        %764 = vmatprep.subr.mxu0 %v334
        %765 = vmatpush1.msra.mxu0 %v333
        %766 = vmatprep.subr.mxu0 %v337
        %767 = vmatpush1.msra.mxu0 %v336
        %768 = vmatprep.subr.mxu0 %v340
        %769 = vmatpush1.msra.mxu0 %v339
        %770 = vmatprep.subr.mxu0 %v343
        %771 = vmatpush1.msra.mxu0 %v342
        %772 = vmatprep.subr.mxu0 %v346
        %773 = vmatpush1.msra.mxu0 %v345
        %774 = vmatprep.subr.mxu0 0.0
        %775 = vmatpush1.msra.mxu0 0.0
        %776 = vmatprep.subr.mxu0 0.0
        %777 = vmatpush1.msra.mxu0 0.0
        %778 = vmatprep.subr.mxu0 0.0
        %779 = vmatpush1.msra.mxu0 0.0
        %780 = vmatprep.subr.mxu0 0.0
        %781 = vmatpush1.msra.mxu0 0.0
        %782 = vmatprep.subr.mxu0 0.0
        %783 = vmatpush1.msra.mxu0 0.0
        %784 = vmatprep.subr.mxu0 0.0
        %785 = vmatpush1.msra.mxu0 0.0
        %786 = vmatprep.subr.mxu0 0.0
        %787 = vmatpush1.msra.mxu0 0.0
        %788 = vmatprep.subr.mxu0 0.0
        %789 = vmatpush1.msra.mxu0 0.0
        %790 = vmatprep.subr.mxu0 0.0
        %791 = vmatpush1.msra.mxu0 0.0
        %792 = vmatprep.subr.mxu0 0.0
        %793 = vmatpush1.msra.mxu0 0.0
        %794 = vmatprep.subr.mxu0 0.0
        %795 = vmatpush1.msra.mxu0 0.0
        %796 = vmatprep.subr.mxu0 0.0
        %797 = vmatpush1.msra.mxu0 0.0
        %798 = vmatprep.subr.mxu0 0.0
        %799 = vmatpush1.msra.mxu0 0.0
        %800 = vmatprep.subr.mxu0 0.0
        %801 = vmatpush1.msra.mxu0 0.0
        %802 = vmatprep.subr.mxu0 0.0
        %803 = vmatpush1.msra.mxu0 0.0
        %804 = vmatprep.subr.mxu0 0.0
        %805 = vmatpush1.msra.mxu0 0.0
        %806 = vmatprep.mubr.f32.mxu0 0.0
        %807 = vmatmul.mubr.f32.gmra.mrb[0].mxu0 %v709
        %v808 = vpop.f32.mrb[0].mxu0
        %v809 = vadd.f32 0.0, %v808
        %v810 = vpop.f32.mrb[0].mxu0
        %v811 = vadd.f32 0.0, %v810
        %812 = vdwg.mxu0
        %813 = vmatprep.subr.mxu0 0.0
        %814 = vmatpush1.msra.mxu0 %v302
        %815 = vmatprep.subr.mxu0 0.0
        %816 = vmatpush1.msra.mxu0 %v305
        %817 = vmatprep.subr.mxu0 0.0
        %818 = vmatpush1.msra.mxu0 %v308
        %819 = vmatprep.subr.mxu0 0.0
        %820 = vmatpush1.msra.mxu0 %v311
        %821 = vmatprep.subr.mxu0 0.0
        %822 = vmatpush1.msra.mxu0 %v314
        %823 = vmatprep.subr.mxu0 0.0
        %824 = vmatpush1.msra.mxu0 %v317
        %825 = vmatprep.subr.mxu0 0.0
        %826 = vmatpush1.msra.mxu0 %v320
        %827 = vmatprep.subr.mxu0 0.0
        %828 = vmatpush1.msra.mxu0 %v323
        %829 = vmatprep.subr.mxu0 0.0
        %830 = vmatpush1.msra.mxu0 %v326
        %831 = vmatprep.subr.mxu0 0.0
        %832 = vmatpush1.msra.mxu0 %v329
        %833 = vmatprep.subr.mxu0 0.0
        %834 = vmatpush1.msra.mxu0 %v332
        %835 = vmatprep.subr.mxu0 0.0
        %836 = vmatpush1.msra.mxu0 %v335
        %837 = vmatprep.subr.mxu0 0.0
        %838 = vmatpush1.msra.mxu0 %v338
        %839 = vmatprep.subr.mxu0 0.0
        %840 = vmatpush1.msra.mxu0 %v341
        %841 = vmatprep.subr.mxu0 0.0
        %842 = vmatpush1.msra.mxu0 %v344
        %843 = vmatprep.subr.mxu0 0.0
        %844 = vmatpush1.msra.mxu0 %v347
        %845 = vmatprep.subr.mxu0 0.0
        %846 = vmatpush1.msra.mxu0 0.0
        %847 = vmatprep.subr.mxu0 0.0
        %848 = vmatpush1.msra.mxu0 0.0
        %849 = vmatprep.subr.mxu0 0.0
        %850 = vmatpush1.msra.mxu0 0.0
        %851 = vmatprep.subr.mxu0 0.0
        %852 = vmatpush1.msra.mxu0 0.0
        %853 = vmatprep.subr.mxu0 0.0
        %854 = vmatpush1.msra.mxu0 0.0
        %855 = vmatprep.subr.mxu0 0.0
        %856 = vmatpush1.msra.mxu0 0.0
        %857 = vmatprep.subr.mxu0 0.0
        %858 = vmatpush1.msra.mxu0 0.0
        %859 = vmatprep.subr.mxu0 0.0
        %860 = vmatpush1.msra.mxu0 0.0
        %861 = vmatprep.subr.mxu0 0.0
        %862 = vmatpush1.msra.mxu0 0.0
        %863 = vmatprep.subr.mxu0 0.0
        %864 = vmatpush1.msra.mxu0 0.0
        %865 = vmatprep.subr.mxu0 0.0
        %866 = vmatpush1.msra.mxu0 0.0
        %867 = vmatprep.subr.mxu0 0.0
        %868 = vmatpush1.msra.mxu0 0.0
        %869 = vmatprep.subr.mxu0 0.0
        %870 = vmatpush1.msra.mxu0 0.0
        %871 = vmatprep.subr.mxu0 0.0
        %872 = vmatpush1.msra.mxu0 0.0
        %873 = vmatprep.subr.mxu0 0.0
        %874 = vmatpush1.msra.mxu0 0.0
        %875 = vmatprep.subr.mxu0 0.0
        %876 = vmatpush1.msra.mxu0 0.0
        %877 = vmatprep.mubr.f32.mxu0 0.0
        %878 = vmatmul.mubr.f32.gmra.mrb[0].mxu0 %v709
        %v879 = vpop.f32.mrb[0].mxu0
        %v880 = vadd.f32 0.0, %v879
        %v881 = vpop.f32.mrb[0].mxu0
        %882 = vdwg.mxu0
        %883 = vmatprep.subr.mxu0 %v350
        %884 = vmatpush1.msra.mxu0 %v349
        %885 = vmatprep.subr.mxu0 %v353
        %886 = vmatpush1.msra.mxu0 %v352
        %887 = vmatprep.subr.mxu0 %v356
        %888 = vmatpush1.msra.mxu0 %v355
        %889 = vmatprep.subr.mxu0 %v359
        %890 = vmatpush1.msra.mxu0 %v358
        %891 = vmatprep.subr.mxu0 %v362
        %892 = vmatpush1.msra.mxu0 %v361
        %893 = vmatprep.subr.mxu0 %v365
        %894 = vmatpush1.msra.mxu0 %v364
        %895 = vmatprep.subr.mxu0 %v368
        %896 = vmatpush1.msra.mxu0 %v367
        %897 = vmatprep.subr.mxu0 %v371
        %898 = vmatpush1.msra.mxu0 %v370
        %899 = vmatprep.subr.mxu0 %v374
        %900 = vmatpush1.msra.mxu0 %v373
        %901 = vmatprep.subr.mxu0 %v377
        %902 = vmatpush1.msra.mxu0 %v376
        %903 = vmatprep.subr.mxu0 %v380
        %904 = vmatpush1.msra.mxu0 %v379
        %905 = vmatprep.subr.mxu0 %v383
        %906 = vmatpush1.msra.mxu0 %v382
        %907 = vmatprep.subr.mxu0 %v386
        %908 = vmatpush1.msra.mxu0 %v385
        %909 = vmatprep.subr.mxu0 %v389
        %910 = vmatpush1.msra.mxu0 %v388
        %911 = vmatprep.subr.mxu0 %v392
        %912 = vmatpush1.msra.mxu0 %v391
        %913 = vmatprep.subr.mxu0 %v395
        %914 = vmatpush1.msra.mxu0 %v394
        %915 = vmatprep.subr.mxu0 0.0
        %916 = vmatpush1.msra.mxu0 0.0
        %917 = vmatprep.subr.mxu0 0.0
        %918 = vmatpush1.msra.mxu0 0.0
        %919 = vmatprep.subr.mxu0 0.0
        %920 = vmatpush1.msra.mxu0 0.0
        %921 = vmatprep.subr.mxu0 0.0
        %922 = vmatpush1.msra.mxu0 0.0
        %923 = vmatprep.subr.mxu0 0.0
        %924 = vmatpush1.msra.mxu0 0.0
        %925 = vmatprep.subr.mxu0 0.0
        %926 = vmatpush1.msra.mxu0 0.0
        %927 = vmatprep.subr.mxu0 0.0
        %928 = vmatpush1.msra.mxu0 0.0
        %929 = vmatprep.subr.mxu0 0.0
        %930 = vmatpush1.msra.mxu0 0.0
        %931 = vmatprep.subr.mxu0 0.0
        %932 = vmatpush1.msra.mxu0 0.0
        %933 = vmatprep.subr.mxu0 0.0
        %934 = vmatpush1.msra.mxu0 0.0
        %935 = vmatprep.subr.mxu0 0.0
        %936 = vmatpush1.msra.mxu0 0.0
        %937 = vmatprep.subr.mxu0 0.0
        %938 = vmatpush1.msra.mxu0 0.0
        %939 = vmatprep.subr.mxu0 0.0
        %940 = vmatpush1.msra.mxu0 0.0
        %941 = vmatprep.subr.mxu0 0.0
        %942 = vmatpush1.msra.mxu0 0.0
        %943 = vmatprep.subr.mxu0 0.0
        %944 = vmatpush1.msra.mxu0 0.0
        %945 = vmatprep.subr.mxu0 0.0
        %946 = vmatpush1.msra.mxu0 0.0
        %947 = vmatprep.mubr.f32.mxu0 0.0
        %948 = vmatmul.mubr.f32.gmra.mrb[0].mxu0 %v735
        %v949 = vpop.f32.mrb[0].mxu0
        %v950 = vadd.f32 0.0, %v949
        %v951 = vpop.f32.mrb[0].mxu0
        %v952 = vadd.f32 0.0, %v951
        %953 = vdwg.mxu0
        %954 = vmatprep.subr.mxu0 0.0
        %955 = vmatpush1.msra.mxu0 %v351
        %956 = vmatprep.subr.mxu0 0.0
        %957 = vmatpush1.msra.mxu0 %v354
        %958 = vmatprep.subr.mxu0 0.0
        %959 = vmatpush1.msra.mxu0 %v357
        %960 = vmatprep.subr.mxu0 0.0
        %961 = vmatpush1.msra.mxu0 %v360
        %962 = vmatprep.subr.mxu0 0.0
        %963 = vmatpush1.msra.mxu0 %v363
        %964 = vmatprep.subr.mxu0 0.0
        %965 = vmatpush1.msra.mxu0 %v366
        %966 = vmatprep.subr.mxu0 0.0
        %967 = vmatpush1.msra.mxu0 %v369
        %968 = vmatprep.subr.mxu0 0.0
        %969 = vmatpush1.msra.mxu0 %v372
        %970 = vmatprep.subr.mxu0 0.0
        %971 = vmatpush1.msra.mxu0 %v375
        %972 = vmatprep.subr.mxu0 0.0
        %973 = vmatpush1.msra.mxu0 %v378
        %974 = vmatprep.subr.mxu0 0.0
        %975 = vmatpush1.msra.mxu0 %v381
        %976 = vmatprep.subr.mxu0 0.0
        %977 = vmatpush1.msra.mxu0 %v384
        %978 = vmatprep.subr.mxu0 0.0
        %979 = vmatpush1.msra.mxu0 %v387
        %980 = vmatprep.subr.mxu0 0.0
        %981 = vmatpush1.msra.mxu0 %v390
        %982 = vmatprep.subr.mxu0 0.0
        %983 = vmatpush1.msra.mxu0 %v393
        %984 = vmatprep.subr.mxu0 0.0
        %985 = vmatpush1.msra.mxu0 %v396
        %986 = vmatprep.subr.mxu0 0.0
        %987 = vmatpush1.msra.mxu0 0.0
        %988 = vmatprep.subr.mxu0 0.0
        %989 = vmatpush1.msra.mxu0 0.0
        %990 = vmatprep.subr.mxu0 0.0
        %991 = vmatpush1.msra.mxu0 0.0
        %992 = vmatprep.subr.mxu0 0.0
        %993 = vmatpush1.msra.mxu0 0.0
        %994 = vmatprep.subr.mxu0 0.0
        %995 = vmatpush1.msra.mxu0 0.0
        %996 = vmatprep.subr.mxu0 0.0
        %997 = vmatpush1.msra.mxu0 0.0
        %998 = vmatprep.subr.mxu0 0.0
        %999 = vmatpush1.msra.mxu0 0.0
        %1000 = vmatprep.subr.mxu0 0.0
        %1001 = vmatpush1.msra.mxu0 0.0
        %1002 = vmatprep.subr.mxu0 0.0
        %1003 = vmatpush1.msra.mxu0 0.0
        %1004 = vmatprep.subr.mxu0 0.0
        %1005 = vmatpush1.msra.mxu0 0.0
        %1006 = vmatprep.subr.mxu0 0.0
        %1007 = vmatpush1.msra.mxu0 0.0
        %1008 = vmatprep.subr.mxu0 0.0
        %1009 = vmatpush1.msra.mxu0 0.0
        %1010 = vmatprep.subr.mxu0 0.0
        %1011 = vmatpush1.msra.mxu0 0.0
        %1012 = vmatprep.subr.mxu0 0.0
        %1013 = vmatpush1.msra.mxu0 0.0
        %1014 = vmatprep.subr.mxu0 0.0
        %1015 = vmatpush1.msra.mxu0 0.0
        %1016 = vmatprep.subr.mxu0 0.0
        %1017 = vmatpush1.msra.mxu0 0.0
        %1018 = vmatprep.mubr.f32.mxu0 0.0
        %1019 = vmatmul.mubr.f32.gmra.mrb[0].mxu0 %v735
        %v1020 = vpop.f32.mrb[0].mxu0
        %v1021 = vadd.f32 0.0, %v1020
        %v1022 = vpop.f32.mrb[0].mxu0
        %1023 = vdwg.mxu0
        %v1024 = vadd.f32 %v739, %v809
        %v1025 = vxor.u32 %v1024, 2147483648
        %v1026 = vmul.f32 %v1025, 1.442695
        %v1027 = vpow.pop %v1026
        %v1028 = vadd.f32 %v1027, 1.0
        %v1029 = vrcp.pop %v1028
        %v1030 = vmul.f32 1.0, %v1029
        %v1032 = vrot.slane %v739, 1
        %v1034 = vadd.f32 %v1032, %v811
        %v1035 = vxor.u32 %v1034, 2147483648
        %v1036 = vmul.f32 %v1035, 1.442695
        %v1037 = vpow.pop %v1036
        %v1038 = vadd.f32 %v1037, 1.0
        %v1039 = vrcp.pop %v1038
        %v1040 = vmul.f32 1.0, %v1039
        %v1041 = vmul.f32 %v1030, %v880
        %v1042 = vrot.slane %v739, 2
        %v1044 = vadd.f32 %v1042, %v1041
        %v1045 = vtanh.pop %v1044
        %v1046 = vsub.f32 1.0, %v1040
        %v1047 = vmul.f32 %v1046, %v1045
        %v1048 = vmul.f32 %v1040, %v709
        %v1049 = vadd.f32 %v1047, %v1048
        %v1050 = vadd.f32 %v741, %v950
        %v1051 = vxor.u32 %v1050, 2147483648
        %v1052 = vmul.f32 %v1051, 1.442695
        %v1053 = vpow.pop %v1052
        %v1054 = vadd.f32 %v1053, 1.0
        %v1055 = vrcp.pop %v1054
        %v1056 = vmul.f32 1.0, %v1055
        %v1058 = vrot.slane %v741, 1
        %v1060 = vadd.f32 %v1058, %v952
        %v1061 = vxor.u32 %v1060, 2147483648
        %v1062 = vmul.f32 %v1061, 1.442695
        %v1063 = vpow.pop %v1062
        %v1064 = vadd.f32 %v1063, 1.0
        %v1065 = vrcp.pop %v1064
        %v1066 = vmul.f32 1.0, %v1065
        %v1067 = vmul.f32 %v1056, %v1021
        %v1068 = vrot.slane %v741, 2
        %v1070 = vadd.f32 %v1068, %v1067
        %v1071 = vtanh.pop %v1070
        %v1072 = vsub.f32 1.0, %v1066
        %v1073 = vmul.f32 %v1072, %v1071
        %v1074 = vmul.f32 %v1066, %v735
        %v1075 = vadd.f32 %v1073, %v1074
        %1076 = vst [vmem:[%s264 + $0x1] sm:$0x1] %v1049
        %1077 = vst [vmem:[%s271 + $0xe] sm:$0x1] %v1075
        %s1078 = scalar_lea.vmem %s230, 2 [#allocation6]
        %v1079 = vld [vmem:[%s1078] ss:$8 sm:$0x7]
        %s1080 = scalar_lea.vmem %s239, 29 [#allocation9]
        %v1081 = vld [vmem:[%s1080] ss:$8 sm:$0x7]
        %1082 = vmatprep.subr.mxu0 %v301
        %1083 = vmatpush1.msra.mxu0 %v300
        %1084 = vmatprep.subr.mxu0 %v304
        %1085 = vmatpush1.msra.mxu0 %v303
        %1086 = vmatprep.subr.mxu0 %v307
        %1087 = vmatpush1.msra.mxu0 %v306
        %1088 = vmatprep.subr.mxu0 %v310
        %1089 = vmatpush1.msra.mxu0 %v309
        %1090 = vmatprep.subr.mxu0 %v313
        %1091 = vmatpush1.msra.mxu0 %v312
        %1092 = vmatprep.subr.mxu0 %v316
        %1093 = vmatpush1.msra.mxu0 %v315
        %1094 = vmatprep.subr.mxu0 %v319
        %1095 = vmatpush1.msra.mxu0 %v318
        %1096 = vmatprep.subr.mxu0 %v322
        %1097 = vmatpush1.msra.mxu0 %v321
        %1098 = vmatprep.subr.mxu0 %v325
        %1099 = vmatpush1.msra.mxu0 %v324
        %1100 = vmatprep.subr.mxu0 %v328
        %1101 = vmatpush1.msra.mxu0 %v327
        %1102 = vmatprep.subr.mxu0 %v331
        %1103 = vmatpush1.msra.mxu0 %v330
        %1104 = vmatprep.subr.mxu0 %v334
        %1105 = vmatpush1.msra.mxu0 %v333
        %1106 = vmatprep.subr.mxu0 %v337
        %1107 = vmatpush1.msra.mxu0 %v336
        %1108 = vmatprep.subr.mxu0 %v340
        %1109 = vmatpush1.msra.mxu0 %v339
        %1110 = vmatprep.subr.mxu0 %v343
        %1111 = vmatpush1.msra.mxu0 %v342
        %1112 = vmatprep.subr.mxu0 %v346
        %1113 = vmatpush1.msra.mxu0 %v345
        %1114 = vmatprep.subr.mxu0 0.0
        %1115 = vmatpush1.msra.mxu0 0.0
        %1116 = vmatprep.subr.mxu0 0.0
        %1117 = vmatpush1.msra.mxu0 0.0
        %1118 = vmatprep.subr.mxu0 0.0
        %1119 = vmatpush1.msra.mxu0 0.0
        %1120 = vmatprep.subr.mxu0 0.0
        %1121 = vmatpush1.msra.mxu0 0.0
        %1122 = vmatprep.subr.mxu0 0.0
        %1123 = vmatpush1.msra.mxu0 0.0
        %1124 = vmatprep.subr.mxu0 0.0
        %1125 = vmatpush1.msra.mxu0 0.0
        %1126 = vmatprep.subr.mxu0 0.0
        %1127 = vmatpush1.msra.mxu0 0.0
        %1128 = vmatprep.subr.mxu0 0.0
        %1129 = vmatpush1.msra.mxu0 0.0
        %1130 = vmatprep.subr.mxu0 0.0
        %1131 = vmatpush1.msra.mxu0 0.0
        %1132 = vmatprep.subr.mxu0 0.0
        %1133 = vmatpush1.msra.mxu0 0.0
        %1134 = vmatprep.subr.mxu0 0.0
        %1135 = vmatpush1.msra.mxu0 0.0
        %1136 = vmatprep.subr.mxu0 0.0
        %1137 = vmatpush1.msra.mxu0 0.0
        %1138 = vmatprep.subr.mxu0 0.0
        %1139 = vmatpush1.msra.mxu0 0.0
        %1140 = vmatprep.subr.mxu0 0.0
        %1141 = vmatpush1.msra.mxu0 0.0
        %1142 = vmatprep.subr.mxu0 0.0
        %1143 = vmatpush1.msra.mxu0 0.0
        %1144 = vmatprep.subr.mxu0 0.0
        %1145 = vmatpush1.msra.mxu0 0.0
        %1146 = vmatprep.mubr.f32.mxu0 0.0
        %1147 = vmatmul.mubr.f32.gmra.mrb[0].mxu0 %v1049
        %v1148 = vpop.f32.mrb[0].mxu0
        %v1149 = vadd.f32 0.0, %v1148
        %v1150 = vpop.f32.mrb[0].mxu0
        %v1151 = vadd.f32 0.0, %v1150
        %1152 = vdwg.mxu0
        %1153 = vmatprep.subr.mxu0 0.0
        %1154 = vmatpush1.msra.mxu0 %v302
        %1155 = vmatprep.subr.mxu0 0.0
        %1156 = vmatpush1.msra.mxu0 %v305
        %1157 = vmatprep.subr.mxu0 0.0
        %1158 = vmatpush1.msra.mxu0 %v308
        %1159 = vmatprep.subr.mxu0 0.0
        %1160 = vmatpush1.msra.mxu0 %v311
        %1161 = vmatprep.subr.mxu0 0.0
        %1162 = vmatpush1.msra.mxu0 %v314
        %1163 = vmatprep.subr.mxu0 0.0
        %1164 = vmatpush1.msra.mxu0 %v317
        %1165 = vmatprep.subr.mxu0 0.0
        %1166 = vmatpush1.msra.mxu0 %v320
        %1167 = vmatprep.subr.mxu0 0.0
        %1168 = vmatpush1.msra.mxu0 %v323
        %1169 = vmatprep.subr.mxu0 0.0
        %1170 = vmatpush1.msra.mxu0 %v326
        %1171 = vmatprep.subr.mxu0 0.0
        %1172 = vmatpush1.msra.mxu0 %v329
        %1173 = vmatprep.subr.mxu0 0.0
        %1174 = vmatpush1.msra.mxu0 %v332
        %1175 = vmatprep.subr.mxu0 0.0
        %1176 = vmatpush1.msra.mxu0 %v335
        %1177 = vmatprep.subr.mxu0 0.0
        %1178 = vmatpush1.msra.mxu0 %v338
        %1179 = vmatprep.subr.mxu0 0.0
        %1180 = vmatpush1.msra.mxu0 %v341
        %1181 = vmatprep.subr.mxu0 0.0
        %1182 = vmatpush1.msra.mxu0 %v344
        %1183 = vmatprep.subr.mxu0 0.0
        %1184 = vmatpush1.msra.mxu0 %v347
        %1185 = vmatprep.subr.mxu0 0.0
        %1186 = vmatpush1.msra.mxu0 0.0
        %1187 = vmatprep.subr.mxu0 0.0
        %1188 = vmatpush1.msra.mxu0 0.0
        %1189 = vmatprep.subr.mxu0 0.0
        %1190 = vmatpush1.msra.mxu0 0.0
        %1191 = vmatprep.subr.mxu0 0.0
        %1192 = vmatpush1.msra.mxu0 0.0
        %1193 = vmatprep.subr.mxu0 0.0
        %1194 = vmatpush1.msra.mxu0 0.0
        %1195 = vmatprep.subr.mxu0 0.0
        %1196 = vmatpush1.msra.mxu0 0.0
        %1197 = vmatprep.subr.mxu0 0.0
        %1198 = vmatpush1.msra.mxu0 0.0
        %1199 = vmatprep.subr.mxu0 0.0
        %1200 = vmatpush1.msra.mxu0 0.0
        %1201 = vmatprep.subr.mxu0 0.0
        %1202 = vmatpush1.msra.mxu0 0.0
        %1203 = vmatprep.subr.mxu0 0.0
        %1204 = vmatpush1.msra.mxu0 0.0
        %1205 = vmatprep.subr.mxu0 0.0
        %1206 = vmatpush1.msra.mxu0 0.0
        %1207 = vmatprep.subr.mxu0 0.0
        %1208 = vmatpush1.msra.mxu0 0.0
        %1209 = vmatprep.subr.mxu0 0.0
        %1210 = vmatpush1.msra.mxu0 0.0
        %1211 = vmatprep.subr.mxu0 0.0
        %1212 = vmatpush1.msra.mxu0 0.0
        %1213 = vmatprep.subr.mxu0 0.0
        %1214 = vmatpush1.msra.mxu0 0.0
        %1215 = vmatprep.subr.mxu0 0.0
        %1216 = vmatpush1.msra.mxu0 0.0
        %1217 = vmatprep.mubr.f32.mxu0 0.0
        %1218 = vmatmul.mubr.f32.gmra.mrb[0].mxu0 %v1049
        %v1219 = vpop.f32.mrb[0].mxu0
        %v1220 = vadd.f32 0.0, %v1219
        %v1221 = vpop.f32.mrb[0].mxu0
        %1222 = vdwg.mxu0
        %1223 = vmatprep.subr.mxu0 %v350
        %1224 = vmatpush1.msra.mxu0 %v349
        %1225 = vmatprep.subr.mxu0 %v353
        %1226 = vmatpush1.msra.mxu0 %v352
        %1227 = vmatprep.subr.mxu0 %v356
        %1228 = vmatpush1.msra.mxu0 %v355
        %1229 = vmatprep.subr.mxu0 %v359
        %1230 = vmatpush1.msra.mxu0 %v358
        %1231 = vmatprep.subr.mxu0 %v362
        %1232 = vmatpush1.msra.mxu0 %v361
        %1233 = vmatprep.subr.mxu0 %v365
        %1234 = vmatpush1.msra.mxu0 %v364
        %1235 = vmatprep.subr.mxu0 %v368
        %1236 = vmatpush1.msra.mxu0 %v367
        %1237 = vmatprep.subr.mxu0 %v371
        %1238 = vmatpush1.msra.mxu0 %v370
        %1239 = vmatprep.subr.mxu0 %v374
        %1240 = vmatpush1.msra.mxu0 %v373
        %1241 = vmatprep.subr.mxu0 %v377
        %1242 = vmatpush1.msra.mxu0 %v376
        %1243 = vmatprep.subr.mxu0 %v380
        %1244 = vmatpush1.msra.mxu0 %v379
        %1245 = vmatprep.subr.mxu0 %v383
        %1246 = vmatpush1.msra.mxu0 %v382
        %1247 = vmatprep.subr.mxu0 %v386
        %1248 = vmatpush1.msra.mxu0 %v385
        %1249 = vmatprep.subr.mxu0 %v389
        %1250 = vmatpush1.msra.mxu0 %v388
        %1251 = vmatprep.subr.mxu0 %v392
        %1252 = vmatpush1.msra.mxu0 %v391
        %1253 = vmatprep.subr.mxu0 %v395
        %1254 = vmatpush1.msra.mxu0 %v394
        %1255 = vmatprep.subr.mxu0 0.0
        %1256 = vmatpush1.msra.mxu0 0.0
        %1257 = vmatprep.subr.mxu0 0.0
        %1258 = vmatpush1.msra.mxu0 0.0
        %1259 = vmatprep.subr.mxu0 0.0
        %1260 = vmatpush1.msra.mxu0 0.0
        %1261 = vmatprep.subr.mxu0 0.0
        %1262 = vmatpush1.msra.mxu0 0.0
        %1263 = vmatprep.subr.mxu0 0.0
        %1264 = vmatpush1.msra.mxu0 0.0
        %1265 = vmatprep.subr.mxu0 0.0
        %1266 = vmatpush1.msra.mxu0 0.0
        %1267 = vmatprep.subr.mxu0 0.0
        %1268 = vmatpush1.msra.mxu0 0.0
        %1269 = vmatprep.subr.mxu0 0.0
        %1270 = vmatpush1.msra.mxu0 0.0
        %1271 = vmatprep.subr.mxu0 0.0
        %1272 = vmatpush1.msra.mxu0 0.0
        %1273 = vmatprep.subr.mxu0 0.0
        %1274 = vmatpush1.msra.mxu0 0.0
        %1275 = vmatprep.subr.mxu0 0.0
        %1276 = vmatpush1.msra.mxu0 0.0
        %1277 = vmatprep.subr.mxu0 0.0
        %1278 = vmatpush1.msra.mxu0 0.0
        %1279 = vmatprep.subr.mxu0 0.0
        %1280 = vmatpush1.msra.mxu0 0.0
        %1281 = vmatprep.subr.mxu0 0.0
        %1282 = vmatpush1.msra.mxu0 0.0
        %1283 = vmatprep.subr.mxu0 0.0
        %1284 = vmatpush1.msra.mxu0 0.0
        %1285 = vmatprep.subr.mxu0 0.0
        %1286 = vmatpush1.msra.mxu0 0.0
        %1287 = vmatprep.mubr.f32.mxu0 0.0
        %1288 = vmatmul.mubr.f32.gmra.mrb[0].mxu0 %v1075
        %v1289 = vpop.f32.mrb[0].mxu0
        %v1290 = vadd.f32 0.0, %v1289
        %v1291 = vpop.f32.mrb[0].mxu0
        %v1292 = vadd.f32 0.0, %v1291
        %1293 = vdwg.mxu0
        %1294 = vmatprep.subr.mxu0 0.0
        %1295 = vmatpush1.msra.mxu0 %v351
        %1296 = vmatprep.subr.mxu0 0.0
        %1297 = vmatpush1.msra.mxu0 %v354
        %1298 = vmatprep.subr.mxu0 0.0
        %1299 = vmatpush1.msra.mxu0 %v357
        %1300 = vmatprep.subr.mxu0 0.0
        %1301 = vmatpush1.msra.mxu0 %v360
        %1302 = vmatprep.subr.mxu0 0.0
        %1303 = vmatpush1.msra.mxu0 %v363
        %1304 = vmatprep.subr.mxu0 0.0
        %1305 = vmatpush1.msra.mxu0 %v366
        %1306 = vmatprep.subr.mxu0 0.0
        %1307 = vmatpush1.msra.mxu0 %v369
        %1308 = vmatprep.subr.mxu0 0.0
        %1309 = vmatpush1.msra.mxu0 %v372
        %1310 = vmatprep.subr.mxu0 0.0
        %1311 = vmatpush1.msra.mxu0 %v375
        %1312 = vmatprep.subr.mxu0 0.0
        %1313 = vmatpush1.msra.mxu0 %v378
        %1314 = vmatprep.subr.mxu0 0.0
        %1315 = vmatpush1.msra.mxu0 %v381
        %1316 = vmatprep.subr.mxu0 0.0
        %1317 = vmatpush1.msra.mxu0 %v384
        %1318 = vmatprep.subr.mxu0 0.0
        %1319 = vmatpush1.msra.mxu0 %v387
        %1320 = vmatprep.subr.mxu0 0.0
        %1321 = vmatpush1.msra.mxu0 %v390
        %1322 = vmatprep.subr.mxu0 0.0
        %1323 = vmatpush1.msra.mxu0 %v393
        %1324 = vmatprep.subr.mxu0 0.0
        %1325 = vmatpush1.msra.mxu0 %v396
        %1326 = vmatprep.subr.mxu0 0.0
        %1327 = vmatpush1.msra.mxu0 0.0
        %1328 = vmatprep.subr.mxu0 0.0
        %1329 = vmatpush1.msra.mxu0 0.0
        %1330 = vmatprep.subr.mxu0 0.0
        %1331 = vmatpush1.msra.mxu0 0.0
        %1332 = vmatprep.subr.mxu0 0.0
        %1333 = vmatpush1.msra.mxu0 0.0
        %1334 = vmatprep.subr.mxu0 0.0
        %1335 = vmatpush1.msra.mxu0 0.0
        %1336 = vmatprep.subr.mxu0 0.0
        %1337 = vmatpush1.msra.mxu0 0.0
        %1338 = vmatprep.subr.mxu0 0.0
        %1339 = vmatpush1.msra.mxu0 0.0
        %1340 = vmatprep.subr.mxu0 0.0
        %1341 = vmatpush1.msra.mxu0 0.0
        %1342 = vmatprep.subr.mxu0 0.0
        %1343 = vmatpush1.msra.mxu0 0.0
        %1344 = vmatprep.subr.mxu0 0.0
        %1345 = vmatpush1.msra.mxu0 0.0
        %1346 = vmatprep.subr.mxu0 0.0
        %1347 = vmatpush1.msra.mxu0 0.0
        %1348 = vmatprep.subr.mxu0 0.0
        %1349 = vmatpush1.msra.mxu0 0.0
        %1350 = vmatprep.subr.mxu0 0.0
        %1351 = vmatpush1.msra.mxu0 0.0
        %1352 = vmatprep.subr.mxu0 0.0
        %1353 = vmatpush1.msra.mxu0 0.0
        %1354 = vmatprep.subr.mxu0 0.0
        %1355 = vmatpush1.msra.mxu0 0.0
        %1356 = vmatprep.subr.mxu0 0.0
        %1357 = vmatpush1.msra.mxu0 0.0
        %1358 = vmatprep.mubr.f32.mxu0 0.0
        %1359 = vmatmul.mubr.f32.gmra.mrb[0].mxu0 %v1075
        %v1360 = vpop.f32.mrb[0].mxu0
        %v1361 = vadd.f32 0.0, %v1360
        %v1362 = vpop.f32.mrb[0].mxu0
        %1363 = vdwg.mxu0
        %v1364 = vadd.f32 %v1079, %v1149
        %v1365 = vxor.u32 %v1364, 2147483648
        %v1366 = vmul.f32 %v1365, 1.442695
        %v1367 = vpow.pop %v1366
        %v1368 = vadd.f32 %v1367, 1.0
        %v1369 = vrcp.pop %v1368
        %v1370 = vmul.f32 1.0, %v1369
        %v1372 = vrot.slane %v1079, 1
        %v1374 = vadd.f32 %v1372, %v1151
        %v1375 = vxor.u32 %v1374, 2147483648
        %v1376 = vmul.f32 %v1375, 1.442695
        %v1377 = vpow.pop %v1376
        %v1378 = vadd.f32 %v1377, 1.0
        %v1379 = vrcp.pop %v1378
        %v1380 = vmul.f32 1.0, %v1379
        %v1381 = vmul.f32 %v1370, %v1220
        %v1382 = vrot.slane %v1079, 2
        %v1384 = vadd.f32 %v1382, %v1381
        %v1385 = vtanh.pop %v1384
        %v1386 = vsub.f32 1.0, %v1380
        %v1387 = vmul.f32 %v1386, %v1385
        %v1388 = vmul.f32 %v1380, %v1049
        %v1389 = vadd.f32 %v1387, %v1388
        %v1390 = vadd.f32 %v1081, %v1290
        %v1391 = vxor.u32 %v1390, 2147483648
        %v1392 = vmul.f32 %v1391, 1.442695
        %v1393 = vpow.pop %v1392
        %v1394 = vadd.f32 %v1393, 1.0
        %v1395 = vrcp.pop %v1394
        %v1396 = vmul.f32 1.0, %v1395
        %v1398 = vrot.slane %v1081, 1
        %v1400 = vadd.f32 %v1398, %v1292
        %v1401 = vxor.u32 %v1400, 2147483648
        %v1402 = vmul.f32 %v1401, 1.442695
        %v1403 = vpow.pop %v1402
        %v1404 = vadd.f32 %v1403, 1.0
        %v1405 = vrcp.pop %v1404
        %v1406 = vmul.f32 1.0, %v1405
        %v1407 = vmul.f32 %v1396, %v1361
        %v1408 = vrot.slane %v1081, 2
        %v1410 = vadd.f32 %v1408, %v1407
        %v1411 = vtanh.pop %v1410
        %v1412 = vsub.f32 1.0, %v1406
        %v1413 = vmul.f32 %v1412, %v1411
        %v1414 = vmul.f32 %v1406, %v1075
        %v1415 = vadd.f32 %v1413, %v1414
        %1416 = vst [vmem:[%s264 + $0x2] sm:$0x1] %v1389
        %1417 = vst [vmem:[%s271 + $0xd] sm:$0x1] %v1415
        %s1418 = scalar_lea.vmem %s230, 3 [#allocation6]
        %v1419 = vld [vmem:[%s1418] ss:$8 sm:$0x7]
        %s1420 = scalar_lea.vmem %s239, 28 [#allocation9]
        %v1421 = vld [vmem:[%s1420] ss:$8 sm:$0x7]
        %1422 = vmatprep.subr.mxu0 %v301
        %1423 = vmatpush1.msra.mxu0 %v300
        %1424 = vmatprep.subr.mxu0 %v304
        %1425 = vmatpush1.msra.mxu0 %v303
        %1426 = vmatprep.subr.mxu0 %v307
        %1427 = vmatpush1.msra.mxu0 %v306
        %1428 = vmatprep.subr.mxu0 %v310
        %1429 = vmatpush1.msra.mxu0 %v309
        %1430 = vmatprep.subr.mxu0 %v313
        %1431 = vmatpush1.msra.mxu0 %v312
        %1432 = vmatprep.subr.mxu0 %v316
        %1433 = vmatpush1.msra.mxu0 %v315
        %1434 = vmatprep.subr.mxu0 %v319
        %1435 = vmatpush1.msra.mxu0 %v318
        %1436 = vmatprep.subr.mxu0 %v322
        %1437 = vmatpush1.msra.mxu0 %v321
        %1438 = vmatprep.subr.mxu0 %v325
        %1439 = vmatpush1.msra.mxu0 %v324
        %1440 = vmatprep.subr.mxu0 %v328
        %1441 = vmatpush1.msra.mxu0 %v327
        %1442 = vmatprep.subr.mxu0 %v331
        %1443 = vmatpush1.msra.mxu0 %v330
        %1444 = vmatprep.subr.mxu0 %v334
        %1445 = vmatpush1.msra.mxu0 %v333
        %1446 = vmatprep.subr.mxu0 %v337
        %1447 = vmatpush1.msra.mxu0 %v336
        %1448 = vmatprep.subr.mxu0 %v340
        %1449 = vmatpush1.msra.mxu0 %v339
        %1450 = vmatprep.subr.mxu0 %v343
        %1451 = vmatpush1.msra.mxu0 %v342
        %1452 = vmatprep.subr.mxu0 %v346
        %1453 = vmatpush1.msra.mxu0 %v345
        %1454 = vmatprep.subr.mxu0 0.0
        %1455 = vmatpush1.msra.mxu0 0.0
        %1456 = vmatprep.subr.mxu0 0.0
        %1457 = vmatpush1.msra.mxu0 0.0
        %1458 = vmatprep.subr.mxu0 0.0
        %1459 = vmatpush1.msra.mxu0 0.0
        %1460 = vmatprep.subr.mxu0 0.0
        %1461 = vmatpush1.msra.mxu0 0.0
        %1462 = vmatprep.subr.mxu0 0.0
        %1463 = vmatpush1.msra.mxu0 0.0
        %1464 = vmatprep.subr.mxu0 0.0
        %1465 = vmatpush1.msra.mxu0 0.0
        %1466 = vmatprep.subr.mxu0 0.0
        %1467 = vmatpush1.msra.mxu0 0.0
        %1468 = vmatprep.subr.mxu0 0.0
        %1469 = vmatpush1.msra.mxu0 0.0
        %1470 = vmatprep.subr.mxu0 0.0
        %1471 = vmatpush1.msra.mxu0 0.0
        %1472 = vmatprep.subr.mxu0 0.0
        %1473 = vmatpush1.msra.mxu0 0.0
        %1474 = vmatprep.subr.mxu0 0.0
        %1475 = vmatpush1.msra.mxu0 0.0
        %1476 = vmatprep.subr.mxu0 0.0
        %1477 = vmatpush1.msra.mxu0 0.0
        %1478 = vmatprep.subr.mxu0 0.0
        %1479 = vmatpush1.msra.mxu0 0.0
        %1480 = vmatprep.subr.mxu0 0.0
        %1481 = vmatpush1.msra.mxu0 0.0
        %1482 = vmatprep.subr.mxu0 0.0
        %1483 = vmatpush1.msra.mxu0 0.0
        %1484 = vmatprep.subr.mxu0 0.0
        %1485 = vmatpush1.msra.mxu0 0.0
        %1486 = vmatprep.mubr.f32.mxu0 0.0
        %1487 = vmatmul.mubr.f32.gmra.mrb[0].mxu0 %v1389
        %v1488 = vpop.f32.mrb[0].mxu0
        %v1489 = vadd.f32 0.0, %v1488
        %v1490 = vpop.f32.mrb[0].mxu0
        %v1491 = vadd.f32 0.0, %v1490
        %1492 = vdwg.mxu0
        %1493 = vmatprep.subr.mxu0 0.0
        %1494 = vmatpush1.msra.mxu0 %v302
        %1495 = vmatprep.subr.mxu0 0.0
        %1496 = vmatpush1.msra.mxu0 %v305
        %1497 = vmatprep.subr.mxu0 0.0
        %1498 = vmatpush1.msra.mxu0 %v308
        %1499 = vmatprep.subr.mxu0 0.0
        %1500 = vmatpush1.msra.mxu0 %v311
        %1501 = vmatprep.subr.mxu0 0.0
        %1502 = vmatpush1.msra.mxu0 %v314
        %1503 = vmatprep.subr.mxu0 0.0
        %1504 = vmatpush1.msra.mxu0 %v317
        %1505 = vmatprep.subr.mxu0 0.0
        %1506 = vmatpush1.msra.mxu0 %v320
        %1507 = vmatprep.subr.mxu0 0.0
        %1508 = vmatpush1.msra.mxu0 %v323
        %1509 = vmatprep.subr.mxu0 0.0
        %1510 = vmatpush1.msra.mxu0 %v326
        %1511 = vmatprep.subr.mxu0 0.0
        %1512 = vmatpush1.msra.mxu0 %v329
        %1513 = vmatprep.subr.mxu0 0.0
        %1514 = vmatpush1.msra.mxu0 %v332
        %1515 = vmatprep.subr.mxu0 0.0
        %1516 = vmatpush1.msra.mxu0 %v335
        %1517 = vmatprep.subr.mxu0 0.0
        %1518 = vmatpush1.msra.mxu0 %v338
        %1519 = vmatprep.subr.mxu0 0.0
        %1520 = vmatpush1.msra.mxu0 %v341
        %1521 = vmatprep.subr.mxu0 0.0
        %1522 = vmatpush1.msra.mxu0 %v344
        %1523 = vmatprep.subr.mxu0 0.0
        %1524 = vmatpush1.msra.mxu0 %v347
        %1525 = vmatprep.subr.mxu0 0.0
        %1526 = vmatpush1.msra.mxu0 0.0
        %1527 = vmatprep.subr.mxu0 0.0
        %1528 = vmatpush1.msra.mxu0 0.0
        %1529 = vmatprep.subr.mxu0 0.0
        %1530 = vmatpush1.msra.mxu0 0.0
        %1531 = vmatprep.subr.mxu0 0.0
        %1532 = vmatpush1.msra.mxu0 0.0
        %1533 = vmatprep.subr.mxu0 0.0
        %1534 = vmatpush1.msra.mxu0 0.0
        %1535 = vmatprep.subr.mxu0 0.0
        %1536 = vmatpush1.msra.mxu0 0.0
        %1537 = vmatprep.subr.mxu0 0.0
        %1538 = vmatpush1.msra.mxu0 0.0
        %1539 = vmatprep.subr.mxu0 0.0
        %1540 = vmatpush1.msra.mxu0 0.0
        %1541 = vmatprep.subr.mxu0 0.0
        %1542 = vmatpush1.msra.mxu0 0.0
        %1543 = vmatprep.subr.mxu0 0.0
        %1544 = vmatpush1.msra.mxu0 0.0
        %1545 = vmatprep.subr.mxu0 0.0
        %1546 = vmatpush1.msra.mxu0 0.0
        %1547 = vmatprep.subr.mxu0 0.0
        %1548 = vmatpush1.msra.mxu0 0.0
        %1549 = vmatprep.subr.mxu0 0.0
        %1550 = vmatpush1.msra.mxu0 0.0
        %1551 = vmatprep.subr.mxu0 0.0
        %1552 = vmatpush1.msra.mxu0 0.0
        %1553 = vmatprep.subr.mxu0 0.0
        %1554 = vmatpush1.msra.mxu0 0.0
        %1555 = vmatprep.subr.mxu0 0.0
        %1556 = vmatpush1.msra.mxu0 0.0
        %1557 = vmatprep.mubr.f32.mxu0 0.0
        %1558 = vmatmul.mubr.f32.gmra.mrb[0].mxu0 %v1389
        %v1559 = vpop.f32.mrb[0].mxu0
        %v1560 = vadd.f32 0.0, %v1559
        %v1561 = vpop.f32.mrb[0].mxu0
        %1562 = vdwg.mxu0
        %1563 = vmatprep.subr.mxu0 %v350
        %1564 = vmatpush1.msra.mxu0 %v349
        %1565 = vmatprep.subr.mxu0 %v353
        %1566 = vmatpush1.msra.mxu0 %v352
        %1567 = vmatprep.subr.mxu0 %v356
        %1568 = vmatpush1.msra.mxu0 %v355
        %1569 = vmatprep.subr.mxu0 %v359
        %1570 = vmatpush1.msra.mxu0 %v358
        %1571 = vmatprep.subr.mxu0 %v362
        %1572 = vmatpush1.msra.mxu0 %v361
        %1573 = vmatprep.subr.mxu0 %v365
        %1574 = vmatpush1.msra.mxu0 %v364
        %1575 = vmatprep.subr.mxu0 %v368
        %1576 = vmatpush1.msra.mxu0 %v367
        %1577 = vmatprep.subr.mxu0 %v371
        %1578 = vmatpush1.msra.mxu0 %v370
        %1579 = vmatprep.subr.mxu0 %v374
        %1580 = vmatpush1.msra.mxu0 %v373
        %1581 = vmatprep.subr.mxu0 %v377
        %1582 = vmatpush1.msra.mxu0 %v376
        %1583 = vmatprep.subr.mxu0 %v380
        %1584 = vmatpush1.msra.mxu0 %v379
        %1585 = vmatprep.subr.mxu0 %v383
        %1586 = vmatpush1.msra.mxu0 %v382
        %1587 = vmatprep.subr.mxu0 %v386
        %1588 = vmatpush1.msra.mxu0 %v385
        %1589 = vmatprep.subr.mxu0 %v389
        %1590 = vmatpush1.msra.mxu0 %v388
        %1591 = vmatprep.subr.mxu0 %v392
        %1592 = vmatpush1.msra.mxu0 %v391
        %1593 = vmatprep.subr.mxu0 %v395
        %1594 = vmatpush1.msra.mxu0 %v394
        %1595 = vmatprep.subr.mxu0 0.0
        %1596 = vmatpush1.msra.mxu0 0.0
        %1597 = vmatprep.subr.mxu0 0.0
        %1598 = vmatpush1.msra.mxu0 0.0
        %1599 = vmatprep.subr.mxu0 0.0
        %1600 = vmatpush1.msra.mxu0 0.0
        %1601 = vmatprep.subr.mxu0 0.0
        %1602 = vmatpush1.msra.mxu0 0.0
        %1603 = vmatprep.subr.mxu0 0.0
        %1604 = vmatpush1.msra.mxu0 0.0
        %1605 = vmatprep.subr.mxu0 0.0
        %1606 = vmatpush1.msra.mxu0 0.0
        %1607 = vmatprep.subr.mxu0 0.0
        %1608 = vmatpush1.msra.mxu0 0.0
        %1609 = vmatprep.subr.mxu0 0.0
        %1610 = vmatpush1.msra.mxu0 0.0
        %1611 = vmatprep.subr.mxu0 0.0
        %1612 = vmatpush1.msra.mxu0 0.0
        %1613 = vmatprep.subr.mxu0 0.0
        %1614 = vmatpush1.msra.mxu0 0.0
        %1615 = vmatprep.subr.mxu0 0.0
        %1616 = vmatpush1.msra.mxu0 0.0
        %1617 = vmatprep.subr.mxu0 0.0
        %1618 = vmatpush1.msra.mxu0 0.0
        %1619 = vmatprep.subr.mxu0 0.0
        %1620 = vmatpush1.msra.mxu0 0.0
        %1621 = vmatprep.subr.mxu0 0.0
        %1622 = vmatpush1.msra.mxu0 0.0
        %1623 = vmatprep.subr.mxu0 0.0
        %1624 = vmatpush1.msra.mxu0 0.0
        %1625 = vmatprep.subr.mxu0 0.0
        %1626 = vmatpush1.msra.mxu0 0.0
        %1627 = vmatprep.mubr.f32.mxu0 0.0
        %1628 = vmatmul.mubr.f32.gmra.mrb[0].mxu0 %v1415
        %v1629 = vpop.f32.mrb[0].mxu0
        %v1630 = vadd.f32 0.0, %v1629
        %v1631 = vpop.f32.mrb[0].mxu0
        %v1632 = vadd.f32 0.0, %v1631
        %1633 = vdwg.mxu0
        %1634 = vmatprep.subr.mxu0 0.0
        %1635 = vmatpush1.msra.mxu0 %v351
        %1636 = vmatprep.subr.mxu0 0.0
        %1637 = vmatpush1.msra.mxu0 %v354
        %1638 = vmatprep.subr.mxu0 0.0
        %1639 = vmatpush1.msra.mxu0 %v357
        %1640 = vmatprep.subr.mxu0 0.0
        %1641 = vmatpush1.msra.mxu0 %v360
        %1642 = vmatprep.subr.mxu0 0.0
        %1643 = vmatpush1.msra.mxu0 %v363
        %1644 = vmatprep.subr.mxu0 0.0
        %1645 = vmatpush1.msra.mxu0 %v366
        %1646 = vmatprep.subr.mxu0 0.0
        %1647 = vmatpush1.msra.mxu0 %v369
        %1648 = vmatprep.subr.mxu0 0.0
        %1649 = vmatpush1.msra.mxu0 %v372
        %1650 = vmatprep.subr.mxu0 0.0
        %1651 = vmatpush1.msra.mxu0 %v375
        %1652 = vmatprep.subr.mxu0 0.0
        %1653 = vmatpush1.msra.mxu0 %v378
        %1654 = vmatprep.subr.mxu0 0.0
        %1655 = vmatpush1.msra.mxu0 %v381
        %1656 = vmatprep.subr.mxu0 0.0
        %1657 = vmatpush1.msra.mxu0 %v384
        %1658 = vmatprep.subr.mxu0 0.0
        %1659 = vmatpush1.msra.mxu0 %v387
        %1660 = vmatprep.subr.mxu0 0.0
        %1661 = vmatpush1.msra.mxu0 %v390
        %1662 = vmatprep.subr.mxu0 0.0
        %1663 = vmatpush1.msra.mxu0 %v393
        %1664 = vmatprep.subr.mxu0 0.0
        %1665 = vmatpush1.msra.mxu0 %v396
        %1666 = vmatprep.subr.mxu0 0.0
        %1667 = vmatpush1.msra.mxu0 0.0
        %1668 = vmatprep.subr.mxu0 0.0
        %1669 = vmatpush1.msra.mxu0 0.0
        %1670 = vmatprep.subr.mxu0 0.0
        %1671 = vmatpush1.msra.mxu0 0.0
        %1672 = vmatprep.subr.mxu0 0.0
        %1673 = vmatpush1.msra.mxu0 0.0
        %1674 = vmatprep.subr.mxu0 0.0
        %1675 = vmatpush1.msra.mxu0 0.0
        %1676 = vmatprep.subr.mxu0 0.0
        %1677 = vmatpush1.msra.mxu0 0.0
        %1678 = vmatprep.subr.mxu0 0.0
        %1679 = vmatpush1.msra.mxu0 0.0
        %1680 = vmatprep.subr.mxu0 0.0
        %1681 = vmatpush1.msra.mxu0 0.0
        %1682 = vmatprep.subr.mxu0 0.0
        %1683 = vmatpush1.msra.mxu0 0.0
        %1684 = vmatprep.subr.mxu0 0.0
        %1685 = vmatpush1.msra.mxu0 0.0
        %1686 = vmatprep.subr.mxu0 0.0
        %1687 = vmatpush1.msra.mxu0 0.0
        %1688 = vmatprep.subr.mxu0 0.0
        %1689 = vmatpush1.msra.mxu0 0.0
        %1690 = vmatprep.subr.mxu0 0.0
        %1691 = vmatpush1.msra.mxu0 0.0
        %1692 = vmatprep.subr.mxu0 0.0
        %1693 = vmatpush1.msra.mxu0 0.0
        %1694 = vmatprep.subr.mxu0 0.0
        %1695 = vmatpush1.msra.mxu0 0.0
        %1696 = vmatprep.subr.mxu0 0.0
        %1697 = vmatpush1.msra.mxu0 0.0
        %1698 = vmatprep.mubr.f32.mxu0 0.0
        %1699 = vmatmul.mubr.f32.gmra.mrb[0].mxu0 %v1415
        %v1700 = vpop.f32.mrb[0].mxu0
        %v1701 = vadd.f32 0.0, %v1700
        %v1702 = vpop.f32.mrb[0].mxu0
        %1703 = vdwg.mxu0
        %v1704 = vadd.f32 %v1419, %v1489
        %v1705 = vxor.u32 %v1704, 2147483648
        %v1706 = vmul.f32 %v1705, 1.442695
        %v1707 = vpow.pop %v1706
        %v1708 = vadd.f32 %v1707, 1.0
        %v1709 = vrcp.pop %v1708
        %v1710 = vmul.f32 1.0, %v1709
        %v1712 = vrot.slane %v1419, 1
        %v1714 = vadd.f32 %v1712, %v1491
        %v1715 = vxor.u32 %v1714, 2147483648
        %v1716 = vmul.f32 %v1715, 1.442695
        %v1717 = vpow.pop %v1716
        %v1718 = vadd.f32 %v1717, 1.0
        %v1719 = vrcp.pop %v1718
        %v1720 = vmul.f32 1.0, %v1719
        %v1721 = vmul.f32 %v1710, %v1560
        %v1722 = vrot.slane %v1419, 2
        %v1724 = vadd.f32 %v1722, %v1721
        %v1725 = vtanh.pop %v1724
        %v1726 = vsub.f32 1.0, %v1720
        %v1727 = vmul.f32 %v1726, %v1725
        %v1728 = vmul.f32 %v1720, %v1389
        %v1729 = vadd.f32 %v1727, %v1728
        %v1730 = vadd.f32 %v1421, %v1630
        %v1731 = vxor.u32 %v1730, 2147483648
        %v1732 = vmul.f32 %v1731, 1.442695
        %v1733 = vpow.pop %v1732
        %v1734 = vadd.f32 %v1733, 1.0
        %v1735 = vrcp.pop %v1734
        %v1736 = vmul.f32 1.0, %v1735
        %v1738 = vrot.slane %v1421, 1
        %v1740 = vadd.f32 %v1738, %v1632
        %v1741 = vxor.u32 %v1740, 2147483648
        %v1742 = vmul.f32 %v1741, 1.442695
        %v1743 = vpow.pop %v1742
        %v1744 = vadd.f32 %v1743, 1.0
        %v1745 = vrcp.pop %v1744
        %v1746 = vmul.f32 1.0, %v1745
        %v1747 = vmul.f32 %v1736, %v1701
        %v1748 = vrot.slane %v1421, 2
        %v1750 = vadd.f32 %v1748, %v1747
        %v1751 = vtanh.pop %v1750
        %v1752 = vsub.f32 1.0, %v1746
        %v1753 = vmul.f32 %v1752, %v1751
        %v1754 = vmul.f32 %v1746, %v1415
        %v1755 = vadd.f32 %v1753, %v1754
        %1756 = vst [vmem:[%s264 + $0x3] sm:$0x1] %v1729
        %1757 = vst [vmem:[%s271 + $0xc] sm:$0x1] %v1755
        %s1758 = scalar_lea.vmem %s230, 4 [#allocation6]
        %v1759 = vld [vmem:[%s1758] ss:$8 sm:$0x7]
        %s1760 = scalar_lea.vmem %s239, 27 [#allocation9]
        %v1761 = vld [vmem:[%s1760] ss:$8 sm:$0x7]
        %1762 = vmatprep.subr.mxu0 %v301
        %1763 = vmatpush1.msra.mxu0 %v300
        %1764 = vmatprep.subr.mxu0 %v304
        %1765 = vmatpush1.msra.mxu0 %v303
        %1766 = vmatprep.subr.mxu0 %v307
        %1767 = vmatpush1.msra.mxu0 %v306
        %1768 = vmatprep.subr.mxu0 %v310
        %1769 = vmatpush1.msra.mxu0 %v309
        %1770 = vmatprep.subr.mxu0 %v313
        %1771 = vmatpush1.msra.mxu0 %v312
        %1772 = vmatprep.subr.mxu0 %v316
        %1773 = vmatpush1.msra.mxu0 %v315
        %1774 = vmatprep.subr.mxu0 %v319
        %1775 = vmatpush1.msra.mxu0 %v318
        %1776 = vmatprep.subr.mxu0 %v322
        %1777 = vmatpush1.msra.mxu0 %v321
        %1778 = vmatprep.subr.mxu0 %v325
        %1779 = vmatpush1.msra.mxu0 %v324
        %1780 = vmatprep.subr.mxu0 %v328
        %1781 = vmatpush1.msra.mxu0 %v327
        %1782 = vmatprep.subr.mxu0 %v331
        %1783 = vmatpush1.msra.mxu0 %v330
        %1784 = vmatprep.subr.mxu0 %v334
        %1785 = vmatpush1.msra.mxu0 %v333
        %1786 = vmatprep.subr.mxu0 %v337
        %1787 = vmatpush1.msra.mxu0 %v336
        %1788 = vmatprep.subr.mxu0 %v340
        %1789 = vmatpush1.msra.mxu0 %v339
        %1790 = vmatprep.subr.mxu0 %v343
        %1791 = vmatpush1.msra.mxu0 %v342
        %1792 = vmatprep.subr.mxu0 %v346
        %1793 = vmatpush1.msra.mxu0 %v345
        %1794 = vmatprep.subr.mxu0 0.0
        %1795 = vmatpush1.msra.mxu0 0.0
        %1796 = vmatprep.subr.mxu0 0.0
        %1797 = vmatpush1.msra.mxu0 0.0
        %1798 = vmatprep.subr.mxu0 0.0
        %1799 = vmatpush1.msra.mxu0 0.0
        %1800 = vmatprep.subr.mxu0 0.0
        %1801 = vmatpush1.msra.mxu0 0.0
        %1802 = vmatprep.subr.mxu0 0.0
        %1803 = vmatpush1.msra.mxu0 0.0
        %1804 = vmatprep.subr.mxu0 0.0
        %1805 = vmatpush1.msra.mxu0 0.0
        %1806 = vmatprep.subr.mxu0 0.0
        %1807 = vmatpush1.msra.mxu0 0.0
        %1808 = vmatprep.subr.mxu0 0.0
        %1809 = vmatpush1.msra.mxu0 0.0
        %1810 = vmatprep.subr.mxu0 0.0
        %1811 = vmatpush1.msra.mxu0 0.0
        %1812 = vmatprep.subr.mxu0 0.0
        %1813 = vmatpush1.msra.mxu0 0.0
        %1814 = vmatprep.subr.mxu0 0.0
        %1815 = vmatpush1.msra.mxu0 0.0
        %1816 = vmatprep.subr.mxu0 0.0
        %1817 = vmatpush1.msra.mxu0 0.0
        %1818 = vmatprep.subr.mxu0 0.0
        %1819 = vmatpush1.msra.mxu0 0.0
        %1820 = vmatprep.subr.mxu0 0.0
        %1821 = vmatpush1.msra.mxu0 0.0
        %1822 = vmatprep.subr.mxu0 0.0
        %1823 = vmatpush1.msra.mxu0 0.0
        %1824 = vmatprep.subr.mxu0 0.0
        %1825 = vmatpush1.msra.mxu0 0.0
        %1826 = vmatprep.mubr.f32.mxu0 0.0
        %1827 = vmatmul.mubr.f32.gmra.mrb[0].mxu0 %v1729
        %v1828 = vpop.f32.mrb[0].mxu0
        %v1829 = vadd.f32 0.0, %v1828
        %v1830 = vpop.f32.mrb[0].mxu0
        %v1831 = vadd.f32 0.0, %v1830
        %1832 = vdwg.mxu0
        %1833 = vmatprep.subr.mxu0 0.0
        %1834 = vmatpush1.msra.mxu0 %v302
        %1835 = vmatprep.subr.mxu0 0.0
        %1836 = vmatpush1.msra.mxu0 %v305
        %1837 = vmatprep.subr.mxu0 0.0
        %1838 = vmatpush1.msra.mxu0 %v308
        %1839 = vmatprep.subr.mxu0 0.0
        %1840 = vmatpush1.msra.mxu0 %v311
        %1841 = vmatprep.subr.mxu0 0.0
        %1842 = vmatpush1.msra.mxu0 %v314
        %1843 = vmatprep.subr.mxu0 0.0
        %1844 = vmatpush1.msra.mxu0 %v317
        %1845 = vmatprep.subr.mxu0 0.0
        %1846 = vmatpush1.msra.mxu0 %v320
        %1847 = vmatprep.subr.mxu0 0.0
        %1848 = vmatpush1.msra.mxu0 %v323
        %1849 = vmatprep.subr.mxu0 0.0
        %1850 = vmatpush1.msra.mxu0 %v326
        %1851 = vmatprep.subr.mxu0 0.0
        %1852 = vmatpush1.msra.mxu0 %v329
        %1853 = vmatprep.subr.mxu0 0.0
        %1854 = vmatpush1.msra.mxu0 %v332
        %1855 = vmatprep.subr.mxu0 0.0
        %1856 = vmatpush1.msra.mxu0 %v335
        %1857 = vmatprep.subr.mxu0 0.0
        %1858 = vmatpush1.msra.mxu0 %v338
        %1859 = vmatprep.subr.mxu0 0.0
        %1860 = vmatpush1.msra.mxu0 %v341
        %1861 = vmatprep.subr.mxu0 0.0
        %1862 = vmatpush1.msra.mxu0 %v344
        %1863 = vmatprep.subr.mxu0 0.0
        %1864 = vmatpush1.msra.mxu0 %v347
        %1865 = vmatprep.subr.mxu0 0.0
        %1866 = vmatpush1.msra.mxu0 0.0
        %1867 = vmatprep.subr.mxu0 0.0
        %1868 = vmatpush1.msra.mxu0 0.0
        %1869 = vmatprep.subr.mxu0 0.0
        %1870 = vmatpush1.msra.mxu0 0.0
        %1871 = vmatprep.subr.mxu0 0.0
        %1872 = vmatpush1.msra.mxu0 0.0
        %1873 = vmatprep.subr.mxu0 0.0
        %1874 = vmatpush1.msra.mxu0 0.0
        %1875 = vmatprep.subr.mxu0 0.0
        %1876 = vmatpush1.msra.mxu0 0.0
        %1877 = vmatprep.subr.mxu0 0.0
        %1878 = vmatpush1.msra.mxu0 0.0
        %1879 = vmatprep.subr.mxu0 0.0
        %1880 = vmatpush1.msra.mxu0 0.0
        %1881 = vmatprep.subr.mxu0 0.0
        %1882 = vmatpush1.msra.mxu0 0.0
        %1883 = vmatprep.subr.mxu0 0.0
        %1884 = vmatpush1.msra.mxu0 0.0
        %1885 = vmatprep.subr.mxu0 0.0
        %1886 = vmatpush1.msra.mxu0 0.0
        %1887 = vmatprep.subr.mxu0 0.0
        %1888 = vmatpush1.msra.mxu0 0.0
        %1889 = vmatprep.subr.mxu0 0.0
        %1890 = vmatpush1.msra.mxu0 0.0
        %1891 = vmatprep.subr.mxu0 0.0
        %1892 = vmatpush1.msra.mxu0 0.0
        %1893 = vmatprep.subr.mxu0 0.0
        %1894 = vmatpush1.msra.mxu0 0.0
        %1895 = vmatprep.subr.mxu0 0.0
        %1896 = vmatpush1.msra.mxu0 0.0
        %1897 = vmatprep.mubr.f32.mxu0 0.0
        %1898 = vmatmul.mubr.f32.gmra.mrb[0].mxu0 %v1729
        %v1899 = vpop.f32.mrb[0].mxu0
        %v1900 = vadd.f32 0.0, %v1899
        %v1901 = vpop.f32.mrb[0].mxu0
        %1902 = vdwg.mxu0
        %1903 = vmatprep.subr.mxu0 %v350
        %1904 = vmatpush1.msra.mxu0 %v349
        %1905 = vmatprep.subr.mxu0 %v353
        %1906 = vmatpush1.msra.mxu0 %v352
        %1907 = vmatprep.subr.mxu0 %v356
        %1908 = vmatpush1.msra.mxu0 %v355
        %1909 = vmatprep.subr.mxu0 %v359
        %1910 = vmatpush1.msra.mxu0 %v358
        %1911 = vmatprep.subr.mxu0 %v362
        %1912 = vmatpush1.msra.mxu0 %v361
        %1913 = vmatprep.subr.mxu0 %v365
        %1914 = vmatpush1.msra.mxu0 %v364
        %1915 = vmatprep.subr.mxu0 %v368
        %1916 = vmatpush1.msra.mxu0 %v367
        %1917 = vmatprep.subr.mxu0 %v371
        %1918 = vmatpush1.msra.mxu0 %v370
        %1919 = vmatprep.subr.mxu0 %v374
        %1920 = vmatpush1.msra.mxu0 %v373
        %1921 = vmatprep.subr.mxu0 %v377
        %1922 = vmatpush1.msra.mxu0 %v376
        %1923 = vmatprep.subr.mxu0 %v380
        %1924 = vmatpush1.msra.mxu0 %v379
        %1925 = vmatprep.subr.mxu0 %v383
        %1926 = vmatpush1.msra.mxu0 %v382
        %1927 = vmatprep.subr.mxu0 %v386
        %1928 = vmatpush1.msra.mxu0 %v385
        %1929 = vmatprep.subr.mxu0 %v389
        %1930 = vmatpush1.msra.mxu0 %v388
        %1931 = vmatprep.subr.mxu0 %v392
        %1932 = vmatpush1.msra.mxu0 %v391
        %1933 = vmatprep.subr.mxu0 %v395
        %1934 = vmatpush1.msra.mxu0 %v394
        %1935 = vmatprep.subr.mxu0 0.0
        %1936 = vmatpush1.msra.mxu0 0.0
        %1937 = vmatprep.subr.mxu0 0.0
        %1938 = vmatpush1.msra.mxu0 0.0
        %1939 = vmatprep.subr.mxu0 0.0
        %1940 = vmatpush1.msra.mxu0 0.0
        %1941 = vmatprep.subr.mxu0 0.0
        %1942 = vmatpush1.msra.mxu0 0.0
        %1943 = vmatprep.subr.mxu0 0.0
        %1944 = vmatpush1.msra.mxu0 0.0
        %1945 = vmatprep.subr.mxu0 0.0
        %1946 = vmatpush1.msra.mxu0 0.0
        %1947 = vmatprep.subr.mxu0 0.0
        %1948 = vmatpush1.msra.mxu0 0.0
        %1949 = vmatprep.subr.mxu0 0.0
        %1950 = vmatpush1.msra.mxu0 0.0
        %1951 = vmatprep.subr.mxu0 0.0
        %1952 = vmatpush1.msra.mxu0 0.0
        %1953 = vmatprep.subr.mxu0 0.0
        %1954 = vmatpush1.msra.mxu0 0.0
        %1955 = vmatprep.subr.mxu0 0.0
        %1956 = vmatpush1.msra.mxu0 0.0
        %1957 = vmatprep.subr.mxu0 0.0
        %1958 = vmatpush1.msra.mxu0 0.0
        %1959 = vmatprep.subr.mxu0 0.0
        %1960 = vmatpush1.msra.mxu0 0.0
        %1961 = vmatprep.subr.mxu0 0.0
        %1962 = vmatpush1.msra.mxu0 0.0
        %1963 = vmatprep.subr.mxu0 0.0
        %1964 = vmatpush1.msra.mxu0 0.0
        %1965 = vmatprep.subr.mxu0 0.0
        %1966 = vmatpush1.msra.mxu0 0.0
        %1967 = vmatprep.mubr.f32.mxu0 0.0
        %1968 = vmatmul.mubr.f32.gmra.mrb[0].mxu0 %v1755
        %v1969 = vpop.f32.mrb[0].mxu0
        %v1970 = vadd.f32 0.0, %v1969
        %v1971 = vpop.f32.mrb[0].mxu0
        %v1972 = vadd.f32 0.0, %v1971
        %1973 = vdwg.mxu0
        %1974 = vmatprep.subr.mxu0 0.0
        %1975 = vmatpush1.msra.mxu0 %v351
        %1976 = vmatprep.subr.mxu0 0.0
        %1977 = vmatpush1.msra.mxu0 %v354
        %1978 = vmatprep.subr.mxu0 0.0
        %1979 = vmatpush1.msra.mxu0 %v357
        %1980 = vmatprep.subr.mxu0 0.0
        %1981 = vmatpush1.msra.mxu0 %v360
        %1982 = vmatprep.subr.mxu0 0.0
        %1983 = vmatpush1.msra.mxu0 %v363
        %1984 = vmatprep.subr.mxu0 0.0
        %1985 = vmatpush1.msra.mxu0 %v366
        %1986 = vmatprep.subr.mxu0 0.0
        %1987 = vmatpush1.msra.mxu0 %v369
        %1988 = vmatprep.subr.mxu0 0.0
        %1989 = vmatpush1.msra.mxu0 %v372
        %1990 = vmatprep.subr.mxu0 0.0
        %1991 = vmatpush1.msra.mxu0 %v375
        %1992 = vmatprep.subr.mxu0 0.0
        %1993 = vmatpush1.msra.mxu0 %v378
        %1994 = vmatprep.subr.mxu0 0.0
        %1995 = vmatpush1.msra.mxu0 %v381
        %1996 = vmatprep.subr.mxu0 0.0
        %1997 = vmatpush1.msra.mxu0 %v384
        %1998 = vmatprep.subr.mxu0 0.0
        %1999 = vmatpush1.msra.mxu0 %v387
        %2000 = vmatprep.subr.mxu0 0.0
        %2001 = vmatpush1.msra.mxu0 %v390
        %2002 = vmatprep.subr.mxu0 0.0
        %2003 = vmatpush1.msra.mxu0 %v393
        %2004 = vmatprep.subr.mxu0 0.0
        %2005 = vmatpush1.msra.mxu0 %v396
        %2006 = vmatprep.subr.mxu0 0.0
        %2007 = vmatpush1.msra.mxu0 0.0
        %2008 = vmatprep.subr.mxu0 0.0
        %2009 = vmatpush1.msra.mxu0 0.0
        %2010 = vmatprep.subr.mxu0 0.0
        %2011 = vmatpush1.msra.mxu0 0.0
        %2012 = vmatprep.subr.mxu0 0.0
        %2013 = vmatpush1.msra.mxu0 0.0
        %2014 = vmatprep.subr.mxu0 0.0
        %2015 = vmatpush1.msra.mxu0 0.0
        %2016 = vmatprep.subr.mxu0 0.0
        %2017 = vmatpush1.msra.mxu0 0.0
        %2018 = vmatprep.subr.mxu0 0.0
        %2019 = vmatpush1.msra.mxu0 0.0
        %2020 = vmatprep.subr.mxu0 0.0
        %2021 = vmatpush1.msra.mxu0 0.0
        %2022 = vmatprep.subr.mxu0 0.0
        %2023 = vmatpush1.msra.mxu0 0.0
        %2024 = vmatprep.subr.mxu0 0.0
        %2025 = vmatpush1.msra.mxu0 0.0
        %2026 = vmatprep.subr.mxu0 0.0
        %2027 = vmatpush1.msra.mxu0 0.0
        %2028 = vmatprep.subr.mxu0 0.0
        %2029 = vmatpush1.msra.mxu0 0.0
        %2030 = vmatprep.subr.mxu0 0.0
        %2031 = vmatpush1.msra.mxu0 0.0
        %2032 = vmatprep.subr.mxu0 0.0
        %2033 = vmatpush1.msra.mxu0 0.0
        %2034 = vmatprep.subr.mxu0 0.0
        %2035 = vmatpush1.msra.mxu0 0.0
        %2036 = vmatprep.subr.mxu0 0.0
        %2037 = vmatpush1.msra.mxu0 0.0
        %2038 = vmatprep.mubr.f32.mxu0 0.0
        %2039 = vmatmul.mubr.f32.gmra.mrb[0].mxu0 %v1755
        %v2040 = vpop.f32.mrb[0].mxu0
        %v2041 = vadd.f32 0.0, %v2040
        %v2042 = vpop.f32.mrb[0].mxu0
        %2043 = vdwg.mxu0
        %v2044 = vadd.f32 %v1759, %v1829
        %v2045 = vxor.u32 %v2044, 2147483648
        %v2046 = vmul.f32 %v2045, 1.442695
        %v2047 = vpow.pop %v2046
        %v2048 = vadd.f32 %v2047, 1.0
        %v2049 = vrcp.pop %v2048
        %v2050 = vmul.f32 1.0, %v2049
        %v2052 = vrot.slane %v1759, 1
        %v2054 = vadd.f32 %v2052, %v1831
        %v2055 = vxor.u32 %v2054, 2147483648
        %v2056 = vmul.f32 %v2055, 1.442695
        %v2057 = vpow.pop %v2056
        %v2058 = vadd.f32 %v2057, 1.0
        %v2059 = vrcp.pop %v2058
        %v2060 = vmul.f32 1.0, %v2059
        %v2061 = vmul.f32 %v2050, %v1900
        %v2062 = vrot.slane %v1759, 2
        %v2064 = vadd.f32 %v2062, %v2061
        %v2065 = vtanh.pop %v2064
        %v2066 = vsub.f32 1.0, %v2060
        %v2067 = vmul.f32 %v2066, %v2065
        %v2068 = vmul.f32 %v2060, %v1729
        %v2069 = vadd.f32 %v2067, %v2068
        %v2070 = vadd.f32 %v1761, %v1970
        %v2071 = vxor.u32 %v2070, 2147483648
        %v2072 = vmul.f32 %v2071, 1.442695
        %v2073 = vpow.pop %v2072
        %v2074 = vadd.f32 %v2073, 1.0
        %v2075 = vrcp.pop %v2074
        %v2076 = vmul.f32 1.0, %v2075
        %v2078 = vrot.slane %v1761, 1
        %v2080 = vadd.f32 %v2078, %v1972
        %v2081 = vxor.u32 %v2080, 2147483648
        %v2082 = vmul.f32 %v2081, 1.442695
        %v2083 = vpow.pop %v2082
        %v2084 = vadd.f32 %v2083, 1.0
        %v2085 = vrcp.pop %v2084
        %v2086 = vmul.f32 1.0, %v2085
        %v2087 = vmul.f32 %v2076, %v2041
        %v2088 = vrot.slane %v1761, 2
        %v2090 = vadd.f32 %v2088, %v2087
        %v2091 = vtanh.pop %v2090
        %v2092 = vsub.f32 1.0, %v2086
        %v2093 = vmul.f32 %v2092, %v2091
        %v2094 = vmul.f32 %v2086, %v1755
        %v2095 = vadd.f32 %v2093, %v2094
        %2096 = vst [vmem:[%s264 + $0x4] sm:$0x1] %v2069
        %2097 = vst [vmem:[%s271 + $0xb] sm:$0x1] %v2095
        %s2098 = scalar_lea.vmem %s230, 5 [#allocation6]
        %v2099 = vld [vmem:[%s2098] ss:$8 sm:$0x7]
        %s2100 = scalar_lea.vmem %s239, 26 [#allocation9]
        %v2101 = vld [vmem:[%s2100] ss:$8 sm:$0x7]
        %2102 = vmatprep.subr.mxu0 %v301
        %2103 = vmatpush1.msra.mxu0 %v300
        %2104 = vmatprep.subr.mxu0 %v304
        %2105 = vmatpush1.msra.mxu0 %v303
        %2106 = vmatprep.subr.mxu0 %v307
        %2107 = vmatpush1.msra.mxu0 %v306
        %2108 = vmatprep.subr.mxu0 %v310
        %2109 = vmatpush1.msra.mxu0 %v309
        %2110 = vmatprep.subr.mxu0 %v313
        %2111 = vmatpush1.msra.mxu0 %v312
        %2112 = vmatprep.subr.mxu0 %v316
        %2113 = vmatpush1.msra.mxu0 %v315
        %2114 = vmatprep.subr.mxu0 %v319
        %2115 = vmatpush1.msra.mxu0 %v318
        %2116 = vmatprep.subr.mxu0 %v322
        %2117 = vmatpush1.msra.mxu0 %v321
        %2118 = vmatprep.subr.mxu0 %v325
        %2119 = vmatpush1.msra.mxu0 %v324
        %2120 = vmatprep.subr.mxu0 %v328
        %2121 = vmatpush1.msra.mxu0 %v327
        %2122 = vmatprep.subr.mxu0 %v331
        %2123 = vmatpush1.msra.mxu0 %v330
        %2124 = vmatprep.subr.mxu0 %v334
        %2125 = vmatpush1.msra.mxu0 %v333
        %2126 = vmatprep.subr.mxu0 %v337
        %2127 = vmatpush1.msra.mxu0 %v336
        %2128 = vmatprep.subr.mxu0 %v340
        %2129 = vmatpush1.msra.mxu0 %v339
        %2130 = vmatprep.subr.mxu0 %v343
        %2131 = vmatpush1.msra.mxu0 %v342
        %2132 = vmatprep.subr.mxu0 %v346
        %2133 = vmatpush1.msra.mxu0 %v345
        %2134 = vmatprep.subr.mxu0 0.0
        %2135 = vmatpush1.msra.mxu0 0.0
        %2136 = vmatprep.subr.mxu0 0.0
        %2137 = vmatpush1.msra.mxu0 0.0
        %2138 = vmatprep.subr.mxu0 0.0
        %2139 = vmatpush1.msra.mxu0 0.0
        %2140 = vmatprep.subr.mxu0 0.0
        %2141 = vmatpush1.msra.mxu0 0.0
        %2142 = vmatprep.subr.mxu0 0.0
        %2143 = vmatpush1.msra.mxu0 0.0
        %2144 = vmatprep.subr.mxu0 0.0
        %2145 = vmatpush1.msra.mxu0 0.0
        %2146 = vmatprep.subr.mxu0 0.0
        %2147 = vmatpush1.msra.mxu0 0.0
        %2148 = vmatprep.subr.mxu0 0.0
        %2149 = vmatpush1.msra.mxu0 0.0
        %2150 = vmatprep.subr.mxu0 0.0
        %2151 = vmatpush1.msra.mxu0 0.0
        %2152 = vmatprep.subr.mxu0 0.0
        %2153 = vmatpush1.msra.mxu0 0.0
        %2154 = vmatprep.subr.mxu0 0.0
        %2155 = vmatpush1.msra.mxu0 0.0
        %2156 = vmatprep.subr.mxu0 0.0
        %2157 = vmatpush1.msra.mxu0 0.0
        %2158 = vmatprep.subr.mxu0 0.0
        %2159 = vmatpush1.msra.mxu0 0.0
        %2160 = vmatprep.subr.mxu0 0.0
        %2161 = vmatpush1.msra.mxu0 0.0
        %2162 = vmatprep.subr.mxu0 0.0
        %2163 = vmatpush1.msra.mxu0 0.0
        %2164 = vmatprep.subr.mxu0 0.0
        %2165 = vmatpush1.msra.mxu0 0.0
        %2166 = vmatprep.mubr.f32.mxu0 0.0
        %2167 = vmatmul.mubr.f32.gmra.mrb[0].mxu0 %v2069
        %v2168 = vpop.f32.mrb[0].mxu0
        %v2169 = vadd.f32 0.0, %v2168
        %v2170 = vpop.f32.mrb[0].mxu0
        %v2171 = vadd.f32 0.0, %v2170
        %2172 = vdwg.mxu0
        %2173 = vmatprep.subr.mxu0 0.0
        %2174 = vmatpush1.msra.mxu0 %v302
        %2175 = vmatprep.subr.mxu0 0.0
        %2176 = vmatpush1.msra.mxu0 %v305
        %2177 = vmatprep.subr.mxu0 0.0
        %2178 = vmatpush1.msra.mxu0 %v308
        %2179 = vmatprep.subr.mxu0 0.0
        %2180 = vmatpush1.msra.mxu0 %v311
        %2181 = vmatprep.subr.mxu0 0.0
        %2182 = vmatpush1.msra.mxu0 %v314
        %2183 = vmatprep.subr.mxu0 0.0
        %2184 = vmatpush1.msra.mxu0 %v317
        %2185 = vmatprep.subr.mxu0 0.0
        %2186 = vmatpush1.msra.mxu0 %v320
        %2187 = vmatprep.subr.mxu0 0.0
        %2188 = vmatpush1.msra.mxu0 %v323
        %2189 = vmatprep.subr.mxu0 0.0
        %2190 = vmatpush1.msra.mxu0 %v326
        %2191 = vmatprep.subr.mxu0 0.0
        %2192 = vmatpush1.msra.mxu0 %v329
        %2193 = vmatprep.subr.mxu0 0.0
        %2194 = vmatpush1.msra.mxu0 %v332
        %2195 = vmatprep.subr.mxu0 0.0
        %2196 = vmatpush1.msra.mxu0 %v335
        %2197 = vmatprep.subr.mxu0 0.0
        %2198 = vmatpush1.msra.mxu0 %v338
        %2199 = vmatprep.subr.mxu0 0.0
        %2200 = vmatpush1.msra.mxu0 %v341
        %2201 = vmatprep.subr.mxu0 0.0
        %2202 = vmatpush1.msra.mxu0 %v344
        %2203 = vmatprep.subr.mxu0 0.0
        %2204 = vmatpush1.msra.mxu0 %v347
        %2205 = vmatprep.subr.mxu0 0.0
        %2206 = vmatpush1.msra.mxu0 0.0
        %2207 = vmatprep.subr.mxu0 0.0
        %2208 = vmatpush1.msra.mxu0 0.0
        %2209 = vmatprep.subr.mxu0 0.0
        %2210 = vmatpush1.msra.mxu0 0.0
        %2211 = vmatprep.subr.mxu0 0.0
        %2212 = vmatpush1.msra.mxu0 0.0
        %2213 = vmatprep.subr.mxu0 0.0
        %2214 = vmatpush1.msra.mxu0 0.0
        %2215 = vmatprep.subr.mxu0 0.0
        %2216 = vmatpush1.msra.mxu0 0.0
        %2217 = vmatprep.subr.mxu0 0.0
        %2218 = vmatpush1.msra.mxu0 0.0
        %2219 = vmatprep.subr.mxu0 0.0
        %2220 = vmatpush1.msra.mxu0 0.0
        %2221 = vmatprep.subr.mxu0 0.0
        %2222 = vmatpush1.msra.mxu0 0.0
        %2223 = vmatprep.subr.mxu0 0.0
        %2224 = vmatpush1.msra.mxu0 0.0
        %2225 = vmatprep.subr.mxu0 0.0
        %2226 = vmatpush1.msra.mxu0 0.0
        %2227 = vmatprep.subr.mxu0 0.0
        %2228 = vmatpush1.msra.mxu0 0.0
        %2229 = vmatprep.subr.mxu0 0.0
        %2230 = vmatpush1.msra.mxu0 0.0
        %2231 = vmatprep.subr.mxu0 0.0
        %2232 = vmatpush1.msra.mxu0 0.0
        %2233 = vmatprep.subr.mxu0 0.0
        %2234 = vmatpush1.msra.mxu0 0.0
        %2235 = vmatprep.subr.mxu0 0.0
        %2236 = vmatpush1.msra.mxu0 0.0
        %2237 = vmatprep.mubr.f32.mxu0 0.0
        %2238 = vmatmul.mubr.f32.gmra.mrb[0].mxu0 %v2069
        %v2239 = vpop.f32.mrb[0].mxu0
        %v2240 = vadd.f32 0.0, %v2239
        %v2241 = vpop.f32.mrb[0].mxu0
        %2242 = vdwg.mxu0
        %2243 = vmatprep.subr.mxu0 %v350
        %2244 = vmatpush1.msra.mxu0 %v349
        %2245 = vmatprep.subr.mxu0 %v353
        %2246 = vmatpush1.msra.mxu0 %v352
        %2247 = vmatprep.subr.mxu0 %v356
        %2248 = vmatpush1.msra.mxu0 %v355
        %2249 = vmatprep.subr.mxu0 %v359
        %2250 = vmatpush1.msra.mxu0 %v358
        %2251 = vmatprep.subr.mxu0 %v362
        %2252 = vmatpush1.msra.mxu0 %v361
        %2253 = vmatprep.subr.mxu0 %v365
        %2254 = vmatpush1.msra.mxu0 %v364
        %2255 = vmatprep.subr.mxu0 %v368
        %2256 = vmatpush1.msra.mxu0 %v367
        %2257 = vmatprep.subr.mxu0 %v371
        %2258 = vmatpush1.msra.mxu0 %v370
        %2259 = vmatprep.subr.mxu0 %v374
        %2260 = vmatpush1.msra.mxu0 %v373
        %2261 = vmatprep.subr.mxu0 %v377
        %2262 = vmatpush1.msra.mxu0 %v376
        %2263 = vmatprep.subr.mxu0 %v380
        %2264 = vmatpush1.msra.mxu0 %v379
        %2265 = vmatprep.subr.mxu0 %v383
        %2266 = vmatpush1.msra.mxu0 %v382
        %2267 = vmatprep.subr.mxu0 %v386
        %2268 = vmatpush1.msra.mxu0 %v385
        %2269 = vmatprep.subr.mxu0 %v389
        %2270 = vmatpush1.msra.mxu0 %v388
        %2271 = vmatprep.subr.mxu0 %v392
        %2272 = vmatpush1.msra.mxu0 %v391
        %2273 = vmatprep.subr.mxu0 %v395
        %2274 = vmatpush1.msra.mxu0 %v394
        %2275 = vmatprep.subr.mxu0 0.0
        %2276 = vmatpush1.msra.mxu0 0.0
        %2277 = vmatprep.subr.mxu0 0.0
        %2278 = vmatpush1.msra.mxu0 0.0
        %2279 = vmatprep.subr.mxu0 0.0
        %2280 = vmatpush1.msra.mxu0 0.0
        %2281 = vmatprep.subr.mxu0 0.0
        %2282 = vmatpush1.msra.mxu0 0.0
        %2283 = vmatprep.subr.mxu0 0.0
        %2284 = vmatpush1.msra.mxu0 0.0
        %2285 = vmatprep.subr.mxu0 0.0
        %2286 = vmatpush1.msra.mxu0 0.0
        %2287 = vmatprep.subr.mxu0 0.0
        %2288 = vmatpush1.msra.mxu0 0.0
        %2289 = vmatprep.subr.mxu0 0.0
        %2290 = vmatpush1.msra.mxu0 0.0
        %2291 = vmatprep.subr.mxu0 0.0
        %2292 = vmatpush1.msra.mxu0 0.0
        %2293 = vmatprep.subr.mxu0 0.0
        %2294 = vmatpush1.msra.mxu0 0.0
        %2295 = vmatprep.subr.mxu0 0.0
        %2296 = vmatpush1.msra.mxu0 0.0
        %2297 = vmatprep.subr.mxu0 0.0
        %2298 = vmatpush1.msra.mxu0 0.0
        %2299 = vmatprep.subr.mxu0 0.0
        %2300 = vmatpush1.msra.mxu0 0.0
        %2301 = vmatprep.subr.mxu0 0.0
        %2302 = vmatpush1.msra.mxu0 0.0
        %2303 = vmatprep.subr.mxu0 0.0
        %2304 = vmatpush1.msra.mxu0 0.0
        %2305 = vmatprep.subr.mxu0 0.0
        %2306 = vmatpush1.msra.mxu0 0.0
        %2307 = vmatprep.mubr.f32.mxu0 0.0
        %2308 = vmatmul.mubr.f32.gmra.mrb[0].mxu0 %v2095
        %v2309 = vpop.f32.mrb[0].mxu0
        %v2310 = vadd.f32 0.0, %v2309
        %v2311 = vpop.f32.mrb[0].mxu0
        %v2312 = vadd.f32 0.0, %v2311
        %2313 = vdwg.mxu0
        %2314 = vmatprep.subr.mxu0 0.0
        %2315 = vmatpush1.msra.mxu0 %v351
        %2316 = vmatprep.subr.mxu0 0.0
        %2317 = vmatpush1.msra.mxu0 %v354
        %2318 = vmatprep.subr.mxu0 0.0
        %2319 = vmatpush1.msra.mxu0 %v357
        %2320 = vmatprep.subr.mxu0 0.0
        %2321 = vmatpush1.msra.mxu0 %v360
        %2322 = vmatprep.subr.mxu0 0.0
        %2323 = vmatpush1.msra.mxu0 %v363
        %2324 = vmatprep.subr.mxu0 0.0
        %2325 = vmatpush1.msra.mxu0 %v366
        %2326 = vmatprep.subr.mxu0 0.0
        %2327 = vmatpush1.msra.mxu0 %v369
        %2328 = vmatprep.subr.mxu0 0.0
        %2329 = vmatpush1.msra.mxu0 %v372
        %2330 = vmatprep.subr.mxu0 0.0
        %2331 = vmatpush1.msra.mxu0 %v375
        %2332 = vmatprep.subr.mxu0 0.0
        %2333 = vmatpush1.msra.mxu0 %v378
        %2334 = vmatprep.subr.mxu0 0.0
        %2335 = vmatpush1.msra.mxu0 %v381
        %2336 = vmatprep.subr.mxu0 0.0
        %2337 = vmatpush1.msra.mxu0 %v384
        %2338 = vmatprep.subr.mxu0 0.0
        %2339 = vmatpush1.msra.mxu0 %v387
        %2340 = vmatprep.subr.mxu0 0.0
        %2341 = vmatpush1.msra.mxu0 %v390
        %2342 = vmatprep.subr.mxu0 0.0
        %2343 = vmatpush1.msra.mxu0 %v393
        %2344 = vmatprep.subr.mxu0 0.0
        %2345 = vmatpush1.msra.mxu0 %v396
        %2346 = vmatprep.subr.mxu0 0.0
        %2347 = vmatpush1.msra.mxu0 0.0
        %2348 = vmatprep.subr.mxu0 0.0
        %2349 = vmatpush1.msra.mxu0 0.0
        %2350 = vmatprep.subr.mxu0 0.0
        %2351 = vmatpush1.msra.mxu0 0.0
        %2352 = vmatprep.subr.mxu0 0.0
        %2353 = vmatpush1.msra.mxu0 0.0
        %2354 = vmatprep.subr.mxu0 0.0
        %2355 = vmatpush1.msra.mxu0 0.0
        %2356 = vmatprep.subr.mxu0 0.0
        %2357 = vmatpush1.msra.mxu0 0.0
        %2358 = vmatprep.subr.mxu0 0.0
        %2359 = vmatpush1.msra.mxu0 0.0
        %2360 = vmatprep.subr.mxu0 0.0
        %2361 = vmatpush1.msra.mxu0 0.0
        %2362 = vmatprep.subr.mxu0 0.0
        %2363 = vmatpush1.msra.mxu0 0.0
        %2364 = vmatprep.subr.mxu0 0.0
        %2365 = vmatpush1.msra.mxu0 0.0
        %2366 = vmatprep.subr.mxu0 0.0
        %2367 = vmatpush1.msra.mxu0 0.0
        %2368 = vmatprep.subr.mxu0 0.0
        %2369 = vmatpush1.msra.mxu0 0.0
        %2370 = vmatprep.subr.mxu0 0.0
        %2371 = vmatpush1.msra.mxu0 0.0
        %2372 = vmatprep.subr.mxu0 0.0
        %2373 = vmatpush1.msra.mxu0 0.0
        %2374 = vmatprep.subr.mxu0 0.0
        %2375 = vmatpush1.msra.mxu0 0.0
        %2376 = vmatprep.subr.mxu0 0.0
        %2377 = vmatpush1.msra.mxu0 0.0
        %2378 = vmatprep.mubr.f32.mxu0 0.0
        %2379 = vmatmul.mubr.f32.gmra.mrb[0].mxu0 %v2095
        %v2380 = vpop.f32.mrb[0].mxu0
        %v2381 = vadd.f32 0.0, %v2380
        %v2382 = vpop.f32.mrb[0].mxu0
        %2383 = vdwg.mxu0
        %v2384 = vadd.f32 %v2099, %v2169
        %v2385 = vxor.u32 %v2384, 2147483648
        %v2386 = vmul.f32 %v2385, 1.442695
        %v2387 = vpow.pop %v2386
        %v2388 = vadd.f32 %v2387, 1.0
        %v2389 = vrcp.pop %v2388
        %v2390 = vmul.f32 1.0, %v2389
        %v2392 = vrot.slane %v2099, 1
        %v2394 = vadd.f32 %v2392, %v2171
        %v2395 = vxor.u32 %v2394, 2147483648
        %v2396 = vmul.f32 %v2395, 1.442695
        %v2397 = vpow.pop %v2396
        %v2398 = vadd.f32 %v2397, 1.0
        %v2399 = vrcp.pop %v2398
        %v2400 = vmul.f32 1.0, %v2399
        %v2401 = vmul.f32 %v2390, %v2240
        %v2402 = vrot.slane %v2099, 2
        %v2404 = vadd.f32 %v2402, %v2401
        %v2405 = vtanh.pop %v2404
        %v2406 = vsub.f32 1.0, %v2400
        %v2407 = vmul.f32 %v2406, %v2405
        %v2408 = vmul.f32 %v2400, %v2069
        %v2409 = vadd.f32 %v2407, %v2408
        %v2410 = vadd.f32 %v2101, %v2310
        %v2411 = vxor.u32 %v2410, 2147483648
        %v2412 = vmul.f32 %v2411, 1.442695
        %v2413 = vpow.pop %v2412
        %v2414 = vadd.f32 %v2413, 1.0
        %v2415 = vrcp.pop %v2414
        %v2416 = vmul.f32 1.0, %v2415
        %v2418 = vrot.slane %v2101, 1
        %v2420 = vadd.f32 %v2418, %v2312
        %v2421 = vxor.u32 %v2420, 2147483648
        %v2422 = vmul.f32 %v2421, 1.442695
        %v2423 = vpow.pop %v2422
        %v2424 = vadd.f32 %v2423, 1.0
        %v2425 = vrcp.pop %v2424
        %v2426 = vmul.f32 1.0, %v2425
        %v2427 = vmul.f32 %v2416, %v2381
        %v2428 = vrot.slane %v2101, 2
        %v2430 = vadd.f32 %v2428, %v2427
        %v2431 = vtanh.pop %v2430
        %v2432 = vsub.f32 1.0, %v2426
        %v2433 = vmul.f32 %v2432, %v2431
        %v2434 = vmul.f32 %v2426, %v2095
        %v2435 = vadd.f32 %v2433, %v2434
        %2436 = vst [vmem:[%s264 + $0x5] sm:$0x1] %v2409
        %2437 = vst [vmem:[%s271 + $0xa] sm:$0x1] %v2435
        %s2438 = scalar_lea.vmem %s230, 6 [#allocation6]
        %v2439 = vld [vmem:[%s2438] ss:$8 sm:$0x7]
        %s2440 = scalar_lea.vmem %s239, 25 [#allocation9]
        %v2441 = vld [vmem:[%s2440] ss:$8 sm:$0x7]
        %2442 = vmatprep.subr.mxu0 %v301
        %2443 = vmatpush1.msra.mxu0 %v300
        %2444 = vmatprep.subr.mxu0 %v304
        %2445 = vmatpush1.msra.mxu0 %v303
        %2446 = vmatprep.subr.mxu0 %v307
        %2447 = vmatpush1.msra.mxu0 %v306
        %2448 = vmatprep.subr.mxu0 %v310
        %2449 = vmatpush1.msra.mxu0 %v309
        %2450 = vmatprep.subr.mxu0 %v313
        %2451 = vmatpush1.msra.mxu0 %v312
        %2452 = vmatprep.subr.mxu0 %v316
        %2453 = vmatpush1.msra.mxu0 %v315
        %2454 = vmatprep.subr.mxu0 %v319
        %2455 = vmatpush1.msra.mxu0 %v318
        %2456 = vmatprep.subr.mxu0 %v322
        %2457 = vmatpush1.msra.mxu0 %v321
        %2458 = vmatprep.subr.mxu0 %v325
        %2459 = vmatpush1.msra.mxu0 %v324
        %2460 = vmatprep.subr.mxu0 %v328
        %2461 = vmatpush1.msra.mxu0 %v327
        %2462 = vmatprep.subr.mxu0 %v331
        %2463 = vmatpush1.msra.mxu0 %v330
        %2464 = vmatprep.subr.mxu0 %v334
        %2465 = vmatpush1.msra.mxu0 %v333
        %2466 = vmatprep.subr.mxu0 %v337
        %2467 = vmatpush1.msra.mxu0 %v336
        %2468 = vmatprep.subr.mxu0 %v340
        %2469 = vmatpush1.msra.mxu0 %v339
        %2470 = vmatprep.subr.mxu0 %v343
        %2471 = vmatpush1.msra.mxu0 %v342
        %2472 = vmatprep.subr.mxu0 %v346
        %2473 = vmatpush1.msra.mxu0 %v345
        %2474 = vmatprep.subr.mxu0 0.0
        %2475 = vmatpush1.msra.mxu0 0.0
        %2476 = vmatprep.subr.mxu0 0.0
        %2477 = vmatpush1.msra.mxu0 0.0
        %2478 = vmatprep.subr.mxu0 0.0
        %2479 = vmatpush1.msra.mxu0 0.0
        %2480 = vmatprep.subr.mxu0 0.0
        %2481 = vmatpush1.msra.mxu0 0.0
        %2482 = vmatprep.subr.mxu0 0.0
        %2483 = vmatpush1.msra.mxu0 0.0
        %2484 = vmatprep.subr.mxu0 0.0
        %2485 = vmatpush1.msra.mxu0 0.0
        %2486 = vmatprep.subr.mxu0 0.0
        %2487 = vmatpush1.msra.mxu0 0.0
        %2488 = vmatprep.subr.mxu0 0.0
        %2489 = vmatpush1.msra.mxu0 0.0
        %2490 = vmatprep.subr.mxu0 0.0
        %2491 = vmatpush1.msra.mxu0 0.0
        %2492 = vmatprep.subr.mxu0 0.0
        %2493 = vmatpush1.msra.mxu0 0.0
        %2494 = vmatprep.subr.mxu0 0.0
        %2495 = vmatpush1.msra.mxu0 0.0
        %2496 = vmatprep.subr.mxu0 0.0
        %2497 = vmatpush1.msra.mxu0 0.0
        %2498 = vmatprep.subr.mxu0 0.0
        %2499 = vmatpush1.msra.mxu0 0.0
        %2500 = vmatprep.subr.mxu0 0.0
        %2501 = vmatpush1.msra.mxu0 0.0
        %2502 = vmatprep.subr.mxu0 0.0
        %2503 = vmatpush1.msra.mxu0 0.0
        %2504 = vmatprep.subr.mxu0 0.0
        %2505 = vmatpush1.msra.mxu0 0.0
        %2506 = vmatprep.mubr.f32.mxu0 0.0
        %2507 = vmatmul.mubr.f32.gmra.mrb[0].mxu0 %v2409
        %v2508 = vpop.f32.mrb[0].mxu0
        %v2509 = vadd.f32 0.0, %v2508
        %v2510 = vpop.f32.mrb[0].mxu0
        %v2511 = vadd.f32 0.0, %v2510
        %2512 = vdwg.mxu0
        %2513 = vmatprep.subr.mxu0 0.0
        %2514 = vmatpush1.msra.mxu0 %v302
        %2515 = vmatprep.subr.mxu0 0.0
        %2516 = vmatpush1.msra.mxu0 %v305
        %2517 = vmatprep.subr.mxu0 0.0
        %2518 = vmatpush1.msra.mxu0 %v308
        %2519 = vmatprep.subr.mxu0 0.0
        %2520 = vmatpush1.msra.mxu0 %v311
        %2521 = vmatprep.subr.mxu0 0.0
        %2522 = vmatpush1.msra.mxu0 %v314
        %2523 = vmatprep.subr.mxu0 0.0
        %2524 = vmatpush1.msra.mxu0 %v317
        %2525 = vmatprep.subr.mxu0 0.0
        %2526 = vmatpush1.msra.mxu0 %v320
        %2527 = vmatprep.subr.mxu0 0.0
        %2528 = vmatpush1.msra.mxu0 %v323
        %2529 = vmatprep.subr.mxu0 0.0
        %2530 = vmatpush1.msra.mxu0 %v326
        %2531 = vmatprep.subr.mxu0 0.0
        %2532 = vmatpush1.msra.mxu0 %v329
        %2533 = vmatprep.subr.mxu0 0.0
        %2534 = vmatpush1.msra.mxu0 %v332
        %2535 = vmatprep.subr.mxu0 0.0
        %2536 = vmatpush1.msra.mxu0 %v335
        %2537 = vmatprep.subr.mxu0 0.0
        %2538 = vmatpush1.msra.mxu0 %v338
        %2539 = vmatprep.subr.mxu0 0.0
        %2540 = vmatpush1.msra.mxu0 %v341
        %2541 = vmatprep.subr.mxu0 0.0
        %2542 = vmatpush1.msra.mxu0 %v344
        %2543 = vmatprep.subr.mxu0 0.0
        %2544 = vmatpush1.msra.mxu0 %v347
        %2545 = vmatprep.subr.mxu0 0.0
        %2546 = vmatpush1.msra.mxu0 0.0
        %2547 = vmatprep.subr.mxu0 0.0
        %2548 = vmatpush1.msra.mxu0 0.0
        %2549 = vmatprep.subr.mxu0 0.0
        %2550 = vmatpush1.msra.mxu0 0.0
        %2551 = vmatprep.subr.mxu0 0.0
        %2552 = vmatpush1.msra.mxu0 0.0
        %2553 = vmatprep.subr.mxu0 0.0
        %2554 = vmatpush1.msra.mxu0 0.0
        %2555 = vmatprep.subr.mxu0 0.0
        %2556 = vmatpush1.msra.mxu0 0.0
        %2557 = vmatprep.subr.mxu0 0.0
        %2558 = vmatpush1.msra.mxu0 0.0
        %2559 = vmatprep.subr.mxu0 0.0
        %2560 = vmatpush1.msra.mxu0 0.0
        %2561 = vmatprep.subr.mxu0 0.0
        %2562 = vmatpush1.msra.mxu0 0.0
        %2563 = vmatprep.subr.mxu0 0.0
        %2564 = vmatpush1.msra.mxu0 0.0
        %2565 = vmatprep.subr.mxu0 0.0
        %2566 = vmatpush1.msra.mxu0 0.0
        %2567 = vmatprep.subr.mxu0 0.0
        %2568 = vmatpush1.msra.mxu0 0.0
        %2569 = vmatprep.subr.mxu0 0.0
        %2570 = vmatpush1.msra.mxu0 0.0
        %2571 = vmatprep.subr.mxu0 0.0
        %2572 = vmatpush1.msra.mxu0 0.0
        %2573 = vmatprep.subr.mxu0 0.0
        %2574 = vmatpush1.msra.mxu0 0.0
        %2575 = vmatprep.subr.mxu0 0.0
        %2576 = vmatpush1.msra.mxu0 0.0
        %2577 = vmatprep.mubr.f32.mxu0 0.0
        %2578 = vmatmul.mubr.f32.gmra.mrb[0].mxu0 %v2409
        %v2579 = vpop.f32.mrb[0].mxu0
        %v2580 = vadd.f32 0.0, %v2579
        %v2581 = vpop.f32.mrb[0].mxu0
        %2582 = vdwg.mxu0
        %2583 = vmatprep.subr.mxu0 %v350
        %2584 = vmatpush1.msra.mxu0 %v349
        %2585 = vmatprep.subr.mxu0 %v353
        %2586 = vmatpush1.msra.mxu0 %v352
        %2587 = vmatprep.subr.mxu0 %v356
        %2588 = vmatpush1.msra.mxu0 %v355
        %2589 = vmatprep.subr.mxu0 %v359
        %2590 = vmatpush1.msra.mxu0 %v358
        %2591 = vmatprep.subr.mxu0 %v362
        %2592 = vmatpush1.msra.mxu0 %v361
        %2593 = vmatprep.subr.mxu0 %v365
        %2594 = vmatpush1.msra.mxu0 %v364
        %2595 = vmatprep.subr.mxu0 %v368
        %2596 = vmatpush1.msra.mxu0 %v367
        %2597 = vmatprep.subr.mxu0 %v371
        %2598 = vmatpush1.msra.mxu0 %v370
        %2599 = vmatprep.subr.mxu0 %v374
        %2600 = vmatpush1.msra.mxu0 %v373
        %2601 = vmatprep.subr.mxu0 %v377
        %2602 = vmatpush1.msra.mxu0 %v376
        %2603 = vmatprep.subr.mxu0 %v380
        %2604 = vmatpush1.msra.mxu0 %v379
        %2605 = vmatprep.subr.mxu0 %v383
        %2606 = vmatpush1.msra.mxu0 %v382
        %2607 = vmatprep.subr.mxu0 %v386
        %2608 = vmatpush1.msra.mxu0 %v385
        %2609 = vmatprep.subr.mxu0 %v389
        %2610 = vmatpush1.msra.mxu0 %v388
        %2611 = vmatprep.subr.mxu0 %v392
        %2612 = vmatpush1.msra.mxu0 %v391
        %2613 = vmatprep.subr.mxu0 %v395
        %2614 = vmatpush1.msra.mxu0 %v394
        %2615 = vmatprep.subr.mxu0 0.0
        %2616 = vmatpush1.msra.mxu0 0.0
        %2617 = vmatprep.subr.mxu0 0.0
        %2618 = vmatpush1.msra.mxu0 0.0
        %2619 = vmatprep.subr.mxu0 0.0
        %2620 = vmatpush1.msra.mxu0 0.0
        %2621 = vmatprep.subr.mxu0 0.0
        %2622 = vmatpush1.msra.mxu0 0.0
        %2623 = vmatprep.subr.mxu0 0.0
        %2624 = vmatpush1.msra.mxu0 0.0
        %2625 = vmatprep.subr.mxu0 0.0
        %2626 = vmatpush1.msra.mxu0 0.0
        %2627 = vmatprep.subr.mxu0 0.0
        %2628 = vmatpush1.msra.mxu0 0.0
        %2629 = vmatprep.subr.mxu0 0.0
        %2630 = vmatpush1.msra.mxu0 0.0
        %2631 = vmatprep.subr.mxu0 0.0
        %2632 = vmatpush1.msra.mxu0 0.0
        %2633 = vmatprep.subr.mxu0 0.0
        %2634 = vmatpush1.msra.mxu0 0.0
        %2635 = vmatprep.subr.mxu0 0.0
        %2636 = vmatpush1.msra.mxu0 0.0
        %2637 = vmatprep.subr.mxu0 0.0
        %2638 = vmatpush1.msra.mxu0 0.0
        %2639 = vmatprep.subr.mxu0 0.0
        %2640 = vmatpush1.msra.mxu0 0.0
        %2641 = vmatprep.subr.mxu0 0.0
        %2642 = vmatpush1.msra.mxu0 0.0
        %2643 = vmatprep.subr.mxu0 0.0
        %2644 = vmatpush1.msra.mxu0 0.0
        %2645 = vmatprep.subr.mxu0 0.0
        %2646 = vmatpush1.msra.mxu0 0.0
        %2647 = vmatprep.mubr.f32.mxu0 0.0
        %2648 = vmatmul.mubr.f32.gmra.mrb[0].mxu0 %v2435
        %v2649 = vpop.f32.mrb[0].mxu0
        %v2650 = vadd.f32 0.0, %v2649
        %v2651 = vpop.f32.mrb[0].mxu0
        %v2652 = vadd.f32 0.0, %v2651
        %2653 = vdwg.mxu0
        %2654 = vmatprep.subr.mxu0 0.0
        %2655 = vmatpush1.msra.mxu0 %v351
        %2656 = vmatprep.subr.mxu0 0.0
        %2657 = vmatpush1.msra.mxu0 %v354
        %2658 = vmatprep.subr.mxu0 0.0
        %2659 = vmatpush1.msra.mxu0 %v357
        %2660 = vmatprep.subr.mxu0 0.0
        %2661 = vmatpush1.msra.mxu0 %v360
        %2662 = vmatprep.subr.mxu0 0.0
        %2663 = vmatpush1.msra.mxu0 %v363
        %2664 = vmatprep.subr.mxu0 0.0
        %2665 = vmatpush1.msra.mxu0 %v366
        %2666 = vmatprep.subr.mxu0 0.0
        %2667 = vmatpush1.msra.mxu0 %v369
        %2668 = vmatprep.subr.mxu0 0.0
        %2669 = vmatpush1.msra.mxu0 %v372
        %2670 = vmatprep.subr.mxu0 0.0
        %2671 = vmatpush1.msra.mxu0 %v375
        %2672 = vmatprep.subr.mxu0 0.0
        %2673 = vmatpush1.msra.mxu0 %v378
        %2674 = vmatprep.subr.mxu0 0.0
        %2675 = vmatpush1.msra.mxu0 %v381
        %2676 = vmatprep.subr.mxu0 0.0
        %2677 = vmatpush1.msra.mxu0 %v384
        %2678 = vmatprep.subr.mxu0 0.0
        %2679 = vmatpush1.msra.mxu0 %v387
        %2680 = vmatprep.subr.mxu0 0.0
        %2681 = vmatpush1.msra.mxu0 %v390
        %2682 = vmatprep.subr.mxu0 0.0
        %2683 = vmatpush1.msra.mxu0 %v393
        %2684 = vmatprep.subr.mxu0 0.0
        %2685 = vmatpush1.msra.mxu0 %v396
        %2686 = vmatprep.subr.mxu0 0.0
        %2687 = vmatpush1.msra.mxu0 0.0
        %2688 = vmatprep.subr.mxu0 0.0
        %2689 = vmatpush1.msra.mxu0 0.0
        %2690 = vmatprep.subr.mxu0 0.0
        %2691 = vmatpush1.msra.mxu0 0.0
        %2692 = vmatprep.subr.mxu0 0.0
        %2693 = vmatpush1.msra.mxu0 0.0
        %2694 = vmatprep.subr.mxu0 0.0
        %2695 = vmatpush1.msra.mxu0 0.0
        %2696 = vmatprep.subr.mxu0 0.0
        %2697 = vmatpush1.msra.mxu0 0.0
        %2698 = vmatprep.subr.mxu0 0.0
        %2699 = vmatpush1.msra.mxu0 0.0
        %2700 = vmatprep.subr.mxu0 0.0
        %2701 = vmatpush1.msra.mxu0 0.0
        %2702 = vmatprep.subr.mxu0 0.0
        %2703 = vmatpush1.msra.mxu0 0.0
        %2704 = vmatprep.subr.mxu0 0.0
        %2705 = vmatpush1.msra.mxu0 0.0
        %2706 = vmatprep.subr.mxu0 0.0
        %2707 = vmatpush1.msra.mxu0 0.0
        %2708 = vmatprep.subr.mxu0 0.0
        %2709 = vmatpush1.msra.mxu0 0.0
        %2710 = vmatprep.subr.mxu0 0.0
        %2711 = vmatpush1.msra.mxu0 0.0
        %2712 = vmatprep.subr.mxu0 0.0
        %2713 = vmatpush1.msra.mxu0 0.0
        %2714 = vmatprep.subr.mxu0 0.0
        %2715 = vmatpush1.msra.mxu0 0.0
        %2716 = vmatprep.subr.mxu0 0.0
        %2717 = vmatpush1.msra.mxu0 0.0
        %2718 = vmatprep.mubr.f32.mxu0 0.0
        %2719 = vmatmul.mubr.f32.gmra.mrb[0].mxu0 %v2435
        %v2720 = vpop.f32.mrb[0].mxu0
        %v2721 = vadd.f32 0.0, %v2720
        %v2722 = vpop.f32.mrb[0].mxu0
        %2723 = vdwg.mxu0
        %v2724 = vadd.f32 %v2439, %v2509
        %v2725 = vxor.u32 %v2724, 2147483648
        %v2726 = vmul.f32 %v2725, 1.442695
        %v2727 = vpow.pop %v2726
        %v2728 = vadd.f32 %v2727, 1.0
        %v2729 = vrcp.pop %v2728
        %v2730 = vmul.f32 1.0, %v2729
        %v2732 = vrot.slane %v2439, 1
        %v2734 = vadd.f32 %v2732, %v2511
        %v2735 = vxor.u32 %v2734, 2147483648
        %v2736 = vmul.f32 %v2735, 1.442695
        %v2737 = vpow.pop %v2736
        %v2738 = vadd.f32 %v2737, 1.0
        %v2739 = vrcp.pop %v2738
        %v2740 = vmul.f32 1.0, %v2739
        %v2741 = vmul.f32 %v2730, %v2580
        %v2742 = vrot.slane %v2439, 2
        %v2744 = vadd.f32 %v2742, %v2741
        %v2745 = vtanh.pop %v2744
        %v2746 = vsub.f32 1.0, %v2740
        %v2747 = vmul.f32 %v2746, %v2745
        %v2748 = vmul.f32 %v2740, %v2409
        %v2749 = vadd.f32 %v2747, %v2748
        %v2750 = vadd.f32 %v2441, %v2650
        %v2751 = vxor.u32 %v2750, 2147483648
        %v2752 = vmul.f32 %v2751, 1.442695
        %v2753 = vpow.pop %v2752
        %v2754 = vadd.f32 %v2753, 1.0
        %v2755 = vrcp.pop %v2754
        %v2756 = vmul.f32 1.0, %v2755
        %v2758 = vrot.slane %v2441, 1
        %v2760 = vadd.f32 %v2758, %v2652
        %v2761 = vxor.u32 %v2760, 2147483648
        %v2762 = vmul.f32 %v2761, 1.442695
        %v2763 = vpow.pop %v2762
        %v2764 = vadd.f32 %v2763, 1.0
        %v2765 = vrcp.pop %v2764
        %v2766 = vmul.f32 1.0, %v2765
        %v2767 = vmul.f32 %v2756, %v2721
        %v2768 = vrot.slane %v2441, 2
        %v2770 = vadd.f32 %v2768, %v2767
        %v2771 = vtanh.pop %v2770
        %v2772 = vsub.f32 1.0, %v2766
        %v2773 = vmul.f32 %v2772, %v2771
        %v2774 = vmul.f32 %v2766, %v2435
        %v2775 = vadd.f32 %v2773, %v2774
        %2776 = vst [vmem:[%s264 + $0x6] sm:$0x1] %v2749
        %2777 = vst [vmem:[%s271 + $0x9] sm:$0x1] %v2775
        %s2778 = scalar_lea.vmem %s230, 7 [#allocation6]
        %v2779 = vld [vmem:[%s2778] ss:$8 sm:$0x7]
        %s2780 = scalar_lea.vmem %s239, 24 [#allocation9]
        %v2781 = vld [vmem:[%s2780] ss:$8 sm:$0x7]
        %2782 = vmatprep.subr.mxu0 %v301
        %2783 = vmatpush1.msra.mxu0 %v300
        %2784 = vmatprep.subr.mxu0 %v304
        %2785 = vmatpush1.msra.mxu0 %v303
        %2786 = vmatprep.subr.mxu0 %v307
        %2787 = vmatpush1.msra.mxu0 %v306
        %2788 = vmatprep.subr.mxu0 %v310
        %2789 = vmatpush1.msra.mxu0 %v309
        %2790 = vmatprep.subr.mxu0 %v313
        %2791 = vmatpush1.msra.mxu0 %v312
        %2792 = vmatprep.subr.mxu0 %v316
        %2793 = vmatpush1.msra.mxu0 %v315
        %2794 = vmatprep.subr.mxu0 %v319
        %2795 = vmatpush1.msra.mxu0 %v318
        %2796 = vmatprep.subr.mxu0 %v322
        %2797 = vmatpush1.msra.mxu0 %v321
        %2798 = vmatprep.subr.mxu0 %v325
        %2799 = vmatpush1.msra.mxu0 %v324
        %2800 = vmatprep.subr.mxu0 %v328
        %2801 = vmatpush1.msra.mxu0 %v327
        %2802 = vmatprep.subr.mxu0 %v331
        %2803 = vmatpush1.msra.mxu0 %v330
        %2804 = vmatprep.subr.mxu0 %v334
        %2805 = vmatpush1.msra.mxu0 %v333
        %2806 = vmatprep.subr.mxu0 %v337
        %2807 = vmatpush1.msra.mxu0 %v336
        %2808 = vmatprep.subr.mxu0 %v340
        %2809 = vmatpush1.msra.mxu0 %v339
        %2810 = vmatprep.subr.mxu0 %v343
        %2811 = vmatpush1.msra.mxu0 %v342
        %2812 = vmatprep.subr.mxu0 %v346
        %2813 = vmatpush1.msra.mxu0 %v345
        %2814 = vmatprep.subr.mxu0 0.0
        %2815 = vmatpush1.msra.mxu0 0.0
        %2816 = vmatprep.subr.mxu0 0.0
        %2817 = vmatpush1.msra.mxu0 0.0
        %2818 = vmatprep.subr.mxu0 0.0
        %2819 = vmatpush1.msra.mxu0 0.0
        %2820 = vmatprep.subr.mxu0 0.0
        %2821 = vmatpush1.msra.mxu0 0.0
        %2822 = vmatprep.subr.mxu0 0.0
        %2823 = vmatpush1.msra.mxu0 0.0
        %2824 = vmatprep.subr.mxu0 0.0
        %2825 = vmatpush1.msra.mxu0 0.0
        %2826 = vmatprep.subr.mxu0 0.0
        %2827 = vmatpush1.msra.mxu0 0.0
        %2828 = vmatprep.subr.mxu0 0.0
        %2829 = vmatpush1.msra.mxu0 0.0
        %2830 = vmatprep.subr.mxu0 0.0
        %2831 = vmatpush1.msra.mxu0 0.0
        %2832 = vmatprep.subr.mxu0 0.0
        %2833 = vmatpush1.msra.mxu0 0.0
        %2834 = vmatprep.subr.mxu0 0.0
        %2835 = vmatpush1.msra.mxu0 0.0
        %2836 = vmatprep.subr.mxu0 0.0
        %2837 = vmatpush1.msra.mxu0 0.0
        %2838 = vmatprep.subr.mxu0 0.0
        %2839 = vmatpush1.msra.mxu0 0.0
        %2840 = vmatprep.subr.mxu0 0.0
        %2841 = vmatpush1.msra.mxu0 0.0
        %2842 = vmatprep.subr.mxu0 0.0
        %2843 = vmatpush1.msra.mxu0 0.0
        %2844 = vmatprep.subr.mxu0 0.0
        %2845 = vmatpush1.msra.mxu0 0.0
        %2846 = vmatprep.mubr.f32.mxu0 0.0
        %2847 = vmatmul.mubr.f32.gmra.mrb[0].mxu0 %v2749
        %v2848 = vpop.f32.mrb[0].mxu0
        %v2849 = vadd.f32 0.0, %v2848
        %v2850 = vpop.f32.mrb[0].mxu0
        %v2851 = vadd.f32 0.0, %v2850
        %2852 = vdwg.mxu0
        %2853 = vmatprep.subr.mxu0 0.0
        %2854 = vmatpush1.msra.mxu0 %v302
        %2855 = vmatprep.subr.mxu0 0.0
        %2856 = vmatpush1.msra.mxu0 %v305
        %2857 = vmatprep.subr.mxu0 0.0
        %2858 = vmatpush1.msra.mxu0 %v308
        %2859 = vmatprep.subr.mxu0 0.0
        %2860 = vmatpush1.msra.mxu0 %v311
        %2861 = vmatprep.subr.mxu0 0.0
        %2862 = vmatpush1.msra.mxu0 %v314
        %2863 = vmatprep.subr.mxu0 0.0
        %2864 = vmatpush1.msra.mxu0 %v317
        %2865 = vmatprep.subr.mxu0 0.0
        %2866 = vmatpush1.msra.mxu0 %v320
        %2867 = vmatprep.subr.mxu0 0.0
        %2868 = vmatpush1.msra.mxu0 %v323
        %2869 = vmatprep.subr.mxu0 0.0
        %2870 = vmatpush1.msra.mxu0 %v326
        %2871 = vmatprep.subr.mxu0 0.0
        %2872 = vmatpush1.msra.mxu0 %v329
        %2873 = vmatprep.subr.mxu0 0.0
        %2874 = vmatpush1.msra.mxu0 %v332
        %2875 = vmatprep.subr.mxu0 0.0
        %2876 = vmatpush1.msra.mxu0 %v335
        %2877 = vmatprep.subr.mxu0 0.0
        %2878 = vmatpush1.msra.mxu0 %v338
        %2879 = vmatprep.subr.mxu0 0.0
        %2880 = vmatpush1.msra.mxu0 %v341
        %2881 = vmatprep.subr.mxu0 0.0
        %2882 = vmatpush1.msra.mxu0 %v344
        %2883 = vmatprep.subr.mxu0 0.0
        %2884 = vmatpush1.msra.mxu0 %v347
        %2885 = vmatprep.subr.mxu0 0.0
        %2886 = vmatpush1.msra.mxu0 0.0
        %2887 = vmatprep.subr.mxu0 0.0
        %2888 = vmatpush1.msra.mxu0 0.0
        %2889 = vmatprep.subr.mxu0 0.0
        %2890 = vmatpush1.msra.mxu0 0.0
        %2891 = vmatprep.subr.mxu0 0.0
        %2892 = vmatpush1.msra.mxu0 0.0
        %2893 = vmatprep.subr.mxu0 0.0
        %2894 = vmatpush1.msra.mxu0 0.0
        %2895 = vmatprep.subr.mxu0 0.0
        %2896 = vmatpush1.msra.mxu0 0.0
        %2897 = vmatprep.subr.mxu0 0.0
        %2898 = vmatpush1.msra.mxu0 0.0
        %2899 = vmatprep.subr.mxu0 0.0
        %2900 = vmatpush1.msra.mxu0 0.0
        %2901 = vmatprep.subr.mxu0 0.0
        %2902 = vmatpush1.msra.mxu0 0.0
        %2903 = vmatprep.subr.mxu0 0.0
        %2904 = vmatpush1.msra.mxu0 0.0
        %2905 = vmatprep.subr.mxu0 0.0
        %2906 = vmatpush1.msra.mxu0 0.0
        %2907 = vmatprep.subr.mxu0 0.0
        %2908 = vmatpush1.msra.mxu0 0.0
        %2909 = vmatprep.subr.mxu0 0.0
        %2910 = vmatpush1.msra.mxu0 0.0
        %2911 = vmatprep.subr.mxu0 0.0
        %2912 = vmatpush1.msra.mxu0 0.0
        %2913 = vmatprep.subr.mxu0 0.0
        %2914 = vmatpush1.msra.mxu0 0.0
        %2915 = vmatprep.subr.mxu0 0.0
        %2916 = vmatpush1.msra.mxu0 0.0
        %2917 = vmatprep.mubr.f32.mxu0 0.0
        %2918 = vmatmul.mubr.f32.gmra.mrb[0].mxu0 %v2749
        %v2919 = vpop.f32.mrb[0].mxu0
        %v2920 = vadd.f32 0.0, %v2919
        %v2921 = vpop.f32.mrb[0].mxu0
        %2922 = vdwg.mxu0
        %2923 = vmatprep.subr.mxu0 %v350
        %2924 = vmatpush1.msra.mxu0 %v349
        %2925 = vmatprep.subr.mxu0 %v353
        %2926 = vmatpush1.msra.mxu0 %v352
        %2927 = vmatprep.subr.mxu0 %v356
        %2928 = vmatpush1.msra.mxu0 %v355
        %2929 = vmatprep.subr.mxu0 %v359
        %2930 = vmatpush1.msra.mxu0 %v358
        %2931 = vmatprep.subr.mxu0 %v362
        %2932 = vmatpush1.msra.mxu0 %v361
        %2933 = vmatprep.subr.mxu0 %v365
        %2934 = vmatpush1.msra.mxu0 %v364
        %2935 = vmatprep.subr.mxu0 %v368
        %2936 = vmatpush1.msra.mxu0 %v367
        %2937 = vmatprep.subr.mxu0 %v371
        %2938 = vmatpush1.msra.mxu0 %v370
        %2939 = vmatprep.subr.mxu0 %v374
        %2940 = vmatpush1.msra.mxu0 %v373
        %2941 = vmatprep.subr.mxu0 %v377
        %2942 = vmatpush1.msra.mxu0 %v376
        %2943 = vmatprep.subr.mxu0 %v380
        %2944 = vmatpush1.msra.mxu0 %v379
        %2945 = vmatprep.subr.mxu0 %v383
        %2946 = vmatpush1.msra.mxu0 %v382
        %2947 = vmatprep.subr.mxu0 %v386
        %2948 = vmatpush1.msra.mxu0 %v385
        %2949 = vmatprep.subr.mxu0 %v389
        %2950 = vmatpush1.msra.mxu0 %v388
        %2951 = vmatprep.subr.mxu0 %v392
        %2952 = vmatpush1.msra.mxu0 %v391
        %2953 = vmatprep.subr.mxu0 %v395
        %2954 = vmatpush1.msra.mxu0 %v394
        %2955 = vmatprep.subr.mxu0 0.0
        %2956 = vmatpush1.msra.mxu0 0.0
        %2957 = vmatprep.subr.mxu0 0.0
        %2958 = vmatpush1.msra.mxu0 0.0
        %2959 = vmatprep.subr.mxu0 0.0
        %2960 = vmatpush1.msra.mxu0 0.0
        %2961 = vmatprep.subr.mxu0 0.0
        %2962 = vmatpush1.msra.mxu0 0.0
        %2963 = vmatprep.subr.mxu0 0.0
        %2964 = vmatpush1.msra.mxu0 0.0
        %2965 = vmatprep.subr.mxu0 0.0
        %2966 = vmatpush1.msra.mxu0 0.0
        %2967 = vmatprep.subr.mxu0 0.0
        %2968 = vmatpush1.msra.mxu0 0.0
        %2969 = vmatprep.subr.mxu0 0.0
        %2970 = vmatpush1.msra.mxu0 0.0
        %2971 = vmatprep.subr.mxu0 0.0
        %2972 = vmatpush1.msra.mxu0 0.0
        %2973 = vmatprep.subr.mxu0 0.0
        %2974 = vmatpush1.msra.mxu0 0.0
        %2975 = vmatprep.subr.mxu0 0.0
        %2976 = vmatpush1.msra.mxu0 0.0
        %2977 = vmatprep.subr.mxu0 0.0
        %2978 = vmatpush1.msra.mxu0 0.0
        %2979 = vmatprep.subr.mxu0 0.0
        %2980 = vmatpush1.msra.mxu0 0.0
        %2981 = vmatprep.subr.mxu0 0.0
        %2982 = vmatpush1.msra.mxu0 0.0
        %2983 = vmatprep.subr.mxu0 0.0
        %2984 = vmatpush1.msra.mxu0 0.0
        %2985 = vmatprep.subr.mxu0 0.0
        %2986 = vmatpush1.msra.mxu0 0.0
        %2987 = vmatprep.mubr.f32.mxu0 0.0
        %2988 = vmatmul.mubr.f32.gmra.mrb[0].mxu0 %v2775
        %v2989 = vpop.f32.mrb[0].mxu0
        %v2990 = vadd.f32 0.0, %v2989
        %v2991 = vpop.f32.mrb[0].mxu0
        %v2992 = vadd.f32 0.0, %v2991
        %2993 = vdwg.mxu0
        %2994 = vmatprep.subr.mxu0 0.0
        %2995 = vmatpush1.msra.mxu0 %v351
        %2996 = vmatprep.subr.mxu0 0.0
        %2997 = vmatpush1.msra.mxu0 %v354
        %2998 = vmatprep.subr.mxu0 0.0
        %2999 = vmatpush1.msra.mxu0 %v357
        %3000 = vmatprep.subr.mxu0 0.0
        %3001 = vmatpush1.msra.mxu0 %v360
        %3002 = vmatprep.subr.mxu0 0.0
        %3003 = vmatpush1.msra.mxu0 %v363
        %3004 = vmatprep.subr.mxu0 0.0
        %3005 = vmatpush1.msra.mxu0 %v366
        %3006 = vmatprep.subr.mxu0 0.0
        %3007 = vmatpush1.msra.mxu0 %v369
        %3008 = vmatprep.subr.mxu0 0.0
        %3009 = vmatpush1.msra.mxu0 %v372
        %3010 = vmatprep.subr.mxu0 0.0
        %3011 = vmatpush1.msra.mxu0 %v375
        %3012 = vmatprep.subr.mxu0 0.0
        %3013 = vmatpush1.msra.mxu0 %v378
        %3014 = vmatprep.subr.mxu0 0.0
        %3015 = vmatpush1.msra.mxu0 %v381
        %3016 = vmatprep.subr.mxu0 0.0
        %3017 = vmatpush1.msra.mxu0 %v384
        %3018 = vmatprep.subr.mxu0 0.0
        %3019 = vmatpush1.msra.mxu0 %v387
        %3020 = vmatprep.subr.mxu0 0.0
        %3021 = vmatpush1.msra.mxu0 %v390
        %3022 = vmatprep.subr.mxu0 0.0
        %3023 = vmatpush1.msra.mxu0 %v393
        %3024 = vmatprep.subr.mxu0 0.0
        %3025 = vmatpush1.msra.mxu0 %v396
        %3026 = vmatprep.subr.mxu0 0.0
        %3027 = vmatpush1.msra.mxu0 0.0
        %3028 = vmatprep.subr.mxu0 0.0
        %3029 = vmatpush1.msra.mxu0 0.0
        %3030 = vmatprep.subr.mxu0 0.0
        %3031 = vmatpush1.msra.mxu0 0.0
        %3032 = vmatprep.subr.mxu0 0.0
        %3033 = vmatpush1.msra.mxu0 0.0
        %3034 = vmatprep.subr.mxu0 0.0
        %3035 = vmatpush1.msra.mxu0 0.0
        %3036 = vmatprep.subr.mxu0 0.0
        %3037 = vmatpush1.msra.mxu0 0.0
        %3038 = vmatprep.subr.mxu0 0.0
        %3039 = vmatpush1.msra.mxu0 0.0
        %3040 = vmatprep.subr.mxu0 0.0
        %3041 = vmatpush1.msra.mxu0 0.0
        %3042 = vmatprep.subr.mxu0 0.0
        %3043 = vmatpush1.msra.mxu0 0.0
        %3044 = vmatprep.subr.mxu0 0.0
        %3045 = vmatpush1.msra.mxu0 0.0
        %3046 = vmatprep.subr.mxu0 0.0
        %3047 = vmatpush1.msra.mxu0 0.0
        %3048 = vmatprep.subr.mxu0 0.0
        %3049 = vmatpush1.msra.mxu0 0.0
        %3050 = vmatprep.subr.mxu0 0.0
        %3051 = vmatpush1.msra.mxu0 0.0
        %3052 = vmatprep.subr.mxu0 0.0
        %3053 = vmatpush1.msra.mxu0 0.0
        %3054 = vmatprep.subr.mxu0 0.0
        %3055 = vmatpush1.msra.mxu0 0.0
        %3056 = vmatprep.subr.mxu0 0.0
        %3057 = vmatpush1.msra.mxu0 0.0
        %3058 = vmatprep.mubr.f32.mxu0 0.0
        %3059 = vmatmul.mubr.f32.gmra.mrb[0].mxu0 %v2775
        %v3060 = vpop.f32.mrb[0].mxu0
        %v3061 = vadd.f32 0.0, %v3060
        %v3062 = vpop.f32.mrb[0].mxu0
        %3063 = vdwg.mxu0
        %v3064 = vadd.f32 %v2779, %v2849
        %v3065 = vxor.u32 %v3064, 2147483648
        %v3066 = vmul.f32 %v3065, 1.442695
        %v3067 = vpow.pop %v3066
        %v3068 = vadd.f32 %v3067, 1.0
        %v3069 = vrcp.pop %v3068
        %v3070 = vmul.f32 1.0, %v3069
        %v3072 = vrot.slane %v2779, 1
        %v3074 = vadd.f32 %v3072, %v2851
        %v3075 = vxor.u32 %v3074, 2147483648
        %v3076 = vmul.f32 %v3075, 1.442695
        %v3077 = vpow.pop %v3076
        %v3078 = vadd.f32 %v3077, 1.0
        %v3079 = vrcp.pop %v3078
        %v3080 = vmul.f32 1.0, %v3079
        %v3081 = vmul.f32 %v3070, %v2920
        %v3082 = vrot.slane %v2779, 2
        %v3084 = vadd.f32 %v3082, %v3081
        %v3085 = vtanh.pop %v3084
        %v3086 = vsub.f32 1.0, %v3080
        %v3087 = vmul.f32 %v3086, %v3085
        %v3088 = vmul.f32 %v3080, %v2749
        %v3089 = vadd.f32 %v3087, %v3088
        %v3090 = vadd.f32 %v2781, %v2990
        %v3091 = vxor.u32 %v3090, 2147483648
        %v3092 = vmul.f32 %v3091, 1.442695
        %v3093 = vpow.pop %v3092
        %v3094 = vadd.f32 %v3093, 1.0
        %v3095 = vrcp.pop %v3094
        %v3096 = vmul.f32 1.0, %v3095
        %v3098 = vrot.slane %v2781, 1
        %v3100 = vadd.f32 %v3098, %v2992
        %v3101 = vxor.u32 %v3100, 2147483648
        %v3102 = vmul.f32 %v3101, 1.442695
        %v3103 = vpow.pop %v3102
        %v3104 = vadd.f32 %v3103, 1.0
        %v3105 = vrcp.pop %v3104
        %v3106 = vmul.f32 1.0, %v3105
        %v3107 = vmul.f32 %v3096, %v3061
        %v3108 = vrot.slane %v2781, 2
        %v3110 = vadd.f32 %v3108, %v3107
        %v3111 = vtanh.pop %v3110
        %v3112 = vsub.f32 1.0, %v3106
        %v3113 = vmul.f32 %v3112, %v3111
        %v3114 = vmul.f32 %v3106, %v2775
        %v3115 = vadd.f32 %v3113, %v3114
        %3116 = vst [vmem:[%s264 + $0x7] sm:$0x1] %v3089
        %3117 = vst [vmem:[%s271 + $0x8] sm:$0x1] %v3115
        %s3118 = scalar_lea.vmem %s230, 24 [#allocation6]
        %v3119 = vld [vmem:[%s3118] ss:$8 sm:$0x7]
        %s3120 = scalar_lea.vmem %s239, 7 [#allocation9]
        %v3121 = vld [vmem:[%s3120] ss:$8 sm:$0x7]
        %3122 = vmatprep.subr.mxu0 %v301
        %3123 = vmatpush1.msra.mxu0 %v300
        %3124 = vmatprep.subr.mxu0 %v304
        %3125 = vmatpush1.msra.mxu0 %v303
        %3126 = vmatprep.subr.mxu0 %v307
        %3127 = vmatpush1.msra.mxu0 %v306
        %3128 = vmatprep.subr.mxu0 %v310
        %3129 = vmatpush1.msra.mxu0 %v309
        %3130 = vmatprep.subr.mxu0 %v313
        %3131 = vmatpush1.msra.mxu0 %v312
        %3132 = vmatprep.subr.mxu0 %v316
        %3133 = vmatpush1.msra.mxu0 %v315
        %3134 = vmatprep.subr.mxu0 %v319
        %3135 = vmatpush1.msra.mxu0 %v318
        %3136 = vmatprep.subr.mxu0 %v322
        %3137 = vmatpush1.msra.mxu0 %v321
        %3138 = vmatprep.subr.mxu0 %v325
        %3139 = vmatpush1.msra.mxu0 %v324
        %3140 = vmatprep.subr.mxu0 %v328
        %3141 = vmatpush1.msra.mxu0 %v327
        %3142 = vmatprep.subr.mxu0 %v331
        %3143 = vmatpush1.msra.mxu0 %v330
        %3144 = vmatprep.subr.mxu0 %v334
        %3145 = vmatpush1.msra.mxu0 %v333
        %3146 = vmatprep.subr.mxu0 %v337
        %3147 = vmatpush1.msra.mxu0 %v336
        %3148 = vmatprep.subr.mxu0 %v340
        %3149 = vmatpush1.msra.mxu0 %v339
        %3150 = vmatprep.subr.mxu0 %v343
        %3151 = vmatpush1.msra.mxu0 %v342
        %3152 = vmatprep.subr.mxu0 %v346
        %3153 = vmatpush1.msra.mxu0 %v345
        %3154 = vmatprep.subr.mxu0 0.0
        %3155 = vmatpush1.msra.mxu0 0.0
        %3156 = vmatprep.subr.mxu0 0.0
        %3157 = vmatpush1.msra.mxu0 0.0
        %3158 = vmatprep.subr.mxu0 0.0
        %3159 = vmatpush1.msra.mxu0 0.0
        %3160 = vmatprep.subr.mxu0 0.0
        %3161 = vmatpush1.msra.mxu0 0.0
        %3162 = vmatprep.subr.mxu0 0.0
        %3163 = vmatpush1.msra.mxu0 0.0
        %3164 = vmatprep.subr.mxu0 0.0
        %3165 = vmatpush1.msra.mxu0 0.0
        %3166 = vmatprep.subr.mxu0 0.0
        %3167 = vmatpush1.msra.mxu0 0.0
        %3168 = vmatprep.subr.mxu0 0.0
        %3169 = vmatpush1.msra.mxu0 0.0
        %3170 = vmatprep.subr.mxu0 0.0
        %3171 = vmatpush1.msra.mxu0 0.0
        %3172 = vmatprep.subr.mxu0 0.0
        %3173 = vmatpush1.msra.mxu0 0.0
        %3174 = vmatprep.subr.mxu0 0.0
        %3175 = vmatpush1.msra.mxu0 0.0
        %3176 = vmatprep.subr.mxu0 0.0
        %3177 = vmatpush1.msra.mxu0 0.0
        %3178 = vmatprep.subr.mxu0 0.0
        %3179 = vmatpush1.msra.mxu0 0.0
        %3180 = vmatprep.subr.mxu0 0.0
        %3181 = vmatpush1.msra.mxu0 0.0
        %3182 = vmatprep.subr.mxu0 0.0
        %3183 = vmatpush1.msra.mxu0 0.0
        %3184 = vmatprep.subr.mxu0 0.0
        %3185 = vmatpush1.msra.mxu0 0.0
        %3186 = vmatprep.mubr.f32.mxu0 0.0
        %3187 = vmatmul.mubr.f32.gmra.mrb[0].mxu0 %v3089
        %v3188 = vpop.f32.mrb[0].mxu0
        %v3189 = vadd.f32 0.0, %v3188
        %v3190 = vpop.f32.mrb[0].mxu0
        %v3191 = vadd.f32 0.0, %v3190
        %3192 = vdwg.mxu0
        %3193 = vmatprep.subr.mxu0 0.0
        %3194 = vmatpush1.msra.mxu0 %v302
        %3195 = vmatprep.subr.mxu0 0.0
        %3196 = vmatpush1.msra.mxu0 %v305
        %3197 = vmatprep.subr.mxu0 0.0
        %3198 = vmatpush1.msra.mxu0 %v308
        %3199 = vmatprep.subr.mxu0 0.0
        %3200 = vmatpush1.msra.mxu0 %v311
        %3201 = vmatprep.subr.mxu0 0.0
        %3202 = vmatpush1.msra.mxu0 %v314
        %3203 = vmatprep.subr.mxu0 0.0
        %3204 = vmatpush1.msra.mxu0 %v317
        %3205 = vmatprep.subr.mxu0 0.0
        %3206 = vmatpush1.msra.mxu0 %v320
        %3207 = vmatprep.subr.mxu0 0.0
        %3208 = vmatpush1.msra.mxu0 %v323
        %3209 = vmatprep.subr.mxu0 0.0
        %3210 = vmatpush1.msra.mxu0 %v326
        %3211 = vmatprep.subr.mxu0 0.0
        %3212 = vmatpush1.msra.mxu0 %v329
        %3213 = vmatprep.subr.mxu0 0.0
        %3214 = vmatpush1.msra.mxu0 %v332
        %3215 = vmatprep.subr.mxu0 0.0
        %3216 = vmatpush1.msra.mxu0 %v335
        %3217 = vmatprep.subr.mxu0 0.0
        %3218 = vmatpush1.msra.mxu0 %v338
        %3219 = vmatprep.subr.mxu0 0.0
        %3220 = vmatpush1.msra.mxu0 %v341
        %3221 = vmatprep.subr.mxu0 0.0
        %3222 = vmatpush1.msra.mxu0 %v344
        %3223 = vmatprep.subr.mxu0 0.0
        %3224 = vmatpush1.msra.mxu0 %v347
        %3225 = vmatprep.subr.mxu0 0.0
        %3226 = vmatpush1.msra.mxu0 0.0
        %3227 = vmatprep.subr.mxu0 0.0
        %3228 = vmatpush1.msra.mxu0 0.0
        %3229 = vmatprep.subr.mxu0 0.0
        %3230 = vmatpush1.msra.mxu0 0.0
        %3231 = vmatprep.subr.mxu0 0.0
        %3232 = vmatpush1.msra.mxu0 0.0
        %3233 = vmatprep.subr.mxu0 0.0
        %3234 = vmatpush1.msra.mxu0 0.0
        %3235 = vmatprep.subr.mxu0 0.0
        %3236 = vmatpush1.msra.mxu0 0.0
        %3237 = vmatprep.subr.mxu0 0.0
        %3238 = vmatpush1.msra.mxu0 0.0
        %3239 = vmatprep.subr.mxu0 0.0
        %3240 = vmatpush1.msra.mxu0 0.0
        %3241 = vmatprep.subr.mxu0 0.0
        %3242 = vmatpush1.msra.mxu0 0.0
        %3243 = vmatprep.subr.mxu0 0.0
        %3244 = vmatpush1.msra.mxu0 0.0
        %3245 = vmatprep.subr.mxu0 0.0
        %3246 = vmatpush1.msra.mxu0 0.0
        %3247 = vmatprep.subr.mxu0 0.0
        %3248 = vmatpush1.msra.mxu0 0.0
        %3249 = vmatprep.subr.mxu0 0.0
        %3250 = vmatpush1.msra.mxu0 0.0
        %3251 = vmatprep.subr.mxu0 0.0
        %3252 = vmatpush1.msra.mxu0 0.0
        %3253 = vmatprep.subr.mxu0 0.0
        %3254 = vmatpush1.msra.mxu0 0.0
        %3255 = vmatprep.subr.mxu0 0.0
        %3256 = vmatpush1.msra.mxu0 0.0
        %3257 = vmatprep.mubr.f32.mxu0 0.0
        %3258 = vmatmul.mubr.f32.gmra.mrb[0].mxu0 %v3089
        %v3259 = vpop.f32.mrb[0].mxu0
        %v3260 = vadd.f32 0.0, %v3259
        %v3261 = vpop.f32.mrb[0].mxu0
        %3262 = vdwg.mxu0
        %3263 = vmatprep.subr.mxu0 %v350
        %3264 = vmatpush1.msra.mxu0 %v349
        %3265 = vmatprep.subr.mxu0 %v353
        %3266 = vmatpush1.msra.mxu0 %v352
        %3267 = vmatprep.subr.mxu0 %v356
        %3268 = vmatpush1.msra.mxu0 %v355
        %3269 = vmatprep.subr.mxu0 %v359
        %3270 = vmatpush1.msra.mxu0 %v358
        %3271 = vmatprep.subr.mxu0 %v362
        %3272 = vmatpush1.msra.mxu0 %v361
        %3273 = vmatprep.subr.mxu0 %v365
        %3274 = vmatpush1.msra.mxu0 %v364
        %3275 = vmatprep.subr.mxu0 %v368
        %3276 = vmatpush1.msra.mxu0 %v367
        %3277 = vmatprep.subr.mxu0 %v371
        %3278 = vmatpush1.msra.mxu0 %v370
        %3279 = vmatprep.subr.mxu0 %v374
        %3280 = vmatpush1.msra.mxu0 %v373
        %3281 = vmatprep.subr.mxu0 %v377
        %3282 = vmatpush1.msra.mxu0 %v376
        %3283 = vmatprep.subr.mxu0 %v380
        %3284 = vmatpush1.msra.mxu0 %v379
        %3285 = vmatprep.subr.mxu0 %v383
        %3286 = vmatpush1.msra.mxu0 %v382
        %3287 = vmatprep.subr.mxu0 %v386
        %3288 = vmatpush1.msra.mxu0 %v385
        %3289 = vmatprep.subr.mxu0 %v389
        %3290 = vmatpush1.msra.mxu0 %v388
        %3291 = vmatprep.subr.mxu0 %v392
        %3292 = vmatpush1.msra.mxu0 %v391
        %3293 = vmatprep.subr.mxu0 %v395
        %3294 = vmatpush1.msra.mxu0 %v394
        %3295 = vmatprep.subr.mxu0 0.0
        %3296 = vmatpush1.msra.mxu0 0.0
        %3297 = vmatprep.subr.mxu0 0.0
        %3298 = vmatpush1.msra.mxu0 0.0
        %3299 = vmatprep.subr.mxu0 0.0
        %3300 = vmatpush1.msra.mxu0 0.0
        %3301 = vmatprep.subr.mxu0 0.0
        %3302 = vmatpush1.msra.mxu0 0.0
        %3303 = vmatprep.subr.mxu0 0.0
        %3304 = vmatpush1.msra.mxu0 0.0
        %3305 = vmatprep.subr.mxu0 0.0
        %3306 = vmatpush1.msra.mxu0 0.0
        %3307 = vmatprep.subr.mxu0 0.0
        %3308 = vmatpush1.msra.mxu0 0.0
        %3309 = vmatprep.subr.mxu0 0.0
        %3310 = vmatpush1.msra.mxu0 0.0
        %3311 = vmatprep.subr.mxu0 0.0
        %3312 = vmatpush1.msra.mxu0 0.0
        %3313 = vmatprep.subr.mxu0 0.0
        %3314 = vmatpush1.msra.mxu0 0.0
        %3315 = vmatprep.subr.mxu0 0.0
        %3316 = vmatpush1.msra.mxu0 0.0
        %3317 = vmatprep.subr.mxu0 0.0
        %3318 = vmatpush1.msra.mxu0 0.0
        %3319 = vmatprep.subr.mxu0 0.0
        %3320 = vmatpush1.msra.mxu0 0.0
        %3321 = vmatprep.subr.mxu0 0.0
        %3322 = vmatpush1.msra.mxu0 0.0
        %3323 = vmatprep.subr.mxu0 0.0
        %3324 = vmatpush1.msra.mxu0 0.0
        %3325 = vmatprep.subr.mxu0 0.0
        %3326 = vmatpush1.msra.mxu0 0.0
        %3327 = vmatprep.mubr.f32.mxu0 0.0
        %3328 = vmatmul.mubr.f32.gmra.mrb[0].mxu0 %v3115
        %v3329 = vpop.f32.mrb[0].mxu0
        %v3330 = vadd.f32 0.0, %v3329
        %v3331 = vpop.f32.mrb[0].mxu0
        %v3332 = vadd.f32 0.0, %v3331
        %3333 = vdwg.mxu0
        %3334 = vmatprep.subr.mxu0 0.0
        %3335 = vmatpush1.msra.mxu0 %v351
        %3336 = vmatprep.subr.mxu0 0.0
        %3337 = vmatpush1.msra.mxu0 %v354
        %3338 = vmatprep.subr.mxu0 0.0
        %3339 = vmatpush1.msra.mxu0 %v357
        %3340 = vmatprep.subr.mxu0 0.0
        %3341 = vmatpush1.msra.mxu0 %v360
        %3342 = vmatprep.subr.mxu0 0.0
        %3343 = vmatpush1.msra.mxu0 %v363
        %3344 = vmatprep.subr.mxu0 0.0
        %3345 = vmatpush1.msra.mxu0 %v366
        %3346 = vmatprep.subr.mxu0 0.0
        %3347 = vmatpush1.msra.mxu0 %v369
        %3348 = vmatprep.subr.mxu0 0.0
        %3349 = vmatpush1.msra.mxu0 %v372
        %3350 = vmatprep.subr.mxu0 0.0
        %3351 = vmatpush1.msra.mxu0 %v375
        %3352 = vmatprep.subr.mxu0 0.0
        %3353 = vmatpush1.msra.mxu0 %v378
        %3354 = vmatprep.subr.mxu0 0.0
        %3355 = vmatpush1.msra.mxu0 %v381
        %3356 = vmatprep.subr.mxu0 0.0
        %3357 = vmatpush1.msra.mxu0 %v384
        %3358 = vmatprep.subr.mxu0 0.0
        %3359 = vmatpush1.msra.mxu0 %v387
        %3360 = vmatprep.subr.mxu0 0.0
        %3361 = vmatpush1.msra.mxu0 %v390
        %3362 = vmatprep.subr.mxu0 0.0
        %3363 = vmatpush1.msra.mxu0 %v393
        %3364 = vmatprep.subr.mxu0 0.0
        %3365 = vmatpush1.msra.mxu0 %v396
        %3366 = vmatprep.subr.mxu0 0.0
        %3367 = vmatpush1.msra.mxu0 0.0
        %3368 = vmatprep.subr.mxu0 0.0
        %3369 = vmatpush1.msra.mxu0 0.0
        %3370 = vmatprep.subr.mxu0 0.0
        %3371 = vmatpush1.msra.mxu0 0.0
        %3372 = vmatprep.subr.mxu0 0.0
        %3373 = vmatpush1.msra.mxu0 0.0
        %3374 = vmatprep.subr.mxu0 0.0
        %3375 = vmatpush1.msra.mxu0 0.0
        %3376 = vmatprep.subr.mxu0 0.0
        %3377 = vmatpush1.msra.mxu0 0.0
        %3378 = vmatprep.subr.mxu0 0.0
        %3379 = vmatpush1.msra.mxu0 0.0
        %3380 = vmatprep.subr.mxu0 0.0
        %3381 = vmatpush1.msra.mxu0 0.0
        %3382 = vmatprep.subr.mxu0 0.0
        %3383 = vmatpush1.msra.mxu0 0.0
        %3384 = vmatprep.subr.mxu0 0.0
        %3385 = vmatpush1.msra.mxu0 0.0
        %3386 = vmatprep.subr.mxu0 0.0
        %3387 = vmatpush1.msra.mxu0 0.0
        %3388 = vmatprep.subr.mxu0 0.0
        %3389 = vmatpush1.msra.mxu0 0.0
        %3390 = vmatprep.subr.mxu0 0.0
        %3391 = vmatpush1.msra.mxu0 0.0
        %3392 = vmatprep.subr.mxu0 0.0
        %3393 = vmatpush1.msra.mxu0 0.0
        %3394 = vmatprep.subr.mxu0 0.0
        %3395 = vmatpush1.msra.mxu0 0.0
        %3396 = vmatprep.subr.mxu0 0.0
        %3397 = vmatpush1.msra.mxu0 0.0
        %3398 = vmatprep.mubr.f32.mxu0 0.0
        %3399 = vmatmul.mubr.f32.gmra.mrb[0].mxu0 %v3115
        %v3400 = vpop.f32.mrb[0].mxu0
        %v3401 = vadd.f32 0.0, %v3400
        %v3402 = vpop.f32.mrb[0].mxu0
        %3403 = vdwg.mxu0
        %v3404 = vadd.f32 %v3119, %v3189
        %v3405 = vxor.u32 %v3404, 2147483648
        %v3406 = vmul.f32 %v3405, 1.442695
        %v3407 = vpow.pop %v3406
        %v3408 = vadd.f32 %v3407, 1.0
        %v3409 = vrcp.pop %v3408
        %v3410 = vmul.f32 1.0, %v3409
        %v3412 = vrot.slane %v3119, 1
        %v3414 = vadd.f32 %v3412, %v3191
        %v3415 = vxor.u32 %v3414, 2147483648
        %v3416 = vmul.f32 %v3415, 1.442695
        %v3417 = vpow.pop %v3416
        %v3418 = vadd.f32 %v3417, 1.0
        %v3419 = vrcp.pop %v3418
        %v3420 = vmul.f32 1.0, %v3419
        %v3421 = vmul.f32 %v3410, %v3260
        %v3422 = vrot.slane %v3119, 2
        %v3424 = vadd.f32 %v3422, %v3421
        %v3425 = vtanh.pop %v3424
        %v3426 = vsub.f32 1.0, %v3420
        %v3427 = vmul.f32 %v3426, %v3425
        %v3428 = vmul.f32 %v3420, %v3089
        %v3429 = vadd.f32 %v3427, %v3428
        %v3430 = vadd.f32 %v3121, %v3330
        %v3431 = vxor.u32 %v3430, 2147483648
        %v3432 = vmul.f32 %v3431, 1.442695
        %v3433 = vpow.pop %v3432
        %v3434 = vadd.f32 %v3433, 1.0
        %v3435 = vrcp.pop %v3434
        %v3436 = vmul.f32 1.0, %v3435
        %v3438 = vrot.slane %v3121, 1
        %v3440 = vadd.f32 %v3438, %v3332
        %v3441 = vxor.u32 %v3440, 2147483648
        %v3442 = vmul.f32 %v3441, 1.442695
        %v3443 = vpow.pop %v3442
        %v3444 = vadd.f32 %v3443, 1.0
        %v3445 = vrcp.pop %v3444
        %v3446 = vmul.f32 1.0, %v3445
        %v3447 = vmul.f32 %v3436, %v3401
        %v3448 = vrot.slane %v3121, 2
        %v3450 = vadd.f32 %v3448, %v3447
        %v3451 = vtanh.pop %v3450
        %v3452 = vsub.f32 1.0, %v3446
        %v3453 = vmul.f32 %v3452, %v3451
        %v3454 = vmul.f32 %v3446, %v3115
        %v3455 = vadd.f32 %v3453, %v3454
        %3456 = vst [vmem:[%s264 + $0x8] sm:$0x1] %v3429
        %3457 = vst [vmem:[%s271 + $0x7] sm:$0x1] %v3455
        %s3458 = scalar_lea.vmem %s230, 25 [#allocation6]
        %v3459 = vld [vmem:[%s3458] ss:$8 sm:$0x7]
        %s3460 = scalar_lea.vmem %s239, 6 [#allocation9]
        %v3461 = vld [vmem:[%s3460] ss:$8 sm:$0x7]
        %3462 = vmatprep.subr.mxu0 %v301
        %3463 = vmatpush1.msra.mxu0 %v300
        %3464 = vmatprep.subr.mxu0 %v304
        %3465 = vmatpush1.msra.mxu0 %v303
        %3466 = vmatprep.subr.mxu0 %v307
        %3467 = vmatpush1.msra.mxu0 %v306
        %3468 = vmatprep.subr.mxu0 %v310
        %3469 = vmatpush1.msra.mxu0 %v309
        %3470 = vmatprep.subr.mxu0 %v313
        %3471 = vmatpush1.msra.mxu0 %v312
        %3472 = vmatprep.subr.mxu0 %v316
        %3473 = vmatpush1.msra.mxu0 %v315
        %3474 = vmatprep.subr.mxu0 %v319
        %3475 = vmatpush1.msra.mxu0 %v318
        %3476 = vmatprep.subr.mxu0 %v322
        %3477 = vmatpush1.msra.mxu0 %v321
        %3478 = vmatprep.subr.mxu0 %v325
        %3479 = vmatpush1.msra.mxu0 %v324
        %3480 = vmatprep.subr.mxu0 %v328
        %3481 = vmatpush1.msra.mxu0 %v327
        %3482 = vmatprep.subr.mxu0 %v331
        %3483 = vmatpush1.msra.mxu0 %v330
        %3484 = vmatprep.subr.mxu0 %v334
        %3485 = vmatpush1.msra.mxu0 %v333
        %3486 = vmatprep.subr.mxu0 %v337
        %3487 = vmatpush1.msra.mxu0 %v336
        %3488 = vmatprep.subr.mxu0 %v340
        %3489 = vmatpush1.msra.mxu0 %v339
        %3490 = vmatprep.subr.mxu0 %v343
        %3491 = vmatpush1.msra.mxu0 %v342
        %3492 = vmatprep.subr.mxu0 %v346
        %3493 = vmatpush1.msra.mxu0 %v345
        %3494 = vmatprep.subr.mxu0 0.0
        %3495 = vmatpush1.msra.mxu0 0.0
        %3496 = vmatprep.subr.mxu0 0.0
        %3497 = vmatpush1.msra.mxu0 0.0
        %3498 = vmatprep.subr.mxu0 0.0
        %3499 = vmatpush1.msra.mxu0 0.0
        %3500 = vmatprep.subr.mxu0 0.0
        %3501 = vmatpush1.msra.mxu0 0.0
        %3502 = vmatprep.subr.mxu0 0.0
        %3503 = vmatpush1.msra.mxu0 0.0
        %3504 = vmatprep.subr.mxu0 0.0
        %3505 = vmatpush1.msra.mxu0 0.0
        %3506 = vmatprep.subr.mxu0 0.0
        %3507 = vmatpush1.msra.mxu0 0.0
        %3508 = vmatprep.subr.mxu0 0.0
        %3509 = vmatpush1.msra.mxu0 0.0
        %3510 = vmatprep.subr.mxu0 0.0
        %3511 = vmatpush1.msra.mxu0 0.0
        %3512 = vmatprep.subr.mxu0 0.0
        %3513 = vmatpush1.msra.mxu0 0.0
        %3514 = vmatprep.subr.mxu0 0.0
        %3515 = vmatpush1.msra.mxu0 0.0
        %3516 = vmatprep.subr.mxu0 0.0
        %3517 = vmatpush1.msra.mxu0 0.0
        %3518 = vmatprep.subr.mxu0 0.0
        %3519 = vmatpush1.msra.mxu0 0.0
        %3520 = vmatprep.subr.mxu0 0.0
        %3521 = vmatpush1.msra.mxu0 0.0
        %3522 = vmatprep.subr.mxu0 0.0
        %3523 = vmatpush1.msra.mxu0 0.0
        %3524 = vmatprep.subr.mxu0 0.0
        %3525 = vmatpush1.msra.mxu0 0.0
        %3526 = vmatprep.mubr.f32.mxu0 0.0
        %3527 = vmatmul.mubr.f32.gmra.mrb[0].mxu0 %v3429
        %v3528 = vpop.f32.mrb[0].mxu0
        %v3529 = vadd.f32 0.0, %v3528
        %v3530 = vpop.f32.mrb[0].mxu0
        %v3531 = vadd.f32 0.0, %v3530
        %3532 = vdwg.mxu0
        %3533 = vmatprep.subr.mxu0 0.0
        %3534 = vmatpush1.msra.mxu0 %v302
        %3535 = vmatprep.subr.mxu0 0.0
        %3536 = vmatpush1.msra.mxu0 %v305
        %3537 = vmatprep.subr.mxu0 0.0
        %3538 = vmatpush1.msra.mxu0 %v308
        %3539 = vmatprep.subr.mxu0 0.0
        %3540 = vmatpush1.msra.mxu0 %v311
        %3541 = vmatprep.subr.mxu0 0.0
        %3542 = vmatpush1.msra.mxu0 %v314
        %3543 = vmatprep.subr.mxu0 0.0
        %3544 = vmatpush1.msra.mxu0 %v317
        %3545 = vmatprep.subr.mxu0 0.0
        %3546 = vmatpush1.msra.mxu0 %v320
        %3547 = vmatprep.subr.mxu0 0.0
        %3548 = vmatpush1.msra.mxu0 %v323
        %3549 = vmatprep.subr.mxu0 0.0
        %3550 = vmatpush1.msra.mxu0 %v326
        %3551 = vmatprep.subr.mxu0 0.0
        %3552 = vmatpush1.msra.mxu0 %v329
        %3553 = vmatprep.subr.mxu0 0.0
        %3554 = vmatpush1.msra.mxu0 %v332
        %3555 = vmatprep.subr.mxu0 0.0
        %3556 = vmatpush1.msra.mxu0 %v335
        %3557 = vmatprep.subr.mxu0 0.0
        %3558 = vmatpush1.msra.mxu0 %v338
        %3559 = vmatprep.subr.mxu0 0.0
        %3560 = vmatpush1.msra.mxu0 %v341
        %3561 = vmatprep.subr.mxu0 0.0
        %3562 = vmatpush1.msra.mxu0 %v344
        %3563 = vmatprep.subr.mxu0 0.0
        %3564 = vmatpush1.msra.mxu0 %v347
        %3565 = vmatprep.subr.mxu0 0.0
        %3566 = vmatpush1.msra.mxu0 0.0
        %3567 = vmatprep.subr.mxu0 0.0
        %3568 = vmatpush1.msra.mxu0 0.0
        %3569 = vmatprep.subr.mxu0 0.0
        %3570 = vmatpush1.msra.mxu0 0.0
        %3571 = vmatprep.subr.mxu0 0.0
        %3572 = vmatpush1.msra.mxu0 0.0
        %3573 = vmatprep.subr.mxu0 0.0
        %3574 = vmatpush1.msra.mxu0 0.0
        %3575 = vmatprep.subr.mxu0 0.0
        %3576 = vmatpush1.msra.mxu0 0.0
        %3577 = vmatprep.subr.mxu0 0.0
        %3578 = vmatpush1.msra.mxu0 0.0
        %3579 = vmatprep.subr.mxu0 0.0
        %3580 = vmatpush1.msra.mxu0 0.0
        %3581 = vmatprep.subr.mxu0 0.0
        %3582 = vmatpush1.msra.mxu0 0.0
        %3583 = vmatprep.subr.mxu0 0.0
        %3584 = vmatpush1.msra.mxu0 0.0
        %3585 = vmatprep.subr.mxu0 0.0
        %3586 = vmatpush1.msra.mxu0 0.0
        %3587 = vmatprep.subr.mxu0 0.0
        %3588 = vmatpush1.msra.mxu0 0.0
        %3589 = vmatprep.subr.mxu0 0.0
        %3590 = vmatpush1.msra.mxu0 0.0
        %3591 = vmatprep.subr.mxu0 0.0
        %3592 = vmatpush1.msra.mxu0 0.0
        %3593 = vmatprep.subr.mxu0 0.0
        %3594 = vmatpush1.msra.mxu0 0.0
        %3595 = vmatprep.subr.mxu0 0.0
        %3596 = vmatpush1.msra.mxu0 0.0
        %3597 = vmatprep.mubr.f32.mxu0 0.0
        %3598 = vmatmul.mubr.f32.gmra.mrb[0].mxu0 %v3429
        %v3599 = vpop.f32.mrb[0].mxu0
        %v3600 = vadd.f32 0.0, %v3599
        %v3601 = vpop.f32.mrb[0].mxu0
        %3602 = vdwg.mxu0
        %3603 = vmatprep.subr.mxu0 %v350
        %3604 = vmatpush1.msra.mxu0 %v349
        %3605 = vmatprep.subr.mxu0 %v353
        %3606 = vmatpush1.msra.mxu0 %v352
        %3607 = vmatprep.subr.mxu0 %v356
        %3608 = vmatpush1.msra.mxu0 %v355
        %3609 = vmatprep.subr.mxu0 %v359
        %3610 = vmatpush1.msra.mxu0 %v358
        %3611 = vmatprep.subr.mxu0 %v362
        %3612 = vmatpush1.msra.mxu0 %v361
        %3613 = vmatprep.subr.mxu0 %v365
        %3614 = vmatpush1.msra.mxu0 %v364
        %3615 = vmatprep.subr.mxu0 %v368
        %3616 = vmatpush1.msra.mxu0 %v367
        %3617 = vmatprep.subr.mxu0 %v371
        %3618 = vmatpush1.msra.mxu0 %v370
        %3619 = vmatprep.subr.mxu0 %v374
        %3620 = vmatpush1.msra.mxu0 %v373
        %3621 = vmatprep.subr.mxu0 %v377
        %3622 = vmatpush1.msra.mxu0 %v376
        %3623 = vmatprep.subr.mxu0 %v380
        %3624 = vmatpush1.msra.mxu0 %v379
        %3625 = vmatprep.subr.mxu0 %v383
        %3626 = vmatpush1.msra.mxu0 %v382
        %3627 = vmatprep.subr.mxu0 %v386
        %3628 = vmatpush1.msra.mxu0 %v385
        %3629 = vmatprep.subr.mxu0 %v389
        %3630 = vmatpush1.msra.mxu0 %v388
        %3631 = vmatprep.subr.mxu0 %v392
        %3632 = vmatpush1.msra.mxu0 %v391
        %3633 = vmatprep.subr.mxu0 %v395
        %3634 = vmatpush1.msra.mxu0 %v394
        %3635 = vmatprep.subr.mxu0 0.0
        %3636 = vmatpush1.msra.mxu0 0.0
        %3637 = vmatprep.subr.mxu0 0.0
        %3638 = vmatpush1.msra.mxu0 0.0
        %3639 = vmatprep.subr.mxu0 0.0
        %3640 = vmatpush1.msra.mxu0 0.0
        %3641 = vmatprep.subr.mxu0 0.0
        %3642 = vmatpush1.msra.mxu0 0.0
        %3643 = vmatprep.subr.mxu0 0.0
        %3644 = vmatpush1.msra.mxu0 0.0
        %3645 = vmatprep.subr.mxu0 0.0
        %3646 = vmatpush1.msra.mxu0 0.0
        %3647 = vmatprep.subr.mxu0 0.0
        %3648 = vmatpush1.msra.mxu0 0.0
        %3649 = vmatprep.subr.mxu0 0.0
        %3650 = vmatpush1.msra.mxu0 0.0
        %3651 = vmatprep.subr.mxu0 0.0
        %3652 = vmatpush1.msra.mxu0 0.0
        %3653 = vmatprep.subr.mxu0 0.0
        %3654 = vmatpush1.msra.mxu0 0.0
        %3655 = vmatprep.subr.mxu0 0.0
        %3656 = vmatpush1.msra.mxu0 0.0
        %3657 = vmatprep.subr.mxu0 0.0
        %3658 = vmatpush1.msra.mxu0 0.0
        %3659 = vmatprep.subr.mxu0 0.0
        %3660 = vmatpush1.msra.mxu0 0.0
        %3661 = vmatprep.subr.mxu0 0.0
        %3662 = vmatpush1.msra.mxu0 0.0
        %3663 = vmatprep.subr.mxu0 0.0
        %3664 = vmatpush1.msra.mxu0 0.0
        %3665 = vmatprep.subr.mxu0 0.0
        %3666 = vmatpush1.msra.mxu0 0.0
        %3667 = vmatprep.mubr.f32.mxu0 0.0
        %3668 = vmatmul.mubr.f32.gmra.mrb[0].mxu0 %v3455
        %v3669 = vpop.f32.mrb[0].mxu0
        %v3670 = vadd.f32 0.0, %v3669
        %v3671 = vpop.f32.mrb[0].mxu0
        %v3672 = vadd.f32 0.0, %v3671
        %3673 = vdwg.mxu0
        %3674 = vmatprep.subr.mxu0 0.0
        %3675 = vmatpush1.msra.mxu0 %v351
        %3676 = vmatprep.subr.mxu0 0.0
        %3677 = vmatpush1.msra.mxu0 %v354
        %3678 = vmatprep.subr.mxu0 0.0
        %3679 = vmatpush1.msra.mxu0 %v357
        %3680 = vmatprep.subr.mxu0 0.0
        %3681 = vmatpush1.msra.mxu0 %v360
        %3682 = vmatprep.subr.mxu0 0.0
        %3683 = vmatpush1.msra.mxu0 %v363
        %3684 = vmatprep.subr.mxu0 0.0
        %3685 = vmatpush1.msra.mxu0 %v366
        %3686 = vmatprep.subr.mxu0 0.0
        %3687 = vmatpush1.msra.mxu0 %v369
        %3688 = vmatprep.subr.mxu0 0.0
        %3689 = vmatpush1.msra.mxu0 %v372
        %3690 = vmatprep.subr.mxu0 0.0
        %3691 = vmatpush1.msra.mxu0 %v375
        %3692 = vmatprep.subr.mxu0 0.0
        %3693 = vmatpush1.msra.mxu0 %v378
        %3694 = vmatprep.subr.mxu0 0.0
        %3695 = vmatpush1.msra.mxu0 %v381
        %3696 = vmatprep.subr.mxu0 0.0
        %3697 = vmatpush1.msra.mxu0 %v384
        %3698 = vmatprep.subr.mxu0 0.0
        %3699 = vmatpush1.msra.mxu0 %v387
        %3700 = vmatprep.subr.mxu0 0.0
        %3701 = vmatpush1.msra.mxu0 %v390
        %3702 = vmatprep.subr.mxu0 0.0
        %3703 = vmatpush1.msra.mxu0 %v393
        %3704 = vmatprep.subr.mxu0 0.0
        %3705 = vmatpush1.msra.mxu0 %v396
        %3706 = vmatprep.subr.mxu0 0.0
        %3707 = vmatpush1.msra.mxu0 0.0
        %3708 = vmatprep.subr.mxu0 0.0
        %3709 = vmatpush1.msra.mxu0 0.0
        %3710 = vmatprep.subr.mxu0 0.0
        %3711 = vmatpush1.msra.mxu0 0.0
        %3712 = vmatprep.subr.mxu0 0.0
        %3713 = vmatpush1.msra.mxu0 0.0
        %3714 = vmatprep.subr.mxu0 0.0
        %3715 = vmatpush1.msra.mxu0 0.0
        %3716 = vmatprep.subr.mxu0 0.0
        %3717 = vmatpush1.msra.mxu0 0.0
        %3718 = vmatprep.subr.mxu0 0.0
        %3719 = vmatpush1.msra.mxu0 0.0
        %3720 = vmatprep.subr.mxu0 0.0
        %3721 = vmatpush1.msra.mxu0 0.0
        %3722 = vmatprep.subr.mxu0 0.0
        %3723 = vmatpush1.msra.mxu0 0.0
        %3724 = vmatprep.subr.mxu0 0.0
        %3725 = vmatpush1.msra.mxu0 0.0
        %3726 = vmatprep.subr.mxu0 0.0
        %3727 = vmatpush1.msra.mxu0 0.0
        %3728 = vmatprep.subr.mxu0 0.0
        %3729 = vmatpush1.msra.mxu0 0.0
        %3730 = vmatprep.subr.mxu0 0.0
        %3731 = vmatpush1.msra.mxu0 0.0
        %3732 = vmatprep.subr.mxu0 0.0
        %3733 = vmatpush1.msra.mxu0 0.0
        %3734 = vmatprep.subr.mxu0 0.0
        %3735 = vmatpush1.msra.mxu0 0.0
        %3736 = vmatprep.subr.mxu0 0.0
        %3737 = vmatpush1.msra.mxu0 0.0
        %3738 = vmatprep.mubr.f32.mxu0 0.0
        %3739 = vmatmul.mubr.f32.gmra.mrb[0].mxu0 %v3455
        %v3740 = vpop.f32.mrb[0].mxu0
        %v3741 = vadd.f32 0.0, %v3740
        %v3742 = vpop.f32.mrb[0].mxu0
        %3743 = vdwg.mxu0
        %v3744 = vadd.f32 %v3459, %v3529
        %v3745 = vxor.u32 %v3744, 2147483648
        %v3746 = vmul.f32 %v3745, 1.442695
        %v3747 = vpow.pop %v3746
        %v3748 = vadd.f32 %v3747, 1.0
        %v3749 = vrcp.pop %v3748
        %v3750 = vmul.f32 1.0, %v3749
        %v3752 = vrot.slane %v3459, 1
        %v3754 = vadd.f32 %v3752, %v3531
        %v3755 = vxor.u32 %v3754, 2147483648
        %v3756 = vmul.f32 %v3755, 1.442695
        %v3757 = vpow.pop %v3756
        %v3758 = vadd.f32 %v3757, 1.0
        %v3759 = vrcp.pop %v3758
        %v3760 = vmul.f32 1.0, %v3759
        %v3761 = vmul.f32 %v3750, %v3600
        %v3762 = vrot.slane %v3459, 2
        %v3764 = vadd.f32 %v3762, %v3761
        %v3765 = vtanh.pop %v3764
        %v3766 = vsub.f32 1.0, %v3760
        %v3767 = vmul.f32 %v3766, %v3765
        %v3768 = vmul.f32 %v3760, %v3429
        %v3769 = vadd.f32 %v3767, %v3768
        %v3770 = vadd.f32 %v3461, %v3670
        %v3771 = vxor.u32 %v3770, 2147483648
        %v3772 = vmul.f32 %v3771, 1.442695
        %v3773 = vpow.pop %v3772
        %v3774 = vadd.f32 %v3773, 1.0
        %v3775 = vrcp.pop %v3774
        %v3776 = vmul.f32 1.0, %v3775
        %v3778 = vrot.slane %v3461, 1
        %v3780 = vadd.f32 %v3778, %v3672
        %v3781 = vxor.u32 %v3780, 2147483648
        %v3782 = vmul.f32 %v3781, 1.442695
        %v3783 = vpow.pop %v3782
        %v3784 = vadd.f32 %v3783, 1.0
        %v3785 = vrcp.pop %v3784
        %v3786 = vmul.f32 1.0, %v3785
        %v3787 = vmul.f32 %v3776, %v3741
        %v3788 = vrot.slane %v3461, 2
        %v3790 = vadd.f32 %v3788, %v3787
        %v3791 = vtanh.pop %v3790
        %v3792 = vsub.f32 1.0, %v3786
        %v3793 = vmul.f32 %v3792, %v3791
        %v3794 = vmul.f32 %v3786, %v3455
        %v3795 = vadd.f32 %v3793, %v3794
        %3796 = vst [vmem:[%s264 + $0x9] sm:$0x1] %v3769
        %3797 = vst [vmem:[%s271 + $0x6] sm:$0x1] %v3795
        %s3798 = scalar_lea.vmem %s230, 26 [#allocation6]
        %v3799 = vld [vmem:[%s3798] ss:$8 sm:$0x7]
        %s3800 = scalar_lea.vmem %s239, 5 [#allocation9]
        %v3801 = vld [vmem:[%s3800] ss:$8 sm:$0x7]
        %3802 = vmatprep.subr.mxu0 %v301
        %3803 = vmatpush1.msra.mxu0 %v300
        %3804 = vmatprep.subr.mxu0 %v304
        %3805 = vmatpush1.msra.mxu0 %v303
        %3806 = vmatprep.subr.mxu0 %v307
        %3807 = vmatpush1.msra.mxu0 %v306
        %3808 = vmatprep.subr.mxu0 %v310
        %3809 = vmatpush1.msra.mxu0 %v309
        %3810 = vmatprep.subr.mxu0 %v313
        %3811 = vmatpush1.msra.mxu0 %v312
        %3812 = vmatprep.subr.mxu0 %v316
        %3813 = vmatpush1.msra.mxu0 %v315
        %3814 = vmatprep.subr.mxu0 %v319
        %3815 = vmatpush1.msra.mxu0 %v318
        %3816 = vmatprep.subr.mxu0 %v322
        %3817 = vmatpush1.msra.mxu0 %v321
        %3818 = vmatprep.subr.mxu0 %v325
        %3819 = vmatpush1.msra.mxu0 %v324
        %3820 = vmatprep.subr.mxu0 %v328
        %3821 = vmatpush1.msra.mxu0 %v327
        %3822 = vmatprep.subr.mxu0 %v331
        %3823 = vmatpush1.msra.mxu0 %v330
        %3824 = vmatprep.subr.mxu0 %v334
        %3825 = vmatpush1.msra.mxu0 %v333
        %3826 = vmatprep.subr.mxu0 %v337
        %3827 = vmatpush1.msra.mxu0 %v336
        %3828 = vmatprep.subr.mxu0 %v340
        %3829 = vmatpush1.msra.mxu0 %v339
        %3830 = vmatprep.subr.mxu0 %v343
        %3831 = vmatpush1.msra.mxu0 %v342
        %3832 = vmatprep.subr.mxu0 %v346
        %3833 = vmatpush1.msra.mxu0 %v345
        %3834 = vmatprep.subr.mxu0 0.0
        %3835 = vmatpush1.msra.mxu0 0.0
        %3836 = vmatprep.subr.mxu0 0.0
        %3837 = vmatpush1.msra.mxu0 0.0
        %3838 = vmatprep.subr.mxu0 0.0
        %3839 = vmatpush1.msra.mxu0 0.0
        %3840 = vmatprep.subr.mxu0 0.0
        %3841 = vmatpush1.msra.mxu0 0.0
        %3842 = vmatprep.subr.mxu0 0.0
        %3843 = vmatpush1.msra.mxu0 0.0
        %3844 = vmatprep.subr.mxu0 0.0
        %3845 = vmatpush1.msra.mxu0 0.0
        %3846 = vmatprep.subr.mxu0 0.0
        %3847 = vmatpush1.msra.mxu0 0.0
        %3848 = vmatprep.subr.mxu0 0.0
        %3849 = vmatpush1.msra.mxu0 0.0
        %3850 = vmatprep.subr.mxu0 0.0
        %3851 = vmatpush1.msra.mxu0 0.0
        %3852 = vmatprep.subr.mxu0 0.0
        %3853 = vmatpush1.msra.mxu0 0.0
        %3854 = vmatprep.subr.mxu0 0.0
        %3855 = vmatpush1.msra.mxu0 0.0
        %3856 = vmatprep.subr.mxu0 0.0
        %3857 = vmatpush1.msra.mxu0 0.0
        %3858 = vmatprep.subr.mxu0 0.0
        %3859 = vmatpush1.msra.mxu0 0.0
        %3860 = vmatprep.subr.mxu0 0.0
        %3861 = vmatpush1.msra.mxu0 0.0
        %3862 = vmatprep.subr.mxu0 0.0
        %3863 = vmatpush1.msra.mxu0 0.0
        %3864 = vmatprep.subr.mxu0 0.0
        %3865 = vmatpush1.msra.mxu0 0.0
        %3866 = vmatprep.mubr.f32.mxu0 0.0
        %3867 = vmatmul.mubr.f32.gmra.mrb[0].mxu0 %v3769
        %v3868 = vpop.f32.mrb[0].mxu0
        %v3869 = vadd.f32 0.0, %v3868
        %v3870 = vpop.f32.mrb[0].mxu0
        %v3871 = vadd.f32 0.0, %v3870
        %3872 = vdwg.mxu0
        %3873 = vmatprep.subr.mxu0 0.0
        %3874 = vmatpush1.msra.mxu0 %v302
        %3875 = vmatprep.subr.mxu0 0.0
        %3876 = vmatpush1.msra.mxu0 %v305
        %3877 = vmatprep.subr.mxu0 0.0
        %3878 = vmatpush1.msra.mxu0 %v308
        %3879 = vmatprep.subr.mxu0 0.0
        %3880 = vmatpush1.msra.mxu0 %v311
        %3881 = vmatprep.subr.mxu0 0.0
        %3882 = vmatpush1.msra.mxu0 %v314
        %3883 = vmatprep.subr.mxu0 0.0
        %3884 = vmatpush1.msra.mxu0 %v317
        %3885 = vmatprep.subr.mxu0 0.0
        %3886 = vmatpush1.msra.mxu0 %v320
        %3887 = vmatprep.subr.mxu0 0.0
        %3888 = vmatpush1.msra.mxu0 %v323
        %3889 = vmatprep.subr.mxu0 0.0
        %3890 = vmatpush1.msra.mxu0 %v326
        %3891 = vmatprep.subr.mxu0 0.0
        %3892 = vmatpush1.msra.mxu0 %v329
        %3893 = vmatprep.subr.mxu0 0.0
        %3894 = vmatpush1.msra.mxu0 %v332
        %3895 = vmatprep.subr.mxu0 0.0
        %3896 = vmatpush1.msra.mxu0 %v335
        %3897 = vmatprep.subr.mxu0 0.0
        %3898 = vmatpush1.msra.mxu0 %v338
        %3899 = vmatprep.subr.mxu0 0.0
        %3900 = vmatpush1.msra.mxu0 %v341
        %3901 = vmatprep.subr.mxu0 0.0
        %3902 = vmatpush1.msra.mxu0 %v344
        %3903 = vmatprep.subr.mxu0 0.0
        %3904 = vmatpush1.msra.mxu0 %v347
        %3905 = vmatprep.subr.mxu0 0.0
        %3906 = vmatpush1.msra.mxu0 0.0
        %3907 = vmatprep.subr.mxu0 0.0
        %3908 = vmatpush1.msra.mxu0 0.0
        %3909 = vmatprep.subr.mxu0 0.0
        %3910 = vmatpush1.msra.mxu0 0.0
        %3911 = vmatprep.subr.mxu0 0.0
        %3912 = vmatpush1.msra.mxu0 0.0
        %3913 = vmatprep.subr.mxu0 0.0
        %3914 = vmatpush1.msra.mxu0 0.0
        %3915 = vmatprep.subr.mxu0 0.0
        %3916 = vmatpush1.msra.mxu0 0.0
        %3917 = vmatprep.subr.mxu0 0.0
        %3918 = vmatpush1.msra.mxu0 0.0
        %3919 = vmatprep.subr.mxu0 0.0
        %3920 = vmatpush1.msra.mxu0 0.0
        %3921 = vmatprep.subr.mxu0 0.0
        %3922 = vmatpush1.msra.mxu0 0.0
        %3923 = vmatprep.subr.mxu0 0.0
        %3924 = vmatpush1.msra.mxu0 0.0
        %3925 = vmatprep.subr.mxu0 0.0
        %3926 = vmatpush1.msra.mxu0 0.0
        %3927 = vmatprep.subr.mxu0 0.0
        %3928 = vmatpush1.msra.mxu0 0.0
        %3929 = vmatprep.subr.mxu0 0.0
        %3930 = vmatpush1.msra.mxu0 0.0
        %3931 = vmatprep.subr.mxu0 0.0
        %3932 = vmatpush1.msra.mxu0 0.0
        %3933 = vmatprep.subr.mxu0 0.0
        %3934 = vmatpush1.msra.mxu0 0.0
        %3935 = vmatprep.subr.mxu0 0.0
        %3936 = vmatpush1.msra.mxu0 0.0
        %3937 = vmatprep.mubr.f32.mxu0 0.0
        %3938 = vmatmul.mubr.f32.gmra.mrb[0].mxu0 %v3769
        %v3939 = vpop.f32.mrb[0].mxu0
        %v3940 = vadd.f32 0.0, %v3939
        %v3941 = vpop.f32.mrb[0].mxu0
        %3942 = vdwg.mxu0
        %3943 = vmatprep.subr.mxu0 %v350
        %3944 = vmatpush1.msra.mxu0 %v349
        %3945 = vmatprep.subr.mxu0 %v353
        %3946 = vmatpush1.msra.mxu0 %v352
        %3947 = vmatprep.subr.mxu0 %v356
        %3948 = vmatpush1.msra.mxu0 %v355
        %3949 = vmatprep.subr.mxu0 %v359
        %3950 = vmatpush1.msra.mxu0 %v358
        %3951 = vmatprep.subr.mxu0 %v362
        %3952 = vmatpush1.msra.mxu0 %v361
        %3953 = vmatprep.subr.mxu0 %v365
        %3954 = vmatpush1.msra.mxu0 %v364
        %3955 = vmatprep.subr.mxu0 %v368
        %3956 = vmatpush1.msra.mxu0 %v367
        %3957 = vmatprep.subr.mxu0 %v371
        %3958 = vmatpush1.msra.mxu0 %v370
        %3959 = vmatprep.subr.mxu0 %v374
        %3960 = vmatpush1.msra.mxu0 %v373
        %3961 = vmatprep.subr.mxu0 %v377
        %3962 = vmatpush1.msra.mxu0 %v376
        %3963 = vmatprep.subr.mxu0 %v380
        %3964 = vmatpush1.msra.mxu0 %v379
        %3965 = vmatprep.subr.mxu0 %v383
        %3966 = vmatpush1.msra.mxu0 %v382
        %3967 = vmatprep.subr.mxu0 %v386
        %3968 = vmatpush1.msra.mxu0 %v385
        %3969 = vmatprep.subr.mxu0 %v389
        %3970 = vmatpush1.msra.mxu0 %v388
        %3971 = vmatprep.subr.mxu0 %v392
        %3972 = vmatpush1.msra.mxu0 %v391
        %3973 = vmatprep.subr.mxu0 %v395
        %3974 = vmatpush1.msra.mxu0 %v394
        %3975 = vmatprep.subr.mxu0 0.0
        %3976 = vmatpush1.msra.mxu0 0.0
        %3977 = vmatprep.subr.mxu0 0.0
        %3978 = vmatpush1.msra.mxu0 0.0
        %3979 = vmatprep.subr.mxu0 0.0
        %3980 = vmatpush1.msra.mxu0 0.0
        %3981 = vmatprep.subr.mxu0 0.0
        %3982 = vmatpush1.msra.mxu0 0.0
        %3983 = vmatprep.subr.mxu0 0.0
        %3984 = vmatpush1.msra.mxu0 0.0
        %3985 = vmatprep.subr.mxu0 0.0
        %3986 = vmatpush1.msra.mxu0 0.0
        %3987 = vmatprep.subr.mxu0 0.0
        %3988 = vmatpush1.msra.mxu0 0.0
        %3989 = vmatprep.subr.mxu0 0.0
        %3990 = vmatpush1.msra.mxu0 0.0
        %3991 = vmatprep.subr.mxu0 0.0
        %3992 = vmatpush1.msra.mxu0 0.0
        %3993 = vmatprep.subr.mxu0 0.0
        %3994 = vmatpush1.msra.mxu0 0.0
        %3995 = vmatprep.subr.mxu0 0.0
        %3996 = vmatpush1.msra.mxu0 0.0
        %3997 = vmatprep.subr.mxu0 0.0
        %3998 = vmatpush1.msra.mxu0 0.0
        %3999 = vmatprep.subr.mxu0 0.0
        %4000 = vmatpush1.msra.mxu0 0.0
        %4001 = vmatprep.subr.mxu0 0.0
        %4002 = vmatpush1.msra.mxu0 0.0
        %4003 = vmatprep.subr.mxu0 0.0
        %4004 = vmatpush1.msra.mxu0 0.0
        %4005 = vmatprep.subr.mxu0 0.0
        %4006 = vmatpush1.msra.mxu0 0.0
        %4007 = vmatprep.mubr.f32.mxu0 0.0
        %4008 = vmatmul.mubr.f32.gmra.mrb[0].mxu0 %v3795
        %v4009 = vpop.f32.mrb[0].mxu0
        %v4010 = vadd.f32 0.0, %v4009
        %v4011 = vpop.f32.mrb[0].mxu0
        %v4012 = vadd.f32 0.0, %v4011
        %4013 = vdwg.mxu0
        %4014 = vmatprep.subr.mxu0 0.0
        %4015 = vmatpush1.msra.mxu0 %v351
        %4016 = vmatprep.subr.mxu0 0.0
        %4017 = vmatpush1.msra.mxu0 %v354
        %4018 = vmatprep.subr.mxu0 0.0
        %4019 = vmatpush1.msra.mxu0 %v357
        %4020 = vmatprep.subr.mxu0 0.0
        %4021 = vmatpush1.msra.mxu0 %v360
        %4022 = vmatprep.subr.mxu0 0.0
        %4023 = vmatpush1.msra.mxu0 %v363
        %4024 = vmatprep.subr.mxu0 0.0
        %4025 = vmatpush1.msra.mxu0 %v366
        %4026 = vmatprep.subr.mxu0 0.0
        %4027 = vmatpush1.msra.mxu0 %v369
        %4028 = vmatprep.subr.mxu0 0.0
        %4029 = vmatpush1.msra.mxu0 %v372
        %4030 = vmatprep.subr.mxu0 0.0
        %4031 = vmatpush1.msra.mxu0 %v375
        %4032 = vmatprep.subr.mxu0 0.0
        %4033 = vmatpush1.msra.mxu0 %v378
        %4034 = vmatprep.subr.mxu0 0.0
        %4035 = vmatpush1.msra.mxu0 %v381
        %4036 = vmatprep.subr.mxu0 0.0
        %4037 = vmatpush1.msra.mxu0 %v384
        %4038 = vmatprep.subr.mxu0 0.0
        %4039 = vmatpush1.msra.mxu0 %v387
        %4040 = vmatprep.subr.mxu0 0.0
        %4041 = vmatpush1.msra.mxu0 %v390
        %4042 = vmatprep.subr.mxu0 0.0
        %4043 = vmatpush1.msra.mxu0 %v393
        %4044 = vmatprep.subr.mxu0 0.0
        %4045 = vmatpush1.msra.mxu0 %v396
        %4046 = vmatprep.subr.mxu0 0.0
        %4047 = vmatpush1.msra.mxu0 0.0
        %4048 = vmatprep.subr.mxu0 0.0
        %4049 = vmatpush1.msra.mxu0 0.0
        %4050 = vmatprep.subr.mxu0 0.0
        %4051 = vmatpush1.msra.mxu0 0.0
        %4052 = vmatprep.subr.mxu0 0.0
        %4053 = vmatpush1.msra.mxu0 0.0
        %4054 = vmatprep.subr.mxu0 0.0
        %4055 = vmatpush1.msra.mxu0 0.0
        %4056 = vmatprep.subr.mxu0 0.0
        %4057 = vmatpush1.msra.mxu0 0.0
        %4058 = vmatprep.subr.mxu0 0.0
        %4059 = vmatpush1.msra.mxu0 0.0
        %4060 = vmatprep.subr.mxu0 0.0
        %4061 = vmatpush1.msra.mxu0 0.0
        %4062 = vmatprep.subr.mxu0 0.0
        %4063 = vmatpush1.msra.mxu0 0.0
        %4064 = vmatprep.subr.mxu0 0.0
        %4065 = vmatpush1.msra.mxu0 0.0
        %4066 = vmatprep.subr.mxu0 0.0
        %4067 = vmatpush1.msra.mxu0 0.0
        %4068 = vmatprep.subr.mxu0 0.0
        %4069 = vmatpush1.msra.mxu0 0.0
        %4070 = vmatprep.subr.mxu0 0.0
        %4071 = vmatpush1.msra.mxu0 0.0
        %4072 = vmatprep.subr.mxu0 0.0
        %4073 = vmatpush1.msra.mxu0 0.0
        %4074 = vmatprep.subr.mxu0 0.0
        %4075 = vmatpush1.msra.mxu0 0.0
        %4076 = vmatprep.subr.mxu0 0.0
        %4077 = vmatpush1.msra.mxu0 0.0
        %4078 = vmatprep.mubr.f32.mxu0 0.0
        %4079 = vmatmul.mubr.f32.gmra.mrb[0].mxu0 %v3795
        %v4080 = vpop.f32.mrb[0].mxu0
        %v4081 = vadd.f32 0.0, %v4080
        %v4082 = vpop.f32.mrb[0].mxu0
        %4083 = vdwg.mxu0
        %v4084 = vadd.f32 %v3799, %v3869
        %v4085 = vxor.u32 %v4084, 2147483648
        %v4086 = vmul.f32 %v4085, 1.442695
        %v4087 = vpow.pop %v4086
        %v4088 = vadd.f32 %v4087, 1.0
        %v4089 = vrcp.pop %v4088
        %v4090 = vmul.f32 1.0, %v4089
        %v4092 = vrot.slane %v3799, 1
        %v4094 = vadd.f32 %v4092, %v3871
        %v4095 = vxor.u32 %v4094, 2147483648
        %v4096 = vmul.f32 %v4095, 1.442695
        %v4097 = vpow.pop %v4096
        %v4098 = vadd.f32 %v4097, 1.0
        %v4099 = vrcp.pop %v4098
        %v4100 = vmul.f32 1.0, %v4099
        %v4101 = vmul.f32 %v4090, %v3940
        %v4102 = vrot.slane %v3799, 2
        %v4104 = vadd.f32 %v4102, %v4101
        %v4105 = vtanh.pop %v4104
        %v4106 = vsub.f32 1.0, %v4100
        %v4107 = vmul.f32 %v4106, %v4105
        %v4108 = vmul.f32 %v4100, %v3769
        %v4109 = vadd.f32 %v4107, %v4108
        %v4110 = vadd.f32 %v3801, %v4010
        %v4111 = vxor.u32 %v4110, 2147483648
        %v4112 = vmul.f32 %v4111, 1.442695
        %v4113 = vpow.pop %v4112
        %v4114 = vadd.f32 %v4113, 1.0
        %v4115 = vrcp.pop %v4114
        %v4116 = vmul.f32 1.0, %v4115
        %v4118 = vrot.slane %v3801, 1
        %v4120 = vadd.f32 %v4118, %v4012
        %v4121 = vxor.u32 %v4120, 2147483648
        %v4122 = vmul.f32 %v4121, 1.442695
        %v4123 = vpow.pop %v4122
        %v4124 = vadd.f32 %v4123, 1.0
        %v4125 = vrcp.pop %v4124
        %v4126 = vmul.f32 1.0, %v4125
        %v4127 = vmul.f32 %v4116, %v4081
        %v4128 = vrot.slane %v3801, 2
        %v4130 = vadd.f32 %v4128, %v4127
        %v4131 = vtanh.pop %v4130
        %v4132 = vsub.f32 1.0, %v4126
        %v4133 = vmul.f32 %v4132, %v4131
        %v4134 = vmul.f32 %v4126, %v3795
        %v4135 = vadd.f32 %v4133, %v4134
        %4136 = vst [vmem:[%s264 + $0xa] sm:$0x1] %v4109
        %4137 = vst [vmem:[%s271 + $0x5] sm:$0x1] %v4135
        %s4138 = scalar_lea.vmem %s230, 27 [#allocation6]
        %v4139 = vld [vmem:[%s4138] ss:$8 sm:$0x7]
        %s4140 = scalar_lea.vmem %s239, 4 [#allocation9]
        %v4141 = vld [vmem:[%s4140] ss:$8 sm:$0x7]
        %4142 = vmatprep.subr.mxu0 %v301
        %4143 = vmatpush1.msra.mxu0 %v300
        %4144 = vmatprep.subr.mxu0 %v304
        %4145 = vmatpush1.msra.mxu0 %v303
        %4146 = vmatprep.subr.mxu0 %v307
        %4147 = vmatpush1.msra.mxu0 %v306
        %4148 = vmatprep.subr.mxu0 %v310
        %4149 = vmatpush1.msra.mxu0 %v309
        %4150 = vmatprep.subr.mxu0 %v313
        %4151 = vmatpush1.msra.mxu0 %v312
        %4152 = vmatprep.subr.mxu0 %v316
        %4153 = vmatpush1.msra.mxu0 %v315
        %4154 = vmatprep.subr.mxu0 %v319
        %4155 = vmatpush1.msra.mxu0 %v318
        %4156 = vmatprep.subr.mxu0 %v322
        %4157 = vmatpush1.msra.mxu0 %v321
        %4158 = vmatprep.subr.mxu0 %v325
        %4159 = vmatpush1.msra.mxu0 %v324
        %4160 = vmatprep.subr.mxu0 %v328
        %4161 = vmatpush1.msra.mxu0 %v327
        %4162 = vmatprep.subr.mxu0 %v331
        %4163 = vmatpush1.msra.mxu0 %v330
        %4164 = vmatprep.subr.mxu0 %v334
        %4165 = vmatpush1.msra.mxu0 %v333
        %4166 = vmatprep.subr.mxu0 %v337
        %4167 = vmatpush1.msra.mxu0 %v336
        %4168 = vmatprep.subr.mxu0 %v340
        %4169 = vmatpush1.msra.mxu0 %v339
        %4170 = vmatprep.subr.mxu0 %v343
        %4171 = vmatpush1.msra.mxu0 %v342
        %4172 = vmatprep.subr.mxu0 %v346
        %4173 = vmatpush1.msra.mxu0 %v345
        %4174 = vmatprep.subr.mxu0 0.0
        %4175 = vmatpush1.msra.mxu0 0.0
        %4176 = vmatprep.subr.mxu0 0.0
        %4177 = vmatpush1.msra.mxu0 0.0
        %4178 = vmatprep.subr.mxu0 0.0
        %4179 = vmatpush1.msra.mxu0 0.0
        %4180 = vmatprep.subr.mxu0 0.0
        %4181 = vmatpush1.msra.mxu0 0.0
        %4182 = vmatprep.subr.mxu0 0.0
        %4183 = vmatpush1.msra.mxu0 0.0
        %4184 = vmatprep.subr.mxu0 0.0
        %4185 = vmatpush1.msra.mxu0 0.0
        %4186 = vmatprep.subr.mxu0 0.0
        %4187 = vmatpush1.msra.mxu0 0.0
        %4188 = vmatprep.subr.mxu0 0.0
        %4189 = vmatpush1.msra.mxu0 0.0
        %4190 = vmatprep.subr.mxu0 0.0
        %4191 = vmatpush1.msra.mxu0 0.0
        %4192 = vmatprep.subr.mxu0 0.0
        %4193 = vmatpush1.msra.mxu0 0.0
        %4194 = vmatprep.subr.mxu0 0.0
        %4195 = vmatpush1.msra.mxu0 0.0
        %4196 = vmatprep.subr.mxu0 0.0
        %4197 = vmatpush1.msra.mxu0 0.0
        %4198 = vmatprep.subr.mxu0 0.0
        %4199 = vmatpush1.msra.mxu0 0.0
        %4200 = vmatprep.subr.mxu0 0.0
        %4201 = vmatpush1.msra.mxu0 0.0
        %4202 = vmatprep.subr.mxu0 0.0
        %4203 = vmatpush1.msra.mxu0 0.0
        %4204 = vmatprep.subr.mxu0 0.0
        %4205 = vmatpush1.msra.mxu0 0.0
        %4206 = vmatprep.mubr.f32.mxu0 0.0
        %4207 = vmatmul.mubr.f32.gmra.mrb[0].mxu0 %v4109
        %v4208 = vpop.f32.mrb[0].mxu0
        %v4209 = vadd.f32 0.0, %v4208
        %v4210 = vpop.f32.mrb[0].mxu0
        %v4211 = vadd.f32 0.0, %v4210
        %4212 = vdwg.mxu0
        %4213 = vmatprep.subr.mxu0 0.0
        %4214 = vmatpush1.msra.mxu0 %v302
        %4215 = vmatprep.subr.mxu0 0.0
        %4216 = vmatpush1.msra.mxu0 %v305
        %4217 = vmatprep.subr.mxu0 0.0
        %4218 = vmatpush1.msra.mxu0 %v308
        %4219 = vmatprep.subr.mxu0 0.0
        %4220 = vmatpush1.msra.mxu0 %v311
        %4221 = vmatprep.subr.mxu0 0.0
        %4222 = vmatpush1.msra.mxu0 %v314
        %4223 = vmatprep.subr.mxu0 0.0
        %4224 = vmatpush1.msra.mxu0 %v317
        %4225 = vmatprep.subr.mxu0 0.0
        %4226 = vmatpush1.msra.mxu0 %v320
        %4227 = vmatprep.subr.mxu0 0.0
        %4228 = vmatpush1.msra.mxu0 %v323
        %4229 = vmatprep.subr.mxu0 0.0
        %4230 = vmatpush1.msra.mxu0 %v326
        %4231 = vmatprep.subr.mxu0 0.0
        %4232 = vmatpush1.msra.mxu0 %v329
        %4233 = vmatprep.subr.mxu0 0.0
        %4234 = vmatpush1.msra.mxu0 %v332
        %4235 = vmatprep.subr.mxu0 0.0
        %4236 = vmatpush1.msra.mxu0 %v335
        %4237 = vmatprep.subr.mxu0 0.0
        %4238 = vmatpush1.msra.mxu0 %v338
        %4239 = vmatprep.subr.mxu0 0.0
        %4240 = vmatpush1.msra.mxu0 %v341
        %4241 = vmatprep.subr.mxu0 0.0
        %4242 = vmatpush1.msra.mxu0 %v344
        %4243 = vmatprep.subr.mxu0 0.0
        %4244 = vmatpush1.msra.mxu0 %v347
        %4245 = vmatprep.subr.mxu0 0.0
        %4246 = vmatpush1.msra.mxu0 0.0
        %4247 = vmatprep.subr.mxu0 0.0
        %4248 = vmatpush1.msra.mxu0 0.0
        %4249 = vmatprep.subr.mxu0 0.0
        %4250 = vmatpush1.msra.mxu0 0.0
        %4251 = vmatprep.subr.mxu0 0.0
        %4252 = vmatpush1.msra.mxu0 0.0
        %4253 = vmatprep.subr.mxu0 0.0
        %4254 = vmatpush1.msra.mxu0 0.0
        %4255 = vmatprep.subr.mxu0 0.0
        %4256 = vmatpush1.msra.mxu0 0.0
        %4257 = vmatprep.subr.mxu0 0.0
        %4258 = vmatpush1.msra.mxu0 0.0
        %4259 = vmatprep.subr.mxu0 0.0
        %4260 = vmatpush1.msra.mxu0 0.0
        %4261 = vmatprep.subr.mxu0 0.0
        %4262 = vmatpush1.msra.mxu0 0.0
        %4263 = vmatprep.subr.mxu0 0.0
        %4264 = vmatpush1.msra.mxu0 0.0
        %4265 = vmatprep.subr.mxu0 0.0
        %4266 = vmatpush1.msra.mxu0 0.0
        %4267 = vmatprep.subr.mxu0 0.0
        %4268 = vmatpush1.msra.mxu0 0.0
        %4269 = vmatprep.subr.mxu0 0.0
        %4270 = vmatpush1.msra.mxu0 0.0
        %4271 = vmatprep.subr.mxu0 0.0
        %4272 = vmatpush1.msra.mxu0 0.0
        %4273 = vmatprep.subr.mxu0 0.0
        %4274 = vmatpush1.msra.mxu0 0.0
        %4275 = vmatprep.subr.mxu0 0.0
        %4276 = vmatpush1.msra.mxu0 0.0
        %4277 = vmatprep.mubr.f32.mxu0 0.0
        %4278 = vmatmul.mubr.f32.gmra.mrb[0].mxu0 %v4109
        %v4279 = vpop.f32.mrb[0].mxu0
        %v4280 = vadd.f32 0.0, %v4279
        %v4281 = vpop.f32.mrb[0].mxu0
        %4282 = vdwg.mxu0
        %4283 = vmatprep.subr.mxu0 %v350
        %4284 = vmatpush1.msra.mxu0 %v349
        %4285 = vmatprep.subr.mxu0 %v353
        %4286 = vmatpush1.msra.mxu0 %v352
        %4287 = vmatprep.subr.mxu0 %v356
        %4288 = vmatpush1.msra.mxu0 %v355
        %4289 = vmatprep.subr.mxu0 %v359
        %4290 = vmatpush1.msra.mxu0 %v358
        %4291 = vmatprep.subr.mxu0 %v362
        %4292 = vmatpush1.msra.mxu0 %v361
        %4293 = vmatprep.subr.mxu0 %v365
        %4294 = vmatpush1.msra.mxu0 %v364
        %4295 = vmatprep.subr.mxu0 %v368
        %4296 = vmatpush1.msra.mxu0 %v367
        %4297 = vmatprep.subr.mxu0 %v371
        %4298 = vmatpush1.msra.mxu0 %v370
        %4299 = vmatprep.subr.mxu0 %v374
        %4300 = vmatpush1.msra.mxu0 %v373
        %4301 = vmatprep.subr.mxu0 %v377
        %4302 = vmatpush1.msra.mxu0 %v376
        %4303 = vmatprep.subr.mxu0 %v380
        %4304 = vmatpush1.msra.mxu0 %v379
        %4305 = vmatprep.subr.mxu0 %v383
        %4306 = vmatpush1.msra.mxu0 %v382
        %4307 = vmatprep.subr.mxu0 %v386
        %4308 = vmatpush1.msra.mxu0 %v385
        %4309 = vmatprep.subr.mxu0 %v389
        %4310 = vmatpush1.msra.mxu0 %v388
        %4311 = vmatprep.subr.mxu0 %v392
        %4312 = vmatpush1.msra.mxu0 %v391
        %4313 = vmatprep.subr.mxu0 %v395
        %4314 = vmatpush1.msra.mxu0 %v394
        %4315 = vmatprep.subr.mxu0 0.0
        %4316 = vmatpush1.msra.mxu0 0.0
        %4317 = vmatprep.subr.mxu0 0.0
        %4318 = vmatpush1.msra.mxu0 0.0
        %4319 = vmatprep.subr.mxu0 0.0
        %4320 = vmatpush1.msra.mxu0 0.0
        %4321 = vmatprep.subr.mxu0 0.0
        %4322 = vmatpush1.msra.mxu0 0.0
        %4323 = vmatprep.subr.mxu0 0.0
        %4324 = vmatpush1.msra.mxu0 0.0
        %4325 = vmatprep.subr.mxu0 0.0
        %4326 = vmatpush1.msra.mxu0 0.0
        %4327 = vmatprep.subr.mxu0 0.0
        %4328 = vmatpush1.msra.mxu0 0.0
        %4329 = vmatprep.subr.mxu0 0.0
        %4330 = vmatpush1.msra.mxu0 0.0
        %4331 = vmatprep.subr.mxu0 0.0
        %4332 = vmatpush1.msra.mxu0 0.0
        %4333 = vmatprep.subr.mxu0 0.0
        %4334 = vmatpush1.msra.mxu0 0.0
        %4335 = vmatprep.subr.mxu0 0.0
        %4336 = vmatpush1.msra.mxu0 0.0
        %4337 = vmatprep.subr.mxu0 0.0
        %4338 = vmatpush1.msra.mxu0 0.0
        %4339 = vmatprep.subr.mxu0 0.0
        %4340 = vmatpush1.msra.mxu0 0.0
        %4341 = vmatprep.subr.mxu0 0.0
        %4342 = vmatpush1.msra.mxu0 0.0
        %4343 = vmatprep.subr.mxu0 0.0
        %4344 = vmatpush1.msra.mxu0 0.0
        %4345 = vmatprep.subr.mxu0 0.0
        %4346 = vmatpush1.msra.mxu0 0.0
        %4347 = vmatprep.mubr.f32.mxu0 0.0
        %4348 = vmatmul.mubr.f32.gmra.mrb[0].mxu0 %v4135
        %v4349 = vpop.f32.mrb[0].mxu0
        %v4350 = vadd.f32 0.0, %v4349
        %v4351 = vpop.f32.mrb[0].mxu0
        %v4352 = vadd.f32 0.0, %v4351
        %4353 = vdwg.mxu0
        %4354 = vmatprep.subr.mxu0 0.0
        %4355 = vmatpush1.msra.mxu0 %v351
        %4356 = vmatprep.subr.mxu0 0.0
        %4357 = vmatpush1.msra.mxu0 %v354
        %4358 = vmatprep.subr.mxu0 0.0
        %4359 = vmatpush1.msra.mxu0 %v357
        %4360 = vmatprep.subr.mxu0 0.0
        %4361 = vmatpush1.msra.mxu0 %v360
        %4362 = vmatprep.subr.mxu0 0.0
        %4363 = vmatpush1.msra.mxu0 %v363
        %4364 = vmatprep.subr.mxu0 0.0
        %4365 = vmatpush1.msra.mxu0 %v366
        %4366 = vmatprep.subr.mxu0 0.0
        %4367 = vmatpush1.msra.mxu0 %v369
        %4368 = vmatprep.subr.mxu0 0.0
        %4369 = vmatpush1.msra.mxu0 %v372
        %4370 = vmatprep.subr.mxu0 0.0
        %4371 = vmatpush1.msra.mxu0 %v375
        %4372 = vmatprep.subr.mxu0 0.0
        %4373 = vmatpush1.msra.mxu0 %v378
        %4374 = vmatprep.subr.mxu0 0.0
        %4375 = vmatpush1.msra.mxu0 %v381
        %4376 = vmatprep.subr.mxu0 0.0
        %4377 = vmatpush1.msra.mxu0 %v384
        %4378 = vmatprep.subr.mxu0 0.0
        %4379 = vmatpush1.msra.mxu0 %v387
        %4380 = vmatprep.subr.mxu0 0.0
        %4381 = vmatpush1.msra.mxu0 %v390
        %4382 = vmatprep.subr.mxu0 0.0
        %4383 = vmatpush1.msra.mxu0 %v393
        %4384 = vmatprep.subr.mxu0 0.0
        %4385 = vmatpush1.msra.mxu0 %v396
        %4386 = vmatprep.subr.mxu0 0.0
        %4387 = vmatpush1.msra.mxu0 0.0
        %4388 = vmatprep.subr.mxu0 0.0
        %4389 = vmatpush1.msra.mxu0 0.0
        %4390 = vmatprep.subr.mxu0 0.0
        %4391 = vmatpush1.msra.mxu0 0.0
        %4392 = vmatprep.subr.mxu0 0.0
        %4393 = vmatpush1.msra.mxu0 0.0
        %4394 = vmatprep.subr.mxu0 0.0
        %4395 = vmatpush1.msra.mxu0 0.0
        %4396 = vmatprep.subr.mxu0 0.0
        %4397 = vmatpush1.msra.mxu0 0.0
        %4398 = vmatprep.subr.mxu0 0.0
        %4399 = vmatpush1.msra.mxu0 0.0
        %4400 = vmatprep.subr.mxu0 0.0
        %4401 = vmatpush1.msra.mxu0 0.0
        %4402 = vmatprep.subr.mxu0 0.0
        %4403 = vmatpush1.msra.mxu0 0.0
        %4404 = vmatprep.subr.mxu0 0.0
        %4405 = vmatpush1.msra.mxu0 0.0
        %4406 = vmatprep.subr.mxu0 0.0
        %4407 = vmatpush1.msra.mxu0 0.0
        %4408 = vmatprep.subr.mxu0 0.0
        %4409 = vmatpush1.msra.mxu0 0.0
        %4410 = vmatprep.subr.mxu0 0.0
        %4411 = vmatpush1.msra.mxu0 0.0
        %4412 = vmatprep.subr.mxu0 0.0
        %4413 = vmatpush1.msra.mxu0 0.0
        %4414 = vmatprep.subr.mxu0 0.0
        %4415 = vmatpush1.msra.mxu0 0.0
        %4416 = vmatprep.subr.mxu0 0.0
        %4417 = vmatpush1.msra.mxu0 0.0
        %4418 = vmatprep.mubr.f32.mxu0 0.0
        %4419 = vmatmul.mubr.f32.gmra.mrb[0].mxu0 %v4135
        %v4420 = vpop.f32.mrb[0].mxu0
        %v4421 = vadd.f32 0.0, %v4420
        %v4422 = vpop.f32.mrb[0].mxu0
        %4423 = vdwg.mxu0
        %v4424 = vadd.f32 %v4139, %v4209
        %v4425 = vxor.u32 %v4424, 2147483648
        %v4426 = vmul.f32 %v4425, 1.442695
        %v4427 = vpow.pop %v4426
        %v4428 = vadd.f32 %v4427, 1.0
        %v4429 = vrcp.pop %v4428
        %v4430 = vmul.f32 1.0, %v4429
        %v4432 = vrot.slane %v4139, 1
        %v4434 = vadd.f32 %v4432, %v4211
        %v4435 = vxor.u32 %v4434, 2147483648
        %v4436 = vmul.f32 %v4435, 1.442695
        %v4437 = vpow.pop %v4436
        %v4438 = vadd.f32 %v4437, 1.0
        %v4439 = vrcp.pop %v4438
        %v4440 = vmul.f32 1.0, %v4439
        %v4441 = vmul.f32 %v4430, %v4280
        %v4442 = vrot.slane %v4139, 2
        %v4444 = vadd.f32 %v4442, %v4441
        %v4445 = vtanh.pop %v4444
        %v4446 = vsub.f32 1.0, %v4440
        %v4447 = vmul.f32 %v4446, %v4445
        %v4448 = vmul.f32 %v4440, %v4109
        %v4449 = vadd.f32 %v4447, %v4448
        %v4450 = vadd.f32 %v4141, %v4350
        %v4451 = vxor.u32 %v4450, 2147483648
        %v4452 = vmul.f32 %v4451, 1.442695
        %v4453 = vpow.pop %v4452
        %v4454 = vadd.f32 %v4453, 1.0
        %v4455 = vrcp.pop %v4454
        %v4456 = vmul.f32 1.0, %v4455
        %v4458 = vrot.slane %v4141, 1
        %v4460 = vadd.f32 %v4458, %v4352
        %v4461 = vxor.u32 %v4460, 2147483648
        %v4462 = vmul.f32 %v4461, 1.442695
        %v4463 = vpow.pop %v4462
        %v4464 = vadd.f32 %v4463, 1.0
        %v4465 = vrcp.pop %v4464
        %v4466 = vmul.f32 1.0, %v4465
        %v4467 = vmul.f32 %v4456, %v4421
        %v4468 = vrot.slane %v4141, 2
        %v4470 = vadd.f32 %v4468, %v4467
        %v4471 = vtanh.pop %v4470
        %v4472 = vsub.f32 1.0, %v4466
        %v4473 = vmul.f32 %v4472, %v4471
        %v4474 = vmul.f32 %v4466, %v4135
        %v4475 = vadd.f32 %v4473, %v4474
        %4476 = vst [vmem:[%s264 + $0xb] sm:$0x1] %v4449
        %4477 = vst [vmem:[%s271 + $0x4] sm:$0x1] %v4475
        %s4478 = scalar_lea.vmem %s230, 28 [#allocation6]
        %v4479 = vld [vmem:[%s4478] ss:$8 sm:$0x7]
        %s4480 = scalar_lea.vmem %s239, 3 [#allocation9]
        %v4481 = vld [vmem:[%s4480] ss:$8 sm:$0x7]
        %4482 = vmatprep.subr.mxu0 %v301
        %4483 = vmatpush1.msra.mxu0 %v300
        %4484 = vmatprep.subr.mxu0 %v304
        %4485 = vmatpush1.msra.mxu0 %v303
        %4486 = vmatprep.subr.mxu0 %v307
        %4487 = vmatpush1.msra.mxu0 %v306
        %4488 = vmatprep.subr.mxu0 %v310
        %4489 = vmatpush1.msra.mxu0 %v309
        %4490 = vmatprep.subr.mxu0 %v313
        %4491 = vmatpush1.msra.mxu0 %v312
        %4492 = vmatprep.subr.mxu0 %v316
        %4493 = vmatpush1.msra.mxu0 %v315
        %4494 = vmatprep.subr.mxu0 %v319
        %4495 = vmatpush1.msra.mxu0 %v318
        %4496 = vmatprep.subr.mxu0 %v322
        %4497 = vmatpush1.msra.mxu0 %v321
        %4498 = vmatprep.subr.mxu0 %v325
        %4499 = vmatpush1.msra.mxu0 %v324
        %4500 = vmatprep.subr.mxu0 %v328
        %4501 = vmatpush1.msra.mxu0 %v327
        %4502 = vmatprep.subr.mxu0 %v331
        %4503 = vmatpush1.msra.mxu0 %v330
        %4504 = vmatprep.subr.mxu0 %v334
        %4505 = vmatpush1.msra.mxu0 %v333
        %4506 = vmatprep.subr.mxu0 %v337
        %4507 = vmatpush1.msra.mxu0 %v336
        %4508 = vmatprep.subr.mxu0 %v340
        %4509 = vmatpush1.msra.mxu0 %v339
        %4510 = vmatprep.subr.mxu0 %v343
        %4511 = vmatpush1.msra.mxu0 %v342
        %4512 = vmatprep.subr.mxu0 %v346
        %4513 = vmatpush1.msra.mxu0 %v345
        %4514 = vmatprep.subr.mxu0 0.0
        %4515 = vmatpush1.msra.mxu0 0.0
        %4516 = vmatprep.subr.mxu0 0.0
        %4517 = vmatpush1.msra.mxu0 0.0
        %4518 = vmatprep.subr.mxu0 0.0
        %4519 = vmatpush1.msra.mxu0 0.0
        %4520 = vmatprep.subr.mxu0 0.0
        %4521 = vmatpush1.msra.mxu0 0.0
        %4522 = vmatprep.subr.mxu0 0.0
        %4523 = vmatpush1.msra.mxu0 0.0
        %4524 = vmatprep.subr.mxu0 0.0
        %4525 = vmatpush1.msra.mxu0 0.0
        %4526 = vmatprep.subr.mxu0 0.0
        %4527 = vmatpush1.msra.mxu0 0.0
        %4528 = vmatprep.subr.mxu0 0.0
        %4529 = vmatpush1.msra.mxu0 0.0
        %4530 = vmatprep.subr.mxu0 0.0
        %4531 = vmatpush1.msra.mxu0 0.0
        %4532 = vmatprep.subr.mxu0 0.0
        %4533 = vmatpush1.msra.mxu0 0.0
        %4534 = vmatprep.subr.mxu0 0.0
        %4535 = vmatpush1.msra.mxu0 0.0
        %4536 = vmatprep.subr.mxu0 0.0
        %4537 = vmatpush1.msra.mxu0 0.0
        %4538 = vmatprep.subr.mxu0 0.0
        %4539 = vmatpush1.msra.mxu0 0.0
        %4540 = vmatprep.subr.mxu0 0.0
        %4541 = vmatpush1.msra.mxu0 0.0
        %4542 = vmatprep.subr.mxu0 0.0
        %4543 = vmatpush1.msra.mxu0 0.0
        %4544 = vmatprep.subr.mxu0 0.0
        %4545 = vmatpush1.msra.mxu0 0.0
        %4546 = vmatprep.mubr.f32.mxu0 0.0
        %4547 = vmatmul.mubr.f32.gmra.mrb[0].mxu0 %v4449
        %v4548 = vpop.f32.mrb[0].mxu0
        %v4549 = vadd.f32 0.0, %v4548
        %v4550 = vpop.f32.mrb[0].mxu0
        %v4551 = vadd.f32 0.0, %v4550
        %4552 = vdwg.mxu0
        %4553 = vmatprep.subr.mxu0 0.0
        %4554 = vmatpush1.msra.mxu0 %v302
        %4555 = vmatprep.subr.mxu0 0.0
        %4556 = vmatpush1.msra.mxu0 %v305
        %4557 = vmatprep.subr.mxu0 0.0
        %4558 = vmatpush1.msra.mxu0 %v308
        %4559 = vmatprep.subr.mxu0 0.0
        %4560 = vmatpush1.msra.mxu0 %v311
        %4561 = vmatprep.subr.mxu0 0.0
        %4562 = vmatpush1.msra.mxu0 %v314
        %4563 = vmatprep.subr.mxu0 0.0
        %4564 = vmatpush1.msra.mxu0 %v317
        %4565 = vmatprep.subr.mxu0 0.0
        %4566 = vmatpush1.msra.mxu0 %v320
        %4567 = vmatprep.subr.mxu0 0.0
        %4568 = vmatpush1.msra.mxu0 %v323
        %4569 = vmatprep.subr.mxu0 0.0
        %4570 = vmatpush1.msra.mxu0 %v326
        %4571 = vmatprep.subr.mxu0 0.0
        %4572 = vmatpush1.msra.mxu0 %v329
        %4573 = vmatprep.subr.mxu0 0.0
        %4574 = vmatpush1.msra.mxu0 %v332
        %4575 = vmatprep.subr.mxu0 0.0
        %4576 = vmatpush1.msra.mxu0 %v335
        %4577 = vmatprep.subr.mxu0 0.0
        %4578 = vmatpush1.msra.mxu0 %v338
        %4579 = vmatprep.subr.mxu0 0.0
        %4580 = vmatpush1.msra.mxu0 %v341
        %4581 = vmatprep.subr.mxu0 0.0
        %4582 = vmatpush1.msra.mxu0 %v344
        %4583 = vmatprep.subr.mxu0 0.0
        %4584 = vmatpush1.msra.mxu0 %v347
        %4585 = vmatprep.subr.mxu0 0.0
        %4586 = vmatpush1.msra.mxu0 0.0
        %4587 = vmatprep.subr.mxu0 0.0
        %4588 = vmatpush1.msra.mxu0 0.0
        %4589 = vmatprep.subr.mxu0 0.0
        %4590 = vmatpush1.msra.mxu0 0.0
        %4591 = vmatprep.subr.mxu0 0.0
        %4592 = vmatpush1.msra.mxu0 0.0
        %4593 = vmatprep.subr.mxu0 0.0
        %4594 = vmatpush1.msra.mxu0 0.0
        %4595 = vmatprep.subr.mxu0 0.0
        %4596 = vmatpush1.msra.mxu0 0.0
        %4597 = vmatprep.subr.mxu0 0.0
        %4598 = vmatpush1.msra.mxu0 0.0
        %4599 = vmatprep.subr.mxu0 0.0
        %4600 = vmatpush1.msra.mxu0 0.0
        %4601 = vmatprep.subr.mxu0 0.0
        %4602 = vmatpush1.msra.mxu0 0.0
        %4603 = vmatprep.subr.mxu0 0.0
        %4604 = vmatpush1.msra.mxu0 0.0
        %4605 = vmatprep.subr.mxu0 0.0
        %4606 = vmatpush1.msra.mxu0 0.0
        %4607 = vmatprep.subr.mxu0 0.0
        %4608 = vmatpush1.msra.mxu0 0.0
        %4609 = vmatprep.subr.mxu0 0.0
        %4610 = vmatpush1.msra.mxu0 0.0
        %4611 = vmatprep.subr.mxu0 0.0
        %4612 = vmatpush1.msra.mxu0 0.0
        %4613 = vmatprep.subr.mxu0 0.0
        %4614 = vmatpush1.msra.mxu0 0.0
        %4615 = vmatprep.subr.mxu0 0.0
        %4616 = vmatpush1.msra.mxu0 0.0
        %4617 = vmatprep.mubr.f32.mxu0 0.0
        %4618 = vmatmul.mubr.f32.gmra.mrb[0].mxu0 %v4449
        %v4619 = vpop.f32.mrb[0].mxu0
        %v4620 = vadd.f32 0.0, %v4619
        %v4621 = vpop.f32.mrb[0].mxu0
        %4622 = vdwg.mxu0
        %4623 = vmatprep.subr.mxu0 %v350
        %4624 = vmatpush1.msra.mxu0 %v349
        %4625 = vmatprep.subr.mxu0 %v353
        %4626 = vmatpush1.msra.mxu0 %v352
        %4627 = vmatprep.subr.mxu0 %v356
        %4628 = vmatpush1.msra.mxu0 %v355
        %4629 = vmatprep.subr.mxu0 %v359
        %4630 = vmatpush1.msra.mxu0 %v358
        %4631 = vmatprep.subr.mxu0 %v362
        %4632 = vmatpush1.msra.mxu0 %v361
        %4633 = vmatprep.subr.mxu0 %v365
        %4634 = vmatpush1.msra.mxu0 %v364
        %4635 = vmatprep.subr.mxu0 %v368
        %4636 = vmatpush1.msra.mxu0 %v367
        %4637 = vmatprep.subr.mxu0 %v371
        %4638 = vmatpush1.msra.mxu0 %v370
        %4639 = vmatprep.subr.mxu0 %v374
        %4640 = vmatpush1.msra.mxu0 %v373
        %4641 = vmatprep.subr.mxu0 %v377
        %4642 = vmatpush1.msra.mxu0 %v376
        %4643 = vmatprep.subr.mxu0 %v380
        %4644 = vmatpush1.msra.mxu0 %v379
        %4645 = vmatprep.subr.mxu0 %v383
        %4646 = vmatpush1.msra.mxu0 %v382
        %4647 = vmatprep.subr.mxu0 %v386
        %4648 = vmatpush1.msra.mxu0 %v385
        %4649 = vmatprep.subr.mxu0 %v389
        %4650 = vmatpush1.msra.mxu0 %v388
        %4651 = vmatprep.subr.mxu0 %v392
        %4652 = vmatpush1.msra.mxu0 %v391
        %4653 = vmatprep.subr.mxu0 %v395
        %4654 = vmatpush1.msra.mxu0 %v394
        %4655 = vmatprep.subr.mxu0 0.0
        %4656 = vmatpush1.msra.mxu0 0.0
        %4657 = vmatprep.subr.mxu0 0.0
        %4658 = vmatpush1.msra.mxu0 0.0
        %4659 = vmatprep.subr.mxu0 0.0
        %4660 = vmatpush1.msra.mxu0 0.0
        %4661 = vmatprep.subr.mxu0 0.0
        %4662 = vmatpush1.msra.mxu0 0.0
        %4663 = vmatprep.subr.mxu0 0.0
        %4664 = vmatpush1.msra.mxu0 0.0
        %4665 = vmatprep.subr.mxu0 0.0
        %4666 = vmatpush1.msra.mxu0 0.0
        %4667 = vmatprep.subr.mxu0 0.0
        %4668 = vmatpush1.msra.mxu0 0.0
        %4669 = vmatprep.subr.mxu0 0.0
        %4670 = vmatpush1.msra.mxu0 0.0
        %4671 = vmatprep.subr.mxu0 0.0
        %4672 = vmatpush1.msra.mxu0 0.0
        %4673 = vmatprep.subr.mxu0 0.0
        %4674 = vmatpush1.msra.mxu0 0.0
        %4675 = vmatprep.subr.mxu0 0.0
        %4676 = vmatpush1.msra.mxu0 0.0
        %4677 = vmatprep.subr.mxu0 0.0
        %4678 = vmatpush1.msra.mxu0 0.0
        %4679 = vmatprep.subr.mxu0 0.0
        %4680 = vmatpush1.msra.mxu0 0.0
        %4681 = vmatprep.subr.mxu0 0.0
        %4682 = vmatpush1.msra.mxu0 0.0
        %4683 = vmatprep.subr.mxu0 0.0
        %4684 = vmatpush1.msra.mxu0 0.0
        %4685 = vmatprep.subr.mxu0 0.0
        %4686 = vmatpush1.msra.mxu0 0.0
        %4687 = vmatprep.mubr.f32.mxu0 0.0
        %4688 = vmatmul.mubr.f32.gmra.mrb[0].mxu0 %v4475
        %v4689 = vpop.f32.mrb[0].mxu0
        %v4690 = vadd.f32 0.0, %v4689
        %v4691 = vpop.f32.mrb[0].mxu0
        %v4692 = vadd.f32 0.0, %v4691
        %4693 = vdwg.mxu0
        %4694 = vmatprep.subr.mxu0 0.0
        %4695 = vmatpush1.msra.mxu0 %v351
        %4696 = vmatprep.subr.mxu0 0.0
        %4697 = vmatpush1.msra.mxu0 %v354
        %4698 = vmatprep.subr.mxu0 0.0
        %4699 = vmatpush1.msra.mxu0 %v357
        %4700 = vmatprep.subr.mxu0 0.0
        %4701 = vmatpush1.msra.mxu0 %v360
        %4702 = vmatprep.subr.mxu0 0.0
        %4703 = vmatpush1.msra.mxu0 %v363
        %4704 = vmatprep.subr.mxu0 0.0
        %4705 = vmatpush1.msra.mxu0 %v366
        %4706 = vmatprep.subr.mxu0 0.0
        %4707 = vmatpush1.msra.mxu0 %v369
        %4708 = vmatprep.subr.mxu0 0.0
        %4709 = vmatpush1.msra.mxu0 %v372
        %4710 = vmatprep.subr.mxu0 0.0
        %4711 = vmatpush1.msra.mxu0 %v375
        %4712 = vmatprep.subr.mxu0 0.0
        %4713 = vmatpush1.msra.mxu0 %v378
        %4714 = vmatprep.subr.mxu0 0.0
        %4715 = vmatpush1.msra.mxu0 %v381
        %4716 = vmatprep.subr.mxu0 0.0
        %4717 = vmatpush1.msra.mxu0 %v384
        %4718 = vmatprep.subr.mxu0 0.0
        %4719 = vmatpush1.msra.mxu0 %v387
        %4720 = vmatprep.subr.mxu0 0.0
        %4721 = vmatpush1.msra.mxu0 %v390
        %4722 = vmatprep.subr.mxu0 0.0
        %4723 = vmatpush1.msra.mxu0 %v393
        %4724 = vmatprep.subr.mxu0 0.0
        %4725 = vmatpush1.msra.mxu0 %v396
        %4726 = vmatprep.subr.mxu0 0.0
        %4727 = vmatpush1.msra.mxu0 0.0
        %4728 = vmatprep.subr.mxu0 0.0
        %4729 = vmatpush1.msra.mxu0 0.0
        %4730 = vmatprep.subr.mxu0 0.0
        %4731 = vmatpush1.msra.mxu0 0.0
        %4732 = vmatprep.subr.mxu0 0.0
        %4733 = vmatpush1.msra.mxu0 0.0
        %4734 = vmatprep.subr.mxu0 0.0
        %4735 = vmatpush1.msra.mxu0 0.0
        %4736 = vmatprep.subr.mxu0 0.0
        %4737 = vmatpush1.msra.mxu0 0.0
        %4738 = vmatprep.subr.mxu0 0.0
        %4739 = vmatpush1.msra.mxu0 0.0
        %4740 = vmatprep.subr.mxu0 0.0
        %4741 = vmatpush1.msra.mxu0 0.0
        %4742 = vmatprep.subr.mxu0 0.0
        %4743 = vmatpush1.msra.mxu0 0.0
        %4744 = vmatprep.subr.mxu0 0.0
        %4745 = vmatpush1.msra.mxu0 0.0
        %4746 = vmatprep.subr.mxu0 0.0
        %4747 = vmatpush1.msra.mxu0 0.0
        %4748 = vmatprep.subr.mxu0 0.0
        %4749 = vmatpush1.msra.mxu0 0.0
        %4750 = vmatprep.subr.mxu0 0.0
        %4751 = vmatpush1.msra.mxu0 0.0
        %4752 = vmatprep.subr.mxu0 0.0
        %4753 = vmatpush1.msra.mxu0 0.0
        %4754 = vmatprep.subr.mxu0 0.0
        %4755 = vmatpush1.msra.mxu0 0.0
        %4756 = vmatprep.subr.mxu0 0.0
        %4757 = vmatpush1.msra.mxu0 0.0
        %4758 = vmatprep.mubr.f32.mxu0 0.0
        %4759 = vmatmul.mubr.f32.gmra.mrb[0].mxu0 %v4475
        %v4760 = vpop.f32.mrb[0].mxu0
        %v4761 = vadd.f32 0.0, %v4760
        %v4762 = vpop.f32.mrb[0].mxu0
        %4763 = vdwg.mxu0
        %v4764 = vadd.f32 %v4479, %v4549
        %v4765 = vxor.u32 %v4764, 2147483648
        %v4766 = vmul.f32 %v4765, 1.442695
        %v4767 = vpow.pop %v4766
        %v4768 = vadd.f32 %v4767, 1.0
        %v4769 = vrcp.pop %v4768
        %v4770 = vmul.f32 1.0, %v4769
        %v4772 = vrot.slane %v4479, 1
        %v4774 = vadd.f32 %v4772, %v4551
        %v4775 = vxor.u32 %v4774, 2147483648
        %v4776 = vmul.f32 %v4775, 1.442695
        %v4777 = vpow.pop %v4776
        %v4778 = vadd.f32 %v4777, 1.0
        %v4779 = vrcp.pop %v4778
        %v4780 = vmul.f32 1.0, %v4779
        %v4781 = vmul.f32 %v4770, %v4620
        %v4782 = vrot.slane %v4479, 2
        %v4784 = vadd.f32 %v4782, %v4781
        %v4785 = vtanh.pop %v4784
        %v4786 = vsub.f32 1.0, %v4780
        %v4787 = vmul.f32 %v4786, %v4785
        %v4788 = vmul.f32 %v4780, %v4449
        %v4789 = vadd.f32 %v4787, %v4788
        %v4790 = vadd.f32 %v4481, %v4690
        %v4791 = vxor.u32 %v4790, 2147483648
        %v4792 = vmul.f32 %v4791, 1.442695
        %v4793 = vpow.pop %v4792
        %v4794 = vadd.f32 %v4793, 1.0
        %v4795 = vrcp.pop %v4794
        %v4796 = vmul.f32 1.0, %v4795
        %v4798 = vrot.slane %v4481, 1
        %v4800 = vadd.f32 %v4798, %v4692
        %v4801 = vxor.u32 %v4800, 2147483648
        %v4802 = vmul.f32 %v4801, 1.442695
        %v4803 = vpow.pop %v4802
        %v4804 = vadd.f32 %v4803, 1.0
        %v4805 = vrcp.pop %v4804
        %v4806 = vmul.f32 1.0, %v4805
        %v4807 = vmul.f32 %v4796, %v4761
        %v4808 = vrot.slane %v4481, 2
        %v4810 = vadd.f32 %v4808, %v4807
        %v4811 = vtanh.pop %v4810
        %v4812 = vsub.f32 1.0, %v4806
        %v4813 = vmul.f32 %v4812, %v4811
        %v4814 = vmul.f32 %v4806, %v4475
        %v4815 = vadd.f32 %v4813, %v4814
        %4816 = vst [vmem:[%s264 + $0xc] sm:$0x1] %v4789
        %4817 = vst [vmem:[%s271 + $0x3] sm:$0x1] %v4815
        %s4818 = scalar_lea.vmem %s230, 29 [#allocation6]
        %v4819 = vld [vmem:[%s4818] ss:$8 sm:$0x7]
        %s4820 = scalar_lea.vmem %s239, 2 [#allocation9]
        %v4821 = vld [vmem:[%s4820] ss:$8 sm:$0x7]
        %4822 = vmatprep.subr.mxu0 %v301
        %4823 = vmatpush1.msra.mxu0 %v300
        %4824 = vmatprep.subr.mxu0 %v304
        %4825 = vmatpush1.msra.mxu0 %v303
        %4826 = vmatprep.subr.mxu0 %v307
        %4827 = vmatpush1.msra.mxu0 %v306
        %4828 = vmatprep.subr.mxu0 %v310
        %4829 = vmatpush1.msra.mxu0 %v309
        %4830 = vmatprep.subr.mxu0 %v313
        %4831 = vmatpush1.msra.mxu0 %v312
        %4832 = vmatprep.subr.mxu0 %v316
        %4833 = vmatpush1.msra.mxu0 %v315
        %4834 = vmatprep.subr.mxu0 %v319
        %4835 = vmatpush1.msra.mxu0 %v318
        %4836 = vmatprep.subr.mxu0 %v322
        %4837 = vmatpush1.msra.mxu0 %v321
        %4838 = vmatprep.subr.mxu0 %v325
        %4839 = vmatpush1.msra.mxu0 %v324
        %4840 = vmatprep.subr.mxu0 %v328
        %4841 = vmatpush1.msra.mxu0 %v327
        %4842 = vmatprep.subr.mxu0 %v331
        %4843 = vmatpush1.msra.mxu0 %v330
        %4844 = vmatprep.subr.mxu0 %v334
        %4845 = vmatpush1.msra.mxu0 %v333
        %4846 = vmatprep.subr.mxu0 %v337
        %4847 = vmatpush1.msra.mxu0 %v336
        %4848 = vmatprep.subr.mxu0 %v340
        %4849 = vmatpush1.msra.mxu0 %v339
        %4850 = vmatprep.subr.mxu0 %v343
        %4851 = vmatpush1.msra.mxu0 %v342
        %4852 = vmatprep.subr.mxu0 %v346
        %4853 = vmatpush1.msra.mxu0 %v345
        %4854 = vmatprep.subr.mxu0 0.0
        %4855 = vmatpush1.msra.mxu0 0.0
        %4856 = vmatprep.subr.mxu0 0.0
        %4857 = vmatpush1.msra.mxu0 0.0
        %4858 = vmatprep.subr.mxu0 0.0
        %4859 = vmatpush1.msra.mxu0 0.0
        %4860 = vmatprep.subr.mxu0 0.0
        %4861 = vmatpush1.msra.mxu0 0.0
        %4862 = vmatprep.subr.mxu0 0.0
        %4863 = vmatpush1.msra.mxu0 0.0
        %4864 = vmatprep.subr.mxu0 0.0
        %4865 = vmatpush1.msra.mxu0 0.0
        %4866 = vmatprep.subr.mxu0 0.0
        %4867 = vmatpush1.msra.mxu0 0.0
        %4868 = vmatprep.subr.mxu0 0.0
        %4869 = vmatpush1.msra.mxu0 0.0
        %4870 = vmatprep.subr.mxu0 0.0
        %4871 = vmatpush1.msra.mxu0 0.0
        %4872 = vmatprep.subr.mxu0 0.0
        %4873 = vmatpush1.msra.mxu0 0.0
        %4874 = vmatprep.subr.mxu0 0.0
        %4875 = vmatpush1.msra.mxu0 0.0
        %4876 = vmatprep.subr.mxu0 0.0
        %4877 = vmatpush1.msra.mxu0 0.0
        %4878 = vmatprep.subr.mxu0 0.0
        %4879 = vmatpush1.msra.mxu0 0.0
        %4880 = vmatprep.subr.mxu0 0.0
        %4881 = vmatpush1.msra.mxu0 0.0
        %4882 = vmatprep.subr.mxu0 0.0
        %4883 = vmatpush1.msra.mxu0 0.0
        %4884 = vmatprep.subr.mxu0 0.0
        %4885 = vmatpush1.msra.mxu0 0.0
        %4886 = vmatprep.mubr.f32.mxu0 0.0
        %4887 = vmatmul.mubr.f32.gmra.mrb[0].mxu0 %v4789
        %v4888 = vpop.f32.mrb[0].mxu0
        %v4889 = vadd.f32 0.0, %v4888
        %v4890 = vpop.f32.mrb[0].mxu0
        %v4891 = vadd.f32 0.0, %v4890
        %4892 = vdwg.mxu0
        %4893 = vmatprep.subr.mxu0 0.0
        %4894 = vmatpush1.msra.mxu0 %v302
        %4895 = vmatprep.subr.mxu0 0.0
        %4896 = vmatpush1.msra.mxu0 %v305
        %4897 = vmatprep.subr.mxu0 0.0
        %4898 = vmatpush1.msra.mxu0 %v308
        %4899 = vmatprep.subr.mxu0 0.0
        %4900 = vmatpush1.msra.mxu0 %v311
        %4901 = vmatprep.subr.mxu0 0.0
        %4902 = vmatpush1.msra.mxu0 %v314
        %4903 = vmatprep.subr.mxu0 0.0
        %4904 = vmatpush1.msra.mxu0 %v317
        %4905 = vmatprep.subr.mxu0 0.0
        %4906 = vmatpush1.msra.mxu0 %v320
        %4907 = vmatprep.subr.mxu0 0.0
        %4908 = vmatpush1.msra.mxu0 %v323
        %4909 = vmatprep.subr.mxu0 0.0
        %4910 = vmatpush1.msra.mxu0 %v326
        %4911 = vmatprep.subr.mxu0 0.0
        %4912 = vmatpush1.msra.mxu0 %v329
        %4913 = vmatprep.subr.mxu0 0.0
        %4914 = vmatpush1.msra.mxu0 %v332
        %4915 = vmatprep.subr.mxu0 0.0
        %4916 = vmatpush1.msra.mxu0 %v335
        %4917 = vmatprep.subr.mxu0 0.0
        %4918 = vmatpush1.msra.mxu0 %v338
        %4919 = vmatprep.subr.mxu0 0.0
        %4920 = vmatpush1.msra.mxu0 %v341
        %4921 = vmatprep.subr.mxu0 0.0
        %4922 = vmatpush1.msra.mxu0 %v344
        %4923 = vmatprep.subr.mxu0 0.0
        %4924 = vmatpush1.msra.mxu0 %v347
        %4925 = vmatprep.subr.mxu0 0.0
        %4926 = vmatpush1.msra.mxu0 0.0
        %4927 = vmatprep.subr.mxu0 0.0
        %4928 = vmatpush1.msra.mxu0 0.0
        %4929 = vmatprep.subr.mxu0 0.0
        %4930 = vmatpush1.msra.mxu0 0.0
        %4931 = vmatprep.subr.mxu0 0.0
        %4932 = vmatpush1.msra.mxu0 0.0
        %4933 = vmatprep.subr.mxu0 0.0
        %4934 = vmatpush1.msra.mxu0 0.0
        %4935 = vmatprep.subr.mxu0 0.0
        %4936 = vmatpush1.msra.mxu0 0.0
        %4937 = vmatprep.subr.mxu0 0.0
        %4938 = vmatpush1.msra.mxu0 0.0
        %4939 = vmatprep.subr.mxu0 0.0
        %4940 = vmatpush1.msra.mxu0 0.0
        %4941 = vmatprep.subr.mxu0 0.0
        %4942 = vmatpush1.msra.mxu0 0.0
        %4943 = vmatprep.subr.mxu0 0.0
        %4944 = vmatpush1.msra.mxu0 0.0
        %4945 = vmatprep.subr.mxu0 0.0
        %4946 = vmatpush1.msra.mxu0 0.0
        %4947 = vmatprep.subr.mxu0 0.0
        %4948 = vmatpush1.msra.mxu0 0.0
        %4949 = vmatprep.subr.mxu0 0.0
        %4950 = vmatpush1.msra.mxu0 0.0
        %4951 = vmatprep.subr.mxu0 0.0
        %4952 = vmatpush1.msra.mxu0 0.0
        %4953 = vmatprep.subr.mxu0 0.0
        %4954 = vmatpush1.msra.mxu0 0.0
        %4955 = vmatprep.subr.mxu0 0.0
        %4956 = vmatpush1.msra.mxu0 0.0
        %4957 = vmatprep.mubr.f32.mxu0 0.0
        %4958 = vmatmul.mubr.f32.gmra.mrb[0].mxu0 %v4789
        %v4959 = vpop.f32.mrb[0].mxu0
        %v4960 = vadd.f32 0.0, %v4959
        %v4961 = vpop.f32.mrb[0].mxu0
        %4962 = vdwg.mxu0
        %4963 = vmatprep.subr.mxu0 %v350
        %4964 = vmatpush1.msra.mxu0 %v349
        %4965 = vmatprep.subr.mxu0 %v353
        %4966 = vmatpush1.msra.mxu0 %v352
        %4967 = vmatprep.subr.mxu0 %v356
        %4968 = vmatpush1.msra.mxu0 %v355
        %4969 = vmatprep.subr.mxu0 %v359
        %4970 = vmatpush1.msra.mxu0 %v358
        %4971 = vmatprep.subr.mxu0 %v362
        %4972 = vmatpush1.msra.mxu0 %v361
        %4973 = vmatprep.subr.mxu0 %v365
        %4974 = vmatpush1.msra.mxu0 %v364
        %4975 = vmatprep.subr.mxu0 %v368
        %4976 = vmatpush1.msra.mxu0 %v367
        %4977 = vmatprep.subr.mxu0 %v371
        %4978 = vmatpush1.msra.mxu0 %v370
        %4979 = vmatprep.subr.mxu0 %v374
        %4980 = vmatpush1.msra.mxu0 %v373
        %4981 = vmatprep.subr.mxu0 %v377
        %4982 = vmatpush1.msra.mxu0 %v376
        %4983 = vmatprep.subr.mxu0 %v380
        %4984 = vmatpush1.msra.mxu0 %v379
        %4985 = vmatprep.subr.mxu0 %v383
        %4986 = vmatpush1.msra.mxu0 %v382
        %4987 = vmatprep.subr.mxu0 %v386
        %4988 = vmatpush1.msra.mxu0 %v385
        %4989 = vmatprep.subr.mxu0 %v389
        %4990 = vmatpush1.msra.mxu0 %v388
        %4991 = vmatprep.subr.mxu0 %v392
        %4992 = vmatpush1.msra.mxu0 %v391
        %4993 = vmatprep.subr.mxu0 %v395
        %4994 = vmatpush1.msra.mxu0 %v394
        %4995 = vmatprep.subr.mxu0 0.0
        %4996 = vmatpush1.msra.mxu0 0.0
        %4997 = vmatprep.subr.mxu0 0.0
        %4998 = vmatpush1.msra.mxu0 0.0
        %4999 = vmatprep.subr.mxu0 0.0
        %5000 = vmatpush1.msra.mxu0 0.0
        %5001 = vmatprep.subr.mxu0 0.0
        %5002 = vmatpush1.msra.mxu0 0.0
        %5003 = vmatprep.subr.mxu0 0.0
        %5004 = vmatpush1.msra.mxu0 0.0
        %5005 = vmatprep.subr.mxu0 0.0
        %5006 = vmatpush1.msra.mxu0 0.0
        %5007 = vmatprep.subr.mxu0 0.0
        %5008 = vmatpush1.msra.mxu0 0.0
        %5009 = vmatprep.subr.mxu0 0.0
        %5010 = vmatpush1.msra.mxu0 0.0
        %5011 = vmatprep.subr.mxu0 0.0
        %5012 = vmatpush1.msra.mxu0 0.0
        %5013 = vmatprep.subr.mxu0 0.0
        %5014 = vmatpush1.msra.mxu0 0.0
        %5015 = vmatprep.subr.mxu0 0.0
        %5016 = vmatpush1.msra.mxu0 0.0
        %5017 = vmatprep.subr.mxu0 0.0
        %5018 = vmatpush1.msra.mxu0 0.0
        %5019 = vmatprep.subr.mxu0 0.0
        %5020 = vmatpush1.msra.mxu0 0.0
        %5021 = vmatprep.subr.mxu0 0.0
        %5022 = vmatpush1.msra.mxu0 0.0
        %5023 = vmatprep.subr.mxu0 0.0
        %5024 = vmatpush1.msra.mxu0 0.0
        %5025 = vmatprep.subr.mxu0 0.0
        %5026 = vmatpush1.msra.mxu0 0.0
        %5027 = vmatprep.mubr.f32.mxu0 0.0
        %5028 = vmatmul.mubr.f32.gmra.mrb[0].mxu0 %v4815
        %v5029 = vpop.f32.mrb[0].mxu0
        %v5030 = vadd.f32 0.0, %v5029
        %v5031 = vpop.f32.mrb[0].mxu0
        %v5032 = vadd.f32 0.0, %v5031
        %5033 = vdwg.mxu0
        %5034 = vmatprep.subr.mxu0 0.0
        %5035 = vmatpush1.msra.mxu0 %v351
        %5036 = vmatprep.subr.mxu0 0.0
        %5037 = vmatpush1.msra.mxu0 %v354
        %5038 = vmatprep.subr.mxu0 0.0
        %5039 = vmatpush1.msra.mxu0 %v357
        %5040 = vmatprep.subr.mxu0 0.0
        %5041 = vmatpush1.msra.mxu0 %v360
        %5042 = vmatprep.subr.mxu0 0.0
        %5043 = vmatpush1.msra.mxu0 %v363
        %5044 = vmatprep.subr.mxu0 0.0
        %5045 = vmatpush1.msra.mxu0 %v366
        %5046 = vmatprep.subr.mxu0 0.0
        %5047 = vmatpush1.msra.mxu0 %v369
        %5048 = vmatprep.subr.mxu0 0.0
        %5049 = vmatpush1.msra.mxu0 %v372
        %5050 = vmatprep.subr.mxu0 0.0
        %5051 = vmatpush1.msra.mxu0 %v375
        %5052 = vmatprep.subr.mxu0 0.0
        %5053 = vmatpush1.msra.mxu0 %v378
        %5054 = vmatprep.subr.mxu0 0.0
        %5055 = vmatpush1.msra.mxu0 %v381
        %5056 = vmatprep.subr.mxu0 0.0
        %5057 = vmatpush1.msra.mxu0 %v384
        %5058 = vmatprep.subr.mxu0 0.0
        %5059 = vmatpush1.msra.mxu0 %v387
        %5060 = vmatprep.subr.mxu0 0.0
        %5061 = vmatpush1.msra.mxu0 %v390
        %5062 = vmatprep.subr.mxu0 0.0
        %5063 = vmatpush1.msra.mxu0 %v393
        %5064 = vmatprep.subr.mxu0 0.0
        %5065 = vmatpush1.msra.mxu0 %v396
        %5066 = vmatprep.subr.mxu0 0.0
        %5067 = vmatpush1.msra.mxu0 0.0
        %5068 = vmatprep.subr.mxu0 0.0
        %5069 = vmatpush1.msra.mxu0 0.0
        %5070 = vmatprep.subr.mxu0 0.0
        %5071 = vmatpush1.msra.mxu0 0.0
        %5072 = vmatprep.subr.mxu0 0.0
        %5073 = vmatpush1.msra.mxu0 0.0
        %5074 = vmatprep.subr.mxu0 0.0
        %5075 = vmatpush1.msra.mxu0 0.0
        %5076 = vmatprep.subr.mxu0 0.0
        %5077 = vmatpush1.msra.mxu0 0.0
        %5078 = vmatprep.subr.mxu0 0.0
        %5079 = vmatpush1.msra.mxu0 0.0
        %5080 = vmatprep.subr.mxu0 0.0
        %5081 = vmatpush1.msra.mxu0 0.0
        %5082 = vmatprep.subr.mxu0 0.0
        %5083 = vmatpush1.msra.mxu0 0.0
        %5084 = vmatprep.subr.mxu0 0.0
        %5085 = vmatpush1.msra.mxu0 0.0
        %5086 = vmatprep.subr.mxu0 0.0
        %5087 = vmatpush1.msra.mxu0 0.0
        %5088 = vmatprep.subr.mxu0 0.0
        %5089 = vmatpush1.msra.mxu0 0.0
        %5090 = vmatprep.subr.mxu0 0.0
        %5091 = vmatpush1.msra.mxu0 0.0
        %5092 = vmatprep.subr.mxu0 0.0
        %5093 = vmatpush1.msra.mxu0 0.0
        %5094 = vmatprep.subr.mxu0 0.0
        %5095 = vmatpush1.msra.mxu0 0.0
        %5096 = vmatprep.subr.mxu0 0.0
        %5097 = vmatpush1.msra.mxu0 0.0
        %5098 = vmatprep.mubr.f32.mxu0 0.0
        %5099 = vmatmul.mubr.f32.gmra.mrb[0].mxu0 %v4815
        %v5100 = vpop.f32.mrb[0].mxu0
        %v5101 = vadd.f32 0.0, %v5100
        %v5102 = vpop.f32.mrb[0].mxu0
        %5103 = vdwg.mxu0
        %v5104 = vadd.f32 %v4819, %v4889
        %v5105 = vxor.u32 %v5104, 2147483648
        %v5106 = vmul.f32 %v5105, 1.442695
        %v5107 = vpow.pop %v5106
        %v5108 = vadd.f32 %v5107, 1.0
        %v5109 = vrcp.pop %v5108
        %v5110 = vmul.f32 1.0, %v5109
        %v5112 = vrot.slane %v4819, 1
        %v5114 = vadd.f32 %v5112, %v4891
        %v5115 = vxor.u32 %v5114, 2147483648
        %v5116 = vmul.f32 %v5115, 1.442695
        %v5117 = vpow.pop %v5116
        %v5118 = vadd.f32 %v5117, 1.0
        %v5119 = vrcp.pop %v5118
        %v5120 = vmul.f32 1.0, %v5119
        %v5121 = vmul.f32 %v5110, %v4960
        %v5122 = vrot.slane %v4819, 2
        %v5124 = vadd.f32 %v5122, %v5121
        %v5125 = vtanh.pop %v5124
        %v5126 = vsub.f32 1.0, %v5120
        %v5127 = vmul.f32 %v5126, %v5125
        %v5128 = vmul.f32 %v5120, %v4789
        %v5129 = vadd.f32 %v5127, %v5128
        %v5130 = vadd.f32 %v4821, %v5030
        %v5131 = vxor.u32 %v5130, 2147483648
        %v5132 = vmul.f32 %v5131, 1.442695
        %v5133 = vpow.pop %v5132
        %v5134 = vadd.f32 %v5133, 1.0
        %v5135 = vrcp.pop %v5134
        %v5136 = vmul.f32 1.0, %v5135
        %v5138 = vrot.slane %v4821, 1
        %v5140 = vadd.f32 %v5138, %v5032
        %v5141 = vxor.u32 %v5140, 2147483648
        %v5142 = vmul.f32 %v5141, 1.442695
        %v5143 = vpow.pop %v5142
        %v5144 = vadd.f32 %v5143, 1.0
        %v5145 = vrcp.pop %v5144
        %v5146 = vmul.f32 1.0, %v5145
        %v5147 = vmul.f32 %v5136, %v5101
        %v5148 = vrot.slane %v4821, 2
        %v5150 = vadd.f32 %v5148, %v5147
        %v5151 = vtanh.pop %v5150
        %v5152 = vsub.f32 1.0, %v5146
        %v5153 = vmul.f32 %v5152, %v5151
        %v5154 = vmul.f32 %v5146, %v4815
        %v5155 = vadd.f32 %v5153, %v5154
        %5156 = vst [vmem:[%s264 + $0xd] sm:$0x1] %v5129
        %5157 = vst [vmem:[%s271 + $0x2] sm:$0x1] %v5155
        %s5158 = scalar_lea.vmem %s230, 30 [#allocation6]
        %v5159 = vld [vmem:[%s5158] ss:$8 sm:$0x7]
        %s5160 = scalar_lea.vmem %s239, 1 [#allocation9]
        %v5161 = vld [vmem:[%s5160] ss:$8 sm:$0x7]
        %5162 = vmatprep.subr.mxu0 %v301
        %5163 = vmatpush1.msra.mxu0 %v300
        %5164 = vmatprep.subr.mxu0 %v304
        %5165 = vmatpush1.msra.mxu0 %v303
        %5166 = vmatprep.subr.mxu0 %v307
        %5167 = vmatpush1.msra.mxu0 %v306
        %5168 = vmatprep.subr.mxu0 %v310
        %5169 = vmatpush1.msra.mxu0 %v309
        %5170 = vmatprep.subr.mxu0 %v313
        %5171 = vmatpush1.msra.mxu0 %v312
        %5172 = vmatprep.subr.mxu0 %v316
        %5173 = vmatpush1.msra.mxu0 %v315
        %5174 = vmatprep.subr.mxu0 %v319
        %5175 = vmatpush1.msra.mxu0 %v318
        %5176 = vmatprep.subr.mxu0 %v322
        %5177 = vmatpush1.msra.mxu0 %v321
        %5178 = vmatprep.subr.mxu0 %v325
        %5179 = vmatpush1.msra.mxu0 %v324
        %5180 = vmatprep.subr.mxu0 %v328
        %5181 = vmatpush1.msra.mxu0 %v327
        %5182 = vmatprep.subr.mxu0 %v331
        %5183 = vmatpush1.msra.mxu0 %v330
        %5184 = vmatprep.subr.mxu0 %v334
        %5185 = vmatpush1.msra.mxu0 %v333
        %5186 = vmatprep.subr.mxu0 %v337
        %5187 = vmatpush1.msra.mxu0 %v336
        %5188 = vmatprep.subr.mxu0 %v340
        %5189 = vmatpush1.msra.mxu0 %v339
        %5190 = vmatprep.subr.mxu0 %v343
        %5191 = vmatpush1.msra.mxu0 %v342
        %5192 = vmatprep.subr.mxu0 %v346
        %5193 = vmatpush1.msra.mxu0 %v345
        %5194 = vmatprep.subr.mxu0 0.0
        %5195 = vmatpush1.msra.mxu0 0.0
        %5196 = vmatprep.subr.mxu0 0.0
        %5197 = vmatpush1.msra.mxu0 0.0
        %5198 = vmatprep.subr.mxu0 0.0
        %5199 = vmatpush1.msra.mxu0 0.0
        %5200 = vmatprep.subr.mxu0 0.0
        %5201 = vmatpush1.msra.mxu0 0.0
        %5202 = vmatprep.subr.mxu0 0.0
        %5203 = vmatpush1.msra.mxu0 0.0
        %5204 = vmatprep.subr.mxu0 0.0
        %5205 = vmatpush1.msra.mxu0 0.0
        %5206 = vmatprep.subr.mxu0 0.0
        %5207 = vmatpush1.msra.mxu0 0.0
        %5208 = vmatprep.subr.mxu0 0.0
        %5209 = vmatpush1.msra.mxu0 0.0
        %5210 = vmatprep.subr.mxu0 0.0
        %5211 = vmatpush1.msra.mxu0 0.0
        %5212 = vmatprep.subr.mxu0 0.0
        %5213 = vmatpush1.msra.mxu0 0.0
        %5214 = vmatprep.subr.mxu0 0.0
        %5215 = vmatpush1.msra.mxu0 0.0
        %5216 = vmatprep.subr.mxu0 0.0
        %5217 = vmatpush1.msra.mxu0 0.0
        %5218 = vmatprep.subr.mxu0 0.0
        %5219 = vmatpush1.msra.mxu0 0.0
        %5220 = vmatprep.subr.mxu0 0.0
        %5221 = vmatpush1.msra.mxu0 0.0
        %5222 = vmatprep.subr.mxu0 0.0
        %5223 = vmatpush1.msra.mxu0 0.0
        %5224 = vmatprep.subr.mxu0 0.0
        %5225 = vmatpush1.msra.mxu0 0.0
        %5226 = vmatprep.mubr.f32.mxu0 0.0
        %5227 = vmatmul.mubr.f32.gmra.mrb[0].mxu0 %v5129
        %v5228 = vpop.f32.mrb[0].mxu0
        %v5229 = vadd.f32 0.0, %v5228
        %v5230 = vpop.f32.mrb[0].mxu0
        %v5231 = vadd.f32 0.0, %v5230
        %5232 = vdwg.mxu0
        %5233 = vmatprep.subr.mxu0 0.0
        %5234 = vmatpush1.msra.mxu0 %v302
        %5235 = vmatprep.subr.mxu0 0.0
        %5236 = vmatpush1.msra.mxu0 %v305
        %5237 = vmatprep.subr.mxu0 0.0
        %5238 = vmatpush1.msra.mxu0 %v308
        %5239 = vmatprep.subr.mxu0 0.0
        %5240 = vmatpush1.msra.mxu0 %v311
        %5241 = vmatprep.subr.mxu0 0.0
        %5242 = vmatpush1.msra.mxu0 %v314
        %5243 = vmatprep.subr.mxu0 0.0
        %5244 = vmatpush1.msra.mxu0 %v317
        %5245 = vmatprep.subr.mxu0 0.0
        %5246 = vmatpush1.msra.mxu0 %v320
        %5247 = vmatprep.subr.mxu0 0.0
        %5248 = vmatpush1.msra.mxu0 %v323
        %5249 = vmatprep.subr.mxu0 0.0
        %5250 = vmatpush1.msra.mxu0 %v326
        %5251 = vmatprep.subr.mxu0 0.0
        %5252 = vmatpush1.msra.mxu0 %v329
        %5253 = vmatprep.subr.mxu0 0.0
        %5254 = vmatpush1.msra.mxu0 %v332
        %5255 = vmatprep.subr.mxu0 0.0
        %5256 = vmatpush1.msra.mxu0 %v335
        %5257 = vmatprep.subr.mxu0 0.0
        %5258 = vmatpush1.msra.mxu0 %v338
        %5259 = vmatprep.subr.mxu0 0.0
        %5260 = vmatpush1.msra.mxu0 %v341
        %5261 = vmatprep.subr.mxu0 0.0
        %5262 = vmatpush1.msra.mxu0 %v344
        %5263 = vmatprep.subr.mxu0 0.0
        %5264 = vmatpush1.msra.mxu0 %v347
        %5265 = vmatprep.subr.mxu0 0.0
        %5266 = vmatpush1.msra.mxu0 0.0
        %5267 = vmatprep.subr.mxu0 0.0
        %5268 = vmatpush1.msra.mxu0 0.0
        %5269 = vmatprep.subr.mxu0 0.0
        %5270 = vmatpush1.msra.mxu0 0.0
        %5271 = vmatprep.subr.mxu0 0.0
        %5272 = vmatpush1.msra.mxu0 0.0
        %5273 = vmatprep.subr.mxu0 0.0
        %5274 = vmatpush1.msra.mxu0 0.0
        %5275 = vmatprep.subr.mxu0 0.0
        %5276 = vmatpush1.msra.mxu0 0.0
        %5277 = vmatprep.subr.mxu0 0.0
        %5278 = vmatpush1.msra.mxu0 0.0
        %5279 = vmatprep.subr.mxu0 0.0
        %5280 = vmatpush1.msra.mxu0 0.0
        %5281 = vmatprep.subr.mxu0 0.0
        %5282 = vmatpush1.msra.mxu0 0.0
        %5283 = vmatprep.subr.mxu0 0.0
        %5284 = vmatpush1.msra.mxu0 0.0
        %5285 = vmatprep.subr.mxu0 0.0
        %5286 = vmatpush1.msra.mxu0 0.0
        %5287 = vmatprep.subr.mxu0 0.0
        %5288 = vmatpush1.msra.mxu0 0.0
        %5289 = vmatprep.subr.mxu0 0.0
        %5290 = vmatpush1.msra.mxu0 0.0
        %5291 = vmatprep.subr.mxu0 0.0
        %5292 = vmatpush1.msra.mxu0 0.0
        %5293 = vmatprep.subr.mxu0 0.0
        %5294 = vmatpush1.msra.mxu0 0.0
        %5295 = vmatprep.subr.mxu0 0.0
        %5296 = vmatpush1.msra.mxu0 0.0
        %5297 = vmatprep.mubr.f32.mxu0 0.0
        %5298 = vmatmul.mubr.f32.gmra.mrb[0].mxu0 %v5129
        %v5299 = vpop.f32.mrb[0].mxu0
        %v5300 = vadd.f32 0.0, %v5299
        %v5301 = vpop.f32.mrb[0].mxu0
        %5302 = vdwg.mxu0
        %5303 = vmatprep.subr.mxu0 %v350
        %5304 = vmatpush1.msra.mxu0 %v349
        %5305 = vmatprep.subr.mxu0 %v353
        %5306 = vmatpush1.msra.mxu0 %v352
        %5307 = vmatprep.subr.mxu0 %v356
        %5308 = vmatpush1.msra.mxu0 %v355
        %5309 = vmatprep.subr.mxu0 %v359
        %5310 = vmatpush1.msra.mxu0 %v358
        %5311 = vmatprep.subr.mxu0 %v362
        %5312 = vmatpush1.msra.mxu0 %v361
        %5313 = vmatprep.subr.mxu0 %v365
        %5314 = vmatpush1.msra.mxu0 %v364
        %5315 = vmatprep.subr.mxu0 %v368
        %5316 = vmatpush1.msra.mxu0 %v367
        %5317 = vmatprep.subr.mxu0 %v371
        %5318 = vmatpush1.msra.mxu0 %v370
        %5319 = vmatprep.subr.mxu0 %v374
        %5320 = vmatpush1.msra.mxu0 %v373
        %5321 = vmatprep.subr.mxu0 %v377
        %5322 = vmatpush1.msra.mxu0 %v376
        %5323 = vmatprep.subr.mxu0 %v380
        %5324 = vmatpush1.msra.mxu0 %v379
        %5325 = vmatprep.subr.mxu0 %v383
        %5326 = vmatpush1.msra.mxu0 %v382
        %5327 = vmatprep.subr.mxu0 %v386
        %5328 = vmatpush1.msra.mxu0 %v385
        %5329 = vmatprep.subr.mxu0 %v389
        %5330 = vmatpush1.msra.mxu0 %v388
        %5331 = vmatprep.subr.mxu0 %v392
        %5332 = vmatpush1.msra.mxu0 %v391
        %5333 = vmatprep.subr.mxu0 %v395
        %5334 = vmatpush1.msra.mxu0 %v394
        %5335 = vmatprep.subr.mxu0 0.0
        %5336 = vmatpush1.msra.mxu0 0.0
        %5337 = vmatprep.subr.mxu0 0.0
        %5338 = vmatpush1.msra.mxu0 0.0
        %5339 = vmatprep.subr.mxu0 0.0
        %5340 = vmatpush1.msra.mxu0 0.0
        %5341 = vmatprep.subr.mxu0 0.0
        %5342 = vmatpush1.msra.mxu0 0.0
        %5343 = vmatprep.subr.mxu0 0.0
        %5344 = vmatpush1.msra.mxu0 0.0
        %5345 = vmatprep.subr.mxu0 0.0
        %5346 = vmatpush1.msra.mxu0 0.0
        %5347 = vmatprep.subr.mxu0 0.0
        %5348 = vmatpush1.msra.mxu0 0.0
        %5349 = vmatprep.subr.mxu0 0.0
        %5350 = vmatpush1.msra.mxu0 0.0
        %5351 = vmatprep.subr.mxu0 0.0
        %5352 = vmatpush1.msra.mxu0 0.0
        %5353 = vmatprep.subr.mxu0 0.0
        %5354 = vmatpush1.msra.mxu0 0.0
        %5355 = vmatprep.subr.mxu0 0.0
        %5356 = vmatpush1.msra.mxu0 0.0
        %5357 = vmatprep.subr.mxu0 0.0
        %5358 = vmatpush1.msra.mxu0 0.0
        %5359 = vmatprep.subr.mxu0 0.0
        %5360 = vmatpush1.msra.mxu0 0.0
        %5361 = vmatprep.subr.mxu0 0.0
        %5362 = vmatpush1.msra.mxu0 0.0
        %5363 = vmatprep.subr.mxu0 0.0
        %5364 = vmatpush1.msra.mxu0 0.0
        %5365 = vmatprep.subr.mxu0 0.0
        %5366 = vmatpush1.msra.mxu0 0.0
        %5367 = vmatprep.mubr.f32.mxu0 0.0
        %5368 = vmatmul.mubr.f32.gmra.mrb[0].mxu0 %v5155
        %v5369 = vpop.f32.mrb[0].mxu0
        %v5370 = vadd.f32 0.0, %v5369
        %v5371 = vpop.f32.mrb[0].mxu0
        %v5372 = vadd.f32 0.0, %v5371
        %5373 = vdwg.mxu0
        %5374 = vmatprep.subr.mxu0 0.0
        %5375 = vmatpush1.msra.mxu0 %v351
        %5376 = vmatprep.subr.mxu0 0.0
        %5377 = vmatpush1.msra.mxu0 %v354
        %5378 = vmatprep.subr.mxu0 0.0
        %5379 = vmatpush1.msra.mxu0 %v357
        %5380 = vmatprep.subr.mxu0 0.0
        %5381 = vmatpush1.msra.mxu0 %v360
        %5382 = vmatprep.subr.mxu0 0.0
        %5383 = vmatpush1.msra.mxu0 %v363
        %5384 = vmatprep.subr.mxu0 0.0
        %5385 = vmatpush1.msra.mxu0 %v366
        %5386 = vmatprep.subr.mxu0 0.0
        %5387 = vmatpush1.msra.mxu0 %v369
        %5388 = vmatprep.subr.mxu0 0.0
        %5389 = vmatpush1.msra.mxu0 %v372
        %5390 = vmatprep.subr.mxu0 0.0
        %5391 = vmatpush1.msra.mxu0 %v375
        %5392 = vmatprep.subr.mxu0 0.0
        %5393 = vmatpush1.msra.mxu0 %v378
        %5394 = vmatprep.subr.mxu0 0.0
        %5395 = vmatpush1.msra.mxu0 %v381
        %5396 = vmatprep.subr.mxu0 0.0
        %5397 = vmatpush1.msra.mxu0 %v384
        %5398 = vmatprep.subr.mxu0 0.0
        %5399 = vmatpush1.msra.mxu0 %v387
        %5400 = vmatprep.subr.mxu0 0.0
        %5401 = vmatpush1.msra.mxu0 %v390
        %5402 = vmatprep.subr.mxu0 0.0
        %5403 = vmatpush1.msra.mxu0 %v393
        %5404 = vmatprep.subr.mxu0 0.0
        %5405 = vmatpush1.msra.mxu0 %v396
        %5406 = vmatprep.subr.mxu0 0.0
        %5407 = vmatpush1.msra.mxu0 0.0
        %5408 = vmatprep.subr.mxu0 0.0
        %5409 = vmatpush1.msra.mxu0 0.0
        %5410 = vmatprep.subr.mxu0 0.0
        %5411 = vmatpush1.msra.mxu0 0.0
        %5412 = vmatprep.subr.mxu0 0.0
        %5413 = vmatpush1.msra.mxu0 0.0
        %5414 = vmatprep.subr.mxu0 0.0
        %5415 = vmatpush1.msra.mxu0 0.0
        %5416 = vmatprep.subr.mxu0 0.0
        %5417 = vmatpush1.msra.mxu0 0.0
        %5418 = vmatprep.subr.mxu0 0.0
        %5419 = vmatpush1.msra.mxu0 0.0
        %5420 = vmatprep.subr.mxu0 0.0
        %5421 = vmatpush1.msra.mxu0 0.0
        %5422 = vmatprep.subr.mxu0 0.0
        %5423 = vmatpush1.msra.mxu0 0.0
        %5424 = vmatprep.subr.mxu0 0.0
        %5425 = vmatpush1.msra.mxu0 0.0
        %5426 = vmatprep.subr.mxu0 0.0
        %5427 = vmatpush1.msra.mxu0 0.0
        %5428 = vmatprep.subr.mxu0 0.0
        %5429 = vmatpush1.msra.mxu0 0.0
        %5430 = vmatprep.subr.mxu0 0.0
        %5431 = vmatpush1.msra.mxu0 0.0
        %5432 = vmatprep.subr.mxu0 0.0
        %5433 = vmatpush1.msra.mxu0 0.0
        %5434 = vmatprep.subr.mxu0 0.0
        %5435 = vmatpush1.msra.mxu0 0.0
        %5436 = vmatprep.subr.mxu0 0.0
        %5437 = vmatpush1.msra.mxu0 0.0
        %5438 = vmatprep.mubr.f32.mxu0 0.0
        %5439 = vmatmul.mubr.f32.gmra.mrb[0].mxu0 %v5155
        %v5440 = vpop.f32.mrb[0].mxu0
        %v5441 = vadd.f32 0.0, %v5440
        %v5442 = vpop.f32.mrb[0].mxu0
        %5443 = vdwg.mxu0
        %v5444 = vadd.f32 %v5159, %v5229
        %v5445 = vxor.u32 %v5444, 2147483648
        %v5446 = vmul.f32 %v5445, 1.442695
        %v5447 = vpow.pop %v5446
        %v5448 = vadd.f32 %v5447, 1.0
        %v5449 = vrcp.pop %v5448
        %v5450 = vmul.f32 1.0, %v5449
        %v5452 = vrot.slane %v5159, 1
        %v5454 = vadd.f32 %v5452, %v5231
        %v5455 = vxor.u32 %v5454, 2147483648
        %v5456 = vmul.f32 %v5455, 1.442695
        %v5457 = vpow.pop %v5456
        %v5458 = vadd.f32 %v5457, 1.0
        %v5459 = vrcp.pop %v5458
        %v5460 = vmul.f32 1.0, %v5459
        %v5461 = vmul.f32 %v5450, %v5300
        %v5462 = vrot.slane %v5159, 2
        %v5464 = vadd.f32 %v5462, %v5461
        %v5465 = vtanh.pop %v5464
        %v5466 = vsub.f32 1.0, %v5460
        %v5467 = vmul.f32 %v5466, %v5465
        %v5468 = vmul.f32 %v5460, %v5129
        %v5469 = vadd.f32 %v5467, %v5468
        %v5470 = vadd.f32 %v5161, %v5370
        %v5471 = vxor.u32 %v5470, 2147483648
        %v5472 = vmul.f32 %v5471, 1.442695
        %v5473 = vpow.pop %v5472
        %v5474 = vadd.f32 %v5473, 1.0
        %v5475 = vrcp.pop %v5474
        %v5476 = vmul.f32 1.0, %v5475
        %v5478 = vrot.slane %v5161, 1
        %v5480 = vadd.f32 %v5478, %v5372
        %v5481 = vxor.u32 %v5480, 2147483648
        %v5482 = vmul.f32 %v5481, 1.442695
        %v5483 = vpow.pop %v5482
        %v5484 = vadd.f32 %v5483, 1.0
        %v5485 = vrcp.pop %v5484
        %v5486 = vmul.f32 1.0, %v5485
        %v5487 = vmul.f32 %v5476, %v5441
        %v5488 = vrot.slane %v5161, 2
        %v5490 = vadd.f32 %v5488, %v5487
        %v5491 = vtanh.pop %v5490
        %v5492 = vsub.f32 1.0, %v5486
        %v5493 = vmul.f32 %v5492, %v5491
        %v5494 = vmul.f32 %v5486, %v5155
        %v5495 = vadd.f32 %v5493, %v5494
        %5496 = vst [vmem:[%s264 + $0xe] sm:$0x1] %v5469
        %5497 = vst [vmem:[%s271 + $0x1] sm:$0x1] %v5495
        %s5498 = scalar_lea.vmem %s230, 31 [#allocation6]
        %v5499 = vld [vmem:[%s5498] ss:$8 sm:$0x7]
        %v5500 = vld [vmem:[%s239] ss:$8 sm:$0x7]
        %5501 = vmatprep.subr.mxu0 %v301
        %5502 = vmatpush1.msra.mxu0 %v300
        %5503 = vmatprep.subr.mxu0 %v304
        %5504 = vmatpush1.msra.mxu0 %v303
        %5505 = vmatprep.subr.mxu0 %v307
        %5506 = vmatpush1.msra.mxu0 %v306
        %5507 = vmatprep.subr.mxu0 %v310
        %5508 = vmatpush1.msra.mxu0 %v309
        %5509 = vmatprep.subr.mxu0 %v313
        %5510 = vmatpush1.msra.mxu0 %v312
        %5511 = vmatprep.subr.mxu0 %v316
        %5512 = vmatpush1.msra.mxu0 %v315
        %5513 = vmatprep.subr.mxu0 %v319
        %5514 = vmatpush1.msra.mxu0 %v318
        %5515 = vmatprep.subr.mxu0 %v322
        %5516 = vmatpush1.msra.mxu0 %v321
        %5517 = vmatprep.subr.mxu0 %v325
        %5518 = vmatpush1.msra.mxu0 %v324
        %5519 = vmatprep.subr.mxu0 %v328
        %5520 = vmatpush1.msra.mxu0 %v327
        %5521 = vmatprep.subr.mxu0 %v331
        %5522 = vmatpush1.msra.mxu0 %v330
        %5523 = vmatprep.subr.mxu0 %v334
        %5524 = vmatpush1.msra.mxu0 %v333
        %5525 = vmatprep.subr.mxu0 %v337
        %5526 = vmatpush1.msra.mxu0 %v336
        %5527 = vmatprep.subr.mxu0 %v340
        %5528 = vmatpush1.msra.mxu0 %v339
        %5529 = vmatprep.subr.mxu0 %v343
        %5530 = vmatpush1.msra.mxu0 %v342
        %5531 = vmatprep.subr.mxu0 %v346
        %5532 = vmatpush1.msra.mxu0 %v345
        %5533 = vmatprep.subr.mxu0 0.0
        %5534 = vmatpush1.msra.mxu0 0.0
        %5535 = vmatprep.subr.mxu0 0.0
        %5536 = vmatpush1.msra.mxu0 0.0
        %5537 = vmatprep.subr.mxu0 0.0
        %5538 = vmatpush1.msra.mxu0 0.0
        %5539 = vmatprep.subr.mxu0 0.0
        %5540 = vmatpush1.msra.mxu0 0.0
        %5541 = vmatprep.subr.mxu0 0.0
        %5542 = vmatpush1.msra.mxu0 0.0
        %5543 = vmatprep.subr.mxu0 0.0
        %5544 = vmatpush1.msra.mxu0 0.0
        %5545 = vmatprep.subr.mxu0 0.0
        %5546 = vmatpush1.msra.mxu0 0.0
        %5547 = vmatprep.subr.mxu0 0.0
        %5548 = vmatpush1.msra.mxu0 0.0
        %5549 = vmatprep.subr.mxu0 0.0
        %5550 = vmatpush1.msra.mxu0 0.0
        %5551 = vmatprep.subr.mxu0 0.0
        %5552 = vmatpush1.msra.mxu0 0.0
        %5553 = vmatprep.subr.mxu0 0.0
        %5554 = vmatpush1.msra.mxu0 0.0
        %5555 = vmatprep.subr.mxu0 0.0
        %5556 = vmatpush1.msra.mxu0 0.0
        %5557 = vmatprep.subr.mxu0 0.0
        %5558 = vmatpush1.msra.mxu0 0.0
        %5559 = vmatprep.subr.mxu0 0.0
        %5560 = vmatpush1.msra.mxu0 0.0
        %5561 = vmatprep.subr.mxu0 0.0
        %5562 = vmatpush1.msra.mxu0 0.0
        %5563 = vmatprep.subr.mxu0 0.0
        %5564 = vmatpush1.msra.mxu0 0.0
        %5565 = vmatprep.mubr.f32.mxu0 0.0
        %5566 = vmatmul.mubr.f32.gmra.mrb[0].mxu0 %v5469
        %v5567 = vpop.f32.mrb[0].mxu0
        %v5568 = vadd.f32 0.0, %v5567
        %v5569 = vpop.f32.mrb[0].mxu0
        %v5570 = vadd.f32 0.0, %v5569
        %5571 = vdwg.mxu0
        %5572 = vmatprep.subr.mxu0 0.0
        %5573 = vmatpush1.msra.mxu0 %v302
        %5574 = vmatprep.subr.mxu0 0.0
        %5575 = vmatpush1.msra.mxu0 %v305
        %5576 = vmatprep.subr.mxu0 0.0
        %5577 = vmatpush1.msra.mxu0 %v308
        %5578 = vmatprep.subr.mxu0 0.0
        %5579 = vmatpush1.msra.mxu0 %v311
        %5580 = vmatprep.subr.mxu0 0.0
        %5581 = vmatpush1.msra.mxu0 %v314
        %5582 = vmatprep.subr.mxu0 0.0
        %5583 = vmatpush1.msra.mxu0 %v317
        %5584 = vmatprep.subr.mxu0 0.0
        %5585 = vmatpush1.msra.mxu0 %v320
        %5586 = vmatprep.subr.mxu0 0.0
        %5587 = vmatpush1.msra.mxu0 %v323
        %5588 = vmatprep.subr.mxu0 0.0
        %5589 = vmatpush1.msra.mxu0 %v326
        %5590 = vmatprep.subr.mxu0 0.0
        %5591 = vmatpush1.msra.mxu0 %v329
        %5592 = vmatprep.subr.mxu0 0.0
        %5593 = vmatpush1.msra.mxu0 %v332
        %5594 = vmatprep.subr.mxu0 0.0
        %5595 = vmatpush1.msra.mxu0 %v335
        %5596 = vmatprep.subr.mxu0 0.0
        %5597 = vmatpush1.msra.mxu0 %v338
        %5598 = vmatprep.subr.mxu0 0.0
        %5599 = vmatpush1.msra.mxu0 %v341
        %5600 = vmatprep.subr.mxu0 0.0
        %5601 = vmatpush1.msra.mxu0 %v344
        %5602 = vmatprep.subr.mxu0 0.0
        %5603 = vmatpush1.msra.mxu0 %v347
        %5604 = vmatprep.subr.mxu0 0.0
        %5605 = vmatpush1.msra.mxu0 0.0
        %5606 = vmatprep.subr.mxu0 0.0
        %5607 = vmatpush1.msra.mxu0 0.0
        %5608 = vmatprep.subr.mxu0 0.0
        %5609 = vmatpush1.msra.mxu0 0.0
        %5610 = vmatprep.subr.mxu0 0.0
        %5611 = vmatpush1.msra.mxu0 0.0
        %5612 = vmatprep.subr.mxu0 0.0
        %5613 = vmatpush1.msra.mxu0 0.0
        %5614 = vmatprep.subr.mxu0 0.0
        %5615 = vmatpush1.msra.mxu0 0.0
        %5616 = vmatprep.subr.mxu0 0.0
        %5617 = vmatpush1.msra.mxu0 0.0
        %5618 = vmatprep.subr.mxu0 0.0
        %5619 = vmatpush1.msra.mxu0 0.0
        %5620 = vmatprep.subr.mxu0 0.0
        %5621 = vmatpush1.msra.mxu0 0.0
        %5622 = vmatprep.subr.mxu0 0.0
        %5623 = vmatpush1.msra.mxu0 0.0
        %5624 = vmatprep.subr.mxu0 0.0
        %5625 = vmatpush1.msra.mxu0 0.0
        %5626 = vmatprep.subr.mxu0 0.0
        %5627 = vmatpush1.msra.mxu0 0.0
        %5628 = vmatprep.subr.mxu0 0.0
        %5629 = vmatpush1.msra.mxu0 0.0
        %5630 = vmatprep.subr.mxu0 0.0
        %5631 = vmatpush1.msra.mxu0 0.0
        %5632 = vmatprep.subr.mxu0 0.0
        %5633 = vmatpush1.msra.mxu0 0.0
        %5634 = vmatprep.subr.mxu0 0.0
        %5635 = vmatpush1.msra.mxu0 0.0
        %5636 = vmatprep.mubr.f32.mxu0 0.0
        %5637 = vmatmul.mubr.f32.gmra.mrb[0].mxu0 %v5469
        %v5638 = vpop.f32.mrb[0].mxu0
        %v5639 = vadd.f32 0.0, %v5638
        %v5640 = vpop.f32.mrb[0].mxu0
        %5641 = vdwg.mxu0
        %5642 = vmatprep.subr.mxu0 %v350
        %5643 = vmatpush1.msra.mxu0 %v349
        %5644 = vmatprep.subr.mxu0 %v353
        %5645 = vmatpush1.msra.mxu0 %v352
        %5646 = vmatprep.subr.mxu0 %v356
        %5647 = vmatpush1.msra.mxu0 %v355
        %5648 = vmatprep.subr.mxu0 %v359
        %5649 = vmatpush1.msra.mxu0 %v358
        %5650 = vmatprep.subr.mxu0 %v362
        %5651 = vmatpush1.msra.mxu0 %v361
        %5652 = vmatprep.subr.mxu0 %v365
        %5653 = vmatpush1.msra.mxu0 %v364
        %5654 = vmatprep.subr.mxu0 %v368
        %5655 = vmatpush1.msra.mxu0 %v367
        %5656 = vmatprep.subr.mxu0 %v371
        %5657 = vmatpush1.msra.mxu0 %v370
        %5658 = vmatprep.subr.mxu0 %v374
        %5659 = vmatpush1.msra.mxu0 %v373
        %5660 = vmatprep.subr.mxu0 %v377
        %5661 = vmatpush1.msra.mxu0 %v376
        %5662 = vmatprep.subr.mxu0 %v380
        %5663 = vmatpush1.msra.mxu0 %v379
        %5664 = vmatprep.subr.mxu0 %v383
        %5665 = vmatpush1.msra.mxu0 %v382
        %5666 = vmatprep.subr.mxu0 %v386
        %5667 = vmatpush1.msra.mxu0 %v385
        %5668 = vmatprep.subr.mxu0 %v389
        %5669 = vmatpush1.msra.mxu0 %v388
        %5670 = vmatprep.subr.mxu0 %v392
        %5671 = vmatpush1.msra.mxu0 %v391
        %5672 = vmatprep.subr.mxu0 %v395
        %5673 = vmatpush1.msra.mxu0 %v394
        %5674 = vmatprep.subr.mxu0 0.0
        %5675 = vmatpush1.msra.mxu0 0.0
        %5676 = vmatprep.subr.mxu0 0.0
        %5677 = vmatpush1.msra.mxu0 0.0
        %5678 = vmatprep.subr.mxu0 0.0
        %5679 = vmatpush1.msra.mxu0 0.0
        %5680 = vmatprep.subr.mxu0 0.0
        %5681 = vmatpush1.msra.mxu0 0.0
        %5682 = vmatprep.subr.mxu0 0.0
        %5683 = vmatpush1.msra.mxu0 0.0
        %5684 = vmatprep.subr.mxu0 0.0
        %5685 = vmatpush1.msra.mxu0 0.0
        %5686 = vmatprep.subr.mxu0 0.0
        %5687 = vmatpush1.msra.mxu0 0.0
        %5688 = vmatprep.subr.mxu0 0.0
        %5689 = vmatpush1.msra.mxu0 0.0
        %5690 = vmatprep.subr.mxu0 0.0
        %5691 = vmatpush1.msra.mxu0 0.0
        %5692 = vmatprep.subr.mxu0 0.0
        %5693 = vmatpush1.msra.mxu0 0.0
        %5694 = vmatprep.subr.mxu0 0.0
        %5695 = vmatpush1.msra.mxu0 0.0
        %5696 = vmatprep.subr.mxu0 0.0
        %5697 = vmatpush1.msra.mxu0 0.0
        %5698 = vmatprep.subr.mxu0 0.0
        %5699 = vmatpush1.msra.mxu0 0.0
        %5700 = vmatprep.subr.mxu0 0.0
        %5701 = vmatpush1.msra.mxu0 0.0
        %5702 = vmatprep.subr.mxu0 0.0
        %5703 = vmatpush1.msra.mxu0 0.0
        %5704 = vmatprep.subr.mxu0 0.0
        %5705 = vmatpush1.msra.mxu0 0.0
        %5706 = vmatprep.mubr.f32.mxu0 0.0
        %5707 = vmatmul.mubr.f32.gmra.mrb[0].mxu0 %v5495
        %v5708 = vpop.f32.mrb[0].mxu0
        %v5709 = vadd.f32 0.0, %v5708
        %v5710 = vpop.f32.mrb[0].mxu0
        %v5711 = vadd.f32 0.0, %v5710
        %5712 = vdwg.mxu0
        %5713 = vmatprep.subr.mxu0 0.0
        %5714 = vmatpush1.msra.mxu0 %v351
        %5715 = vmatprep.subr.mxu0 0.0
        %5716 = vmatpush1.msra.mxu0 %v354
        %5717 = vmatprep.subr.mxu0 0.0
        %5718 = vmatpush1.msra.mxu0 %v357
        %5719 = vmatprep.subr.mxu0 0.0
        %5720 = vmatpush1.msra.mxu0 %v360
        %5721 = vmatprep.subr.mxu0 0.0
        %5722 = vmatpush1.msra.mxu0 %v363
        %5723 = vmatprep.subr.mxu0 0.0
        %5724 = vmatpush1.msra.mxu0 %v366
        %5725 = vmatprep.subr.mxu0 0.0
        %5726 = vmatpush1.msra.mxu0 %v369
        %5727 = vmatprep.subr.mxu0 0.0
        %5728 = vmatpush1.msra.mxu0 %v372
        %5729 = vmatprep.subr.mxu0 0.0
        %5730 = vmatpush1.msra.mxu0 %v375
        %5731 = vmatprep.subr.mxu0 0.0
        %5732 = vmatpush1.msra.mxu0 %v378
        %5733 = vmatprep.subr.mxu0 0.0
        %5734 = vmatpush1.msra.mxu0 %v381
        %5735 = vmatprep.subr.mxu0 0.0
        %5736 = vmatpush1.msra.mxu0 %v384
        %5737 = vmatprep.subr.mxu0 0.0
        %5738 = vmatpush1.msra.mxu0 %v387
        %5739 = vmatprep.subr.mxu0 0.0
        %5740 = vmatpush1.msra.mxu0 %v390
        %5741 = vmatprep.subr.mxu0 0.0
        %5742 = vmatpush1.msra.mxu0 %v393
        %5743 = vmatprep.subr.mxu0 0.0
        %5744 = vmatpush1.msra.mxu0 %v396
        %5745 = vmatprep.subr.mxu0 0.0
        %5746 = vmatpush1.msra.mxu0 0.0
        %5747 = vmatprep.subr.mxu0 0.0
        %5748 = vmatpush1.msra.mxu0 0.0
        %5749 = vmatprep.subr.mxu0 0.0
        %5750 = vmatpush1.msra.mxu0 0.0
        %5751 = vmatprep.subr.mxu0 0.0
        %5752 = vmatpush1.msra.mxu0 0.0
        %5753 = vmatprep.subr.mxu0 0.0
        %5754 = vmatpush1.msra.mxu0 0.0
        %5755 = vmatprep.subr.mxu0 0.0
        %5756 = vmatpush1.msra.mxu0 0.0
        %5757 = vmatprep.subr.mxu0 0.0
        %5758 = vmatpush1.msra.mxu0 0.0
        %5759 = vmatprep.subr.mxu0 0.0
        %5760 = vmatpush1.msra.mxu0 0.0
        %5761 = vmatprep.subr.mxu0 0.0
        %5762 = vmatpush1.msra.mxu0 0.0
        %5763 = vmatprep.subr.mxu0 0.0
        %5764 = vmatpush1.msra.mxu0 0.0
        %5765 = vmatprep.subr.mxu0 0.0
        %5766 = vmatpush1.msra.mxu0 0.0
        %5767 = vmatprep.subr.mxu0 0.0
        %5768 = vmatpush1.msra.mxu0 0.0
        %5769 = vmatprep.subr.mxu0 0.0
        %5770 = vmatpush1.msra.mxu0 0.0
        %5771 = vmatprep.subr.mxu0 0.0
        %5772 = vmatpush1.msra.mxu0 0.0
        %5773 = vmatprep.subr.mxu0 0.0
        %5774 = vmatpush1.msra.mxu0 0.0
        %5775 = vmatprep.subr.mxu0 0.0
        %5776 = vmatpush1.msra.mxu0 0.0
        %5777 = vmatprep.mubr.f32.mxu0 0.0
        %5778 = vmatmul.mubr.f32.gmra.mrb[0].mxu0 %v5495
        %v5779 = vpop.f32.mrb[0].mxu0
        %v5780 = vadd.f32 0.0, %v5779
        %v5781 = vpop.f32.mrb[0].mxu0
        %5782 = vdwg.mxu0
        %v5783 = vadd.f32 %v5499, %v5568
        %v5784 = vxor.u32 %v5783, 2147483648
        %v5785 = vmul.f32 %v5784, 1.442695
        %v5786 = vpow.pop %v5785
        %v5787 = vadd.f32 %v5786, 1.0
        %v5788 = vrcp.pop %v5787
        %v5789 = vmul.f32 1.0, %v5788
        %v5791 = vrot.slane %v5499, 1
        %v5793 = vadd.f32 %v5791, %v5570
        %v5794 = vxor.u32 %v5793, 2147483648
        %v5795 = vmul.f32 %v5794, 1.442695
        %v5796 = vpow.pop %v5795
        %v5797 = vadd.f32 %v5796, 1.0
        %v5798 = vrcp.pop %v5797
        %v5799 = vmul.f32 1.0, %v5798
        %v5800 = vmul.f32 %v5789, %v5639
        %v5801 = vrot.slane %v5499, 2
        %v5803 = vadd.f32 %v5801, %v5800
        %v5804 = vtanh.pop %v5803
        %v5805 = vsub.f32 1.0, %v5799
        %v5806 = vmul.f32 %v5805, %v5804
        %v5807 = vmul.f32 %v5799, %v5469
        %v5808 = vadd.f32 %v5806, %v5807
        %v5809 = vadd.f32 %v5500, %v5709
        %v5810 = vxor.u32 %v5809, 2147483648
        %v5811 = vmul.f32 %v5810, 1.442695
        %v5812 = vpow.pop %v5811
        %v5813 = vadd.f32 %v5812, 1.0
        %v5814 = vrcp.pop %v5813
        %v5815 = vmul.f32 1.0, %v5814
        %v5817 = vrot.slane %v5500, 1
        %v5819 = vadd.f32 %v5817, %v5711
        %v5820 = vxor.u32 %v5819, 2147483648
        %v5821 = vmul.f32 %v5820, 1.442695
        %v5822 = vpow.pop %v5821
        %v5823 = vadd.f32 %v5822, 1.0
        %v5824 = vrcp.pop %v5823
        %v5825 = vmul.f32 1.0, %v5824
        %v5826 = vmul.f32 %v5815, %v5780
        %v5827 = vrot.slane %v5500, 2
        %v5829 = vadd.f32 %v5827, %v5826
        %v5830 = vtanh.pop %v5829
        %v5831 = vsub.f32 1.0, %v5825
        %v5832 = vmul.f32 %v5831, %v5830
        %v5833 = vmul.f32 %v5825, %v5495
        %v5834 = vadd.f32 %v5832, %v5833
        %5835 = vst [vmem:[%s264 + $0xf] sm:$0x1] %v5808
        %5836 = vst [vmem:[%s271] sm:$0x1] %v5834
        %5837 = vst [vmem:[#allocation3] sm:$0x1] %v5808
        %5838 = vst [vmem:[#allocation4] sm:$0x1] %v5834
        %s5839 = sand.u32 %s108, 1
        %s5840 = scalar_lea.sflag [#allocation8], %s5839
        %s5841 = sand.u32 %s108, 1
        %s5842 = smul.addr %s5841, 16
        %s5843 = scalar_lea.vmem [#allocation11], %s5842
        %s5844 = sand.u32 %s138, 1
        %s5845 = scalar_lea.sflag [#allocation13], %s5844
        %s5846 = sand.u32 %s138, 1
        %s5847 = smul.addr %s5846, 16
        %s5848 = scalar_lea.vmem [#allocation12], %s5847
        // Predicated region
        $region45: #{norm_bigru_forward.7} parent=27 // pred_check
          %p5849 = pneg %p118
        $region46: #{norm_bigru_forward.7} parent=27 // pred_check_branch
          %5851 = sbr.rel (%p5849) target = $region48
        $region47: #{norm_bigru_forward.7} parent=27 // pred_region
          %s5852 = smul.u32 2, %s33
          %s5854 = ssub.s32 256, 256
          %5855 = vsyncadd %s5840, %s5854
          %s5856 = smul.addr %s32, 2
          %s5857 = sadd.s32 %s5852, %s5856
          %s5858 = smul.addr %s5857, 128
          %s5859 = scalar_lea.hbm %s3, %s5858
          %s5860 = sshll.u32 %s5843, 4
          %s5861 = int_to_ptr.vmem [resolvable:$true] %s5860
          %5866 = dma.vmem_to_hbm [thread:$0]  %s5861, 256, %s5859, %s5840, 128, 128, 8
        $region48: #{norm_bigru_forward.7} parent=27 // pred_fallthru
          _
        // Predicated region
        $region49: #{norm_bigru_forward.7} parent=27 // pred_check
          %p5867 = pneg %p148
        $region50: #{norm_bigru_forward.7} parent=27 // pred_check_branch
          %5869 = sbr.rel (%p5867) target = $region52
        $region51: #{norm_bigru_forward.7} parent=27 // pred_region
          %s5870 = ssub.s32 0, %s33
          %s5871 = smul.u32 2, %s5870
          %s5873 = ssub.s32 256, 256
          %5874 = vsyncadd %s5845, %s5873
          %s5875 = smul.addr %s32, 2
          %s5876 = sadd.s32 %s5871, %s5875
          %s5877 = smul.addr %s5876, 128
          %s5878 = scalar_lea.hbm %s4, %s5877
          %s5879 = sshll.u32 %s5848, 4
          %s5880 = int_to_ptr.vmem [resolvable:$true] %s5879
          %5885 = dma.vmem_to_hbm [thread:$0]  %s5880, 256, %s5878, %s5845, 128, 128, 8
        $region52: #{norm_bigru_forward.7} parent=27 // pred_fallthru
          _
      $region28: #{norm_bigru_forward.7} parent=5 // pred_fallthru
        _
      %p5886 = scmp.le.s32.totalorder 2, %s23
      // Predicated region
      $region53: #{norm_bigru_forward.7} parent=5 // pred_check
        %p5887 = pneg %p5886
      $region54: #{norm_bigru_forward.7} parent=5 // pred_check_branch
        %5889 = sbr.rel (%p5887) target = $region56
      $region55: #{norm_bigru_forward.7} parent=5 // pred_region
        %s5890 = ssub.s32 %s23, 2
        // Predicated region
        $region57: #{norm_bigru_forward.7} parent=55 // pred_check
          %p5891 = pneg %p124
        $region58: #{norm_bigru_forward.7} parent=55 // pred_check_branch
          %5893 = sbr.rel (%p5891) target = $region60
        $region59: #{norm_bigru_forward.7} parent=55 // pred_region
          %s5894 = sand.u32 %s109, 1
          %s5895 = scalar_lea.sflag [#allocation8], %s5894
          %s5896 = sand.u32 %s109, 1
          %s5897 = smul.addr %s5896, 16
          %s5898 = scalar_lea.vmem [#allocation11], %s5897
          %5899 = dma.done %s5895, 256
        $region60: #{norm_bigru_forward.7} parent=55 // pred_fallthru
          _
        // Predicated region
        $region61: #{norm_bigru_forward.7} parent=55 // pred_check
          %p5900 = pneg %p154
        $region62: #{norm_bigru_forward.7} parent=55 // pred_check_branch
          %5902 = sbr.rel (%p5900) target = $region64
        $region63: #{norm_bigru_forward.7} parent=55 // pred_region
          %s5903 = sand.u32 %s139, 1
          %s5904 = scalar_lea.sflag [#allocation13], %s5903
          %s5905 = sand.u32 %s139, 1
          %s5906 = smul.addr %s5905, 16
          %s5907 = scalar_lea.vmem [#allocation12], %s5906
          %5908 = dma.done %s5904, 256
        $region64: #{norm_bigru_forward.7} parent=55 // pred_fallthru
          _
      $region56: #{norm_bigru_forward.7} parent=5 // pred_fallthru
        _
    $region6: #{norm_bigru_forward.7} parent=1 // loop_footer
      %s27 = sadd.s32 1, %s23
    $region7: #{norm_bigru_forward.7} parent=1 // loop_footer_branch
      %22 = sbr.rel target = $region3
    $region8: #{norm_bigru_forward.7} parent=1 // loop_exit
      _
    %5909 = vsyncpa [#allocation7], 1
    %s5910 = scalar_lea.sflag [#allocation7], 1
    %5911 = vsyncpa %s5910, 1
    %5912 = vsyncpa [#allocation10], 1
    %s5913 = scalar_lea.sflag [#allocation10], 1
    %5914 = vsyncpa %s5913, 1
    %5915 = vsyncpa [#allocation8], 1
    %s5916 = scalar_lea.sflag [#allocation8], 1
    %5917 = vsyncpa %s5916, 1
    %5918 = vsyncpa [#allocation13], 1
    %s5919 = scalar_lea.sflag [#allocation13], 1
    %5920 = vsyncpa %s5919, 1
  %5921 = vsyncmov [#allocation5]
  %s5922 = vpop.sfrf %5921
  %p5923 = scmp.eq.s32.totalorder %s5922, 0
  %p5924 = pneg %p5923
  %5926 = shalt.err (%p5924)

</llo_original>
